<compile_context>
chip_gen: v5e
topology: v5e:2x2
jax: 0.10.0
libtpu: 0.0.40
codegen_flags: <defaults>
</compile_context>

<pallas_src>
import functools

import jax
import jax.numpy as jnp
import numpy as np
from jax.experimental import pallas as pl
from jax.experimental.pallas import tpu as pltpu

EPS = 1e-5


def _round_up(x, n):
    return -(-x // n) * n


# ------------------------------ Pallas kernel -------------------------------
def _up_block_kernel(x_ref, w1_ref, g1_ref, bt1_ref,
                     w2_ref, g2_ref, bt2_ref, mask_ref,
                     o_ref, col1_ref, col2_ref, y1_ref, *,
                     margin, l_pad, shifts, cin_p, cmid, cmid_p, m_count):
    """Fused DoubleConv (conv+BN+ReLU twice) on flat channel-first activations.

    x_ref   : (cin_p, LB)        zero-margined, halo-padded, flattened input
    w1_ref  : (cmid, 27*cin_p)   im2col-ordered weights, layer 1
    w2_ref  : (cout, 27*cmid_p)  im2col-ordered weights, layer 2
    g*/bt*  : (C, 1)             BN gamma / beta
    mask    : (1, L)             1.0 at valid conv-output (interior) positions
    o_ref   : (cout, L)          output on padded flat grid (halos = don't care)
    col1/2  : (27*C_p, L)        VMEM im2col scratch (one deep matmul / layer)
    y1_ref  : (cmid_p, LB)       layer-1 activation, re-padded for conv 2
    """
    mask = mask_ref[...]                                        # (1, L)
    inv_m = 1.0 / m_count

    # ---------- phase 1a: build im2col for conv1 (no matmuls interleaved) ----
    for t, sh in enumerate(shifts):                             # 27 static taps
        start = margin + sh                                     # static offset
        col1_ref[t * cin_p:(t + 1) * cin_p, :] = x_ref[:, start:start + l_pad]

    # ---------- phase 1b: single deep MXU matmul + BN + ReLU -----------------
    # (conv bias cancelled exactly by the BN mean subtraction -> omitted)
    acc1 = jnp.dot(w1_ref[...], col1_ref[...],
                   preferred_element_type=jnp.float32)          # (cmid, L)
    mean1 = jnp.sum(acc1 * mask, axis=1, keepdims=True) * inv_m
    cen1 = (acc1 - mean1) * mask
    var1 = jnp.sum(cen1 * cen1, axis=1, keepdims=True) * inv_m
    scale1 = jax.lax.rsqrt(var1 + EPS) * g1_ref[...]            # (cmid, 1)
    # trailing *mask keeps halo positions exactly 0 (beta may be > 0 there);
    # conv2 relies on zero halos when reading its shifted taps.
    y1 = jnp.maximum(cen1 * scale1 + bt1_ref[...], 0.0) * mask  # (cmid, L)

    # re-pad for conv2: sublane-pad channels to cmid_p (aligned stores) and
    # zero ONLY the lane margins of the halo buffer.
    pad_rows = cmid_p - cmid
    if pad_rows:
        y1 = jnp.concatenate(
            [y1, jnp.zeros((pad_rows, l_pad), jnp.float32)], axis=0)
    y1_ref[:, :margin] = jnp.zeros((cmid_p, margin), jnp.float32)
    y1_ref[:, margin:margin + l_pad] = y1
    y1_ref[:, margin + l_pad:] = jnp.zeros(
        (cmid_p, y1_ref.shape[1] - margin - l_pad), jnp.float32)

    # ---------- phase 2a: im2col for conv2 ------------------------------------
    for t, sh in enumerate(shifts):
        start = margin + sh
        col2_ref[t * cmid_p:(t + 1) * cmid_p, :] = y1_ref[:, start:start + l_pad]

    # ---------- phase 2b: single deep MXU matmul + BN + ReLU ------------------
    acc2 = jnp.dot(w2_ref[...], col2_ref[...],
                   preferred_element_type=jnp.float32)          # (cout, L)
    mean2 = jnp.sum(acc2 * mask, axis=1, keepdims=True) * inv_m
    cen2 = (acc2 - mean2) * mask
    var2 = jnp.sum(cen2 * cen2, axis=1, keepdims=True) * inv_m
    scale2 = jax.lax.rsqrt(var2 + EPS) * g2_ref[...]
    o_ref[...] = jnp.maximum(cen2 * scale2 + bt2_ref[...], 0.0)


# ------------------------------ glue helpers --------------------------------
def _upsample_linear_axis(x, axis, out_size):
    """1-D linear interpolation with align_corners=True semantics."""
    in_size = x.shape[axis]
    if in_size == 1:
        return jnp.take(x, jnp.zeros((out_size,), jnp.int32), axis=axis)
    pos = jnp.arange(out_size, dtype=jnp.float32) * ((in_size - 1) / (out_size - 1))
    lo = jnp.floor(pos).astype(jnp.int32)
    hi = jnp.minimum(lo + 1, in_size - 1)
    frac = pos - lo.astype(jnp.float32)
    xlo = jnp.take(x, lo, axis=axis)
    xhi = jnp.take(x, hi, axis=axis)
    shape = [1] * x.ndim
    shape[axis] = out_size
    frac = frac.reshape(shape)
    return xlo * (1.0 - frac) + xhi * frac


def upsample_trilinear_x2_align_corners(x_ncdhw):
    n, c, d, h, w = x_ncdhw.shape
    x = _upsample_linear_axis(x_ncdhw, 2, 2 * d)
    x = _upsample_linear_axis(x, 3, 2 * h)
    x = _upsample_linear_axis(x, 4, 2 * w)
    return x


# -------------------------------- Up.forward --------------------------------
def up_forward(params, x1_ncdhw, x2_ncdhw):
    # ---- upsample + pad to the skip-connection spatial size (tiny XLA ops) --
    x1 = upsample_trilinear_x2_align_corners(x1_ncdhw)
    dd = x2_ncdhw.shape[2] - x1.shape[2]
    dh = x2_ncdhw.shape[3] - x1.shape[3]
    dw = x2_ncdhw.shape[4] - x1.shape[4]
    x1 = jnp.pad(x1, ((0, 0), (0, 0),
                      (dd // 2, dd - dd // 2),
                      (dh // 2, dh - dh // 2),
                      (dw // 2, dw - dw // 2)))

    n, c2, d, h, w = x2_ncdhw.shape
    c1 = x1.shape[1]
    cin = c1 + c2
    cmid = params["w1"].shape[0]
    cout = params["w2"].shape[0]
    cin_p = _round_up(cin, 8)                 # sublane-aligned channel counts
    cmid_p = _round_up(cmid, 8)

    dp, hp, wp = d + 2, h + 2, w + 2
    flat_len = n * dp * hp * wp               # padded flat grid size
    l_pad = _round_up(flat_len, 128)          # lane-dense, 128-aligned L
    m_count = n * d * h * w                   # number of valid conv outputs
    smax = hp * wp + wp + 1                   # max |tap shift| on the flat grid
    margin = _round_up(smax, 128)             # aligned lane margin (>= smax)
    lb = margin + l_pad + margin

    # ---- flat channel-first, halo-padded input buffer (cin_p, lb) -----------
    x = jnp.concatenate([x2_ncdhw, x1], axis=1)                    # (N,Cin,D,H,W)
    xp = jnp.pad(x, ((0, 0), (0, 0), (1, 1), (1, 1), (1, 1)))      # conv halo
    xcf = jnp.transpose(xp, (1, 0, 2, 3, 4)).reshape(cin, flat_len)
    x_buf = jnp.pad(xcf, ((0, cin_p - cin),
                          (margin, lb - margin - flat_len)))

    # interior mask (1.0 where the conv output is valid), lane-padded to l_pad
    mk = np.zeros((n, dp, hp, wp), np.float32)
    mk[:, 1:-1, 1:-1, 1:-1] = 1.0
    mk = mk.reshape(1, flat_len)
    mask = jnp.asarray(np.pad(mk, ((0, 0), (0, l_pad - flat_len))))

    # im2col-ordered weights (tap-major, channel-padded): OIDHW -> (O, 27*C_p)
    def pack_w(wt, c_real, c_pad):
        o = wt.shape[0]
        wt = jnp.transpose(wt, (0, 2, 3, 4, 1))                    # (O,kd,kh,kw,I)
        wt = jnp.pad(wt, ((0, 0), (0, 0), (0, 0), (0, 0), (0, c_pad - c_real)))
        return wt.reshape(o, 27 * c_pad)

    w1 = pack_w(params["w1"], cin, cin_p)      # (cmid, 27*cin_p)
    w2 = pack_w(params["w2"], cmid, cmid_p)    # (cout, 27*cmid_p)
    # NOTE: conv biases b1/b2 are cancelled exactly by training-mode BN mean
    # subtraction, so they are not passed to the kernel.
    g1 = params["g1"].reshape(cmid, 1)
    bt1 = params["bt1"].reshape(cmid, 1)
    g2 = params["g2"].reshape(cout, 1)
    bt2 = params["bt2"].reshape(cout, 1)

    # per-tap flat-index shifts, same tap order as the weight packing
    shifts = tuple((kd - 1) * hp * wp + (kh - 1) * wp + (kw - 1)
                   for kd in range(3) for kh in range(3) for kw in range(3))

    kernel = functools.partial(_up_block_kernel, margin=margin, l_pad=l_pad,
                               shifts=shifts, cin_p=cin_p, cmid=cmid,
                               cmid_p=cmid_p, m_count=float(m_count))

    out_flat = pl.pallas_call(
        kernel,
        out_shape=jax.ShapeDtypeStruct((cout, l_pad), jnp.float32),
        grid=(1,),
        in_specs=[
            pl.BlockSpec((cin_p, lb), lambda i: (0, 0)),
            pl.BlockSpec((cmid, 27 * cin_p), lambda i: (0, 0)),
            pl.BlockSpec((cmid, 1), lambda i: (0, 0)),
            pl.BlockSpec((cmid, 1), lambda i: (0, 0)),
            pl.BlockSpec((cout, 27 * cmid_p), lambda i: (0, 0)),
            pl.BlockSpec((cout, 1), lambda i: (0, 0)),
            pl.BlockSpec((cout, 1), lambda i: (0, 0)),
            pl.BlockSpec((1, l_pad), lambda i: (0, 0)),
        ],
        out_specs=pl.BlockSpec((cout, l_pad), lambda i: (0, 0)),
        scratch_shapes=[
            pltpu.VMEM((27 * cin_p, l_pad), jnp.float32),   # im2col, conv1
            pltpu.VMEM((27 * cmid_p, l_pad), jnp.float32),  # im2col, conv2
            pltpu.VMEM((cmid_p, lb), jnp.float32),          # re-padded y1
        ],
        compiler_params=pltpu.CompilerParams(
            dimension_semantics=("arbitrary",)),
    )(x_buf, w1, g1, bt1, w2, g2, bt2, mask)

    # (Cout, L) -> crop lane padding + interior -> NCDHW
    y = out_flat[:, :flat_len].reshape(cout, n, dp, hp, wp)[:, :, 1:-1, 1:-1, 1:-1]
    return jnp.transpose(y, (1, 0, 2, 3, 4))


# ----------------------------- pure-JAX reference ----------------------------
def ref_up_forward(params, x1, x2):
    def conv_bn_relu_ref(x, w, b, g, bt):
        y = jax.lax.conv_general_dilated(
            x, w, (1, 1, 1), ((1, 1), (1, 1), (1, 1)),
            dimension_numbers=("NCDHW", "OIDHW", "NCDHW"))
        y = y + b[None, :, None, None, None]
        mean = jnp.mean(y, axis=(0, 2, 3, 4), keepdims=True)
        var = jnp.mean((y - mean) ** 2, axis=(0, 2, 3, 4), keepdims=True)
        yn = (y - mean) * jax.lax.rsqrt(var + EPS)
        return jnp.maximum(
            yn * g[None, :, None, None, None] + bt[None, :, None, None, None], 0.0)

    x1u = upsample_trilinear_x2_align_corners(x1)
    dd = x2.shape[2] - x1u.shape[2]
    dh = x2.shape[3] - x1u.shape[3]
    dw = x2.shape[4] - x1u.shape[4]
    x1u = jnp.pad(x1u, ((0, 0), (0, 0),
                        (dd // 2, dd - dd // 2),
                        (dh // 2, dh - dh // 2),
                        (dw // 2, dw - dw // 2)))
    x = jnp.concatenate([x2, x1u], axis=1)
    hh = conv_bn_relu_ref(x, params["w1"], params["b1"], params["g1"], params["bt1"])
    hh = conv_bn_relu_ref(hh, params["w2"], params["b2"], params["g2"], params["bt2"])
    return hh


# ----------------------------------- main ------------------------------------
if __name__ == "__main__":
    key = jax.random.PRNGKey(0)
    ks = jax.random.split(key, 10)

    # Up(in_channels=8, out_channels=4, trilinear=True)
    in_channels, out_channels = 8, 4
    mid_channels = in_channels // 2  # DoubleConv mid = in_channels // 2

    # deterministic synthetic parameters (PyTorch conv weight layout OIDHW)
    params = {
        "w1": 0.1 * jax.random.normal(ks[0], (mid_channels, in_channels, 3, 3, 3), jnp.float32),
        "b1": 0.1 * jax.random.normal(ks[1], (mid_channels,), jnp.float32),
        "g1": 1.0 + 0.1 * jax.random.normal(ks[2], (mid_channels,), jnp.float32),
        "bt1": 0.1 * jax.random.normal(ks[3], (mid_channels,), jnp.float32),
        "w2": 0.1 * jax.random.normal(ks[4], (out_channels, mid_channels, 3, 3, 3), jnp.float32),
        "b2": 0.1 * jax.random.normal(ks[5], (out_channels,), jnp.float32),
        "g2": 1.0 + 0.1 * jax.random.normal(ks[6], (out_channels,), jnp.float32),
        "bt2": 0.1 * jax.random.normal(ks[7], (out_channels,), jnp.float32),
    }

    # x1: low-res feature map (gets upsampled x2); x2: skip connection.
    x1 = jax.random.normal(ks[8], (2, 4, 4, 4, 4), jnp.float32)   # (N, C=4, D, H, W)
    x2 = jax.random.normal(ks[9], (2, 4, 8, 8, 8), jnp.float32)   # (N, C=4, 2D, 2H, 2W)

    out = jax.jit(up_forward)(params, x1, x2)
    out = jax.block_until_ready(out)

    ref = jax.block_until_ready(ref_up_forward(params, x1, x2))
    np.testing.assert_allclose(np.asarray(out), np.asarray(ref), rtol=1e-3, atol=1e-3)
    assert out.shape == (2, out_channels, 8, 8, 8)

    print("KERNEL_OK")
</pallas_src>

<mosaic_0001>
module attributes {stable_mosaic.version = 11 : i64} {
  func.func @_up_block_kernel(%arg0: i32, %arg1: memref<8x2304xf32, #tpu.memory_space<vmem>>, %arg2: memref<4x216xf32, #tpu.memory_space<vmem>>, %arg3: memref<4x1xf32, #tpu.memory_space<vmem>>, %arg4: memref<4x1xf32, #tpu.memory_space<vmem>>, %arg5: memref<4x216xf32, #tpu.memory_space<vmem>>, %arg6: memref<4x1xf32, #tpu.memory_space<vmem>>, %arg7: memref<4x1xf32, #tpu.memory_space<vmem>>, %arg8: memref<1x2048xf32, #tpu.memory_space<vmem>>, %arg9: memref<4x2048xf32, #tpu.memory_space<vmem>>, %arg10: memref<216x2048xf32, #tpu.memory_space<vmem>>, %arg11: memref<216x2048xf32, #tpu.memory_space<vmem>>, %arg12: memref<8x2304xf32, #tpu.memory_space<vmem>>) attributes {dimension_semantics = [#tpu.dimension_semantics<arbitrary>], iteration_bounds = array<i64: 1>, scalar_prefetch = 0 : i64, scratch_operands = 3 : i64, tpu.core_type = #tpu.core_type<tc>, window_params = [{pipeline_mode = #tpu.pipeline_mode<synchronous>, transform_indices = @transform_0, window_bounds = array<i64: 8, 2304>}, {pipeline_mode = #tpu.pipeline_mode<synchronous>, transform_indices = @transform_1, window_bounds = array<i64: 4, 216>}, {pipeline_mode = #tpu.pipeline_mode<synchronous>, transform_indices = @transform_2, window_bounds = array<i64: 4, 1>}, {pipeline_mode = #tpu.pipeline_mode<synchronous>, transform_indices = @transform_3, window_bounds = array<i64: 4, 1>}, {pipeline_mode = #tpu.pipeline_mode<synchronous>, transform_indices = @transform_4, window_bounds = array<i64: 4, 216>}, {pipeline_mode = #tpu.pipeline_mode<synchronous>, transform_indices = @transform_5, window_bounds = array<i64: 4, 1>}, {pipeline_mode = #tpu.pipeline_mode<synchronous>, transform_indices = @transform_6, window_bounds = array<i64: 4, 1>}, {pipeline_mode = #tpu.pipeline_mode<synchronous>, transform_indices = @transform_7, window_bounds = array<i64: 1, 2048>}, {pipeline_mode = #tpu.pipeline_mode<synchronous>, transform_indices = @transform_8, window_bounds = array<i64: 4, 2048>}]} {
    %c0 = arith.constant 0 : index
    %c0_0 = arith.constant 0 : index
    %0 = vector.load %arg8[%c0, %c0_0] : memref<1x2048xf32, #tpu.memory_space<vmem>>, vector<1x2048xf32>
    %c0_1 = arith.constant 0 : index
    %c17 = arith.constant 17 : index
    %1 = vector.load %arg1[%c0_1, %c17] : memref<8x2304xf32, #tpu.memory_space<vmem>>, vector<8x2048xf32>
    %c0_2 = arith.constant 0 : index
    %c0_3 = arith.constant 0 : index
    %2 = vector.load %arg10[%c0_2, %c0_3] : memref<216x2048xf32, #tpu.memory_space<vmem>>, vector<8x2048xf32>
    tpu.vector_store %arg10[%c0_2, %c0_3], %1 {strides = array<i32>} : memref<216x2048xf32, #tpu.memory_space<vmem>>, vector<8x2048xf32>,
    %c0_4 = arith.constant 0 : index
    %c18 = arith.constant 18 : index
    %3 = vector.load %arg1[%c0_4, %c18] : memref<8x2304xf32, #tpu.memory_space<vmem>>, vector<8x2048xf32>
    %c8 = arith.constant 8 : index
    %c0_5 = arith.constant 0 : index
    %4 = vector.load %arg10[%c8, %c0_5] : memref<216x2048xf32, #tpu.memory_space<vmem>>, vector<8x2048xf32>
    tpu.vector_store %arg10[%c8, %c0_5], %3 {strides = array<i32>} : memref<216x2048xf32, #tpu.memory_space<vmem>>, vector<8x2048xf32>,
    %c0_6 = arith.constant 0 : index
    %c19 = arith.constant 19 : index
    %5 = vector.load %arg1[%c0_6, %c19] : memref<8x2304xf32, #tpu.memory_space<vmem>>, vector<8x2048xf32>
    %c16 = arith.constant 16 : index
    %c0_7 = arith.constant 0 : index
    %6 = vector.load %arg10[%c16, %c0_7] : memref<216x2048xf32, #tpu.memory_space<vmem>>, vector<8x2048xf32>
    tpu.vector_store %arg10[%c16, %c0_7], %5 {strides = array<i32>} : memref<216x2048xf32, #tpu.memory_space<vmem>>, vector<8x2048xf32>,
    %c0_8 = arith.constant 0 : index
    %c27 = arith.constant 27 : index
    %7 = vector.load %arg1[%c0_8, %c27] : memref<8x2304xf32, #tpu.memory_space<vmem>>, vector<8x2048xf32>
    %c24 = arith.constant 24 : index
    %c0_9 = arith.constant 0 : index
    %8 = vector.load %arg10[%c24, %c0_9] : memref<216x2048xf32, #tpu.memory_space<vmem>>, vector<8x2048xf32>
    tpu.vector_store %arg10[%c24, %c0_9], %7 {strides = array<i32>} : memref<216x2048xf32, #tpu.memory_space<vmem>>, vector<8x2048xf32>,
    %c0_10 = arith.constant 0 : index
    %c28 = arith.constant 28 : index
    %9 = vector.load %arg1[%c0_10, %c28] : memref<8x2304xf32, #tpu.memory_space<vmem>>, vector<8x2048xf32>
    %c32 = arith.constant 32 : index
    %c0_11 = arith.constant 0 : index
    %10 = vector.load %arg10[%c32, %c0_11] : memref<216x2048xf32, #tpu.memory_space<vmem>>, vector<8x2048xf32>
    tpu.vector_store %arg10[%c32, %c0_11], %9 {strides = array<i32>} : memref<216x2048xf32, #tpu.memory_space<vmem>>, vector<8x2048xf32>,
    %c0_12 = arith.constant 0 : index
    %c29 = arith.constant 29 : index
    %11 = vector.load %arg1[%c0_12, %c29] : memref<8x2304xf32, #tpu.memory_space<vmem>>, vector<8x2048xf32>
    %c40 = arith.constant 40 : index
    %c0_13 = arith.constant 0 : index
    %12 = vector.load %arg10[%c40, %c0_13] : memref<216x2048xf32, #tpu.memory_space<vmem>>, vector<8x2048xf32>
    tpu.vector_store %arg10[%c40, %c0_13], %11 {strides = array<i32>} : memref<216x2048xf32, #tpu.memory_space<vmem>>, vector<8x2048xf32>,
    %c0_14 = arith.constant 0 : index
    %c37 = arith.constant 37 : index
    %13 = vector.load %arg1[%c0_14, %c37] : memref<8x2304xf32, #tpu.memory_space<vmem>>, vector<8x2048xf32>
    %c48 = arith.constant 48 : index
    %c0_15 = arith.constant 0 : index
    %14 = vector.load %arg10[%c48, %c0_15] : memref<216x2048xf32, #tpu.memory_space<vmem>>, vector<8x2048xf32>
    tpu.vector_store %arg10[%c48, %c0_15], %13 {strides = array<i32>} : memref<216x2048xf32, #tpu.memory_space<vmem>>, vector<8x2048xf32>,
    %c0_16 = arith.constant 0 : index
    %c38 = arith.constant 38 : index
    %15 = vector.load %arg1[%c0_16, %c38] : memref<8x2304xf32, #tpu.memory_space<vmem>>, vector<8x2048xf32>
    %c56 = arith.constant 56 : index
    %c0_17 = arith.constant 0 : index
    %16 = vector.load %arg10[%c56, %c0_17] : memref<216x2048xf32, #tpu.memory_space<vmem>>, vector<8x2048xf32>
    tpu.vector_store %arg10[%c56, %c0_17], %15 {strides = array<i32>} : memref<216x2048xf32, #tpu.memory_space<vmem>>, vector<8x2048xf32>,
    %c0_18 = arith.constant 0 : index
    %c39 = arith.constant 39 : index
    %17 = vector.load %arg1[%c0_18, %c39] : memref<8x2304xf32, #tpu.memory_space<vmem>>, vector<8x2048xf32>
    %c64 = arith.constant 64 : index
    %c0_19 = arith.constant 0 : index
    %18 = vector.load %arg10[%c64, %c0_19] : memref<216x2048xf32, #tpu.memory_space<vmem>>, vector<8x2048xf32>
    tpu.vector_store %arg10[%c64, %c0_19], %17 {strides = array<i32>} : memref<216x2048xf32, #tpu.memory_space<vmem>>, vector<8x2048xf32>,
    %c0_20 = arith.constant 0 : index
    %c117 = arith.constant 117 : index
    %19 = vector.load %arg1[%c0_20, %c117] : memref<8x2304xf32, #tpu.memory_space<vmem>>, vector<8x2048xf32>
    %c72 = arith.constant 72 : index
    %c0_21 = arith.constant 0 : index
    %20 = vector.load %arg10[%c72, %c0_21] : memref<216x2048xf32, #tpu.memory_space<vmem>>, vector<8x2048xf32>
    tpu.vector_store %arg10[%c72, %c0_21], %19 {strides = array<i32>} : memref<216x2048xf32, #tpu.memory_space<vmem>>, vector<8x2048xf32>,
    %c0_22 = arith.constant 0 : index
    %c118 = arith.constant 118 : index
    %21 = vector.load %arg1[%c0_22, %c118] : memref<8x2304xf32, #tpu.memory_space<vmem>>, vector<8x2048xf32>
    %c80 = arith.constant 80 : index
    %c0_23 = arith.constant 0 : index
    %22 = vector.load %arg10[%c80, %c0_23] : memref<216x2048xf32, #tpu.memory_space<vmem>>, vector<8x2048xf32>
    tpu.vector_store %arg10[%c80, %c0_23], %21 {strides = array<i32>} : memref<216x2048xf32, #tpu.memory_space<vmem>>, vector<8x2048xf32>,
    %c0_24 = arith.constant 0 : index
    %c119 = arith.constant 119 : index
    %23 = vector.load %arg1[%c0_24, %c119] : memref<8x2304xf32, #tpu.memory_space<vmem>>, vector<8x2048xf32>
    %c88 = arith.constant 88 : index
    %c0_25 = arith.constant 0 : index
    %24 = vector.load %arg10[%c88, %c0_25] : memref<216x2048xf32, #tpu.memory_space<vmem>>, vector<8x2048xf32>
    tpu.vector_store %arg10[%c88, %c0_25], %23 {strides = array<i32>} : memref<216x2048xf32, #tpu.memory_space<vmem>>, vector<8x2048xf32>,
    %c0_26 = arith.constant 0 : index
    %c127 = arith.constant 127 : index
    %25 = vector.load %arg1[%c0_26, %c127] : memref<8x2304xf32, #tpu.memory_space<vmem>>, vector<8x2048xf32>
    %c96 = arith.constant 96 : index
    %c0_27 = arith.constant 0 : index
    %26 = vector.load %arg10[%c96, %c0_27] : memref<216x2048xf32, #tpu.memory_space<vmem>>, vector<8x2048xf32>
    tpu.vector_store %arg10[%c96, %c0_27], %25 {strides = array<i32>} : memref<216x2048xf32, #tpu.memory_space<vmem>>, vector<8x2048xf32>,
    %c0_28 = arith.constant 0 : index
    %c128 = arith.constant 128 : index
    %27 = vector.load %arg1[%c0_28, %c128] : memref<8x2304xf32, #tpu.memory_space<vmem>>, vector<8x2048xf32>
    %c104 = arith.constant 104 : index
    %c0_29 = arith.constant 0 : index
    %28 = vector.load %arg10[%c104, %c0_29] : memref<216x2048xf32, #tpu.memory_space<vmem>>, vector<8x2048xf32>
    tpu.vector_store %arg10[%c104, %c0_29], %27 {strides = array<i32>} : memref<216x2048xf32, #tpu.memory_space<vmem>>, vector<8x2048xf32>,
    %c0_30 = arith.constant 0 : index
    %c129 = arith.constant 129 : index
    %29 = vector.load %arg1[%c0_30, %c129] : memref<8x2304xf32, #tpu.memory_space<vmem>>, vector<8x2048xf32>
    %c112 = arith.constant 112 : index
    %c0_31 = arith.constant 0 : index
    %30 = vector.load %arg10[%c112, %c0_31] : memref<216x2048xf32, #tpu.memory_space<vmem>>, vector<8x2048xf32>
    tpu.vector_store %arg10[%c112, %c0_31], %29 {strides = array<i32>} : memref<216x2048xf32, #tpu.memory_space<vmem>>, vector<8x2048xf32>,
    %c0_32 = arith.constant 0 : index
    %c137 = arith.constant 137 : index
    %31 = vector.load %arg1[%c0_32, %c137] : memref<8x2304xf32, #tpu.memory_space<vmem>>, vector<8x2048xf32>
    %c120 = arith.constant 120 : index
    %c0_33 = arith.constant 0 : index
    %32 = vector.load %arg10[%c120, %c0_33] : memref<216x2048xf32, #tpu.memory_space<vmem>>, vector<8x2048xf32>
    tpu.vector_store %arg10[%c120, %c0_33], %31 {strides = array<i32>} : memref<216x2048xf32, #tpu.memory_space<vmem>>, vector<8x2048xf32>,
    %c0_34 = arith.constant 0 : index
    %c138 = arith.constant 138 : index
    %33 = vector.load %arg1[%c0_34, %c138] : memref<8x2304xf32, #tpu.memory_space<vmem>>, vector<8x2048xf32>
    %c128_35 = arith.constant 128 : index
    %c0_36 = arith.constant 0 : index
    %34 = vector.load %arg10[%c128_35, %c0_36] : memref<216x2048xf32, #tpu.memory_space<vmem>>, vector<8x2048xf32>
    tpu.vector_store %arg10[%c128_35, %c0_36], %33 {strides = array<i32>} : memref<216x2048xf32, #tpu.memory_space<vmem>>, vector<8x2048xf32>,
    %c0_37 = arith.constant 0 : index
    %c139 = arith.constant 139 : index
    %35 = vector.load %arg1[%c0_37, %c139] : memref<8x2304xf32, #tpu.memory_space<vmem>>, vector<8x2048xf32>
    %c136 = arith.constant 136 : index
    %c0_38 = arith.constant 0 : index
    %36 = vector.load %arg10[%c136, %c0_38] : memref<216x2048xf32, #tpu.memory_space<vmem>>, vector<8x2048xf32>
    tpu.vector_store %arg10[%c136, %c0_38], %35 {strides = array<i32>} : memref<216x2048xf32, #tpu.memory_space<vmem>>, vector<8x2048xf32>,
    %c0_39 = arith.constant 0 : index
    %c217 = arith.constant 217 : index
    %37 = vector.load %arg1[%c0_39, %c217] : memref<8x2304xf32, #tpu.memory_space<vmem>>, vector<8x2048xf32>
    %c144 = arith.constant 144 : index
    %c0_40 = arith.constant 0 : index
    %38 = vector.load %arg10[%c144, %c0_40] : memref<216x2048xf32, #tpu.memory_space<vmem>>, vector<8x2048xf32>
    tpu.vector_store %arg10[%c144, %c0_40], %37 {strides = array<i32>} : memref<216x2048xf32, #tpu.memory_space<vmem>>, vector<8x2048xf32>,
    %c0_41 = arith.constant 0 : index
    %c218 = arith.constant 218 : index
    %39 = vector.load %arg1[%c0_41, %c218] : memref<8x2304xf32, #tpu.memory_space<vmem>>, vector<8x2048xf32>
    %c152 = arith.constant 152 : index
    %c0_42 = arith.constant 0 : index
    %40 = vector.load %arg10[%c152, %c0_42] : memref<216x2048xf32, #tpu.memory_space<vmem>>, vector<8x2048xf32>
    tpu.vector_store %arg10[%c152, %c0_42], %39 {strides = array<i32>} : memref<216x2048xf32, #tpu.memory_space<vmem>>, vector<8x2048xf32>,
    %c0_43 = arith.constant 0 : index
    %c219 = arith.constant 219 : index
    %41 = vector.load %arg1[%c0_43, %c219] : memref<8x2304xf32, #tpu.memory_space<vmem>>, vector<8x2048xf32>
    %c160 = arith.constant 160 : index
    %c0_44 = arith.constant 0 : index
    %42 = vector.load %arg10[%c160, %c0_44] : memref<216x2048xf32, #tpu.memory_space<vmem>>, vector<8x2048xf32>
    tpu.vector_store %arg10[%c160, %c0_44], %41 {strides = array<i32>} : memref<216x2048xf32, #tpu.memory_space<vmem>>, vector<8x2048xf32>,
    %c0_45 = arith.constant 0 : index
    %c227 = arith.constant 227 : index
    %43 = vector.load %arg1[%c0_45, %c227] : memref<8x2304xf32, #tpu.memory_space<vmem>>, vector<8x2048xf32>
    %c168 = arith.constant 168 : index
    %c0_46 = arith.constant 0 : index
    %44 = vector.load %arg10[%c168, %c0_46] : memref<216x2048xf32, #tpu.memory_space<vmem>>, vector<8x2048xf32>
    tpu.vector_store %arg10[%c168, %c0_46], %43 {strides = array<i32>} : memref<216x2048xf32, #tpu.memory_space<vmem>>, vector<8x2048xf32>,
    %c0_47 = arith.constant 0 : index
    %c228 = arith.constant 228 : index
    %45 = vector.load %arg1[%c0_47, %c228] : memref<8x2304xf32, #tpu.memory_space<vmem>>, vector<8x2048xf32>
    %c176 = arith.constant 176 : index
    %c0_48 = arith.constant 0 : index
    %46 = vector.load %arg10[%c176, %c0_48] : memref<216x2048xf32, #tpu.memory_space<vmem>>, vector<8x2048xf32>
    tpu.vector_store %arg10[%c176, %c0_48], %45 {strides = array<i32>} : memref<216x2048xf32, #tpu.memory_space<vmem>>, vector<8x2048xf32>,
    %c0_49 = arith.constant 0 : index
    %c229 = arith.constant 229 : index
    %47 = vector.load %arg1[%c0_49, %c229] : memref<8x2304xf32, #tpu.memory_space<vmem>>, vector<8x2048xf32>
    %c184 = arith.constant 184 : index
    %c0_50 = arith.constant 0 : index
    %48 = vector.load %arg10[%c184, %c0_50] : memref<216x2048xf32, #tpu.memory_space<vmem>>, vector<8x2048xf32>
    tpu.vector_store %arg10[%c184, %c0_50], %47 {strides = array<i32>} : memref<216x2048xf32, #tpu.memory_space<vmem>>, vector<8x2048xf32>,
    %c0_51 = arith.constant 0 : index
    %c237 = arith.constant 237 : index
    %49 = vector.load %arg1[%c0_51, %c237] : memref<8x2304xf32, #tpu.memory_space<vmem>>, vector<8x2048xf32>
    %c192 = arith.constant 192 : index
    %c0_52 = arith.constant 0 : index
    %50 = vector.load %arg10[%c192, %c0_52] : memref<216x2048xf32, #tpu.memory_space<vmem>>, vector<8x2048xf32>
    tpu.vector_store %arg10[%c192, %c0_52], %49 {strides = array<i32>} : memref<216x2048xf32, #tpu.memory_space<vmem>>, vector<8x2048xf32>,
    %c0_53 = arith.constant 0 : index
    %c238 = arith.constant 238 : index
    %51 = vector.load %arg1[%c0_53, %c238] : memref<8x2304xf32, #tpu.memory_space<vmem>>, vector<8x2048xf32>
    %c200 = arith.constant 200 : index
    %c0_54 = arith.constant 0 : index
    %52 = vector.load %arg10[%c200, %c0_54] : memref<216x2048xf32, #tpu.memory_space<vmem>>, vector<8x2048xf32>
    tpu.vector_store %arg10[%c200, %c0_54], %51 {strides = array<i32>} : memref<216x2048xf32, #tpu.memory_space<vmem>>, vector<8x2048xf32>,
    %c0_55 = arith.constant 0 : index
    %c239 = arith.constant 239 : index
    %53 = vector.load %arg1[%c0_55, %c239] : memref<8x2304xf32, #tpu.memory_space<vmem>>, vector<8x2048xf32>
    %c208 = arith.constant 208 : index
    %c0_56 = arith.constant 0 : index
    %54 = vector.load %arg10[%c208, %c0_56] : memref<216x2048xf32, #tpu.memory_space<vmem>>, vector<8x2048xf32>
    tpu.vector_store %arg10[%c208, %c0_56], %53 {strides = array<i32>} : memref<216x2048xf32, #tpu.memory_space<vmem>>, vector<8x2048xf32>,
    %c0_57 = arith.constant 0 : index
    %c0_58 = arith.constant 0 : index
    %55 = vector.load %arg2[%c0_57, %c0_58] : memref<4x216xf32, #tpu.memory_space<vmem>>, vector<4x216xf32>
    %c0_59 = arith.constant 0 : index
    %c0_60 = arith.constant 0 : index
    %56 = vector.load %arg10[%c0_59, %c0_60] : memref<216x2048xf32, #tpu.memory_space<vmem>>, vector<216x2048xf32>
    %cst = arith.constant dense<0.000000e+00> : vector<4x2048xf32>
    %57 = tpu.matmul %55, %56, %cst {dimension_numbers = #tpu.dot_dimension_numbers<[1], [0], [0], [1], [0, 0, 1, 1], [], []>} : vector<4x216xf32>, vector<216x2048xf32>, vector<4x2048xf32> -> vector<4x2048xf32>
    %58 = vector.broadcast %0 : vector<1x2048xf32> to vector<4x2048xf32>
    %59 = arith.mulf %57, %58 : vector<4x2048xf32>
    %cst_61 = arith.constant dense<0.000000e+00> : vector<4xf32>
    %60 = vector.multi_reduction <add>, %59, %cst_61 [1] : vector<4x2048xf32> to vector<4xf32>
    %61 = vector.shape_cast %60 : vector<4xf32> to vector<4x1xf32>
    %cst_62 = arith.constant 9.765625E-4 : f32
    %62 = vector.broadcast %cst_62 : f32 to vector<4x1xf32>
    %63 = arith.mulf %61, %62 : vector<4x1xf32>
    %64 = vector.broadcast %63 : vector<4x1xf32> to vector<4x2048xf32>
    %65 = arith.subf %57, %64 : vector<4x2048xf32>
    %66 = vector.broadcast %0 : vector<1x2048xf32> to vector<4x2048xf32>
    %67 = arith.mulf %65, %66 : vector<4x2048xf32>
    %68 = arith.mulf %67, %67 : vector<4x2048xf32>
    %cst_63 = arith.constant dense<0.000000e+00> : vector<4xf32>
    %69 = vector.multi_reduction <add>, %68, %cst_63 [1] : vector<4x2048xf32> to vector<4xf32>
    %70 = vector.shape_cast %69 : vector<4xf32> to vector<4x1xf32>
    %cst_64 = arith.constant 9.765625E-4 : f32
    %71 = vector.broadcast %cst_64 : f32 to vector<4x1xf32>
    %72 = arith.mulf %70, %71 : vector<4x1xf32>
    %cst_65 = arith.constant 9.99999974E-6 : f32
    %73 = vector.broadcast %cst_65 : f32 to vector<4x1xf32>
    %74 = arith.addf %72, %73 : vector<4x1xf32>
    %75 = math.rsqrt %74 : vector<4x1xf32>
    %c0_66 = arith.constant 0 : index
    %c0_67 = arith.constant 0 : index
    %76 = vector.load %arg3[%c0_66, %c0_67] : memref<4x1xf32, #tpu.memory_space<vmem>>, vector<4x1xf32>
    %77 = arith.mulf %75, %76 : vector<4x1xf32>
    %78 = vector.broadcast %77 : vector<4x1xf32> to vector<4x2048xf32>
    %79 = arith.mulf %67, %78 : vector<4x2048xf32>
    %c0_68 = arith.constant 0 : index
    %c0_69 = arith.constant 0 : index
    %80 = vector.load %arg4[%c0_68, %c0_69] : memref<4x1xf32, #tpu.memory_space<vmem>>, vector<4x1xf32>
    %81 = vector.broadcast %80 : vector<4x1xf32> to vector<4x2048xf32>
    %82 = arith.addf %79, %81 : vector<4x2048xf32>
    %cst_70 = arith.constant 0.000000e+00 : f32
    %83 = vector.broadcast %cst_70 : f32 to vector<4x2048xf32>
    %84 = arith.maximumf %82, %83 : vector<4x2048xf32>
    %85 = vector.broadcast %0 : vector<1x2048xf32> to vector<4x2048xf32>
    %86 = arith.mulf %84, %85 : vector<4x2048xf32>
    %cst_71 = arith.constant 0.000000e+00 : f32
    %87 = vector.broadcast %cst_71 : f32 to vector<4x2048xf32>
    %88 = tpu.concatenate %86, %87 in 0 : vector<4x2048xf32>, vector<4x2048xf32> -> vector<8x2048xf32>
    %cst_72 = arith.constant 0.000000e+00 : f32
    %89 = vector.broadcast %cst_72 : f32 to vector<8x128xf32>
    %c0_73 = arith.constant 0 : index
    %c0_74 = arith.constant 0 : index
    %90 = vector.load %arg12[%c0_73, %c0_74] : memref<8x2304xf32, #tpu.memory_space<vmem>>, vector<8x128xf32>
    tpu.vector_store %arg12[%c0_73, %c0_74], %89 {strides = array<i32>} : memref<8x2304xf32, #tpu.memory_space<vmem>>, vector<8x128xf32>,
    %c0_75 = arith.constant 0 : index
    %c128_76 = arith.constant 128 : index
    %91 = vector.load %arg12[%c0_75, %c128_76] : memref<8x2304xf32, #tpu.memory_space<vmem>>, vector<8x2048xf32>
    tpu.vector_store %arg12[%c0_75, %c128_76], %88 {strides = array<i32>} : memref<8x2304xf32, #tpu.memory_space<vmem>>, vector<8x2048xf32>,
    %cst_77 = arith.constant 0.000000e+00 : f32
    %92 = vector.broadcast %cst_77 : f32 to vector<8x128xf32>
    %c0_78 = arith.constant 0 : index
    %c2176 = arith.constant 2176 : index
    %93 = vector.load %arg12[%c0_78, %c2176] : memref<8x2304xf32, #tpu.memory_space<vmem>>, vector<8x128xf32>
    tpu.vector_store %arg12[%c0_78, %c2176], %92 {strides = array<i32>} : memref<8x2304xf32, #tpu.memory_space<vmem>>, vector<8x128xf32>,
    %c0_79 = arith.constant 0 : index
    %c17_80 = arith.constant 17 : index
    %94 = vector.load %arg12[%c0_79, %c17_80] : memref<8x2304xf32, #tpu.memory_space<vmem>>, vector<8x2048xf32>
    %c0_81 = arith.constant 0 : index
    %c0_82 = arith.constant 0 : index
    %95 = vector.load %arg11[%c0_81, %c0_82] : memref<216x2048xf32, #tpu.memory_space<vmem>>, vector<8x2048xf32>
    tpu.vector_store %arg11[%c0_81, %c0_82], %94 {strides = array<i32>} : memref<216x2048xf32, #tpu.memory_space<vmem>>, vector<8x2048xf32>,
    %c0_83 = arith.constant 0 : index
    %c18_84 = arith.constant 18 : index
    %96 = vector.load %arg12[%c0_83, %c18_84] : memref<8x2304xf32, #tpu.memory_space<vmem>>, vector<8x2048xf32>
    %c8_85 = arith.constant 8 : index
    %c0_86 = arith.constant 0 : index
    %97 = vector.load %arg11[%c8_85, %c0_86] : memref<216x2048xf32, #tpu.memory_space<vmem>>, vector<8x2048xf32>
    tpu.vector_store %arg11[%c8_85, %c0_86], %96 {strides = array<i32>} : memref<216x2048xf32, #tpu.memory_space<vmem>>, vector<8x2048xf32>,
    %c0_87 = arith.constant 0 : index
    %c19_88 = arith.constant 19 : index
    %98 = vector.load %arg12[%c0_87, %c19_88] : memref<8x2304xf32, #tpu.memory_space<vmem>>, vector<8x2048xf32>
    %c16_89 = arith.constant 16 : index
    %c0_90 = arith.constant 0 : index
    %99 = vector.load %arg11[%c16_89, %c0_90] : memref<216x2048xf32, #tpu.memory_space<vmem>>, vector<8x2048xf32>
    tpu.vector_store %arg11[%c16_89, %c0_90], %98 {strides = array<i32>} : memref<216x2048xf32, #tpu.memory_space<vmem>>, vector<8x2048xf32>,
    %c0_91 = arith.constant 0 : index
    %c27_92 = arith.constant 27 : index
    %100 = vector.load %arg12[%c0_91, %c27_92] : memref<8x2304xf32, #tpu.memory_space<vmem>>, vector<8x2048xf32>
    %c24_93 = arith.constant 24 : index
    %c0_94 = arith.constant 0 : index
    %101 = vector.load %arg11[%c24_93, %c0_94] : memref<216x2048xf32, #tpu.memory_space<vmem>>, vector<8x2048xf32>
    tpu.vector_store %arg11[%c24_93, %c0_94], %100 {strides = array<i32>} : memref<216x2048xf32, #tpu.memory_space<vmem>>, vector<8x2048xf32>,
    %c0_95 = arith.constant 0 : index
    %c28_96 = arith.constant 28 : index
    %102 = vector.load %arg12[%c0_95, %c28_96] : memref<8x2304xf32, #tpu.memory_space<vmem>>, vector<8x2048xf32>
    %c32_97 = arith.constant 32 : index
    %c0_98 = arith.constant 0 : index
    %103 = vector.load %arg11[%c32_97, %c0_98] : memref<216x2048xf32, #tpu.memory_space<vmem>>, vector<8x2048xf32>
    tpu.vector_store %arg11[%c32_97, %c0_98], %102 {strides = array<i32>} : memref<216x2048xf32, #tpu.memory_space<vmem>>, vector<8x2048xf32>,
    %c0_99 = arith.constant 0 : index
    %c29_100 = arith.constant 29 : index
    %104 = vector.load %arg12[%c0_99, %c29_100] : memref<8x2304xf32, #tpu.memory_space<vmem>>, vector<8x2048xf32>
    %c40_101 = arith.constant 40 : index
    %c0_102 = arith.constant 0 : index
    %105 = vector.load %arg11[%c40_101, %c0_102] : memref<216x2048xf32, #tpu.memory_space<vmem>>, vector<8x2048xf32>
    tpu.vector_store %arg11[%c40_101, %c0_102], %104 {strides = array<i32>} : memref<216x2048xf32, #tpu.memory_space<vmem>>, vector<8x2048xf32>,
    %c0_103 = arith.constant 0 : index
    %c37_104 = arith.constant 37 : index
    %106 = vector.load %arg12[%c0_103, %c37_104] : memref<8x2304xf32, #tpu.memory_space<vmem>>, vector<8x2048xf32>
    %c48_105 = arith.constant 48 : index
    %c0_106 = arith.constant 0 : index
    %107 = vector.load %arg11[%c48_105, %c0_106] : memref<216x2048xf32, #tpu.memory_space<vmem>>, vector<8x2048xf32>
    tpu.vector_store %arg11[%c48_105, %c0_106], %106 {strides = array<i32>} : memref<216x2048xf32, #tpu.memory_space<vmem>>, vector<8x2048xf32>,
    %c0_107 = arith.constant 0 : index
    %c38_108 = arith.constant 38 : index
    %108 = vector.load %arg12[%c0_107, %c38_108] : memref<8x2304xf32, #tpu.memory_space<vmem>>, vector<8x2048xf32>
    %c56_109 = arith.constant 56 : index
    %c0_110 = arith.constant 0 : index
    %109 = vector.load %arg11[%c56_109, %c0_110] : memref<216x2048xf32, #tpu.memory_space<vmem>>, vector<8x2048xf32>
    tpu.vector_store %arg11[%c56_109, %c0_110], %108 {strides = array<i32>} : memref<216x2048xf32, #tpu.memory_space<vmem>>, vector<8x2048xf32>,
    %c0_111 = arith.constant 0 : index
    %c39_112 = arith.constant 39 : index
    %110 = vector.load %arg12[%c0_111, %c39_112] : memref<8x2304xf32, #tpu.memory_space<vmem>>, vector<8x2048xf32>
    %c64_113 = arith.constant 64 : index
    %c0_114 = arith.constant 0 : index
    %111 = vector.load %arg11[%c64_113, %c0_114] : memref<216x2048xf32, #tpu.memory_space<vmem>>, vector<8x2048xf32>
    tpu.vector_store %arg11[%c64_113, %c0_114], %110 {strides = array<i32>} : memref<216x2048xf32, #tpu.memory_space<vmem>>, vector<8x2048xf32>,
    %c0_115 = arith.constant 0 : index
    %c117_116 = arith.constant 117 : index
    %112 = vector.load %arg12[%c0_115, %c117_116] : memref<8x2304xf32, #tpu.memory_space<vmem>>, vector<8x2048xf32>
    %c72_117 = arith.constant 72 : index
    %c0_118 = arith.constant 0 : index
    %113 = vector.load %arg11[%c72_117, %c0_118] : memref<216x2048xf32, #tpu.memory_space<vmem>>, vector<8x2048xf32>
    tpu.vector_store %arg11[%c72_117, %c0_118], %112 {strides = array<i32>} : memref<216x2048xf32, #tpu.memory_space<vmem>>, vector<8x2048xf32>,
    %c0_119 = arith.constant 0 : index
    %c118_120 = arith.constant 118 : index
    %114 = vector.load %arg12[%c0_119, %c118_120] : memref<8x2304xf32, #tpu.memory_space<vmem>>, vector<8x2048xf32>
    %c80_121 = arith.constant 80 : index
    %c0_122 = arith.constant 0 : index
    %115 = vector.load %arg11[%c80_121, %c0_122] : memref<216x2048xf32, #tpu.memory_space<vmem>>, vector<8x2048xf32>
    tpu.vector_store %arg11[%c80_121, %c0_122], %114 {strides = array<i32>} : memref<216x2048xf32, #tpu.memory_space<vmem>>, vector<8x2048xf32>,
    %c0_123 = arith.constant 0 : index
    %c119_124 = arith.constant 119 : index
    %116 = vector.load %arg12[%c0_123, %c119_124] : memref<8x2304xf32, #tpu.memory_space<vmem>>, vector<8x2048xf32>
    %c88_125 = arith.constant 88 : index
    %c0_126 = arith.constant 0 : index
    %117 = vector.load %arg11[%c88_125, %c0_126] : memref<216x2048xf32, #tpu.memory_space<vmem>>, vector<8x2048xf32>
    tpu.vector_store %arg11[%c88_125, %c0_126], %116 {strides = array<i32>} : memref<216x2048xf32, #tpu.memory_space<vmem>>, vector<8x2048xf32>,
    %c0_127 = arith.constant 0 : index
    %c127_128 = arith.constant 127 : index
    %118 = vector.load %arg12[%c0_127, %c127_128] : memref<8x2304xf32, #tpu.memory_space<vmem>>, vector<8x2048xf32>
    %c96_129 = arith.constant 96 : index
    %c0_130 = arith.constant 0 : index
    %119 = vector.load %arg11[%c96_129, %c0_130] : memref<216x2048xf32, #tpu.memory_space<vmem>>, vector<8x2048xf32>
    tpu.vector_store %arg11[%c96_129, %c0_130], %118 {strides = array<i32>} : memref<216x2048xf32, #tpu.memory_space<vmem>>, vector<8x2048xf32>,
    %c0_131 = arith.constant 0 : index
    %c128_132 = arith.constant 128 : index
    %120 = vector.load %arg12[%c0_131, %c128_132] : memref<8x2304xf32, #tpu.memory_space<vmem>>, vector<8x2048xf32>
    %c104_133 = arith.constant 104 : index
    %c0_134 = arith.constant 0 : index
    %121 = vector.load %arg11[%c104_133, %c0_134] : memref<216x2048xf32, #tpu.memory_space<vmem>>, vector<8x2048xf32>
    tpu.vector_store %arg11[%c104_133, %c0_134], %120 {strides = array<i32>} : memref<216x2048xf32, #tpu.memory_space<vmem>>, vector<8x2048xf32>,
    %c0_135 = arith.constant 0 : index
    %c129_136 = arith.constant 129 : index
    %122 = vector.load %arg12[%c0_135, %c129_136] : memref<8x2304xf32, #tpu.memory_space<vmem>>, vector<8x2048xf32>
    %c112_137 = arith.constant 112 : index
    %c0_138 = arith.constant 0 : index
    %123 = vector.load %arg11[%c112_137, %c0_138] : memref<216x2048xf32, #tpu.memory_space<vmem>>, vector<8x2048xf32>
    tpu.vector_store %arg11[%c112_137, %c0_138], %122 {strides = array<i32>} : memref<216x2048xf32, #tpu.memory_space<vmem>>, vector<8x2048xf32>,
    %c0_139 = arith.constant 0 : index
    %c137_140 = arith.constant 137 : index
    %124 = vector.load %arg12[%c0_139, %c137_140] : memref<8x2304xf32, #tpu.memory_space<vmem>>, vector<8x2048xf32>
    %c120_141 = arith.constant 120 : index
    %c0_142 = arith.constant 0 : index
    %125 = vector.load %arg11[%c120_141, %c0_142] : memref<216x2048xf32, #tpu.memory_space<vmem>>, vector<8x2048xf32>
    tpu.vector_store %arg11[%c120_141, %c0_142], %124 {strides = array<i32>} : memref<216x2048xf32, #tpu.memory_space<vmem>>, vector<8x2048xf32>,
    %c0_143 = arith.constant 0 : index
    %c138_144 = arith.constant 138 : index
    %126 = vector.load %arg12[%c0_143, %c138_144] : memref<8x2304xf32, #tpu.memory_space<vmem>>, vector<8x2048xf32>
    %c128_145 = arith.constant 128 : index
    %c0_146 = arith.constant 0 : index
    %127 = vector.load %arg11[%c128_145, %c0_146] : memref<216x2048xf32, #tpu.memory_space<vmem>>, vector<8x2048xf32>
    tpu.vector_store %arg11[%c128_145, %c0_146], %126 {strides = array<i32>} : memref<216x2048xf32, #tpu.memory_space<vmem>>, vector<8x2048xf32>,
    %c0_147 = arith.constant 0 : index
    %c139_148 = arith.constant 139 : index
    %128 = vector.load %arg12[%c0_147, %c139_148] : memref<8x2304xf32, #tpu.memory_space<vmem>>, vector<8x2048xf32>
    %c136_149 = arith.constant 136 : index
    %c0_150 = arith.constant 0 : index
    %129 = vector.load %arg11[%c136_149, %c0_150] : memref<216x2048xf32, #tpu.memory_space<vmem>>, vector<8x2048xf32>
    tpu.vector_store %arg11[%c136_149, %c0_150], %128 {strides = array<i32>} : memref<216x2048xf32, #tpu.memory_space<vmem>>, vector<8x2048xf32>,
    %c0_151 = arith.constant 0 : index
    %c217_152 = arith.constant 217 : index
    %130 = vector.load %arg12[%c0_151, %c217_152] : memref<8x2304xf32, #tpu.memory_space<vmem>>, vector<8x2048xf32>
    %c144_153 = arith.constant 144 : index
    %c0_154 = arith.constant 0 : index
    %131 = vector.load %arg11[%c144_153, %c0_154] : memref<216x2048xf32, #tpu.memory_space<vmem>>, vector<8x2048xf32>
    tpu.vector_store %arg11[%c144_153, %c0_154], %130 {strides = array<i32>} : memref<216x2048xf32, #tpu.memory_space<vmem>>, vector<8x2048xf32>,
    %c0_155 = arith.constant 0 : index
    %c218_156 = arith.constant 218 : index
    %132 = vector.load %arg12[%c0_155, %c218_156] : memref<8x2304xf32, #tpu.memory_space<vmem>>, vector<8x2048xf32>
    %c152_157 = arith.constant 152 : index
    %c0_158 = arith.constant 0 : index
    %133 = vector.load %arg11[%c152_157, %c0_158] : memref<216x2048xf32, #tpu.memory_space<vmem>>, vector<8x2048xf32>
    tpu.vector_store %arg11[%c152_157, %c0_158], %132 {strides = array<i32>} : memref<216x2048xf32, #tpu.memory_space<vmem>>, vector<8x2048xf32>,
    %c0_159 = arith.constant 0 : index
    %c219_160 = arith.constant 219 : index
    %134 = vector.load %arg12[%c0_159, %c219_160] : memref<8x2304xf32, #tpu.memory_space<vmem>>, vector<8x2048xf32>
    %c160_161 = arith.constant 160 : index
    %c0_162 = arith.constant 0 : index
    %135 = vector.load %arg11[%c160_161, %c0_162] : memref<216x2048xf32, #tpu.memory_space<vmem>>, vector<8x2048xf32>
    tpu.vector_store %arg11[%c160_161, %c0_162], %134 {strides = array<i32>} : memref<216x2048xf32, #tpu.memory_space<vmem>>, vector<8x2048xf32>,
    %c0_163 = arith.constant 0 : index
    %c227_164 = arith.constant 227 : index
    %136 = vector.load %arg12[%c0_163, %c227_164] : memref<8x2304xf32, #tpu.memory_space<vmem>>, vector<8x2048xf32>
    %c168_165 = arith.constant 168 : index
    %c0_166 = arith.constant 0 : index
    %137 = vector.load %arg11[%c168_165, %c0_166] : memref<216x2048xf32, #tpu.memory_space<vmem>>, vector<8x2048xf32>
    tpu.vector_store %arg11[%c168_165, %c0_166], %136 {strides = array<i32>} : memref<216x2048xf32, #tpu.memory_space<vmem>>, vector<8x2048xf32>,
    %c0_167 = arith.constant 0 : index
    %c228_168 = arith.constant 228 : index
    %138 = vector.load %arg12[%c0_167, %c228_168] : memref<8x2304xf32, #tpu.memory_space<vmem>>, vector<8x2048xf32>
    %c176_169 = arith.constant 176 : index
    %c0_170 = arith.constant 0 : index
    %139 = vector.load %arg11[%c176_169, %c0_170] : memref<216x2048xf32, #tpu.memory_space<vmem>>, vector<8x2048xf32>
    tpu.vector_store %arg11[%c176_169, %c0_170], %138 {strides = array<i32>} : memref<216x2048xf32, #tpu.memory_space<vmem>>, vector<8x2048xf32>,
    %c0_171 = arith.constant 0 : index
    %c229_172 = arith.constant 229 : index
    %140 = vector.load %arg12[%c0_171, %c229_172] : memref<8x2304xf32, #tpu.memory_space<vmem>>, vector<8x2048xf32>
    %c184_173 = arith.constant 184 : index
    %c0_174 = arith.constant 0 : index
    %141 = vector.load %arg11[%c184_173, %c0_174] : memref<216x2048xf32, #tpu.memory_space<vmem>>, vector<8x2048xf32>
    tpu.vector_store %arg11[%c184_173, %c0_174], %140 {strides = array<i32>} : memref<216x2048xf32, #tpu.memory_space<vmem>>, vector<8x2048xf32>,
    %c0_175 = arith.constant 0 : index
    %c237_176 = arith.constant 237 : index
    %142 = vector.load %arg12[%c0_175, %c237_176] : memref<8x2304xf32, #tpu.memory_space<vmem>>, vector<8x2048xf32>
    %c192_177 = arith.constant 192 : index
    %c0_178 = arith.constant 0 : index
    %143 = vector.load %arg11[%c192_177, %c0_178] : memref<216x2048xf32, #tpu.memory_space<vmem>>, vector<8x2048xf32>
    tpu.vector_store %arg11[%c192_177, %c0_178], %142 {strides = array<i32>} : memref<216x2048xf32, #tpu.memory_space<vmem>>, vector<8x2048xf32>,
    %c0_179 = arith.constant 0 : index
    %c238_180 = arith.constant 238 : index
    %144 = vector.load %arg12[%c0_179, %c238_180] : memref<8x2304xf32, #tpu.memory_space<vmem>>, vector<8x2048xf32>
    %c200_181 = arith.constant 200 : index
    %c0_182 = arith.constant 0 : index
    %145 = vector.load %arg11[%c200_181, %c0_182] : memref<216x2048xf32, #tpu.memory_space<vmem>>, vector<8x2048xf32>
    tpu.vector_store %arg11[%c200_181, %c0_182], %144 {strides = array<i32>} : memref<216x2048xf32, #tpu.memory_space<vmem>>, vector<8x2048xf32>,
    %c0_183 = arith.constant 0 : index
    %c239_184 = arith.constant 239 : index
    %146 = vector.load %arg12[%c0_183, %c239_184] : memref<8x2304xf32, #tpu.memory_space<vmem>>, vector<8x2048xf32>
    %c208_185 = arith.constant 208 : index
    %c0_186 = arith.constant 0 : index
    %147 = vector.load %arg11[%c208_185, %c0_186] : memref<216x2048xf32, #tpu.memory_space<vmem>>, vector<8x2048xf32>
    tpu.vector_store %arg11[%c208_185, %c0_186], %146 {strides = array<i32>} : memref<216x2048xf32, #tpu.memory_space<vmem>>, vector<8x2048xf32>,
    %c0_187 = arith.constant 0 : index
    %c0_188 = arith.constant 0 : index
    %148 = vector.load %arg5[%c0_187, %c0_188] : memref<4x216xf32, #tpu.memory_space<vmem>>, vector<4x216xf32>
    %c0_189 = arith.constant 0 : index
    %c0_190 = arith.constant 0 : index
    %149 = vector.load %arg11[%c0_189, %c0_190] : memref<216x2048xf32, #tpu.memory_space<vmem>>, vector<216x2048xf32>
    %cst_191 = arith.constant dense<0.000000e+00> : vector<4x2048xf32>
    %150 = tpu.matmul %148, %149, %cst_191 {dimension_numbers = #tpu.dot_dimension_numbers<[1], [0], [0], [1], [0, 0, 1, 1], [], []>} : vector<4x216xf32>, vector<216x2048xf32>, vector<4x2048xf32> -> vector<4x2048xf32>
    %151 = vector.broadcast %0 : vector<1x2048xf32> to vector<4x2048xf32>
    %152 = arith.mulf %150, %151 : vector<4x2048xf32>
    %cst_192 = arith.constant dense<0.000000e+00> : vector<4xf32>
    %153 = vector.multi_reduction <add>, %152, %cst_192 [1] : vector<4x2048xf32> to vector<4xf32>
    %154 = vector.shape_cast %153 : vector<4xf32> to vector<4x1xf32>
    %cst_193 = arith.constant 9.765625E-4 : f32
    %155 = vector.broadcast %cst_193 : f32 to vector<4x1xf32>
    %156 = arith.mulf %154, %155 : vector<4x1xf32>
    %157 = vector.broadcast %156 : vector<4x1xf32> to vector<4x2048xf32>
    %158 = arith.subf %150, %157 : vector<4x2048xf32>
    %159 = vector.broadcast %0 : vector<1x2048xf32> to vector<4x2048xf32>
    %160 = arith.mulf %158, %159 : vector<4x2048xf32>
    %161 = arith.mulf %160, %160 : vector<4x2048xf32>
    %cst_194 = arith.constant dense<0.000000e+00> : vector<4xf32>
    %162 = vector.multi_reduction <add>, %161, %cst_194 [1] : vector<4x2048xf32> to vector<4xf32>
    %163 = vector.shape_cast %162 : vector<4xf32> to vector<4x1xf32>
    %cst_195 = arith.constant 9.765625E-4 : f32
    %164 = vector.broadcast %cst_195 : f32 to vector<4x1xf32>
    %165 = arith.mulf %163, %164 : vector<4x1xf32>
    %cst_196 = arith.constant 9.99999974E-6 : f32
    %166 = vector.broadcast %cst_196 : f32 to vector<4x1xf32>
    %167 = arith.addf %165, %166 : vector<4x1xf32>
    %168 = math.rsqrt %167 : vector<4x1xf32>
    %c0_197 = arith.constant 0 : index
    %c0_198 = arith.constant 0 : index
    %169 = vector.load %arg6[%c0_197, %c0_198] : memref<4x1xf32, #tpu.memory_space<vmem>>, vector<4x1xf32>
    %170 = arith.mulf %168, %169 : vector<4x1xf32>
    %171 = vector.broadcast %170 : vector<4x1xf32> to vector<4x2048xf32>
    %172 = arith.mulf %160, %171 : vector<4x2048xf32>
    %c0_199 = arith.constant 0 : index
    %c0_200 = arith.constant 0 : index
    %173 = vector.load %arg7[%c0_199, %c0_200] : memref<4x1xf32, #tpu.memory_space<vmem>>, vector<4x1xf32>
    %174 = vector.broadcast %173 : vector<4x1xf32> to vector<4x2048xf32>
    %175 = arith.addf %172, %174 : vector<4x2048xf32>
    %cst_201 = arith.constant 0.000000e+00 : f32
    %176 = vector.broadcast %cst_201 : f32 to vector<4x2048xf32>
    %177 = arith.maximumf %175, %176 : vector<4x2048xf32>
    %c0_202 = arith.constant 0 : index
    %c0_203 = arith.constant 0 : index
    %178 = vector.load %arg9[%c0_202, %c0_203] : memref<4x2048xf32, #tpu.memory_space<vmem>>, vector<4x2048xf32>
    tpu.vector_store %arg9[%c0_202, %c0_203], %177 {strides = array<i32>} : memref<4x2048xf32, #tpu.memory_space<vmem>>, vector<4x2048xf32>,
    return
  }
  func.func @transform_0(%arg0: i32) -> (i32, i32) {
    %c0_i32 = arith.constant 0 : i32
    %c0_i32_0 = arith.constant 0 : i32
    %c0_i32_1 = arith.constant 0 : i32
    return %c0_i32, %c0_i32_0 : i32, i32
  }
  func.func @transform_1(%arg0: i32) -> (i32, i32) {
    %c0_i32 = arith.constant 0 : i32
    %c0_i32_0 = arith.constant 0 : i32
    %c0_i32_1 = arith.constant 0 : i32
    return %c0_i32, %c0_i32_0 : i32, i32
  }
  func.func @transform_2(%arg0: i32) -> (i32, i32) {
    %c0_i32 = arith.constant 0 : i32
    %c0_i32_0 = arith.constant 0 : i32
    %c0_i32_1 = arith.constant 0 : i32
    return %c0_i32, %c0_i32_0 : i32, i32
  }
  func.func @transform_3(%arg0: i32) -> (i32, i32) {
    %c0_i32 = arith.constant 0 : i32
    %c0_i32_0 = arith.constant 0 : i32
    %c0_i32_1 = arith.constant 0 : i32
    return %c0_i32, %c0_i32_0 : i32, i32
  }
  func.func @transform_4(%arg0: i32) -> (i32, i32) {
    %c0_i32 = arith.constant 0 : i32
    %c0_i32_0 = arith.constant 0 : i32
    %c0_i32_1 = arith.constant 0 : i32
    return %c0_i32, %c0_i32_0 : i32, i32
  }
  func.func @transform_5(%arg0: i32) -> (i32, i32) {
    %c0_i32 = arith.constant 0 : i32
    %c0_i32_0 = arith.constant 0 : i32
    %c0_i32_1 = arith.constant 0 : i32
    return %c0_i32, %c0_i32_0 : i32, i32
  }
  func.func @transform_6(%arg0: i32) -> (i32, i32) {
    %c0_i32 = arith.constant 0 : i32
    %c0_i32_0 = arith.constant 0 : i32
    %c0_i32_1 = arith.constant 0 : i32
    return %c0_i32, %c0_i32_0 : i32, i32
  }
  func.func @transform_7(%arg0: i32) -> (i32, i32) {
    %c0_i32 = arith.constant 0 : i32
    %c0_i32_0 = arith.constant 0 : i32
    %c0_i32_1 = arith.constant 0 : i32
    return %c0_i32, %c0_i32_0 : i32, i32
  }
  func.func @transform_8(%arg0: i32) -> (i32, i32) {
    %c0_i32 = arith.constant 0 : i32
    %c0_i32_0 = arith.constant 0 : i32
    %c0_i32_1 = arith.constant 0 : i32
    return %c0_i32, %c0_i32_0 : i32, i32
  }
}

</mosaic_0001>

<llo_original>
// kernel: up_forward.1
$region0: #{up_forward.1}
  #allocation0 [shape = 'u32[]', space=smem, size = 0x4, offset = 0x4, fixed_abs, tag = 'smem constant byte address 0x4 - core index']
  #allocation1 [shape = 'u32[72,128]{1,0:T(1,128)}', space=vmem, size = 0x9000, scoped, tag = 'internal scratch']
  #allocation2 [shape = 'f32[216,2048]{1,0:T(8,128)}', space=vmem, size = 0x1b0000, scoped, tag = 'scratch operand']
  #allocation3 [shape = 'f32[216,2048]{1,0:T(8,128)}', space=vmem, size = 0x1b0000, scoped, tag = 'scratch operand']
  #allocation4 [shape = 'f32[8,2304]{1,0:T(8,128)}', space=vmem, size = 0x12000, scoped, tag = 'scratch operand']
  %s0 = inlined_call_operand.vmem [shape: f32[8,2304], index: 0, kind: input, shape index: {}]
  %s1 = inlined_call_operand.vmem [shape: f32[4,216], index: 1, kind: input, shape index: {}]
  %s2 = inlined_call_operand.vmem [shape: f32[4,1], index: 2, kind: input, shape index: {}]
  %s3 = inlined_call_operand.vmem [shape: f32[4,1], index: 3, kind: input, shape index: {}]
  %s4 = inlined_call_operand.vmem [shape: f32[4,216], index: 4, kind: input, shape index: {}]
  %s5 = inlined_call_operand.vmem [shape: f32[4,1], index: 5, kind: input, shape index: {}]
  %s6 = inlined_call_operand.vmem [shape: f32[4,1], index: 6, kind: input, shape index: {}]
  %s7 = inlined_call_operand.vmem [shape: f32[1,2048], index: 7, kind: input, shape index: {}]
  %s8 = inlined_call_operand.vmem [shape: f32[4,2048], index: 8, kind: output, shape index: {}]
  %s9 = sld [smem:[#allocation0]]
  $region42: #{up_forward.1} parent=0
    _
  %s11 = ssub.s32 1, %s9
  %s12 = scalar_select 0, %s11, %s9
  // Predicated region
  $region2: #{up_forward.1} parent=0 // pred_check
    _
  $region3: #{up_forward.1} parent=0 // pred_check_branch
    %14 = sbr.rel (0) target = $region5
  $region4: #{up_forward.1} parent=0 // pred_region
    _
  $region5: #{up_forward.1} parent=0 // pred_fallthru
    _
  // Predicated region
  $region6: #{up_forward.1} parent=0 // pred_check
    _
  $region7: #{up_forward.1} parent=0 // pred_check_branch
    %16 = sbr.rel (0) target = $region9
  $region8: #{up_forward.1} parent=0 // pred_region
    _
  $region9: #{up_forward.1} parent=0 // pred_fallthru
    _
  // Predicated region
  $region10: #{up_forward.1} parent=0 // pred_check
    _
  $region11: #{up_forward.1} parent=0 // pred_check_branch
    %18 = sbr.rel (0) target = $region13
  $region12: #{up_forward.1} parent=0 // pred_region
    _
  $region13: #{up_forward.1} parent=0 // pred_fallthru
    _
  // Predicated region
  $region14: #{up_forward.1} parent=0 // pred_check
    _
  $region15: #{up_forward.1} parent=0 // pred_check_branch
    %20 = sbr.rel (0) target = $region17
  $region16: #{up_forward.1} parent=0 // pred_region
    _
  $region17: #{up_forward.1} parent=0 // pred_fallthru
    _
  // Predicated region
  $region18: #{up_forward.1} parent=0 // pred_check
    _
  $region19: #{up_forward.1} parent=0 // pred_check_branch
    %22 = sbr.rel (0) target = $region21
  $region20: #{up_forward.1} parent=0 // pred_region
    _
  $region21: #{up_forward.1} parent=0 // pred_fallthru
    _
  // Predicated region
  $region22: #{up_forward.1} parent=0 // pred_check
    _
  $region23: #{up_forward.1} parent=0 // pred_check_branch
    %24 = sbr.rel (0) target = $region25
  $region24: #{up_forward.1} parent=0 // pred_region
    _
  $region25: #{up_forward.1} parent=0 // pred_fallthru
    _
  // Predicated region
  $region26: #{up_forward.1} parent=0 // pred_check
    _
  $region27: #{up_forward.1} parent=0 // pred_check_branch
    %26 = sbr.rel (0) target = $region29
  $region28: #{up_forward.1} parent=0 // pred_region
    _
  $region29: #{up_forward.1} parent=0 // pred_fallthru
    _
  // Predicated region
  $region30: #{up_forward.1} parent=0 // pred_check
    _
  $region31: #{up_forward.1} parent=0 // pred_check_branch
    %28 = sbr.rel (0) target = $region33
  $region32: #{up_forward.1} parent=0 // pred_region
    _
  $region33: #{up_forward.1} parent=0 // pred_fallthru
    _
  %v29 = vld [vmem:[%s7] sm:$0xff]
  %v30 = vld [vmem:[%s7 + $0x8] sm:$0xff]
  %v31 = vld [vmem:[%s0] sm:$0xff]
  %v32 = vld [vmem:[%s0 + $0x8] sm:$0xff]
  %v33 = vld [vmem:[%s0 + $0x10] sm:$0xff]
  %v34 = vld [vmem:[%s0 + $0x18] sm:$0xff]
  %v35 = vld [vmem:[%s0 + $0x20] sm:$0xff]
  %v36 = vld [vmem:[%s0 + $0x28] sm:$0xff]
  %v37 = vld [vmem:[%s0 + $0x30] sm:$0xff]
  %v38 = vld [vmem:[%s0 + $0x38] sm:$0xff]
  %v39 = vld [vmem:[%s0 + $0x40] sm:$0xff]
  %v40 = vld [vmem:[%s0 + $0x48] sm:$0xff]
  %v41 = vld [vmem:[%s0 + $0x50] sm:$0xff]
  %v42 = vld [vmem:[%s0 + $0x58] sm:$0xff]
  %v43 = vld [vmem:[%s0 + $0x60] sm:$0xff]
  %v44 = vld [vmem:[%s0 + $0x68] sm:$0xff]
  %v45 = vld [vmem:[%s0 + $0x70] sm:$0xff]
  %v46 = vld [vmem:[%s0 + $0x78] sm:$0xff]
  %v47 = vld [vmem:[%s0 + $0x80] sm:$0xff]
  %65 = vrot.lane.b32.xlu0 %v31, 111
  %v66 = vpop.permute.xlu0 %65
  %67 = vrot.lane.b32.xlu0 %v32, 111
  %v68 = vpop.permute.xlu0 %67
  %69 = vrot.lane.b32.xlu0 %v33, 111
  %v70 = vpop.permute.xlu0 %69
  %71 = vrot.lane.b32.xlu0 %v34, 111
  %v72 = vpop.permute.xlu0 %71
  %73 = vrot.lane.b32.xlu0 %v35, 111
  %v74 = vpop.permute.xlu0 %73
  %75 = vrot.lane.b32.xlu0 %v36, 111
  %v76 = vpop.permute.xlu0 %75
  %77 = vrot.lane.b32.xlu0 %v37, 111
  %v78 = vpop.permute.xlu0 %77
  %79 = vrot.lane.b32.xlu0 %v38, 111
  %v80 = vpop.permute.xlu0 %79
  %81 = vrot.lane.b32.xlu0 %v39, 111
  %v82 = vpop.permute.xlu0 %81
  %83 = vrot.lane.b32.xlu0 %v40, 111
  %v84 = vpop.permute.xlu0 %83
  %85 = vrot.lane.b32.xlu0 %v41, 111
  %v86 = vpop.permute.xlu0 %85
  %87 = vrot.lane.b32.xlu0 %v42, 111
  %v88 = vpop.permute.xlu0 %87
  %89 = vrot.lane.b32.xlu0 %v43, 111
  %v90 = vpop.permute.xlu0 %89
  %91 = vrot.lane.b32.xlu0 %v44, 111
  %v92 = vpop.permute.xlu0 %91
  %93 = vrot.lane.b32.xlu0 %v45, 111
  %v94 = vpop.permute.xlu0 %93
  %95 = vrot.lane.b32.xlu0 %v46, 111
  %v96 = vpop.permute.xlu0 %95
  %97 = vrot.lane.b32.xlu0 %v47, 111
  %v98 = vpop.permute.xlu0 %97
  %vm99 = vcmask 908288
  %v100 = vsel %vm99, %v66, %v68
  %v101 = vsel %vm99, %v68, %v70
  %v102 = vsel %vm99, %v70, %v72
  %v103 = vsel %vm99, %v72, %v74
  %v104 = vsel %vm99, %v74, %v76
  %v105 = vsel %vm99, %v76, %v78
  %v106 = vsel %vm99, %v78, %v80
  %v107 = vsel %vm99, %v80, %v82
  %v108 = vsel %vm99, %v82, %v84
  %v109 = vsel %vm99, %v84, %v86
  %v110 = vsel %vm99, %v86, %v88
  %v111 = vsel %vm99, %v88, %v90
  %v112 = vsel %vm99, %v90, %v92
  %v113 = vsel %vm99, %v92, %v94
  %v114 = vsel %vm99, %v94, %v96
  %v115 = vsel %vm99, %v96, %v98
  %132 = vst [vmem:[#allocation2] sm:$0xff] %v100
  %133 = vst [vmem:[#allocation2 + $0x8] sm:$0xff] %v101
  %134 = vst [vmem:[#allocation2 + $0x10] sm:$0xff] %v102
  %135 = vst [vmem:[#allocation2 + $0x18] sm:$0xff] %v103
  %136 = vst [vmem:[#allocation2 + $0x20] sm:$0xff] %v104
  %137 = vst [vmem:[#allocation2 + $0x28] sm:$0xff] %v105
  %138 = vst [vmem:[#allocation2 + $0x30] sm:$0xff] %v106
  %139 = vst [vmem:[#allocation2 + $0x38] sm:$0xff] %v107
  %140 = vst [vmem:[#allocation2 + $0x40] sm:$0xff] %v108
  %141 = vst [vmem:[#allocation2 + $0x48] sm:$0xff] %v109
  %142 = vst [vmem:[#allocation2 + $0x50] sm:$0xff] %v110
  %143 = vst [vmem:[#allocation2 + $0x58] sm:$0xff] %v111
  %144 = vst [vmem:[#allocation2 + $0x60] sm:$0xff] %v112
  %145 = vst [vmem:[#allocation2 + $0x68] sm:$0xff] %v113
  %146 = vst [vmem:[#allocation2 + $0x70] sm:$0xff] %v114
  %147 = vst [vmem:[#allocation2 + $0x78] sm:$0xff] %v115
  %v148 = vld [vmem:[%s0] sm:$0xff]
  %v149 = vld [vmem:[%s0 + $0x8] sm:$0xff]
  %v150 = vld [vmem:[%s0 + $0x10] sm:$0xff]
  %v151 = vld [vmem:[%s0 + $0x18] sm:$0xff]
  %v152 = vld [vmem:[%s0 + $0x20] sm:$0xff]
  %v153 = vld [vmem:[%s0 + $0x28] sm:$0xff]
  %v154 = vld [vmem:[%s0 + $0x30] sm:$0xff]
  %v155 = vld [vmem:[%s0 + $0x38] sm:$0xff]
  %v156 = vld [vmem:[%s0 + $0x40] sm:$0xff]
  %v157 = vld [vmem:[%s0 + $0x48] sm:$0xff]
  %v158 = vld [vmem:[%s0 + $0x50] sm:$0xff]
  %v159 = vld [vmem:[%s0 + $0x58] sm:$0xff]
  %v160 = vld [vmem:[%s0 + $0x60] sm:$0xff]
  %v161 = vld [vmem:[%s0 + $0x68] sm:$0xff]
  %v162 = vld [vmem:[%s0 + $0x70] sm:$0xff]
  %v163 = vld [vmem:[%s0 + $0x78] sm:$0xff]
  %v164 = vld [vmem:[%s0 + $0x80] sm:$0xff]
  %182 = vrot.lane.b32.xlu0 %v148, 110
  %v183 = vpop.permute.xlu0 %182
  %184 = vrot.lane.b32.xlu0 %v149, 110
  %v185 = vpop.permute.xlu0 %184
  %186 = vrot.lane.b32.xlu0 %v150, 110
  %v187 = vpop.permute.xlu0 %186
  %188 = vrot.lane.b32.xlu0 %v151, 110
  %v189 = vpop.permute.xlu0 %188
  %190 = vrot.lane.b32.xlu0 %v152, 110
  %v191 = vpop.permute.xlu0 %190
  %192 = vrot.lane.b32.xlu0 %v153, 110
  %v193 = vpop.permute.xlu0 %192
  %194 = vrot.lane.b32.xlu0 %v154, 110
  %v195 = vpop.permute.xlu0 %194
  %196 = vrot.lane.b32.xlu0 %v155, 110
  %v197 = vpop.permute.xlu0 %196
  %198 = vrot.lane.b32.xlu0 %v156, 110
  %v199 = vpop.permute.xlu0 %198
  %200 = vrot.lane.b32.xlu0 %v157, 110
  %v201 = vpop.permute.xlu0 %200
  %202 = vrot.lane.b32.xlu0 %v158, 110
  %v203 = vpop.permute.xlu0 %202
  %204 = vrot.lane.b32.xlu0 %v159, 110
  %v205 = vpop.permute.xlu0 %204
  %206 = vrot.lane.b32.xlu0 %v160, 110
  %v207 = vpop.permute.xlu0 %206
  %208 = vrot.lane.b32.xlu0 %v161, 110
  %v209 = vpop.permute.xlu0 %208
  %210 = vrot.lane.b32.xlu0 %v162, 110
  %v211 = vpop.permute.xlu0 %210
  %212 = vrot.lane.b32.xlu0 %v163, 110
  %v213 = vpop.permute.xlu0 %212
  %214 = vrot.lane.b32.xlu0 %v164, 110
  %v215 = vpop.permute.xlu0 %214
  %vm216 = vcmask 900096
  %v217 = vsel %vm216, %v183, %v185
  %v218 = vsel %vm216, %v185, %v187
  %v219 = vsel %vm216, %v187, %v189
  %v220 = vsel %vm216, %v189, %v191
  %v221 = vsel %vm216, %v191, %v193
  %v222 = vsel %vm216, %v193, %v195
  %v223 = vsel %vm216, %v195, %v197
  %v224 = vsel %vm216, %v197, %v199
  %v225 = vsel %vm216, %v199, %v201
  %v226 = vsel %vm216, %v201, %v203
  %v227 = vsel %vm216, %v203, %v205
  %v228 = vsel %vm216, %v205, %v207
  %v229 = vsel %vm216, %v207, %v209
  %v230 = vsel %vm216, %v209, %v211
  %v231 = vsel %vm216, %v211, %v213
  %v232 = vsel %vm216, %v213, %v215
  %249 = vst [vmem:[#allocation2 + $0x80] sm:$0xff] %v217
  %250 = vst [vmem:[#allocation2 + $0x88] sm:$0xff] %v218
  %251 = vst [vmem:[#allocation2 + $0x90] sm:$0xff] %v219
  %252 = vst [vmem:[#allocation2 + $0x98] sm:$0xff] %v220
  %253 = vst [vmem:[#allocation2 + $0xa0] sm:$0xff] %v221
  %254 = vst [vmem:[#allocation2 + $0xa8] sm:$0xff] %v222
  %255 = vst [vmem:[#allocation2 + $0xb0] sm:$0xff] %v223
  %256 = vst [vmem:[#allocation2 + $0xb8] sm:$0xff] %v224
  %257 = vst [vmem:[#allocation2 + $0xc0] sm:$0xff] %v225
  %258 = vst [vmem:[#allocation2 + $0xc8] sm:$0xff] %v226
  %259 = vst [vmem:[#allocation2 + $0xd0] sm:$0xff] %v227
  %260 = vst [vmem:[#allocation2 + $0xd8] sm:$0xff] %v228
  %261 = vst [vmem:[#allocation2 + $0xe0] sm:$0xff] %v229
  %262 = vst [vmem:[#allocation2 + $0xe8] sm:$0xff] %v230
  %263 = vst [vmem:[#allocation2 + $0xf0] sm:$0xff] %v231
  %264 = vst [vmem:[#allocation2 + $0xf8] sm:$0xff] %v232
  %v265 = vld [vmem:[%s0] sm:$0xff]
  %v266 = vld [vmem:[%s0 + $0x8] sm:$0xff]
  %v267 = vld [vmem:[%s0 + $0x10] sm:$0xff]
  %v268 = vld [vmem:[%s0 + $0x18] sm:$0xff]
  %v269 = vld [vmem:[%s0 + $0x20] sm:$0xff]
  %v270 = vld [vmem:[%s0 + $0x28] sm:$0xff]
  %v271 = vld [vmem:[%s0 + $0x30] sm:$0xff]
  %v272 = vld [vmem:[%s0 + $0x38] sm:$0xff]
  %v273 = vld [vmem:[%s0 + $0x40] sm:$0xff]
  %v274 = vld [vmem:[%s0 + $0x48] sm:$0xff]
  %v275 = vld [vmem:[%s0 + $0x50] sm:$0xff]
  %v276 = vld [vmem:[%s0 + $0x58] sm:$0xff]
  %v277 = vld [vmem:[%s0 + $0x60] sm:$0xff]
  %v278 = vld [vmem:[%s0 + $0x68] sm:$0xff]
  %v279 = vld [vmem:[%s0 + $0x70] sm:$0xff]
  %v280 = vld [vmem:[%s0 + $0x78] sm:$0xff]
  %v281 = vld [vmem:[%s0 + $0x80] sm:$0xff]
  %299 = vrot.lane.b32.xlu0 %v265, 109
  %v300 = vpop.permute.xlu0 %299
  %301 = vrot.lane.b32.xlu0 %v266, 109
  %v302 = vpop.permute.xlu0 %301
  %303 = vrot.lane.b32.xlu0 %v267, 109
  %v304 = vpop.permute.xlu0 %303
  %305 = vrot.lane.b32.xlu0 %v268, 109
  %v306 = vpop.permute.xlu0 %305
  %307 = vrot.lane.b32.xlu0 %v269, 109
  %v308 = vpop.permute.xlu0 %307
  %309 = vrot.lane.b32.xlu0 %v270, 109
  %v310 = vpop.permute.xlu0 %309
  %311 = vrot.lane.b32.xlu0 %v271, 109
  %v312 = vpop.permute.xlu0 %311
  %313 = vrot.lane.b32.xlu0 %v272, 109
  %v314 = vpop.permute.xlu0 %313
  %315 = vrot.lane.b32.xlu0 %v273, 109
  %v316 = vpop.permute.xlu0 %315
  %317 = vrot.lane.b32.xlu0 %v274, 109
  %v318 = vpop.permute.xlu0 %317
  %319 = vrot.lane.b32.xlu0 %v275, 109
  %v320 = vpop.permute.xlu0 %319
  %321 = vrot.lane.b32.xlu0 %v276, 109
  %v322 = vpop.permute.xlu0 %321
  %323 = vrot.lane.b32.xlu0 %v277, 109
  %v324 = vpop.permute.xlu0 %323
  %325 = vrot.lane.b32.xlu0 %v278, 109
  %v326 = vpop.permute.xlu0 %325
  %327 = vrot.lane.b32.xlu0 %v279, 109
  %v328 = vpop.permute.xlu0 %327
  %329 = vrot.lane.b32.xlu0 %v280, 109
  %v330 = vpop.permute.xlu0 %329
  %331 = vrot.lane.b32.xlu0 %v281, 109
  %v332 = vpop.permute.xlu0 %331
  %vm333 = vcmask 891904
  %v334 = vsel %vm333, %v300, %v302
  %v335 = vsel %vm333, %v302, %v304
  %v336 = vsel %vm333, %v304, %v306
  %v337 = vsel %vm333, %v306, %v308
  %v338 = vsel %vm333, %v308, %v310
  %v339 = vsel %vm333, %v310, %v312
  %v340 = vsel %vm333, %v312, %v314
  %v341 = vsel %vm333, %v314, %v316
  %v342 = vsel %vm333, %v316, %v318
  %v343 = vsel %vm333, %v318, %v320
  %v344 = vsel %vm333, %v320, %v322
  %v345 = vsel %vm333, %v322, %v324
  %v346 = vsel %vm333, %v324, %v326
  %v347 = vsel %vm333, %v326, %v328
  %v348 = vsel %vm333, %v328, %v330
  %v349 = vsel %vm333, %v330, %v332
  %366 = vst [vmem:[#allocation2 + $0x100] sm:$0xff] %v334
  %367 = vst [vmem:[#allocation2 + $0x108] sm:$0xff] %v335
  %368 = vst [vmem:[#allocation2 + $0x110] sm:$0xff] %v336
  %369 = vst [vmem:[#allocation2 + $0x118] sm:$0xff] %v337
  %370 = vst [vmem:[#allocation2 + $0x120] sm:$0xff] %v338
  %371 = vst [vmem:[#allocation2 + $0x128] sm:$0xff] %v339
  %372 = vst [vmem:[#allocation2 + $0x130] sm:$0xff] %v340
  %373 = vst [vmem:[#allocation2 + $0x138] sm:$0xff] %v341
  %374 = vst [vmem:[#allocation2 + $0x140] sm:$0xff] %v342
  %375 = vst [vmem:[#allocation2 + $0x148] sm:$0xff] %v343
  %376 = vst [vmem:[#allocation2 + $0x150] sm:$0xff] %v344
  %377 = vst [vmem:[#allocation2 + $0x158] sm:$0xff] %v345
  %378 = vst [vmem:[#allocation2 + $0x160] sm:$0xff] %v346
  %379 = vst [vmem:[#allocation2 + $0x168] sm:$0xff] %v347
  %380 = vst [vmem:[#allocation2 + $0x170] sm:$0xff] %v348
  %381 = vst [vmem:[#allocation2 + $0x178] sm:$0xff] %v349
  %v382 = vld [vmem:[%s0] sm:$0xff]
  %v383 = vld [vmem:[%s0 + $0x8] sm:$0xff]
  %v384 = vld [vmem:[%s0 + $0x10] sm:$0xff]
  %v385 = vld [vmem:[%s0 + $0x18] sm:$0xff]
  %v386 = vld [vmem:[%s0 + $0x20] sm:$0xff]
  %v387 = vld [vmem:[%s0 + $0x28] sm:$0xff]
  %v388 = vld [vmem:[%s0 + $0x30] sm:$0xff]
  %v389 = vld [vmem:[%s0 + $0x38] sm:$0xff]
  %v390 = vld [vmem:[%s0 + $0x40] sm:$0xff]
  %v391 = vld [vmem:[%s0 + $0x48] sm:$0xff]
  %v392 = vld [vmem:[%s0 + $0x50] sm:$0xff]
  %v393 = vld [vmem:[%s0 + $0x58] sm:$0xff]
  %v394 = vld [vmem:[%s0 + $0x60] sm:$0xff]
  %v395 = vld [vmem:[%s0 + $0x68] sm:$0xff]
  %v396 = vld [vmem:[%s0 + $0x70] sm:$0xff]
  %v397 = vld [vmem:[%s0 + $0x78] sm:$0xff]
  %v398 = vld [vmem:[%s0 + $0x80] sm:$0xff]
  %416 = vrot.lane.b32.xlu0 %v382, 101
  %v417 = vpop.permute.xlu0 %416
  %418 = vrot.lane.b32.xlu0 %v383, 101
  %v419 = vpop.permute.xlu0 %418
  %420 = vrot.lane.b32.xlu0 %v384, 101
  %v421 = vpop.permute.xlu0 %420
  %422 = vrot.lane.b32.xlu0 %v385, 101
  %v423 = vpop.permute.xlu0 %422
  %424 = vrot.lane.b32.xlu0 %v386, 101
  %v425 = vpop.permute.xlu0 %424
  %426 = vrot.lane.b32.xlu0 %v387, 101
  %v427 = vpop.permute.xlu0 %426
  %428 = vrot.lane.b32.xlu0 %v388, 101
  %v429 = vpop.permute.xlu0 %428
  %430 = vrot.lane.b32.xlu0 %v389, 101
  %v431 = vpop.permute.xlu0 %430
  %432 = vrot.lane.b32.xlu0 %v390, 101
  %v433 = vpop.permute.xlu0 %432
  %434 = vrot.lane.b32.xlu0 %v391, 101
  %v435 = vpop.permute.xlu0 %434
  %436 = vrot.lane.b32.xlu0 %v392, 101
  %v437 = vpop.permute.xlu0 %436
  %438 = vrot.lane.b32.xlu0 %v393, 101
  %v439 = vpop.permute.xlu0 %438
  %440 = vrot.lane.b32.xlu0 %v394, 101
  %v441 = vpop.permute.xlu0 %440
  %442 = vrot.lane.b32.xlu0 %v395, 101
  %v443 = vpop.permute.xlu0 %442
  %444 = vrot.lane.b32.xlu0 %v396, 101
  %v445 = vpop.permute.xlu0 %444
  %446 = vrot.lane.b32.xlu0 %v397, 101
  %v447 = vpop.permute.xlu0 %446
  %448 = vrot.lane.b32.xlu0 %v398, 101
  %v449 = vpop.permute.xlu0 %448
  %vm450 = vcmask 826368
  %v451 = vsel %vm450, %v417, %v419
  %v452 = vsel %vm450, %v419, %v421
  %v453 = vsel %vm450, %v421, %v423
  %v454 = vsel %vm450, %v423, %v425
  %v455 = vsel %vm450, %v425, %v427
  %v456 = vsel %vm450, %v427, %v429
  %v457 = vsel %vm450, %v429, %v431
  %v458 = vsel %vm450, %v431, %v433
  %v459 = vsel %vm450, %v433, %v435
  %v460 = vsel %vm450, %v435, %v437
  %v461 = vsel %vm450, %v437, %v439
  %v462 = vsel %vm450, %v439, %v441
  %v463 = vsel %vm450, %v441, %v443
  %v464 = vsel %vm450, %v443, %v445
  %v465 = vsel %vm450, %v445, %v447
  %v466 = vsel %vm450, %v447, %v449
  %483 = vst [vmem:[#allocation2 + $0x180] sm:$0xff] %v451
  %484 = vst [vmem:[#allocation2 + $0x188] sm:$0xff] %v452
  %485 = vst [vmem:[#allocation2 + $0x190] sm:$0xff] %v453
  %486 = vst [vmem:[#allocation2 + $0x198] sm:$0xff] %v454
  %487 = vst [vmem:[#allocation2 + $0x1a0] sm:$0xff] %v455
  %488 = vst [vmem:[#allocation2 + $0x1a8] sm:$0xff] %v456
  %489 = vst [vmem:[#allocation2 + $0x1b0] sm:$0xff] %v457
  %490 = vst [vmem:[#allocation2 + $0x1b8] sm:$0xff] %v458
  %491 = vst [vmem:[#allocation2 + $0x1c0] sm:$0xff] %v459
  %492 = vst [vmem:[#allocation2 + $0x1c8] sm:$0xff] %v460
  %493 = vst [vmem:[#allocation2 + $0x1d0] sm:$0xff] %v461
  %494 = vst [vmem:[#allocation2 + $0x1d8] sm:$0xff] %v462
  %495 = vst [vmem:[#allocation2 + $0x1e0] sm:$0xff] %v463
  %496 = vst [vmem:[#allocation2 + $0x1e8] sm:$0xff] %v464
  %497 = vst [vmem:[#allocation2 + $0x1f0] sm:$0xff] %v465
  %498 = vst [vmem:[#allocation2 + $0x1f8] sm:$0xff] %v466
  %v499 = vld [vmem:[%s0] sm:$0xff]
  %v500 = vld [vmem:[%s0 + $0x8] sm:$0xff]
  %v501 = vld [vmem:[%s0 + $0x10] sm:$0xff]
  %v502 = vld [vmem:[%s0 + $0x18] sm:$0xff]
  %v503 = vld [vmem:[%s0 + $0x20] sm:$0xff]
  %v504 = vld [vmem:[%s0 + $0x28] sm:$0xff]
  %v505 = vld [vmem:[%s0 + $0x30] sm:$0xff]
  %v506 = vld [vmem:[%s0 + $0x38] sm:$0xff]
  %v507 = vld [vmem:[%s0 + $0x40] sm:$0xff]
  %v508 = vld [vmem:[%s0 + $0x48] sm:$0xff]
  %v509 = vld [vmem:[%s0 + $0x50] sm:$0xff]
  %v510 = vld [vmem:[%s0 + $0x58] sm:$0xff]
  %v511 = vld [vmem:[%s0 + $0x60] sm:$0xff]
  %v512 = vld [vmem:[%s0 + $0x68] sm:$0xff]
  %v513 = vld [vmem:[%s0 + $0x70] sm:$0xff]
  %v514 = vld [vmem:[%s0 + $0x78] sm:$0xff]
  %v515 = vld [vmem:[%s0 + $0x80] sm:$0xff]
  %533 = vrot.lane.b32.xlu0 %v499, 100
  %v534 = vpop.permute.xlu0 %533
  %535 = vrot.lane.b32.xlu0 %v500, 100
  %v536 = vpop.permute.xlu0 %535
  %537 = vrot.lane.b32.xlu0 %v501, 100
  %v538 = vpop.permute.xlu0 %537
  %539 = vrot.lane.b32.xlu0 %v502, 100
  %v540 = vpop.permute.xlu0 %539
  %541 = vrot.lane.b32.xlu0 %v503, 100
  %v542 = vpop.permute.xlu0 %541
  %543 = vrot.lane.b32.xlu0 %v504, 100
  %v544 = vpop.permute.xlu0 %543
  %545 = vrot.lane.b32.xlu0 %v505, 100
  %v546 = vpop.permute.xlu0 %545
  %547 = vrot.lane.b32.xlu0 %v506, 100
  %v548 = vpop.permute.xlu0 %547
  %549 = vrot.lane.b32.xlu0 %v507, 100
  %v550 = vpop.permute.xlu0 %549
  %551 = vrot.lane.b32.xlu0 %v508, 100
  %v552 = vpop.permute.xlu0 %551
  %553 = vrot.lane.b32.xlu0 %v509, 100
  %v554 = vpop.permute.xlu0 %553
  %555 = vrot.lane.b32.xlu0 %v510, 100
  %v556 = vpop.permute.xlu0 %555
  %557 = vrot.lane.b32.xlu0 %v511, 100
  %v558 = vpop.permute.xlu0 %557
  %559 = vrot.lane.b32.xlu0 %v512, 100
  %v560 = vpop.permute.xlu0 %559
  %561 = vrot.lane.b32.xlu0 %v513, 100
  %v562 = vpop.permute.xlu0 %561
  %563 = vrot.lane.b32.xlu0 %v514, 100
  %v564 = vpop.permute.xlu0 %563
  %565 = vrot.lane.b32.xlu0 %v515, 100
  %v566 = vpop.permute.xlu0 %565
  %vm567 = vcmask 818176
  %v568 = vsel %vm567, %v534, %v536
  %v569 = vsel %vm567, %v536, %v538
  %v570 = vsel %vm567, %v538, %v540
  %v571 = vsel %vm567, %v540, %v542
  %v572 = vsel %vm567, %v542, %v544
  %v573 = vsel %vm567, %v544, %v546
  %v574 = vsel %vm567, %v546, %v548
  %v575 = vsel %vm567, %v548, %v550
  %v576 = vsel %vm567, %v550, %v552
  %v577 = vsel %vm567, %v552, %v554
  %v578 = vsel %vm567, %v554, %v556
  %v579 = vsel %vm567, %v556, %v558
  %v580 = vsel %vm567, %v558, %v560
  %v581 = vsel %vm567, %v560, %v562
  %v582 = vsel %vm567, %v562, %v564
  %v583 = vsel %vm567, %v564, %v566
  %600 = vst [vmem:[#allocation2 + $0x200] sm:$0xff] %v568
  %601 = vst [vmem:[#allocation2 + $0x208] sm:$0xff] %v569
  %602 = vst [vmem:[#allocation2 + $0x210] sm:$0xff] %v570
  %603 = vst [vmem:[#allocation2 + $0x218] sm:$0xff] %v571
  %604 = vst [vmem:[#allocation2 + $0x220] sm:$0xff] %v572
  %605 = vst [vmem:[#allocation2 + $0x228] sm:$0xff] %v573
  %606 = vst [vmem:[#allocation2 + $0x230] sm:$0xff] %v574
  %607 = vst [vmem:[#allocation2 + $0x238] sm:$0xff] %v575
  %608 = vst [vmem:[#allocation2 + $0x240] sm:$0xff] %v576
  %609 = vst [vmem:[#allocation2 + $0x248] sm:$0xff] %v577
  %610 = vst [vmem:[#allocation2 + $0x250] sm:$0xff] %v578
  %611 = vst [vmem:[#allocation2 + $0x258] sm:$0xff] %v579
  %612 = vst [vmem:[#allocation2 + $0x260] sm:$0xff] %v580
  %613 = vst [vmem:[#allocation2 + $0x268] sm:$0xff] %v581
  %614 = vst [vmem:[#allocation2 + $0x270] sm:$0xff] %v582
  %615 = vst [vmem:[#allocation2 + $0x278] sm:$0xff] %v583
  %v616 = vld [vmem:[%s0] sm:$0xff]
  %v617 = vld [vmem:[%s0 + $0x8] sm:$0xff]
  %v618 = vld [vmem:[%s0 + $0x10] sm:$0xff]
  %v619 = vld [vmem:[%s0 + $0x18] sm:$0xff]
  %v620 = vld [vmem:[%s0 + $0x20] sm:$0xff]
  %v621 = vld [vmem:[%s0 + $0x28] sm:$0xff]
  %v622 = vld [vmem:[%s0 + $0x30] sm:$0xff]
  %v623 = vld [vmem:[%s0 + $0x38] sm:$0xff]
  %v624 = vld [vmem:[%s0 + $0x40] sm:$0xff]
  %v625 = vld [vmem:[%s0 + $0x48] sm:$0xff]
  %v626 = vld [vmem:[%s0 + $0x50] sm:$0xff]
  %v627 = vld [vmem:[%s0 + $0x58] sm:$0xff]
  %v628 = vld [vmem:[%s0 + $0x60] sm:$0xff]
  %v629 = vld [vmem:[%s0 + $0x68] sm:$0xff]
  %v630 = vld [vmem:[%s0 + $0x70] sm:$0xff]
  %v631 = vld [vmem:[%s0 + $0x78] sm:$0xff]
  %v632 = vld [vmem:[%s0 + $0x80] sm:$0xff]
  %650 = vrot.lane.b32.xlu0 %v616, 99
  %v651 = vpop.permute.xlu0 %650
  %652 = vrot.lane.b32.xlu0 %v617, 99
  %v653 = vpop.permute.xlu0 %652
  %654 = vrot.lane.b32.xlu0 %v618, 99
  %v655 = vpop.permute.xlu0 %654
  %656 = vrot.lane.b32.xlu0 %v619, 99
  %v657 = vpop.permute.xlu0 %656
  %658 = vrot.lane.b32.xlu0 %v620, 99
  %v659 = vpop.permute.xlu0 %658
  %660 = vrot.lane.b32.xlu0 %v621, 99
  %v661 = vpop.permute.xlu0 %660
  %662 = vrot.lane.b32.xlu0 %v622, 99
  %v663 = vpop.permute.xlu0 %662
  %664 = vrot.lane.b32.xlu0 %v623, 99
  %v665 = vpop.permute.xlu0 %664
  %666 = vrot.lane.b32.xlu0 %v624, 99
  %v667 = vpop.permute.xlu0 %666
  %668 = vrot.lane.b32.xlu0 %v625, 99
  %v669 = vpop.permute.xlu0 %668
  %670 = vrot.lane.b32.xlu0 %v626, 99
  %v671 = vpop.permute.xlu0 %670
  %672 = vrot.lane.b32.xlu0 %v627, 99
  %v673 = vpop.permute.xlu0 %672
  %674 = vrot.lane.b32.xlu0 %v628, 99
  %v675 = vpop.permute.xlu0 %674
  %676 = vrot.lane.b32.xlu0 %v629, 99
  %v677 = vpop.permute.xlu0 %676
  %678 = vrot.lane.b32.xlu0 %v630, 99
  %v679 = vpop.permute.xlu0 %678
  %680 = vrot.lane.b32.xlu0 %v631, 99
  %v681 = vpop.permute.xlu0 %680
  %682 = vrot.lane.b32.xlu0 %v632, 99
  %v683 = vpop.permute.xlu0 %682
  %vm684 = vcmask 809984
  %v685 = vsel %vm684, %v651, %v653
  %v686 = vsel %vm684, %v653, %v655
  %v687 = vsel %vm684, %v655, %v657
  %v688 = vsel %vm684, %v657, %v659
  %v689 = vsel %vm684, %v659, %v661
  %v690 = vsel %vm684, %v661, %v663
  %v691 = vsel %vm684, %v663, %v665
  %v692 = vsel %vm684, %v665, %v667
  %v693 = vsel %vm684, %v667, %v669
  %v694 = vsel %vm684, %v669, %v671
  %v695 = vsel %vm684, %v671, %v673
  %v696 = vsel %vm684, %v673, %v675
  %v697 = vsel %vm684, %v675, %v677
  %v698 = vsel %vm684, %v677, %v679
  %v699 = vsel %vm684, %v679, %v681
  %v700 = vsel %vm684, %v681, %v683
  %717 = vst [vmem:[#allocation2 + $0x280] sm:$0xff] %v685
  %718 = vst [vmem:[#allocation2 + $0x288] sm:$0xff] %v686
  %719 = vst [vmem:[#allocation2 + $0x290] sm:$0xff] %v687
  %720 = vst [vmem:[#allocation2 + $0x298] sm:$0xff] %v688
  %721 = vst [vmem:[#allocation2 + $0x2a0] sm:$0xff] %v689
  %722 = vst [vmem:[#allocation2 + $0x2a8] sm:$0xff] %v690
  %723 = vst [vmem:[#allocation2 + $0x2b0] sm:$0xff] %v691
  %724 = vst [vmem:[#allocation2 + $0x2b8] sm:$0xff] %v692
  %725 = vst [vmem:[#allocation2 + $0x2c0] sm:$0xff] %v693
  %726 = vst [vmem:[#allocation2 + $0x2c8] sm:$0xff] %v694
  %727 = vst [vmem:[#allocation2 + $0x2d0] sm:$0xff] %v695
  %728 = vst [vmem:[#allocation2 + $0x2d8] sm:$0xff] %v696
  %729 = vst [vmem:[#allocation2 + $0x2e0] sm:$0xff] %v697
  %730 = vst [vmem:[#allocation2 + $0x2e8] sm:$0xff] %v698
  %731 = vst [vmem:[#allocation2 + $0x2f0] sm:$0xff] %v699
  %732 = vst [vmem:[#allocation2 + $0x2f8] sm:$0xff] %v700
  %v733 = vld [vmem:[%s0] sm:$0xff]
  %v734 = vld [vmem:[%s0 + $0x8] sm:$0xff]
  %v735 = vld [vmem:[%s0 + $0x10] sm:$0xff]
  %v736 = vld [vmem:[%s0 + $0x18] sm:$0xff]
  %v737 = vld [vmem:[%s0 + $0x20] sm:$0xff]
  %v738 = vld [vmem:[%s0 + $0x28] sm:$0xff]
  %v739 = vld [vmem:[%s0 + $0x30] sm:$0xff]
  %v740 = vld [vmem:[%s0 + $0x38] sm:$0xff]
  %v741 = vld [vmem:[%s0 + $0x40] sm:$0xff]
  %v742 = vld [vmem:[%s0 + $0x48] sm:$0xff]
  %v743 = vld [vmem:[%s0 + $0x50] sm:$0xff]
  %v744 = vld [vmem:[%s0 + $0x58] sm:$0xff]
  %v745 = vld [vmem:[%s0 + $0x60] sm:$0xff]
  %v746 = vld [vmem:[%s0 + $0x68] sm:$0xff]
  %v747 = vld [vmem:[%s0 + $0x70] sm:$0xff]
  %v748 = vld [vmem:[%s0 + $0x78] sm:$0xff]
  %v749 = vld [vmem:[%s0 + $0x80] sm:$0xff]
  %767 = vrot.lane.b32.xlu0 %v733, 91
  %v768 = vpop.permute.xlu0 %767
  %769 = vrot.lane.b32.xlu0 %v734, 91
  %v770 = vpop.permute.xlu0 %769
  %771 = vrot.lane.b32.xlu0 %v735, 91
  %v772 = vpop.permute.xlu0 %771
  %773 = vrot.lane.b32.xlu0 %v736, 91
  %v774 = vpop.permute.xlu0 %773
  %775 = vrot.lane.b32.xlu0 %v737, 91
  %v776 = vpop.permute.xlu0 %775
  %777 = vrot.lane.b32.xlu0 %v738, 91
  %v778 = vpop.permute.xlu0 %777
  %779 = vrot.lane.b32.xlu0 %v739, 91
  %v780 = vpop.permute.xlu0 %779
  %781 = vrot.lane.b32.xlu0 %v740, 91
  %v782 = vpop.permute.xlu0 %781
  %783 = vrot.lane.b32.xlu0 %v741, 91
  %v784 = vpop.permute.xlu0 %783
  %785 = vrot.lane.b32.xlu0 %v742, 91
  %v786 = vpop.permute.xlu0 %785
  %787 = vrot.lane.b32.xlu0 %v743, 91
  %v788 = vpop.permute.xlu0 %787
  %789 = vrot.lane.b32.xlu0 %v744, 91
  %v790 = vpop.permute.xlu0 %789
  %791 = vrot.lane.b32.xlu0 %v745, 91
  %v792 = vpop.permute.xlu0 %791
  %793 = vrot.lane.b32.xlu0 %v746, 91
  %v794 = vpop.permute.xlu0 %793
  %795 = vrot.lane.b32.xlu0 %v747, 91
  %v796 = vpop.permute.xlu0 %795
  %797 = vrot.lane.b32.xlu0 %v748, 91
  %v798 = vpop.permute.xlu0 %797
  %799 = vrot.lane.b32.xlu0 %v749, 91
  %v800 = vpop.permute.xlu0 %799
  %vm801 = vcmask 744448
  %v802 = vsel %vm801, %v768, %v770
  %v803 = vsel %vm801, %v770, %v772
  %v804 = vsel %vm801, %v772, %v774
  %v805 = vsel %vm801, %v774, %v776
  %v806 = vsel %vm801, %v776, %v778
  %v807 = vsel %vm801, %v778, %v780
  %v808 = vsel %vm801, %v780, %v782
  %v809 = vsel %vm801, %v782, %v784
  %v810 = vsel %vm801, %v784, %v786
  %v811 = vsel %vm801, %v786, %v788
  %v812 = vsel %vm801, %v788, %v790
  %v813 = vsel %vm801, %v790, %v792
  %v814 = vsel %vm801, %v792, %v794
  %v815 = vsel %vm801, %v794, %v796
  %v816 = vsel %vm801, %v796, %v798
  %v817 = vsel %vm801, %v798, %v800
  %834 = vst [vmem:[#allocation2 + $0x300] sm:$0xff] %v802
  %835 = vst [vmem:[#allocation2 + $0x308] sm:$0xff] %v803
  %836 = vst [vmem:[#allocation2 + $0x310] sm:$0xff] %v804
  %837 = vst [vmem:[#allocation2 + $0x318] sm:$0xff] %v805
  %838 = vst [vmem:[#allocation2 + $0x320] sm:$0xff] %v806
  %839 = vst [vmem:[#allocation2 + $0x328] sm:$0xff] %v807
  %840 = vst [vmem:[#allocation2 + $0x330] sm:$0xff] %v808
  %841 = vst [vmem:[#allocation2 + $0x338] sm:$0xff] %v809
  %842 = vst [vmem:[#allocation2 + $0x340] sm:$0xff] %v810
  %843 = vst [vmem:[#allocation2 + $0x348] sm:$0xff] %v811
  %844 = vst [vmem:[#allocation2 + $0x350] sm:$0xff] %v812
  %845 = vst [vmem:[#allocation2 + $0x358] sm:$0xff] %v813
  %846 = vst [vmem:[#allocation2 + $0x360] sm:$0xff] %v814
  %847 = vst [vmem:[#allocation2 + $0x368] sm:$0xff] %v815
  %848 = vst [vmem:[#allocation2 + $0x370] sm:$0xff] %v816
  %849 = vst [vmem:[#allocation2 + $0x378] sm:$0xff] %v817
  %v850 = vld [vmem:[%s0] sm:$0xff]
  %v851 = vld [vmem:[%s0 + $0x8] sm:$0xff]
  %v852 = vld [vmem:[%s0 + $0x10] sm:$0xff]
  %v853 = vld [vmem:[%s0 + $0x18] sm:$0xff]
  %v854 = vld [vmem:[%s0 + $0x20] sm:$0xff]
  %v855 = vld [vmem:[%s0 + $0x28] sm:$0xff]
  %v856 = vld [vmem:[%s0 + $0x30] sm:$0xff]
  %v857 = vld [vmem:[%s0 + $0x38] sm:$0xff]
  %v858 = vld [vmem:[%s0 + $0x40] sm:$0xff]
  %v859 = vld [vmem:[%s0 + $0x48] sm:$0xff]
  %v860 = vld [vmem:[%s0 + $0x50] sm:$0xff]
  %v861 = vld [vmem:[%s0 + $0x58] sm:$0xff]
  %v862 = vld [vmem:[%s0 + $0x60] sm:$0xff]
  %v863 = vld [vmem:[%s0 + $0x68] sm:$0xff]
  %v864 = vld [vmem:[%s0 + $0x70] sm:$0xff]
  %v865 = vld [vmem:[%s0 + $0x78] sm:$0xff]
  %v866 = vld [vmem:[%s0 + $0x80] sm:$0xff]
  %884 = vrot.lane.b32.xlu0 %v850, 90
  %v885 = vpop.permute.xlu0 %884
  %886 = vrot.lane.b32.xlu0 %v851, 90
  %v887 = vpop.permute.xlu0 %886
  %888 = vrot.lane.b32.xlu0 %v852, 90
  %v889 = vpop.permute.xlu0 %888
  %890 = vrot.lane.b32.xlu0 %v853, 90
  %v891 = vpop.permute.xlu0 %890
  %892 = vrot.lane.b32.xlu0 %v854, 90
  %v893 = vpop.permute.xlu0 %892
  %894 = vrot.lane.b32.xlu0 %v855, 90
  %v895 = vpop.permute.xlu0 %894
  %896 = vrot.lane.b32.xlu0 %v856, 90
  %v897 = vpop.permute.xlu0 %896
  %898 = vrot.lane.b32.xlu0 %v857, 90
  %v899 = vpop.permute.xlu0 %898
  %900 = vrot.lane.b32.xlu0 %v858, 90
  %v901 = vpop.permute.xlu0 %900
  %902 = vrot.lane.b32.xlu0 %v859, 90
  %v903 = vpop.permute.xlu0 %902
  %904 = vrot.lane.b32.xlu0 %v860, 90
  %v905 = vpop.permute.xlu0 %904
  %906 = vrot.lane.b32.xlu0 %v861, 90
  %v907 = vpop.permute.xlu0 %906
  %908 = vrot.lane.b32.xlu0 %v862, 90
  %v909 = vpop.permute.xlu0 %908
  %910 = vrot.lane.b32.xlu0 %v863, 90
  %v911 = vpop.permute.xlu0 %910
  %912 = vrot.lane.b32.xlu0 %v864, 90
  %v913 = vpop.permute.xlu0 %912
  %914 = vrot.lane.b32.xlu0 %v865, 90
  %v915 = vpop.permute.xlu0 %914
  %916 = vrot.lane.b32.xlu0 %v866, 90
  %v917 = vpop.permute.xlu0 %916
  %vm918 = vcmask 736256
  %v919 = vsel %vm918, %v885, %v887
  %v920 = vsel %vm918, %v887, %v889
  %v921 = vsel %vm918, %v889, %v891
  %v922 = vsel %vm918, %v891, %v893
  %v923 = vsel %vm918, %v893, %v895
  %v924 = vsel %vm918, %v895, %v897
  %v925 = vsel %vm918, %v897, %v899
  %v926 = vsel %vm918, %v899, %v901
  %v927 = vsel %vm918, %v901, %v903
  %v928 = vsel %vm918, %v903, %v905
  %v929 = vsel %vm918, %v905, %v907
  %v930 = vsel %vm918, %v907, %v909
  %v931 = vsel %vm918, %v909, %v911
  %v932 = vsel %vm918, %v911, %v913
  %v933 = vsel %vm918, %v913, %v915
  %v934 = vsel %vm918, %v915, %v917
  %951 = vst [vmem:[#allocation2 + $0x380] sm:$0xff] %v919
  %952 = vst [vmem:[#allocation2 + $0x388] sm:$0xff] %v920
  %953 = vst [vmem:[#allocation2 + $0x390] sm:$0xff] %v921
  %954 = vst [vmem:[#allocation2 + $0x398] sm:$0xff] %v922
  %955 = vst [vmem:[#allocation2 + $0x3a0] sm:$0xff] %v923
  %956 = vst [vmem:[#allocation2 + $0x3a8] sm:$0xff] %v924
  %957 = vst [vmem:[#allocation2 + $0x3b0] sm:$0xff] %v925
  %958 = vst [vmem:[#allocation2 + $0x3b8] sm:$0xff] %v926
  %959 = vst [vmem:[#allocation2 + $0x3c0] sm:$0xff] %v927
  %960 = vst [vmem:[#allocation2 + $0x3c8] sm:$0xff] %v928
  %961 = vst [vmem:[#allocation2 + $0x3d0] sm:$0xff] %v929
  %962 = vst [vmem:[#allocation2 + $0x3d8] sm:$0xff] %v930
  %963 = vst [vmem:[#allocation2 + $0x3e0] sm:$0xff] %v931
  %964 = vst [vmem:[#allocation2 + $0x3e8] sm:$0xff] %v932
  %965 = vst [vmem:[#allocation2 + $0x3f0] sm:$0xff] %v933
  %966 = vst [vmem:[#allocation2 + $0x3f8] sm:$0xff] %v934
  %v967 = vld [vmem:[%s0] sm:$0xff]
  %v968 = vld [vmem:[%s0 + $0x8] sm:$0xff]
  %v969 = vld [vmem:[%s0 + $0x10] sm:$0xff]
  %v970 = vld [vmem:[%s0 + $0x18] sm:$0xff]
  %v971 = vld [vmem:[%s0 + $0x20] sm:$0xff]
  %v972 = vld [vmem:[%s0 + $0x28] sm:$0xff]
  %v973 = vld [vmem:[%s0 + $0x30] sm:$0xff]
  %v974 = vld [vmem:[%s0 + $0x38] sm:$0xff]
  %v975 = vld [vmem:[%s0 + $0x40] sm:$0xff]
  %v976 = vld [vmem:[%s0 + $0x48] sm:$0xff]
  %v977 = vld [vmem:[%s0 + $0x50] sm:$0xff]
  %v978 = vld [vmem:[%s0 + $0x58] sm:$0xff]
  %v979 = vld [vmem:[%s0 + $0x60] sm:$0xff]
  %v980 = vld [vmem:[%s0 + $0x68] sm:$0xff]
  %v981 = vld [vmem:[%s0 + $0x70] sm:$0xff]
  %v982 = vld [vmem:[%s0 + $0x78] sm:$0xff]
  %v983 = vld [vmem:[%s0 + $0x80] sm:$0xff]
  %1001 = vrot.lane.b32.xlu0 %v967, 89
  %v1002 = vpop.permute.xlu0 %1001
  %1003 = vrot.lane.b32.xlu0 %v968, 89
  %v1004 = vpop.permute.xlu0 %1003
  %1005 = vrot.lane.b32.xlu0 %v969, 89
  %v1006 = vpop.permute.xlu0 %1005
  %1007 = vrot.lane.b32.xlu0 %v970, 89
  %v1008 = vpop.permute.xlu0 %1007
  %1009 = vrot.lane.b32.xlu0 %v971, 89
  %v1010 = vpop.permute.xlu0 %1009
  %1011 = vrot.lane.b32.xlu0 %v972, 89
  %v1012 = vpop.permute.xlu0 %1011
  %1013 = vrot.lane.b32.xlu0 %v973, 89
  %v1014 = vpop.permute.xlu0 %1013
  %1015 = vrot.lane.b32.xlu0 %v974, 89
  %v1016 = vpop.permute.xlu0 %1015
  %1017 = vrot.lane.b32.xlu0 %v975, 89
  %v1018 = vpop.permute.xlu0 %1017
  %1019 = vrot.lane.b32.xlu0 %v976, 89
  %v1020 = vpop.permute.xlu0 %1019
  %1021 = vrot.lane.b32.xlu0 %v977, 89
  %v1022 = vpop.permute.xlu0 %1021
  %1023 = vrot.lane.b32.xlu0 %v978, 89
  %v1024 = vpop.permute.xlu0 %1023
  %1025 = vrot.lane.b32.xlu0 %v979, 89
  %v1026 = vpop.permute.xlu0 %1025
  %1027 = vrot.lane.b32.xlu0 %v980, 89
  %v1028 = vpop.permute.xlu0 %1027
  %1029 = vrot.lane.b32.xlu0 %v981, 89
  %v1030 = vpop.permute.xlu0 %1029
  %1031 = vrot.lane.b32.xlu0 %v982, 89
  %v1032 = vpop.permute.xlu0 %1031
  %1033 = vrot.lane.b32.xlu0 %v983, 89
  %v1034 = vpop.permute.xlu0 %1033
  %vm1035 = vcmask 728064
  %v1036 = vsel %vm1035, %v1002, %v1004
  %v1037 = vsel %vm1035, %v1004, %v1006
  %v1038 = vsel %vm1035, %v1006, %v1008
  %v1039 = vsel %vm1035, %v1008, %v1010
  %v1040 = vsel %vm1035, %v1010, %v1012
  %v1041 = vsel %vm1035, %v1012, %v1014
  %v1042 = vsel %vm1035, %v1014, %v1016
  %v1043 = vsel %vm1035, %v1016, %v1018
  %v1044 = vsel %vm1035, %v1018, %v1020
  %v1045 = vsel %vm1035, %v1020, %v1022
  %v1046 = vsel %vm1035, %v1022, %v1024
  %v1047 = vsel %vm1035, %v1024, %v1026
  %v1048 = vsel %vm1035, %v1026, %v1028
  %v1049 = vsel %vm1035, %v1028, %v1030
  %v1050 = vsel %vm1035, %v1030, %v1032
  %v1051 = vsel %vm1035, %v1032, %v1034
  %1068 = vst [vmem:[#allocation2 + $0x400] sm:$0xff] %v1036
  %1069 = vst [vmem:[#allocation2 + $0x408] sm:$0xff] %v1037
  %1070 = vst [vmem:[#allocation2 + $0x410] sm:$0xff] %v1038
  %1071 = vst [vmem:[#allocation2 + $0x418] sm:$0xff] %v1039
  %1072 = vst [vmem:[#allocation2 + $0x420] sm:$0xff] %v1040
  %1073 = vst [vmem:[#allocation2 + $0x428] sm:$0xff] %v1041
  %1074 = vst [vmem:[#allocation2 + $0x430] sm:$0xff] %v1042
  %1075 = vst [vmem:[#allocation2 + $0x438] sm:$0xff] %v1043
  %1076 = vst [vmem:[#allocation2 + $0x440] sm:$0xff] %v1044
  %1077 = vst [vmem:[#allocation2 + $0x448] sm:$0xff] %v1045
  %1078 = vst [vmem:[#allocation2 + $0x450] sm:$0xff] %v1046
  %1079 = vst [vmem:[#allocation2 + $0x458] sm:$0xff] %v1047
  %1080 = vst [vmem:[#allocation2 + $0x460] sm:$0xff] %v1048
  %1081 = vst [vmem:[#allocation2 + $0x468] sm:$0xff] %v1049
  %1082 = vst [vmem:[#allocation2 + $0x470] sm:$0xff] %v1050
  %1083 = vst [vmem:[#allocation2 + $0x478] sm:$0xff] %v1051
  %v1084 = vld [vmem:[%s0] sm:$0xff]
  %v1085 = vld [vmem:[%s0 + $0x8] sm:$0xff]
  %v1086 = vld [vmem:[%s0 + $0x10] sm:$0xff]
  %v1087 = vld [vmem:[%s0 + $0x18] sm:$0xff]
  %v1088 = vld [vmem:[%s0 + $0x20] sm:$0xff]
  %v1089 = vld [vmem:[%s0 + $0x28] sm:$0xff]
  %v1090 = vld [vmem:[%s0 + $0x30] sm:$0xff]
  %v1091 = vld [vmem:[%s0 + $0x38] sm:$0xff]
  %v1092 = vld [vmem:[%s0 + $0x40] sm:$0xff]
  %v1093 = vld [vmem:[%s0 + $0x48] sm:$0xff]
  %v1094 = vld [vmem:[%s0 + $0x50] sm:$0xff]
  %v1095 = vld [vmem:[%s0 + $0x58] sm:$0xff]
  %v1096 = vld [vmem:[%s0 + $0x60] sm:$0xff]
  %v1097 = vld [vmem:[%s0 + $0x68] sm:$0xff]
  %v1098 = vld [vmem:[%s0 + $0x70] sm:$0xff]
  %v1099 = vld [vmem:[%s0 + $0x78] sm:$0xff]
  %v1100 = vld [vmem:[%s0 + $0x80] sm:$0xff]
  %1118 = vrot.lane.b32.xlu0 %v1084, 11
  %v1119 = vpop.permute.xlu0 %1118
  %1120 = vrot.lane.b32.xlu0 %v1085, 11
  %v1121 = vpop.permute.xlu0 %1120
  %1122 = vrot.lane.b32.xlu0 %v1086, 11
  %v1123 = vpop.permute.xlu0 %1122
  %1124 = vrot.lane.b32.xlu0 %v1087, 11
  %v1125 = vpop.permute.xlu0 %1124
  %1126 = vrot.lane.b32.xlu0 %v1088, 11
  %v1127 = vpop.permute.xlu0 %1126
  %1128 = vrot.lane.b32.xlu0 %v1089, 11
  %v1129 = vpop.permute.xlu0 %1128
  %1130 = vrot.lane.b32.xlu0 %v1090, 11
  %v1131 = vpop.permute.xlu0 %1130
  %1132 = vrot.lane.b32.xlu0 %v1091, 11
  %v1133 = vpop.permute.xlu0 %1132
  %1134 = vrot.lane.b32.xlu0 %v1092, 11
  %v1135 = vpop.permute.xlu0 %1134
  %1136 = vrot.lane.b32.xlu0 %v1093, 11
  %v1137 = vpop.permute.xlu0 %1136
  %1138 = vrot.lane.b32.xlu0 %v1094, 11
  %v1139 = vpop.permute.xlu0 %1138
  %1140 = vrot.lane.b32.xlu0 %v1095, 11
  %v1141 = vpop.permute.xlu0 %1140
  %1142 = vrot.lane.b32.xlu0 %v1096, 11
  %v1143 = vpop.permute.xlu0 %1142
  %1144 = vrot.lane.b32.xlu0 %v1097, 11
  %v1145 = vpop.permute.xlu0 %1144
  %1146 = vrot.lane.b32.xlu0 %v1098, 11
  %v1147 = vpop.permute.xlu0 %1146
  %1148 = vrot.lane.b32.xlu0 %v1099, 11
  %v1149 = vpop.permute.xlu0 %1148
  %1150 = vrot.lane.b32.xlu0 %v1100, 11
  %v1151 = vpop.permute.xlu0 %1150
  %vm1152 = vcmask 89088
  %v1153 = vsel %vm1152, %v1119, %v1121
  %v1154 = vsel %vm1152, %v1121, %v1123
  %v1155 = vsel %vm1152, %v1123, %v1125
  %v1156 = vsel %vm1152, %v1125, %v1127
  %v1157 = vsel %vm1152, %v1127, %v1129
  %v1158 = vsel %vm1152, %v1129, %v1131
  %v1159 = vsel %vm1152, %v1131, %v1133
  %v1160 = vsel %vm1152, %v1133, %v1135
  %v1161 = vsel %vm1152, %v1135, %v1137
  %v1162 = vsel %vm1152, %v1137, %v1139
  %v1163 = vsel %vm1152, %v1139, %v1141
  %v1164 = vsel %vm1152, %v1141, %v1143
  %v1165 = vsel %vm1152, %v1143, %v1145
  %v1166 = vsel %vm1152, %v1145, %v1147
  %v1167 = vsel %vm1152, %v1147, %v1149
  %v1168 = vsel %vm1152, %v1149, %v1151
  %1185 = vst [vmem:[#allocation2 + $0x480] sm:$0xff] %v1153
  %1186 = vst [vmem:[#allocation2 + $0x488] sm:$0xff] %v1154
  %1187 = vst [vmem:[#allocation2 + $0x490] sm:$0xff] %v1155
  %1188 = vst [vmem:[#allocation2 + $0x498] sm:$0xff] %v1156
  %1189 = vst [vmem:[#allocation2 + $0x4a0] sm:$0xff] %v1157
  %1190 = vst [vmem:[#allocation2 + $0x4a8] sm:$0xff] %v1158
  %1191 = vst [vmem:[#allocation2 + $0x4b0] sm:$0xff] %v1159
  %1192 = vst [vmem:[#allocation2 + $0x4b8] sm:$0xff] %v1160
  %1193 = vst [vmem:[#allocation2 + $0x4c0] sm:$0xff] %v1161
  %1194 = vst [vmem:[#allocation2 + $0x4c8] sm:$0xff] %v1162
  %1195 = vst [vmem:[#allocation2 + $0x4d0] sm:$0xff] %v1163
  %1196 = vst [vmem:[#allocation2 + $0x4d8] sm:$0xff] %v1164
  %1197 = vst [vmem:[#allocation2 + $0x4e0] sm:$0xff] %v1165
  %1198 = vst [vmem:[#allocation2 + $0x4e8] sm:$0xff] %v1166
  %1199 = vst [vmem:[#allocation2 + $0x4f0] sm:$0xff] %v1167
  %1200 = vst [vmem:[#allocation2 + $0x4f8] sm:$0xff] %v1168
  %v1201 = vld [vmem:[%s0] sm:$0xff]
  %v1202 = vld [vmem:[%s0 + $0x8] sm:$0xff]
  %v1203 = vld [vmem:[%s0 + $0x10] sm:$0xff]
  %v1204 = vld [vmem:[%s0 + $0x18] sm:$0xff]
  %v1205 = vld [vmem:[%s0 + $0x20] sm:$0xff]
  %v1206 = vld [vmem:[%s0 + $0x28] sm:$0xff]
  %v1207 = vld [vmem:[%s0 + $0x30] sm:$0xff]
  %v1208 = vld [vmem:[%s0 + $0x38] sm:$0xff]
  %v1209 = vld [vmem:[%s0 + $0x40] sm:$0xff]
  %v1210 = vld [vmem:[%s0 + $0x48] sm:$0xff]
  %v1211 = vld [vmem:[%s0 + $0x50] sm:$0xff]
  %v1212 = vld [vmem:[%s0 + $0x58] sm:$0xff]
  %v1213 = vld [vmem:[%s0 + $0x60] sm:$0xff]
  %v1214 = vld [vmem:[%s0 + $0x68] sm:$0xff]
  %v1215 = vld [vmem:[%s0 + $0x70] sm:$0xff]
  %v1216 = vld [vmem:[%s0 + $0x78] sm:$0xff]
  %v1217 = vld [vmem:[%s0 + $0x80] sm:$0xff]
  %1235 = vrot.lane.b32.xlu0 %v1201, 10
  %v1236 = vpop.permute.xlu0 %1235
  %1237 = vrot.lane.b32.xlu0 %v1202, 10
  %v1238 = vpop.permute.xlu0 %1237
  %1239 = vrot.lane.b32.xlu0 %v1203, 10
  %v1240 = vpop.permute.xlu0 %1239
  %1241 = vrot.lane.b32.xlu0 %v1204, 10
  %v1242 = vpop.permute.xlu0 %1241
  %1243 = vrot.lane.b32.xlu0 %v1205, 10
  %v1244 = vpop.permute.xlu0 %1243
  %1245 = vrot.lane.b32.xlu0 %v1206, 10
  %v1246 = vpop.permute.xlu0 %1245
  %1247 = vrot.lane.b32.xlu0 %v1207, 10
  %v1248 = vpop.permute.xlu0 %1247
  %1249 = vrot.lane.b32.xlu0 %v1208, 10
  %v1250 = vpop.permute.xlu0 %1249
  %1251 = vrot.lane.b32.xlu0 %v1209, 10
  %v1252 = vpop.permute.xlu0 %1251
  %1253 = vrot.lane.b32.xlu0 %v1210, 10
  %v1254 = vpop.permute.xlu0 %1253
  %1255 = vrot.lane.b32.xlu0 %v1211, 10
  %v1256 = vpop.permute.xlu0 %1255
  %1257 = vrot.lane.b32.xlu0 %v1212, 10
  %v1258 = vpop.permute.xlu0 %1257
  %1259 = vrot.lane.b32.xlu0 %v1213, 10
  %v1260 = vpop.permute.xlu0 %1259
  %1261 = vrot.lane.b32.xlu0 %v1214, 10
  %v1262 = vpop.permute.xlu0 %1261
  %1263 = vrot.lane.b32.xlu0 %v1215, 10
  %v1264 = vpop.permute.xlu0 %1263
  %1265 = vrot.lane.b32.xlu0 %v1216, 10
  %v1266 = vpop.permute.xlu0 %1265
  %1267 = vrot.lane.b32.xlu0 %v1217, 10
  %v1268 = vpop.permute.xlu0 %1267
  %vm1269 = vcmask 80896
  %v1270 = vsel %vm1269, %v1236, %v1238
  %v1271 = vsel %vm1269, %v1238, %v1240
  %v1272 = vsel %vm1269, %v1240, %v1242
  %v1273 = vsel %vm1269, %v1242, %v1244
  %v1274 = vsel %vm1269, %v1244, %v1246
  %v1275 = vsel %vm1269, %v1246, %v1248
  %v1276 = vsel %vm1269, %v1248, %v1250
  %v1277 = vsel %vm1269, %v1250, %v1252
  %v1278 = vsel %vm1269, %v1252, %v1254
  %v1279 = vsel %vm1269, %v1254, %v1256
  %v1280 = vsel %vm1269, %v1256, %v1258
  %v1281 = vsel %vm1269, %v1258, %v1260
  %v1282 = vsel %vm1269, %v1260, %v1262
  %v1283 = vsel %vm1269, %v1262, %v1264
  %v1284 = vsel %vm1269, %v1264, %v1266
  %v1285 = vsel %vm1269, %v1266, %v1268
  %1302 = vst [vmem:[#allocation2 + $0x500] sm:$0xff] %v1270
  %1303 = vst [vmem:[#allocation2 + $0x508] sm:$0xff] %v1271
  %1304 = vst [vmem:[#allocation2 + $0x510] sm:$0xff] %v1272
  %1305 = vst [vmem:[#allocation2 + $0x518] sm:$0xff] %v1273
  %1306 = vst [vmem:[#allocation2 + $0x520] sm:$0xff] %v1274
  %1307 = vst [vmem:[#allocation2 + $0x528] sm:$0xff] %v1275
  %1308 = vst [vmem:[#allocation2 + $0x530] sm:$0xff] %v1276
  %1309 = vst [vmem:[#allocation2 + $0x538] sm:$0xff] %v1277
  %1310 = vst [vmem:[#allocation2 + $0x540] sm:$0xff] %v1278
  %1311 = vst [vmem:[#allocation2 + $0x548] sm:$0xff] %v1279
  %1312 = vst [vmem:[#allocation2 + $0x550] sm:$0xff] %v1280
  %1313 = vst [vmem:[#allocation2 + $0x558] sm:$0xff] %v1281
  %1314 = vst [vmem:[#allocation2 + $0x560] sm:$0xff] %v1282
  %1315 = vst [vmem:[#allocation2 + $0x568] sm:$0xff] %v1283
  %1316 = vst [vmem:[#allocation2 + $0x570] sm:$0xff] %v1284
  %1317 = vst [vmem:[#allocation2 + $0x578] sm:$0xff] %v1285
  %v1318 = vld [vmem:[%s0] sm:$0xff]
  %v1319 = vld [vmem:[%s0 + $0x8] sm:$0xff]
  %v1320 = vld [vmem:[%s0 + $0x10] sm:$0xff]
  %v1321 = vld [vmem:[%s0 + $0x18] sm:$0xff]
  %v1322 = vld [vmem:[%s0 + $0x20] sm:$0xff]
  %v1323 = vld [vmem:[%s0 + $0x28] sm:$0xff]
  %v1324 = vld [vmem:[%s0 + $0x30] sm:$0xff]
  %v1325 = vld [vmem:[%s0 + $0x38] sm:$0xff]
  %v1326 = vld [vmem:[%s0 + $0x40] sm:$0xff]
  %v1327 = vld [vmem:[%s0 + $0x48] sm:$0xff]
  %v1328 = vld [vmem:[%s0 + $0x50] sm:$0xff]
  %v1329 = vld [vmem:[%s0 + $0x58] sm:$0xff]
  %v1330 = vld [vmem:[%s0 + $0x60] sm:$0xff]
  %v1331 = vld [vmem:[%s0 + $0x68] sm:$0xff]
  %v1332 = vld [vmem:[%s0 + $0x70] sm:$0xff]
  %v1333 = vld [vmem:[%s0 + $0x78] sm:$0xff]
  %v1334 = vld [vmem:[%s0 + $0x80] sm:$0xff]
  %1352 = vrot.lane.b32.xlu0 %v1318, 9
  %v1353 = vpop.permute.xlu0 %1352
  %1354 = vrot.lane.b32.xlu0 %v1319, 9
  %v1355 = vpop.permute.xlu0 %1354
  %1356 = vrot.lane.b32.xlu0 %v1320, 9
  %v1357 = vpop.permute.xlu0 %1356
  %1358 = vrot.lane.b32.xlu0 %v1321, 9
  %v1359 = vpop.permute.xlu0 %1358
  %1360 = vrot.lane.b32.xlu0 %v1322, 9
  %v1361 = vpop.permute.xlu0 %1360
  %1362 = vrot.lane.b32.xlu0 %v1323, 9
  %v1363 = vpop.permute.xlu0 %1362
  %1364 = vrot.lane.b32.xlu0 %v1324, 9
  %v1365 = vpop.permute.xlu0 %1364
  %1366 = vrot.lane.b32.xlu0 %v1325, 9
  %v1367 = vpop.permute.xlu0 %1366
  %1368 = vrot.lane.b32.xlu0 %v1326, 9
  %v1369 = vpop.permute.xlu0 %1368
  %1370 = vrot.lane.b32.xlu0 %v1327, 9
  %v1371 = vpop.permute.xlu0 %1370
  %1372 = vrot.lane.b32.xlu0 %v1328, 9
  %v1373 = vpop.permute.xlu0 %1372
  %1374 = vrot.lane.b32.xlu0 %v1329, 9
  %v1375 = vpop.permute.xlu0 %1374
  %1376 = vrot.lane.b32.xlu0 %v1330, 9
  %v1377 = vpop.permute.xlu0 %1376
  %1378 = vrot.lane.b32.xlu0 %v1331, 9
  %v1379 = vpop.permute.xlu0 %1378
  %1380 = vrot.lane.b32.xlu0 %v1332, 9
  %v1381 = vpop.permute.xlu0 %1380
  %1382 = vrot.lane.b32.xlu0 %v1333, 9
  %v1383 = vpop.permute.xlu0 %1382
  %1384 = vrot.lane.b32.xlu0 %v1334, 9
  %v1385 = vpop.permute.xlu0 %1384
  %vm1386 = vcmask 72704
  %v1387 = vsel %vm1386, %v1353, %v1355
  %v1388 = vsel %vm1386, %v1355, %v1357
  %v1389 = vsel %vm1386, %v1357, %v1359
  %v1390 = vsel %vm1386, %v1359, %v1361
  %v1391 = vsel %vm1386, %v1361, %v1363
  %v1392 = vsel %vm1386, %v1363, %v1365
  %v1393 = vsel %vm1386, %v1365, %v1367
  %v1394 = vsel %vm1386, %v1367, %v1369
  %v1395 = vsel %vm1386, %v1369, %v1371
  %v1396 = vsel %vm1386, %v1371, %v1373
  %v1397 = vsel %vm1386, %v1373, %v1375
  %v1398 = vsel %vm1386, %v1375, %v1377
  %v1399 = vsel %vm1386, %v1377, %v1379
  %v1400 = vsel %vm1386, %v1379, %v1381
  %v1401 = vsel %vm1386, %v1381, %v1383
  %v1402 = vsel %vm1386, %v1383, %v1385
  %1419 = vst [vmem:[#allocation2 + $0x580] sm:$0xff] %v1387
  %1420 = vst [vmem:[#allocation2 + $0x588] sm:$0xff] %v1388
  %1421 = vst [vmem:[#allocation2 + $0x590] sm:$0xff] %v1389
  %1422 = vst [vmem:[#allocation2 + $0x598] sm:$0xff] %v1390
  %1423 = vst [vmem:[#allocation2 + $0x5a0] sm:$0xff] %v1391
  %1424 = vst [vmem:[#allocation2 + $0x5a8] sm:$0xff] %v1392
  %1425 = vst [vmem:[#allocation2 + $0x5b0] sm:$0xff] %v1393
  %1426 = vst [vmem:[#allocation2 + $0x5b8] sm:$0xff] %v1394
  %1427 = vst [vmem:[#allocation2 + $0x5c0] sm:$0xff] %v1395
  %1428 = vst [vmem:[#allocation2 + $0x5c8] sm:$0xff] %v1396
  %1429 = vst [vmem:[#allocation2 + $0x5d0] sm:$0xff] %v1397
  %1430 = vst [vmem:[#allocation2 + $0x5d8] sm:$0xff] %v1398
  %1431 = vst [vmem:[#allocation2 + $0x5e0] sm:$0xff] %v1399
  %1432 = vst [vmem:[#allocation2 + $0x5e8] sm:$0xff] %v1400
  %1433 = vst [vmem:[#allocation2 + $0x5f0] sm:$0xff] %v1401
  %1434 = vst [vmem:[#allocation2 + $0x5f8] sm:$0xff] %v1402
  %v1435 = vld [vmem:[%s0] sm:$0xff]
  %v1436 = vld [vmem:[%s0 + $0x8] sm:$0xff]
  %v1437 = vld [vmem:[%s0 + $0x10] sm:$0xff]
  %v1438 = vld [vmem:[%s0 + $0x18] sm:$0xff]
  %v1439 = vld [vmem:[%s0 + $0x20] sm:$0xff]
  %v1440 = vld [vmem:[%s0 + $0x28] sm:$0xff]
  %v1441 = vld [vmem:[%s0 + $0x30] sm:$0xff]
  %v1442 = vld [vmem:[%s0 + $0x38] sm:$0xff]
  %v1443 = vld [vmem:[%s0 + $0x40] sm:$0xff]
  %v1444 = vld [vmem:[%s0 + $0x48] sm:$0xff]
  %v1445 = vld [vmem:[%s0 + $0x50] sm:$0xff]
  %v1446 = vld [vmem:[%s0 + $0x58] sm:$0xff]
  %v1447 = vld [vmem:[%s0 + $0x60] sm:$0xff]
  %v1448 = vld [vmem:[%s0 + $0x68] sm:$0xff]
  %v1449 = vld [vmem:[%s0 + $0x70] sm:$0xff]
  %v1450 = vld [vmem:[%s0 + $0x78] sm:$0xff]
  %v1451 = vld [vmem:[%s0 + $0x80] sm:$0xff]
  %1469 = vrot.lane.b32.xlu0 %v1435, 1
  %v1470 = vpop.permute.xlu0 %1469
  %1471 = vrot.lane.b32.xlu0 %v1436, 1
  %v1472 = vpop.permute.xlu0 %1471
  %1473 = vrot.lane.b32.xlu0 %v1437, 1
  %v1474 = vpop.permute.xlu0 %1473
  %1475 = vrot.lane.b32.xlu0 %v1438, 1
  %v1476 = vpop.permute.xlu0 %1475
  %1477 = vrot.lane.b32.xlu0 %v1439, 1
  %v1478 = vpop.permute.xlu0 %1477
  %1479 = vrot.lane.b32.xlu0 %v1440, 1
  %v1480 = vpop.permute.xlu0 %1479
  %1481 = vrot.lane.b32.xlu0 %v1441, 1
  %v1482 = vpop.permute.xlu0 %1481
  %1483 = vrot.lane.b32.xlu0 %v1442, 1
  %v1484 = vpop.permute.xlu0 %1483
  %1485 = vrot.lane.b32.xlu0 %v1443, 1
  %v1486 = vpop.permute.xlu0 %1485
  %1487 = vrot.lane.b32.xlu0 %v1444, 1
  %v1488 = vpop.permute.xlu0 %1487
  %1489 = vrot.lane.b32.xlu0 %v1445, 1
  %v1490 = vpop.permute.xlu0 %1489
  %1491 = vrot.lane.b32.xlu0 %v1446, 1
  %v1492 = vpop.permute.xlu0 %1491
  %1493 = vrot.lane.b32.xlu0 %v1447, 1
  %v1494 = vpop.permute.xlu0 %1493
  %1495 = vrot.lane.b32.xlu0 %v1448, 1
  %v1496 = vpop.permute.xlu0 %1495
  %1497 = vrot.lane.b32.xlu0 %v1449, 1
  %v1498 = vpop.permute.xlu0 %1497
  %1499 = vrot.lane.b32.xlu0 %v1450, 1
  %v1500 = vpop.permute.xlu0 %1499
  %1501 = vrot.lane.b32.xlu0 %v1451, 1
  %v1502 = vpop.permute.xlu0 %1501
  %vm1503 = vcmask 7168
  %v1504 = vsel %vm1503, %v1470, %v1472
  %v1505 = vsel %vm1503, %v1472, %v1474
  %v1506 = vsel %vm1503, %v1474, %v1476
  %v1507 = vsel %vm1503, %v1476, %v1478
  %v1508 = vsel %vm1503, %v1478, %v1480
  %v1509 = vsel %vm1503, %v1480, %v1482
  %v1510 = vsel %vm1503, %v1482, %v1484
  %v1511 = vsel %vm1503, %v1484, %v1486
  %v1512 = vsel %vm1503, %v1486, %v1488
  %v1513 = vsel %vm1503, %v1488, %v1490
  %v1514 = vsel %vm1503, %v1490, %v1492
  %v1515 = vsel %vm1503, %v1492, %v1494
  %v1516 = vsel %vm1503, %v1494, %v1496
  %v1517 = vsel %vm1503, %v1496, %v1498
  %v1518 = vsel %vm1503, %v1498, %v1500
  %v1519 = vsel %vm1503, %v1500, %v1502
  %1536 = vst [vmem:[#allocation2 + $0x600] sm:$0xff] %v1504
  %1537 = vst [vmem:[#allocation2 + $0x608] sm:$0xff] %v1505
  %1538 = vst [vmem:[#allocation2 + $0x610] sm:$0xff] %v1506
  %1539 = vst [vmem:[#allocation2 + $0x618] sm:$0xff] %v1507
  %1540 = vst [vmem:[#allocation2 + $0x620] sm:$0xff] %v1508
  %1541 = vst [vmem:[#allocation2 + $0x628] sm:$0xff] %v1509
  %1542 = vst [vmem:[#allocation2 + $0x630] sm:$0xff] %v1510
  %1543 = vst [vmem:[#allocation2 + $0x638] sm:$0xff] %v1511
  %1544 = vst [vmem:[#allocation2 + $0x640] sm:$0xff] %v1512
  %1545 = vst [vmem:[#allocation2 + $0x648] sm:$0xff] %v1513
  %1546 = vst [vmem:[#allocation2 + $0x650] sm:$0xff] %v1514
  %1547 = vst [vmem:[#allocation2 + $0x658] sm:$0xff] %v1515
  %1548 = vst [vmem:[#allocation2 + $0x660] sm:$0xff] %v1516
  %1549 = vst [vmem:[#allocation2 + $0x668] sm:$0xff] %v1517
  %1550 = vst [vmem:[#allocation2 + $0x670] sm:$0xff] %v1518
  %1551 = vst [vmem:[#allocation2 + $0x678] sm:$0xff] %v1519
  %v1552 = vld [vmem:[%s0 + $0x8] sm:$0xff]
  %v1553 = vld [vmem:[%s0 + $0x10] sm:$0xff]
  %v1554 = vld [vmem:[%s0 + $0x18] sm:$0xff]
  %v1555 = vld [vmem:[%s0 + $0x20] sm:$0xff]
  %v1556 = vld [vmem:[%s0 + $0x28] sm:$0xff]
  %v1557 = vld [vmem:[%s0 + $0x30] sm:$0xff]
  %v1558 = vld [vmem:[%s0 + $0x38] sm:$0xff]
  %v1559 = vld [vmem:[%s0 + $0x40] sm:$0xff]
  %v1560 = vld [vmem:[%s0 + $0x48] sm:$0xff]
  %v1561 = vld [vmem:[%s0 + $0x50] sm:$0xff]
  %v1562 = vld [vmem:[%s0 + $0x58] sm:$0xff]
  %v1563 = vld [vmem:[%s0 + $0x60] sm:$0xff]
  %v1564 = vld [vmem:[%s0 + $0x68] sm:$0xff]
  %v1565 = vld [vmem:[%s0 + $0x70] sm:$0xff]
  %v1566 = vld [vmem:[%s0 + $0x78] sm:$0xff]
  %v1567 = vld [vmem:[%s0 + $0x80] sm:$0xff]
  %1568 = vst [vmem:[#allocation2 + $0x680] sm:$0xff] %v1552
  %1569 = vst [vmem:[#allocation2 + $0x688] sm:$0xff] %v1553
  %1570 = vst [vmem:[#allocation2 + $0x690] sm:$0xff] %v1554
  %1571 = vst [vmem:[#allocation2 + $0x698] sm:$0xff] %v1555
  %1572 = vst [vmem:[#allocation2 + $0x6a0] sm:$0xff] %v1556
  %1573 = vst [vmem:[#allocation2 + $0x6a8] sm:$0xff] %v1557
  %1574 = vst [vmem:[#allocation2 + $0x6b0] sm:$0xff] %v1558
  %1575 = vst [vmem:[#allocation2 + $0x6b8] sm:$0xff] %v1559
  %1576 = vst [vmem:[#allocation2 + $0x6c0] sm:$0xff] %v1560
  %1577 = vst [vmem:[#allocation2 + $0x6c8] sm:$0xff] %v1561
  %1578 = vst [vmem:[#allocation2 + $0x6d0] sm:$0xff] %v1562
  %1579 = vst [vmem:[#allocation2 + $0x6d8] sm:$0xff] %v1563
  %1580 = vst [vmem:[#allocation2 + $0x6e0] sm:$0xff] %v1564
  %1581 = vst [vmem:[#allocation2 + $0x6e8] sm:$0xff] %v1565
  %1582 = vst [vmem:[#allocation2 + $0x6f0] sm:$0xff] %v1566
  %1583 = vst [vmem:[#allocation2 + $0x6f8] sm:$0xff] %v1567
  %v1584 = vld [vmem:[%s0 + $0x8] sm:$0xff]
  %v1585 = vld [vmem:[%s0 + $0x10] sm:$0xff]
  %v1586 = vld [vmem:[%s0 + $0x18] sm:$0xff]
  %v1587 = vld [vmem:[%s0 + $0x20] sm:$0xff]
  %v1588 = vld [vmem:[%s0 + $0x28] sm:$0xff]
  %v1589 = vld [vmem:[%s0 + $0x30] sm:$0xff]
  %v1590 = vld [vmem:[%s0 + $0x38] sm:$0xff]
  %v1591 = vld [vmem:[%s0 + $0x40] sm:$0xff]
  %v1592 = vld [vmem:[%s0 + $0x48] sm:$0xff]
  %v1593 = vld [vmem:[%s0 + $0x50] sm:$0xff]
  %v1594 = vld [vmem:[%s0 + $0x58] sm:$0xff]
  %v1595 = vld [vmem:[%s0 + $0x60] sm:$0xff]
  %v1596 = vld [vmem:[%s0 + $0x68] sm:$0xff]
  %v1597 = vld [vmem:[%s0 + $0x70] sm:$0xff]
  %v1598 = vld [vmem:[%s0 + $0x78] sm:$0xff]
  %v1599 = vld [vmem:[%s0 + $0x80] sm:$0xff]
  %v1600 = vld [vmem:[%s0 + $0x88] sm:$0xff]
  %1618 = vrot.lane.b32.xlu0 %v1584, 127
  %v1619 = vpop.permute.xlu0 %1618
  %1620 = vrot.lane.b32.xlu0 %v1585, 127
  %v1621 = vpop.permute.xlu0 %1620
  %1622 = vrot.lane.b32.xlu0 %v1586, 127
  %v1623 = vpop.permute.xlu0 %1622
  %1624 = vrot.lane.b32.xlu0 %v1587, 127
  %v1625 = vpop.permute.xlu0 %1624
  %1626 = vrot.lane.b32.xlu0 %v1588, 127
  %v1627 = vpop.permute.xlu0 %1626
  %1628 = vrot.lane.b32.xlu0 %v1589, 127
  %v1629 = vpop.permute.xlu0 %1628
  %1630 = vrot.lane.b32.xlu0 %v1590, 127
  %v1631 = vpop.permute.xlu0 %1630
  %1632 = vrot.lane.b32.xlu0 %v1591, 127
  %v1633 = vpop.permute.xlu0 %1632
  %1634 = vrot.lane.b32.xlu0 %v1592, 127
  %v1635 = vpop.permute.xlu0 %1634
  %1636 = vrot.lane.b32.xlu0 %v1593, 127
  %v1637 = vpop.permute.xlu0 %1636
  %1638 = vrot.lane.b32.xlu0 %v1594, 127
  %v1639 = vpop.permute.xlu0 %1638
  %1640 = vrot.lane.b32.xlu0 %v1595, 127
  %v1641 = vpop.permute.xlu0 %1640
  %1642 = vrot.lane.b32.xlu0 %v1596, 127
  %v1643 = vpop.permute.xlu0 %1642
  %1644 = vrot.lane.b32.xlu0 %v1597, 127
  %v1645 = vpop.permute.xlu0 %1644
  %1646 = vrot.lane.b32.xlu0 %v1598, 127
  %v1647 = vpop.permute.xlu0 %1646
  %1648 = vrot.lane.b32.xlu0 %v1599, 127
  %v1649 = vpop.permute.xlu0 %1648
  %1650 = vrot.lane.b32.xlu0 %v1600, 127
  %v1651 = vpop.permute.xlu0 %1650
  %vm1652 = vcmask 1039360
  %v1653 = vsel %vm1652, %v1619, %v1621
  %v1654 = vsel %vm1652, %v1621, %v1623
  %v1655 = vsel %vm1652, %v1623, %v1625
  %v1656 = vsel %vm1652, %v1625, %v1627
  %v1657 = vsel %vm1652, %v1627, %v1629
  %v1658 = vsel %vm1652, %v1629, %v1631
  %v1659 = vsel %vm1652, %v1631, %v1633
  %v1660 = vsel %vm1652, %v1633, %v1635
  %v1661 = vsel %vm1652, %v1635, %v1637
  %v1662 = vsel %vm1652, %v1637, %v1639
  %v1663 = vsel %vm1652, %v1639, %v1641
  %v1664 = vsel %vm1652, %v1641, %v1643
  %v1665 = vsel %vm1652, %v1643, %v1645
  %v1666 = vsel %vm1652, %v1645, %v1647
  %v1667 = vsel %vm1652, %v1647, %v1649
  %v1668 = vsel %vm1652, %v1649, %v1651
  %1685 = vst [vmem:[#allocation2 + $0x700] sm:$0xff] %v1653
  %1686 = vst [vmem:[#allocation2 + $0x708] sm:$0xff] %v1654
  %1687 = vst [vmem:[#allocation2 + $0x710] sm:$0xff] %v1655
  %1688 = vst [vmem:[#allocation2 + $0x718] sm:$0xff] %v1656
  %1689 = vst [vmem:[#allocation2 + $0x720] sm:$0xff] %v1657
  %1690 = vst [vmem:[#allocation2 + $0x728] sm:$0xff] %v1658
  %1691 = vst [vmem:[#allocation2 + $0x730] sm:$0xff] %v1659
  %1692 = vst [vmem:[#allocation2 + $0x738] sm:$0xff] %v1660
  %1693 = vst [vmem:[#allocation2 + $0x740] sm:$0xff] %v1661
  %1694 = vst [vmem:[#allocation2 + $0x748] sm:$0xff] %v1662
  %1695 = vst [vmem:[#allocation2 + $0x750] sm:$0xff] %v1663
  %1696 = vst [vmem:[#allocation2 + $0x758] sm:$0xff] %v1664
  %1697 = vst [vmem:[#allocation2 + $0x760] sm:$0xff] %v1665
  %1698 = vst [vmem:[#allocation2 + $0x768] sm:$0xff] %v1666
  %1699 = vst [vmem:[#allocation2 + $0x770] sm:$0xff] %v1667
  %1700 = vst [vmem:[#allocation2 + $0x778] sm:$0xff] %v1668
  %v1701 = vld [vmem:[%s0 + $0x8] sm:$0xff]
  %v1702 = vld [vmem:[%s0 + $0x10] sm:$0xff]
  %v1703 = vld [vmem:[%s0 + $0x18] sm:$0xff]
  %v1704 = vld [vmem:[%s0 + $0x20] sm:$0xff]
  %v1705 = vld [vmem:[%s0 + $0x28] sm:$0xff]
  %v1706 = vld [vmem:[%s0 + $0x30] sm:$0xff]
  %v1707 = vld [vmem:[%s0 + $0x38] sm:$0xff]
  %v1708 = vld [vmem:[%s0 + $0x40] sm:$0xff]
  %v1709 = vld [vmem:[%s0 + $0x48] sm:$0xff]
  %v1710 = vld [vmem:[%s0 + $0x50] sm:$0xff]
  %v1711 = vld [vmem:[%s0 + $0x58] sm:$0xff]
  %v1712 = vld [vmem:[%s0 + $0x60] sm:$0xff]
  %v1713 = vld [vmem:[%s0 + $0x68] sm:$0xff]
  %v1714 = vld [vmem:[%s0 + $0x70] sm:$0xff]
  %v1715 = vld [vmem:[%s0 + $0x78] sm:$0xff]
  %v1716 = vld [vmem:[%s0 + $0x80] sm:$0xff]
  %v1717 = vld [vmem:[%s0 + $0x88] sm:$0xff]
  %1735 = vrot.lane.b32.xlu0 %v1701, 119
  %v1736 = vpop.permute.xlu0 %1735
  %1737 = vrot.lane.b32.xlu0 %v1702, 119
  %v1738 = vpop.permute.xlu0 %1737
  %1739 = vrot.lane.b32.xlu0 %v1703, 119
  %v1740 = vpop.permute.xlu0 %1739
  %1741 = vrot.lane.b32.xlu0 %v1704, 119
  %v1742 = vpop.permute.xlu0 %1741
  %1743 = vrot.lane.b32.xlu0 %v1705, 119
  %v1744 = vpop.permute.xlu0 %1743
  %1745 = vrot.lane.b32.xlu0 %v1706, 119
  %v1746 = vpop.permute.xlu0 %1745
  %1747 = vrot.lane.b32.xlu0 %v1707, 119
  %v1748 = vpop.permute.xlu0 %1747
  %1749 = vrot.lane.b32.xlu0 %v1708, 119
  %v1750 = vpop.permute.xlu0 %1749
  %1751 = vrot.lane.b32.xlu0 %v1709, 119
  %v1752 = vpop.permute.xlu0 %1751
  %1753 = vrot.lane.b32.xlu0 %v1710, 119
  %v1754 = vpop.permute.xlu0 %1753
  %1755 = vrot.lane.b32.xlu0 %v1711, 119
  %v1756 = vpop.permute.xlu0 %1755
  %1757 = vrot.lane.b32.xlu0 %v1712, 119
  %v1758 = vpop.permute.xlu0 %1757
  %1759 = vrot.lane.b32.xlu0 %v1713, 119
  %v1760 = vpop.permute.xlu0 %1759
  %1761 = vrot.lane.b32.xlu0 %v1714, 119
  %v1762 = vpop.permute.xlu0 %1761
  %1763 = vrot.lane.b32.xlu0 %v1715, 119
  %v1764 = vpop.permute.xlu0 %1763
  %1765 = vrot.lane.b32.xlu0 %v1716, 119
  %v1766 = vpop.permute.xlu0 %1765
  %1767 = vrot.lane.b32.xlu0 %v1717, 119
  %v1768 = vpop.permute.xlu0 %1767
  %vm1769 = vcmask 973824
  %v1770 = vsel %vm1769, %v1736, %v1738
  %v1771 = vsel %vm1769, %v1738, %v1740
  %v1772 = vsel %vm1769, %v1740, %v1742
  %v1773 = vsel %vm1769, %v1742, %v1744
  %v1774 = vsel %vm1769, %v1744, %v1746
  %v1775 = vsel %vm1769, %v1746, %v1748
  %v1776 = vsel %vm1769, %v1748, %v1750
  %v1777 = vsel %vm1769, %v1750, %v1752
  %v1778 = vsel %vm1769, %v1752, %v1754
  %v1779 = vsel %vm1769, %v1754, %v1756
  %v1780 = vsel %vm1769, %v1756, %v1758
  %v1781 = vsel %vm1769, %v1758, %v1760
  %v1782 = vsel %vm1769, %v1760, %v1762
  %v1783 = vsel %vm1769, %v1762, %v1764
  %v1784 = vsel %vm1769, %v1764, %v1766
  %v1785 = vsel %vm1769, %v1766, %v1768
  %1802 = vst [vmem:[#allocation2 + $0x780] sm:$0xff] %v1770
  %1803 = vst [vmem:[#allocation2 + $0x788] sm:$0xff] %v1771
  %1804 = vst [vmem:[#allocation2 + $0x790] sm:$0xff] %v1772
  %1805 = vst [vmem:[#allocation2 + $0x798] sm:$0xff] %v1773
  %1806 = vst [vmem:[#allocation2 + $0x7a0] sm:$0xff] %v1774
  %1807 = vst [vmem:[#allocation2 + $0x7a8] sm:$0xff] %v1775
  %1808 = vst [vmem:[#allocation2 + $0x7b0] sm:$0xff] %v1776
  %1809 = vst [vmem:[#allocation2 + $0x7b8] sm:$0xff] %v1777
  %1810 = vst [vmem:[#allocation2 + $0x7c0] sm:$0xff] %v1778
  %1811 = vst [vmem:[#allocation2 + $0x7c8] sm:$0xff] %v1779
  %1812 = vst [vmem:[#allocation2 + $0x7d0] sm:$0xff] %v1780
  %1813 = vst [vmem:[#allocation2 + $0x7d8] sm:$0xff] %v1781
  %1814 = vst [vmem:[#allocation2 + $0x7e0] sm:$0xff] %v1782
  %1815 = vst [vmem:[#allocation2 + $0x7e8] sm:$0xff] %v1783
  %1816 = vst [vmem:[#allocation2 + $0x7f0] sm:$0xff] %v1784
  %1817 = vst [vmem:[#allocation2 + $0x7f8] sm:$0xff] %v1785
  %v1818 = vld [vmem:[%s0 + $0x8] sm:$0xff]
  %v1819 = vld [vmem:[%s0 + $0x10] sm:$0xff]
  %v1820 = vld [vmem:[%s0 + $0x18] sm:$0xff]
  %v1821 = vld [vmem:[%s0 + $0x20] sm:$0xff]
  %v1822 = vld [vmem:[%s0 + $0x28] sm:$0xff]
  %v1823 = vld [vmem:[%s0 + $0x30] sm:$0xff]
  %v1824 = vld [vmem:[%s0 + $0x38] sm:$0xff]
  %v1825 = vld [vmem:[%s0 + $0x40] sm:$0xff]
  %v1826 = vld [vmem:[%s0 + $0x48] sm:$0xff]
  %v1827 = vld [vmem:[%s0 + $0x50] sm:$0xff]
  %v1828 = vld [vmem:[%s0 + $0x58] sm:$0xff]
  %v1829 = vld [vmem:[%s0 + $0x60] sm:$0xff]
  %v1830 = vld [vmem:[%s0 + $0x68] sm:$0xff]
  %v1831 = vld [vmem:[%s0 + $0x70] sm:$0xff]
  %v1832 = vld [vmem:[%s0 + $0x78] sm:$0xff]
  %v1833 = vld [vmem:[%s0 + $0x80] sm:$0xff]
  %v1834 = vld [vmem:[%s0 + $0x88] sm:$0xff]
  %1852 = vrot.lane.b32.xlu0 %v1818, 118
  %v1853 = vpop.permute.xlu0 %1852
  %1854 = vrot.lane.b32.xlu0 %v1819, 118
  %v1855 = vpop.permute.xlu0 %1854
  %1856 = vrot.lane.b32.xlu0 %v1820, 118
  %v1857 = vpop.permute.xlu0 %1856
  %1858 = vrot.lane.b32.xlu0 %v1821, 118
  %v1859 = vpop.permute.xlu0 %1858
  %1860 = vrot.lane.b32.xlu0 %v1822, 118
  %v1861 = vpop.permute.xlu0 %1860
  %1862 = vrot.lane.b32.xlu0 %v1823, 118
  %v1863 = vpop.permute.xlu0 %1862
  %1864 = vrot.lane.b32.xlu0 %v1824, 118
  %v1865 = vpop.permute.xlu0 %1864
  %1866 = vrot.lane.b32.xlu0 %v1825, 118
  %v1867 = vpop.permute.xlu0 %1866
  %1868 = vrot.lane.b32.xlu0 %v1826, 118
  %v1869 = vpop.permute.xlu0 %1868
  %1870 = vrot.lane.b32.xlu0 %v1827, 118
  %v1871 = vpop.permute.xlu0 %1870
  %1872 = vrot.lane.b32.xlu0 %v1828, 118
  %v1873 = vpop.permute.xlu0 %1872
  %1874 = vrot.lane.b32.xlu0 %v1829, 118
  %v1875 = vpop.permute.xlu0 %1874
  %1876 = vrot.lane.b32.xlu0 %v1830, 118
  %v1877 = vpop.permute.xlu0 %1876
  %1878 = vrot.lane.b32.xlu0 %v1831, 118
  %v1879 = vpop.permute.xlu0 %1878
  %1880 = vrot.lane.b32.xlu0 %v1832, 118
  %v1881 = vpop.permute.xlu0 %1880
  %1882 = vrot.lane.b32.xlu0 %v1833, 118
  %v1883 = vpop.permute.xlu0 %1882
  %1884 = vrot.lane.b32.xlu0 %v1834, 118
  %v1885 = vpop.permute.xlu0 %1884
  %vm1886 = vcmask 965632
  %v1887 = vsel %vm1886, %v1853, %v1855
  %v1888 = vsel %vm1886, %v1855, %v1857
  %v1889 = vsel %vm1886, %v1857, %v1859
  %v1890 = vsel %vm1886, %v1859, %v1861
  %v1891 = vsel %vm1886, %v1861, %v1863
  %v1892 = vsel %vm1886, %v1863, %v1865
  %v1893 = vsel %vm1886, %v1865, %v1867
  %v1894 = vsel %vm1886, %v1867, %v1869
  %v1895 = vsel %vm1886, %v1869, %v1871
  %v1896 = vsel %vm1886, %v1871, %v1873
  %v1897 = vsel %vm1886, %v1873, %v1875
  %v1898 = vsel %vm1886, %v1875, %v1877
  %v1899 = vsel %vm1886, %v1877, %v1879
  %v1900 = vsel %vm1886, %v1879, %v1881
  %v1901 = vsel %vm1886, %v1881, %v1883
  %v1902 = vsel %vm1886, %v1883, %v1885
  %1919 = vst [vmem:[#allocation2 + $0x800] sm:$0xff] %v1887
  %1920 = vst [vmem:[#allocation2 + $0x808] sm:$0xff] %v1888
  %1921 = vst [vmem:[#allocation2 + $0x810] sm:$0xff] %v1889
  %1922 = vst [vmem:[#allocation2 + $0x818] sm:$0xff] %v1890
  %1923 = vst [vmem:[#allocation2 + $0x820] sm:$0xff] %v1891
  %1924 = vst [vmem:[#allocation2 + $0x828] sm:$0xff] %v1892
  %1925 = vst [vmem:[#allocation2 + $0x830] sm:$0xff] %v1893
  %1926 = vst [vmem:[#allocation2 + $0x838] sm:$0xff] %v1894
  %1927 = vst [vmem:[#allocation2 + $0x840] sm:$0xff] %v1895
  %1928 = vst [vmem:[#allocation2 + $0x848] sm:$0xff] %v1896
  %1929 = vst [vmem:[#allocation2 + $0x850] sm:$0xff] %v1897
  %1930 = vst [vmem:[#allocation2 + $0x858] sm:$0xff] %v1898
  %1931 = vst [vmem:[#allocation2 + $0x860] sm:$0xff] %v1899
  %1932 = vst [vmem:[#allocation2 + $0x868] sm:$0xff] %v1900
  %1933 = vst [vmem:[#allocation2 + $0x870] sm:$0xff] %v1901
  %1934 = vst [vmem:[#allocation2 + $0x878] sm:$0xff] %v1902
  %v1935 = vld [vmem:[%s0 + $0x8] sm:$0xff]
  %v1936 = vld [vmem:[%s0 + $0x10] sm:$0xff]
  %v1937 = vld [vmem:[%s0 + $0x18] sm:$0xff]
  %v1938 = vld [vmem:[%s0 + $0x20] sm:$0xff]
  %v1939 = vld [vmem:[%s0 + $0x28] sm:$0xff]
  %v1940 = vld [vmem:[%s0 + $0x30] sm:$0xff]
  %v1941 = vld [vmem:[%s0 + $0x38] sm:$0xff]
  %v1942 = vld [vmem:[%s0 + $0x40] sm:$0xff]
  %v1943 = vld [vmem:[%s0 + $0x48] sm:$0xff]
  %v1944 = vld [vmem:[%s0 + $0x50] sm:$0xff]
  %v1945 = vld [vmem:[%s0 + $0x58] sm:$0xff]
  %v1946 = vld [vmem:[%s0 + $0x60] sm:$0xff]
  %v1947 = vld [vmem:[%s0 + $0x68] sm:$0xff]
  %v1948 = vld [vmem:[%s0 + $0x70] sm:$0xff]
  %v1949 = vld [vmem:[%s0 + $0x78] sm:$0xff]
  %v1950 = vld [vmem:[%s0 + $0x80] sm:$0xff]
  %v1951 = vld [vmem:[%s0 + $0x88] sm:$0xff]
  %1969 = vrot.lane.b32.xlu0 %v1935, 117
  %v1970 = vpop.permute.xlu0 %1969
  %1971 = vrot.lane.b32.xlu0 %v1936, 117
  %v1972 = vpop.permute.xlu0 %1971
  %1973 = vrot.lane.b32.xlu0 %v1937, 117
  %v1974 = vpop.permute.xlu0 %1973
  %1975 = vrot.lane.b32.xlu0 %v1938, 117
  %v1976 = vpop.permute.xlu0 %1975
  %1977 = vrot.lane.b32.xlu0 %v1939, 117
  %v1978 = vpop.permute.xlu0 %1977
  %1979 = vrot.lane.b32.xlu0 %v1940, 117
  %v1980 = vpop.permute.xlu0 %1979
  %1981 = vrot.lane.b32.xlu0 %v1941, 117
  %v1982 = vpop.permute.xlu0 %1981
  %1983 = vrot.lane.b32.xlu0 %v1942, 117
  %v1984 = vpop.permute.xlu0 %1983
  %1985 = vrot.lane.b32.xlu0 %v1943, 117
  %v1986 = vpop.permute.xlu0 %1985
  %1987 = vrot.lane.b32.xlu0 %v1944, 117
  %v1988 = vpop.permute.xlu0 %1987
  %1989 = vrot.lane.b32.xlu0 %v1945, 117
  %v1990 = vpop.permute.xlu0 %1989
  %1991 = vrot.lane.b32.xlu0 %v1946, 117
  %v1992 = vpop.permute.xlu0 %1991
  %1993 = vrot.lane.b32.xlu0 %v1947, 117
  %v1994 = vpop.permute.xlu0 %1993
  %1995 = vrot.lane.b32.xlu0 %v1948, 117
  %v1996 = vpop.permute.xlu0 %1995
  %1997 = vrot.lane.b32.xlu0 %v1949, 117
  %v1998 = vpop.permute.xlu0 %1997
  %1999 = vrot.lane.b32.xlu0 %v1950, 117
  %v2000 = vpop.permute.xlu0 %1999
  %2001 = vrot.lane.b32.xlu0 %v1951, 117
  %v2002 = vpop.permute.xlu0 %2001
  %vm2003 = vcmask 957440
  %v2004 = vsel %vm2003, %v1970, %v1972
  %v2005 = vsel %vm2003, %v1972, %v1974
  %v2006 = vsel %vm2003, %v1974, %v1976
  %v2007 = vsel %vm2003, %v1976, %v1978
  %v2008 = vsel %vm2003, %v1978, %v1980
  %v2009 = vsel %vm2003, %v1980, %v1982
  %v2010 = vsel %vm2003, %v1982, %v1984
  %v2011 = vsel %vm2003, %v1984, %v1986
  %v2012 = vsel %vm2003, %v1986, %v1988
  %v2013 = vsel %vm2003, %v1988, %v1990
  %v2014 = vsel %vm2003, %v1990, %v1992
  %v2015 = vsel %vm2003, %v1992, %v1994
  %v2016 = vsel %vm2003, %v1994, %v1996
  %v2017 = vsel %vm2003, %v1996, %v1998
  %v2018 = vsel %vm2003, %v1998, %v2000
  %v2019 = vsel %vm2003, %v2000, %v2002
  %2036 = vst [vmem:[#allocation2 + $0x880] sm:$0xff] %v2004
  %2037 = vst [vmem:[#allocation2 + $0x888] sm:$0xff] %v2005
  %2038 = vst [vmem:[#allocation2 + $0x890] sm:$0xff] %v2006
  %2039 = vst [vmem:[#allocation2 + $0x898] sm:$0xff] %v2007
  %2040 = vst [vmem:[#allocation2 + $0x8a0] sm:$0xff] %v2008
  %2041 = vst [vmem:[#allocation2 + $0x8a8] sm:$0xff] %v2009
  %2042 = vst [vmem:[#allocation2 + $0x8b0] sm:$0xff] %v2010
  %2043 = vst [vmem:[#allocation2 + $0x8b8] sm:$0xff] %v2011
  %2044 = vst [vmem:[#allocation2 + $0x8c0] sm:$0xff] %v2012
  %2045 = vst [vmem:[#allocation2 + $0x8c8] sm:$0xff] %v2013
  %2046 = vst [vmem:[#allocation2 + $0x8d0] sm:$0xff] %v2014
  %2047 = vst [vmem:[#allocation2 + $0x8d8] sm:$0xff] %v2015
  %2048 = vst [vmem:[#allocation2 + $0x8e0] sm:$0xff] %v2016
  %2049 = vst [vmem:[#allocation2 + $0x8e8] sm:$0xff] %v2017
  %2050 = vst [vmem:[#allocation2 + $0x8f0] sm:$0xff] %v2018
  %2051 = vst [vmem:[#allocation2 + $0x8f8] sm:$0xff] %v2019
  %v2052 = vld [vmem:[%s0 + $0x8] sm:$0xff]
  %v2053 = vld [vmem:[%s0 + $0x10] sm:$0xff]
  %v2054 = vld [vmem:[%s0 + $0x18] sm:$0xff]
  %v2055 = vld [vmem:[%s0 + $0x20] sm:$0xff]
  %v2056 = vld [vmem:[%s0 + $0x28] sm:$0xff]
  %v2057 = vld [vmem:[%s0 + $0x30] sm:$0xff]
  %v2058 = vld [vmem:[%s0 + $0x38] sm:$0xff]
  %v2059 = vld [vmem:[%s0 + $0x40] sm:$0xff]
  %v2060 = vld [vmem:[%s0 + $0x48] sm:$0xff]
  %v2061 = vld [vmem:[%s0 + $0x50] sm:$0xff]
  %v2062 = vld [vmem:[%s0 + $0x58] sm:$0xff]
  %v2063 = vld [vmem:[%s0 + $0x60] sm:$0xff]
  %v2064 = vld [vmem:[%s0 + $0x68] sm:$0xff]
  %v2065 = vld [vmem:[%s0 + $0x70] sm:$0xff]
  %v2066 = vld [vmem:[%s0 + $0x78] sm:$0xff]
  %v2067 = vld [vmem:[%s0 + $0x80] sm:$0xff]
  %v2068 = vld [vmem:[%s0 + $0x88] sm:$0xff]
  %2086 = vrot.lane.b32.xlu0 %v2052, 39
  %v2087 = vpop.permute.xlu0 %2086
  %2088 = vrot.lane.b32.xlu0 %v2053, 39
  %v2089 = vpop.permute.xlu0 %2088
  %2090 = vrot.lane.b32.xlu0 %v2054, 39
  %v2091 = vpop.permute.xlu0 %2090
  %2092 = vrot.lane.b32.xlu0 %v2055, 39
  %v2093 = vpop.permute.xlu0 %2092
  %2094 = vrot.lane.b32.xlu0 %v2056, 39
  %v2095 = vpop.permute.xlu0 %2094
  %2096 = vrot.lane.b32.xlu0 %v2057, 39
  %v2097 = vpop.permute.xlu0 %2096
  %2098 = vrot.lane.b32.xlu0 %v2058, 39
  %v2099 = vpop.permute.xlu0 %2098
  %2100 = vrot.lane.b32.xlu0 %v2059, 39
  %v2101 = vpop.permute.xlu0 %2100
  %2102 = vrot.lane.b32.xlu0 %v2060, 39
  %v2103 = vpop.permute.xlu0 %2102
  %2104 = vrot.lane.b32.xlu0 %v2061, 39
  %v2105 = vpop.permute.xlu0 %2104
  %2106 = vrot.lane.b32.xlu0 %v2062, 39
  %v2107 = vpop.permute.xlu0 %2106
  %2108 = vrot.lane.b32.xlu0 %v2063, 39
  %v2109 = vpop.permute.xlu0 %2108
  %2110 = vrot.lane.b32.xlu0 %v2064, 39
  %v2111 = vpop.permute.xlu0 %2110
  %2112 = vrot.lane.b32.xlu0 %v2065, 39
  %v2113 = vpop.permute.xlu0 %2112
  %2114 = vrot.lane.b32.xlu0 %v2066, 39
  %v2115 = vpop.permute.xlu0 %2114
  %2116 = vrot.lane.b32.xlu0 %v2067, 39
  %v2117 = vpop.permute.xlu0 %2116
  %2118 = vrot.lane.b32.xlu0 %v2068, 39
  %v2119 = vpop.permute.xlu0 %2118
  %vm2120 = vcmask 318464
  %v2121 = vsel %vm2120, %v2087, %v2089
  %v2122 = vsel %vm2120, %v2089, %v2091
  %v2123 = vsel %vm2120, %v2091, %v2093
  %v2124 = vsel %vm2120, %v2093, %v2095
  %v2125 = vsel %vm2120, %v2095, %v2097
  %v2126 = vsel %vm2120, %v2097, %v2099
  %v2127 = vsel %vm2120, %v2099, %v2101
  %v2128 = vsel %vm2120, %v2101, %v2103
  %v2129 = vsel %vm2120, %v2103, %v2105
  %v2130 = vsel %vm2120, %v2105, %v2107
  %v2131 = vsel %vm2120, %v2107, %v2109
  %v2132 = vsel %vm2120, %v2109, %v2111
  %v2133 = vsel %vm2120, %v2111, %v2113
  %v2134 = vsel %vm2120, %v2113, %v2115
  %v2135 = vsel %vm2120, %v2115, %v2117
  %v2136 = vsel %vm2120, %v2117, %v2119
  %2153 = vst [vmem:[#allocation2 + $0x900] sm:$0xff] %v2121
  %2154 = vst [vmem:[#allocation2 + $0x908] sm:$0xff] %v2122
  %2155 = vst [vmem:[#allocation2 + $0x910] sm:$0xff] %v2123
  %2156 = vst [vmem:[#allocation2 + $0x918] sm:$0xff] %v2124
  %2157 = vst [vmem:[#allocation2 + $0x920] sm:$0xff] %v2125
  %2158 = vst [vmem:[#allocation2 + $0x928] sm:$0xff] %v2126
  %2159 = vst [vmem:[#allocation2 + $0x930] sm:$0xff] %v2127
  %2160 = vst [vmem:[#allocation2 + $0x938] sm:$0xff] %v2128
  %2161 = vst [vmem:[#allocation2 + $0x940] sm:$0xff] %v2129
  %2162 = vst [vmem:[#allocation2 + $0x948] sm:$0xff] %v2130
  %2163 = vst [vmem:[#allocation2 + $0x950] sm:$0xff] %v2131
  %2164 = vst [vmem:[#allocation2 + $0x958] sm:$0xff] %v2132
  %2165 = vst [vmem:[#allocation2 + $0x960] sm:$0xff] %v2133
  %2166 = vst [vmem:[#allocation2 + $0x968] sm:$0xff] %v2134
  %2167 = vst [vmem:[#allocation2 + $0x970] sm:$0xff] %v2135
  %2168 = vst [vmem:[#allocation2 + $0x978] sm:$0xff] %v2136
  %v2169 = vld [vmem:[%s0 + $0x8] sm:$0xff]
  %v2170 = vld [vmem:[%s0 + $0x10] sm:$0xff]
  %v2171 = vld [vmem:[%s0 + $0x18] sm:$0xff]
  %v2172 = vld [vmem:[%s0 + $0x20] sm:$0xff]
  %v2173 = vld [vmem:[%s0 + $0x28] sm:$0xff]
  %v2174 = vld [vmem:[%s0 + $0x30] sm:$0xff]
  %v2175 = vld [vmem:[%s0 + $0x38] sm:$0xff]
  %v2176 = vld [vmem:[%s0 + $0x40] sm:$0xff]
  %v2177 = vld [vmem:[%s0 + $0x48] sm:$0xff]
  %v2178 = vld [vmem:[%s0 + $0x50] sm:$0xff]
  %v2179 = vld [vmem:[%s0 + $0x58] sm:$0xff]
  %v2180 = vld [vmem:[%s0 + $0x60] sm:$0xff]
  %v2181 = vld [vmem:[%s0 + $0x68] sm:$0xff]
  %v2182 = vld [vmem:[%s0 + $0x70] sm:$0xff]
  %v2183 = vld [vmem:[%s0 + $0x78] sm:$0xff]
  %v2184 = vld [vmem:[%s0 + $0x80] sm:$0xff]
  %v2185 = vld [vmem:[%s0 + $0x88] sm:$0xff]
  %2203 = vrot.lane.b32.xlu0 %v2169, 38
  %v2204 = vpop.permute.xlu0 %2203
  %2205 = vrot.lane.b32.xlu0 %v2170, 38
  %v2206 = vpop.permute.xlu0 %2205
  %2207 = vrot.lane.b32.xlu0 %v2171, 38
  %v2208 = vpop.permute.xlu0 %2207
  %2209 = vrot.lane.b32.xlu0 %v2172, 38
  %v2210 = vpop.permute.xlu0 %2209
  %2211 = vrot.lane.b32.xlu0 %v2173, 38
  %v2212 = vpop.permute.xlu0 %2211
  %2213 = vrot.lane.b32.xlu0 %v2174, 38
  %v2214 = vpop.permute.xlu0 %2213
  %2215 = vrot.lane.b32.xlu0 %v2175, 38
  %v2216 = vpop.permute.xlu0 %2215
  %2217 = vrot.lane.b32.xlu0 %v2176, 38
  %v2218 = vpop.permute.xlu0 %2217
  %2219 = vrot.lane.b32.xlu0 %v2177, 38
  %v2220 = vpop.permute.xlu0 %2219
  %2221 = vrot.lane.b32.xlu0 %v2178, 38
  %v2222 = vpop.permute.xlu0 %2221
  %2223 = vrot.lane.b32.xlu0 %v2179, 38
  %v2224 = vpop.permute.xlu0 %2223
  %2225 = vrot.lane.b32.xlu0 %v2180, 38
  %v2226 = vpop.permute.xlu0 %2225
  %2227 = vrot.lane.b32.xlu0 %v2181, 38
  %v2228 = vpop.permute.xlu0 %2227
  %2229 = vrot.lane.b32.xlu0 %v2182, 38
  %v2230 = vpop.permute.xlu0 %2229
  %2231 = vrot.lane.b32.xlu0 %v2183, 38
  %v2232 = vpop.permute.xlu0 %2231
  %2233 = vrot.lane.b32.xlu0 %v2184, 38
  %v2234 = vpop.permute.xlu0 %2233
  %2235 = vrot.lane.b32.xlu0 %v2185, 38
  %v2236 = vpop.permute.xlu0 %2235
  %vm2237 = vcmask 310272
  %v2238 = vsel %vm2237, %v2204, %v2206
  %v2239 = vsel %vm2237, %v2206, %v2208
  %v2240 = vsel %vm2237, %v2208, %v2210
  %v2241 = vsel %vm2237, %v2210, %v2212
  %v2242 = vsel %vm2237, %v2212, %v2214
  %v2243 = vsel %vm2237, %v2214, %v2216
  %v2244 = vsel %vm2237, %v2216, %v2218
  %v2245 = vsel %vm2237, %v2218, %v2220
  %v2246 = vsel %vm2237, %v2220, %v2222
  %v2247 = vsel %vm2237, %v2222, %v2224
  %v2248 = vsel %vm2237, %v2224, %v2226
  %v2249 = vsel %vm2237, %v2226, %v2228
  %v2250 = vsel %vm2237, %v2228, %v2230
  %v2251 = vsel %vm2237, %v2230, %v2232
  %v2252 = vsel %vm2237, %v2232, %v2234
  %v2253 = vsel %vm2237, %v2234, %v2236
  %2270 = vst [vmem:[#allocation2 + $0x980] sm:$0xff] %v2238
  %2271 = vst [vmem:[#allocation2 + $0x988] sm:$0xff] %v2239
  %2272 = vst [vmem:[#allocation2 + $0x990] sm:$0xff] %v2240
  %2273 = vst [vmem:[#allocation2 + $0x998] sm:$0xff] %v2241
  %2274 = vst [vmem:[#allocation2 + $0x9a0] sm:$0xff] %v2242
  %2275 = vst [vmem:[#allocation2 + $0x9a8] sm:$0xff] %v2243
  %2276 = vst [vmem:[#allocation2 + $0x9b0] sm:$0xff] %v2244
  %2277 = vst [vmem:[#allocation2 + $0x9b8] sm:$0xff] %v2245
  %2278 = vst [vmem:[#allocation2 + $0x9c0] sm:$0xff] %v2246
  %2279 = vst [vmem:[#allocation2 + $0x9c8] sm:$0xff] %v2247
  %2280 = vst [vmem:[#allocation2 + $0x9d0] sm:$0xff] %v2248
  %2281 = vst [vmem:[#allocation2 + $0x9d8] sm:$0xff] %v2249
  %2282 = vst [vmem:[#allocation2 + $0x9e0] sm:$0xff] %v2250
  %2283 = vst [vmem:[#allocation2 + $0x9e8] sm:$0xff] %v2251
  %2284 = vst [vmem:[#allocation2 + $0x9f0] sm:$0xff] %v2252
  %2285 = vst [vmem:[#allocation2 + $0x9f8] sm:$0xff] %v2253
  %v2286 = vld [vmem:[%s0 + $0x8] sm:$0xff]
  %v2287 = vld [vmem:[%s0 + $0x10] sm:$0xff]
  %v2288 = vld [vmem:[%s0 + $0x18] sm:$0xff]
  %v2289 = vld [vmem:[%s0 + $0x20] sm:$0xff]
  %v2290 = vld [vmem:[%s0 + $0x28] sm:$0xff]
  %v2291 = vld [vmem:[%s0 + $0x30] sm:$0xff]
  %v2292 = vld [vmem:[%s0 + $0x38] sm:$0xff]
  %v2293 = vld [vmem:[%s0 + $0x40] sm:$0xff]
  %v2294 = vld [vmem:[%s0 + $0x48] sm:$0xff]
  %v2295 = vld [vmem:[%s0 + $0x50] sm:$0xff]
  %v2296 = vld [vmem:[%s0 + $0x58] sm:$0xff]
  %v2297 = vld [vmem:[%s0 + $0x60] sm:$0xff]
  %v2298 = vld [vmem:[%s0 + $0x68] sm:$0xff]
  %v2299 = vld [vmem:[%s0 + $0x70] sm:$0xff]
  %v2300 = vld [vmem:[%s0 + $0x78] sm:$0xff]
  %v2301 = vld [vmem:[%s0 + $0x80] sm:$0xff]
  %v2302 = vld [vmem:[%s0 + $0x88] sm:$0xff]
  %2320 = vrot.lane.b32.xlu0 %v2286, 37
  %v2321 = vpop.permute.xlu0 %2320
  %2322 = vrot.lane.b32.xlu0 %v2287, 37
  %v2323 = vpop.permute.xlu0 %2322
  %2324 = vrot.lane.b32.xlu0 %v2288, 37
  %v2325 = vpop.permute.xlu0 %2324
  %2326 = vrot.lane.b32.xlu0 %v2289, 37
  %v2327 = vpop.permute.xlu0 %2326
  %2328 = vrot.lane.b32.xlu0 %v2290, 37
  %v2329 = vpop.permute.xlu0 %2328
  %2330 = vrot.lane.b32.xlu0 %v2291, 37
  %v2331 = vpop.permute.xlu0 %2330
  %2332 = vrot.lane.b32.xlu0 %v2292, 37
  %v2333 = vpop.permute.xlu0 %2332
  %2334 = vrot.lane.b32.xlu0 %v2293, 37
  %v2335 = vpop.permute.xlu0 %2334
  %2336 = vrot.lane.b32.xlu0 %v2294, 37
  %v2337 = vpop.permute.xlu0 %2336
  %2338 = vrot.lane.b32.xlu0 %v2295, 37
  %v2339 = vpop.permute.xlu0 %2338
  %2340 = vrot.lane.b32.xlu0 %v2296, 37
  %v2341 = vpop.permute.xlu0 %2340
  %2342 = vrot.lane.b32.xlu0 %v2297, 37
  %v2343 = vpop.permute.xlu0 %2342
  %2344 = vrot.lane.b32.xlu0 %v2298, 37
  %v2345 = vpop.permute.xlu0 %2344
  %2346 = vrot.lane.b32.xlu0 %v2299, 37
  %v2347 = vpop.permute.xlu0 %2346
  %2348 = vrot.lane.b32.xlu0 %v2300, 37
  %v2349 = vpop.permute.xlu0 %2348
  %2350 = vrot.lane.b32.xlu0 %v2301, 37
  %v2351 = vpop.permute.xlu0 %2350
  %2352 = vrot.lane.b32.xlu0 %v2302, 37
  %v2353 = vpop.permute.xlu0 %2352
  %vm2354 = vcmask 302080
  %v2355 = vsel %vm2354, %v2321, %v2323
  %v2356 = vsel %vm2354, %v2323, %v2325
  %v2357 = vsel %vm2354, %v2325, %v2327
  %v2358 = vsel %vm2354, %v2327, %v2329
  %v2359 = vsel %vm2354, %v2329, %v2331
  %v2360 = vsel %vm2354, %v2331, %v2333
  %v2361 = vsel %vm2354, %v2333, %v2335
  %v2362 = vsel %vm2354, %v2335, %v2337
  %v2363 = vsel %vm2354, %v2337, %v2339
  %v2364 = vsel %vm2354, %v2339, %v2341
  %v2365 = vsel %vm2354, %v2341, %v2343
  %v2366 = vsel %vm2354, %v2343, %v2345
  %v2367 = vsel %vm2354, %v2345, %v2347
  %v2368 = vsel %vm2354, %v2347, %v2349
  %v2369 = vsel %vm2354, %v2349, %v2351
  %v2370 = vsel %vm2354, %v2351, %v2353
  %2387 = vst [vmem:[#allocation2 + $0xa00] sm:$0xff] %v2355
  %2388 = vst [vmem:[#allocation2 + $0xa08] sm:$0xff] %v2356
  %2389 = vst [vmem:[#allocation2 + $0xa10] sm:$0xff] %v2357
  %2390 = vst [vmem:[#allocation2 + $0xa18] sm:$0xff] %v2358
  %2391 = vst [vmem:[#allocation2 + $0xa20] sm:$0xff] %v2359
  %2392 = vst [vmem:[#allocation2 + $0xa28] sm:$0xff] %v2360
  %2393 = vst [vmem:[#allocation2 + $0xa30] sm:$0xff] %v2361
  %2394 = vst [vmem:[#allocation2 + $0xa38] sm:$0xff] %v2362
  %2395 = vst [vmem:[#allocation2 + $0xa40] sm:$0xff] %v2363
  %2396 = vst [vmem:[#allocation2 + $0xa48] sm:$0xff] %v2364
  %2397 = vst [vmem:[#allocation2 + $0xa50] sm:$0xff] %v2365
  %2398 = vst [vmem:[#allocation2 + $0xa58] sm:$0xff] %v2366
  %2399 = vst [vmem:[#allocation2 + $0xa60] sm:$0xff] %v2367
  %2400 = vst [vmem:[#allocation2 + $0xa68] sm:$0xff] %v2368
  %2401 = vst [vmem:[#allocation2 + $0xa70] sm:$0xff] %v2369
  %2402 = vst [vmem:[#allocation2 + $0xa78] sm:$0xff] %v2370
  %v2403 = vld [vmem:[%s0 + $0x8] sm:$0xff]
  %v2404 = vld [vmem:[%s0 + $0x10] sm:$0xff]
  %v2405 = vld [vmem:[%s0 + $0x18] sm:$0xff]
  %v2406 = vld [vmem:[%s0 + $0x20] sm:$0xff]
  %v2407 = vld [vmem:[%s0 + $0x28] sm:$0xff]
  %v2408 = vld [vmem:[%s0 + $0x30] sm:$0xff]
  %v2409 = vld [vmem:[%s0 + $0x38] sm:$0xff]
  %v2410 = vld [vmem:[%s0 + $0x40] sm:$0xff]
  %v2411 = vld [vmem:[%s0 + $0x48] sm:$0xff]
  %v2412 = vld [vmem:[%s0 + $0x50] sm:$0xff]
  %v2413 = vld [vmem:[%s0 + $0x58] sm:$0xff]
  %v2414 = vld [vmem:[%s0 + $0x60] sm:$0xff]
  %v2415 = vld [vmem:[%s0 + $0x68] sm:$0xff]
  %v2416 = vld [vmem:[%s0 + $0x70] sm:$0xff]
  %v2417 = vld [vmem:[%s0 + $0x78] sm:$0xff]
  %v2418 = vld [vmem:[%s0 + $0x80] sm:$0xff]
  %v2419 = vld [vmem:[%s0 + $0x88] sm:$0xff]
  %2437 = vrot.lane.b32.xlu0 %v2403, 29
  %v2438 = vpop.permute.xlu0 %2437
  %2439 = vrot.lane.b32.xlu0 %v2404, 29
  %v2440 = vpop.permute.xlu0 %2439
  %2441 = vrot.lane.b32.xlu0 %v2405, 29
  %v2442 = vpop.permute.xlu0 %2441
  %2443 = vrot.lane.b32.xlu0 %v2406, 29
  %v2444 = vpop.permute.xlu0 %2443
  %2445 = vrot.lane.b32.xlu0 %v2407, 29
  %v2446 = vpop.permute.xlu0 %2445
  %2447 = vrot.lane.b32.xlu0 %v2408, 29
  %v2448 = vpop.permute.xlu0 %2447
  %2449 = vrot.lane.b32.xlu0 %v2409, 29
  %v2450 = vpop.permute.xlu0 %2449
  %2451 = vrot.lane.b32.xlu0 %v2410, 29
  %v2452 = vpop.permute.xlu0 %2451
  %2453 = vrot.lane.b32.xlu0 %v2411, 29
  %v2454 = vpop.permute.xlu0 %2453
  %2455 = vrot.lane.b32.xlu0 %v2412, 29
  %v2456 = vpop.permute.xlu0 %2455
  %2457 = vrot.lane.b32.xlu0 %v2413, 29
  %v2458 = vpop.permute.xlu0 %2457
  %2459 = vrot.lane.b32.xlu0 %v2414, 29
  %v2460 = vpop.permute.xlu0 %2459
  %2461 = vrot.lane.b32.xlu0 %v2415, 29
  %v2462 = vpop.permute.xlu0 %2461
  %2463 = vrot.lane.b32.xlu0 %v2416, 29
  %v2464 = vpop.permute.xlu0 %2463
  %2465 = vrot.lane.b32.xlu0 %v2417, 29
  %v2466 = vpop.permute.xlu0 %2465
  %2467 = vrot.lane.b32.xlu0 %v2418, 29
  %v2468 = vpop.permute.xlu0 %2467
  %2469 = vrot.lane.b32.xlu0 %v2419, 29
  %v2470 = vpop.permute.xlu0 %2469
  %vm2471 = vcmask 236544
  %v2472 = vsel %vm2471, %v2438, %v2440
  %v2473 = vsel %vm2471, %v2440, %v2442
  %v2474 = vsel %vm2471, %v2442, %v2444
  %v2475 = vsel %vm2471, %v2444, %v2446
  %v2476 = vsel %vm2471, %v2446, %v2448
  %v2477 = vsel %vm2471, %v2448, %v2450
  %v2478 = vsel %vm2471, %v2450, %v2452
  %v2479 = vsel %vm2471, %v2452, %v2454
  %v2480 = vsel %vm2471, %v2454, %v2456
  %v2481 = vsel %vm2471, %v2456, %v2458
  %v2482 = vsel %vm2471, %v2458, %v2460
  %v2483 = vsel %vm2471, %v2460, %v2462
  %v2484 = vsel %vm2471, %v2462, %v2464
  %v2485 = vsel %vm2471, %v2464, %v2466
  %v2486 = vsel %vm2471, %v2466, %v2468
  %v2487 = vsel %vm2471, %v2468, %v2470
  %2504 = vst [vmem:[#allocation2 + $0xa80] sm:$0xff] %v2472
  %2505 = vst [vmem:[#allocation2 + $0xa88] sm:$0xff] %v2473
  %2506 = vst [vmem:[#allocation2 + $0xa90] sm:$0xff] %v2474
  %2507 = vst [vmem:[#allocation2 + $0xa98] sm:$0xff] %v2475
  %2508 = vst [vmem:[#allocation2 + $0xaa0] sm:$0xff] %v2476
  %2509 = vst [vmem:[#allocation2 + $0xaa8] sm:$0xff] %v2477
  %2510 = vst [vmem:[#allocation2 + $0xab0] sm:$0xff] %v2478
  %2511 = vst [vmem:[#allocation2 + $0xab8] sm:$0xff] %v2479
  %2512 = vst [vmem:[#allocation2 + $0xac0] sm:$0xff] %v2480
  %2513 = vst [vmem:[#allocation2 + $0xac8] sm:$0xff] %v2481
  %2514 = vst [vmem:[#allocation2 + $0xad0] sm:$0xff] %v2482
  %2515 = vst [vmem:[#allocation2 + $0xad8] sm:$0xff] %v2483
  %2516 = vst [vmem:[#allocation2 + $0xae0] sm:$0xff] %v2484
  %2517 = vst [vmem:[#allocation2 + $0xae8] sm:$0xff] %v2485
  %2518 = vst [vmem:[#allocation2 + $0xaf0] sm:$0xff] %v2486
  %2519 = vst [vmem:[#allocation2 + $0xaf8] sm:$0xff] %v2487
  %v2520 = vld [vmem:[%s0 + $0x8] sm:$0xff]
  %v2521 = vld [vmem:[%s0 + $0x10] sm:$0xff]
  %v2522 = vld [vmem:[%s0 + $0x18] sm:$0xff]
  %v2523 = vld [vmem:[%s0 + $0x20] sm:$0xff]
  %v2524 = vld [vmem:[%s0 + $0x28] sm:$0xff]
  %v2525 = vld [vmem:[%s0 + $0x30] sm:$0xff]
  %v2526 = vld [vmem:[%s0 + $0x38] sm:$0xff]
  %v2527 = vld [vmem:[%s0 + $0x40] sm:$0xff]
  %v2528 = vld [vmem:[%s0 + $0x48] sm:$0xff]
  %v2529 = vld [vmem:[%s0 + $0x50] sm:$0xff]
  %v2530 = vld [vmem:[%s0 + $0x58] sm:$0xff]
  %v2531 = vld [vmem:[%s0 + $0x60] sm:$0xff]
  %v2532 = vld [vmem:[%s0 + $0x68] sm:$0xff]
  %v2533 = vld [vmem:[%s0 + $0x70] sm:$0xff]
  %v2534 = vld [vmem:[%s0 + $0x78] sm:$0xff]
  %v2535 = vld [vmem:[%s0 + $0x80] sm:$0xff]
  %v2536 = vld [vmem:[%s0 + $0x88] sm:$0xff]
  %2554 = vrot.lane.b32.xlu0 %v2520, 28
  %v2555 = vpop.permute.xlu0 %2554
  %2556 = vrot.lane.b32.xlu0 %v2521, 28
  %v2557 = vpop.permute.xlu0 %2556
  %2558 = vrot.lane.b32.xlu0 %v2522, 28
  %v2559 = vpop.permute.xlu0 %2558
  %2560 = vrot.lane.b32.xlu0 %v2523, 28
  %v2561 = vpop.permute.xlu0 %2560
  %2562 = vrot.lane.b32.xlu0 %v2524, 28
  %v2563 = vpop.permute.xlu0 %2562
  %2564 = vrot.lane.b32.xlu0 %v2525, 28
  %v2565 = vpop.permute.xlu0 %2564
  %2566 = vrot.lane.b32.xlu0 %v2526, 28
  %v2567 = vpop.permute.xlu0 %2566
  %2568 = vrot.lane.b32.xlu0 %v2527, 28
  %v2569 = vpop.permute.xlu0 %2568
  %2570 = vrot.lane.b32.xlu0 %v2528, 28
  %v2571 = vpop.permute.xlu0 %2570
  %2572 = vrot.lane.b32.xlu0 %v2529, 28
  %v2573 = vpop.permute.xlu0 %2572
  %2574 = vrot.lane.b32.xlu0 %v2530, 28
  %v2575 = vpop.permute.xlu0 %2574
  %2576 = vrot.lane.b32.xlu0 %v2531, 28
  %v2577 = vpop.permute.xlu0 %2576
  %2578 = vrot.lane.b32.xlu0 %v2532, 28
  %v2579 = vpop.permute.xlu0 %2578
  %2580 = vrot.lane.b32.xlu0 %v2533, 28
  %v2581 = vpop.permute.xlu0 %2580
  %2582 = vrot.lane.b32.xlu0 %v2534, 28
  %v2583 = vpop.permute.xlu0 %2582
  %2584 = vrot.lane.b32.xlu0 %v2535, 28
  %v2585 = vpop.permute.xlu0 %2584
  %2586 = vrot.lane.b32.xlu0 %v2536, 28
  %v2587 = vpop.permute.xlu0 %2586
  %vm2588 = vcmask 228352
  %v2589 = vsel %vm2588, %v2555, %v2557
  %v2590 = vsel %vm2588, %v2557, %v2559
  %v2591 = vsel %vm2588, %v2559, %v2561
  %v2592 = vsel %vm2588, %v2561, %v2563
  %v2593 = vsel %vm2588, %v2563, %v2565
  %v2594 = vsel %vm2588, %v2565, %v2567
  %v2595 = vsel %vm2588, %v2567, %v2569
  %v2596 = vsel %vm2588, %v2569, %v2571
  %v2597 = vsel %vm2588, %v2571, %v2573
  %v2598 = vsel %vm2588, %v2573, %v2575
  %v2599 = vsel %vm2588, %v2575, %v2577
  %v2600 = vsel %vm2588, %v2577, %v2579
  %v2601 = vsel %vm2588, %v2579, %v2581
  %v2602 = vsel %vm2588, %v2581, %v2583
  %v2603 = vsel %vm2588, %v2583, %v2585
  %v2604 = vsel %vm2588, %v2585, %v2587
  %2621 = vst [vmem:[#allocation2 + $0xb00] sm:$0xff] %v2589
  %2622 = vst [vmem:[#allocation2 + $0xb08] sm:$0xff] %v2590
  %2623 = vst [vmem:[#allocation2 + $0xb10] sm:$0xff] %v2591
  %2624 = vst [vmem:[#allocation2 + $0xb18] sm:$0xff] %v2592
  %2625 = vst [vmem:[#allocation2 + $0xb20] sm:$0xff] %v2593
  %2626 = vst [vmem:[#allocation2 + $0xb28] sm:$0xff] %v2594
  %2627 = vst [vmem:[#allocation2 + $0xb30] sm:$0xff] %v2595
  %2628 = vst [vmem:[#allocation2 + $0xb38] sm:$0xff] %v2596
  %2629 = vst [vmem:[#allocation2 + $0xb40] sm:$0xff] %v2597
  %2630 = vst [vmem:[#allocation2 + $0xb48] sm:$0xff] %v2598
  %2631 = vst [vmem:[#allocation2 + $0xb50] sm:$0xff] %v2599
  %2632 = vst [vmem:[#allocation2 + $0xb58] sm:$0xff] %v2600
  %2633 = vst [vmem:[#allocation2 + $0xb60] sm:$0xff] %v2601
  %2634 = vst [vmem:[#allocation2 + $0xb68] sm:$0xff] %v2602
  %2635 = vst [vmem:[#allocation2 + $0xb70] sm:$0xff] %v2603
  %2636 = vst [vmem:[#allocation2 + $0xb78] sm:$0xff] %v2604
  %v2637 = vld [vmem:[%s0 + $0x8] sm:$0xff]
  %v2638 = vld [vmem:[%s0 + $0x10] sm:$0xff]
  %v2639 = vld [vmem:[%s0 + $0x18] sm:$0xff]
  %v2640 = vld [vmem:[%s0 + $0x20] sm:$0xff]
  %v2641 = vld [vmem:[%s0 + $0x28] sm:$0xff]
  %v2642 = vld [vmem:[%s0 + $0x30] sm:$0xff]
  %v2643 = vld [vmem:[%s0 + $0x38] sm:$0xff]
  %v2644 = vld [vmem:[%s0 + $0x40] sm:$0xff]
  %v2645 = vld [vmem:[%s0 + $0x48] sm:$0xff]
  %v2646 = vld [vmem:[%s0 + $0x50] sm:$0xff]
  %v2647 = vld [vmem:[%s0 + $0x58] sm:$0xff]
  %v2648 = vld [vmem:[%s0 + $0x60] sm:$0xff]
  %v2649 = vld [vmem:[%s0 + $0x68] sm:$0xff]
  %v2650 = vld [vmem:[%s0 + $0x70] sm:$0xff]
  %v2651 = vld [vmem:[%s0 + $0x78] sm:$0xff]
  %v2652 = vld [vmem:[%s0 + $0x80] sm:$0xff]
  %v2653 = vld [vmem:[%s0 + $0x88] sm:$0xff]
  %2671 = vrot.lane.b32.xlu0 %v2637, 27
  %v2672 = vpop.permute.xlu0 %2671
  %2673 = vrot.lane.b32.xlu0 %v2638, 27
  %v2674 = vpop.permute.xlu0 %2673
  %2675 = vrot.lane.b32.xlu0 %v2639, 27
  %v2676 = vpop.permute.xlu0 %2675
  %2677 = vrot.lane.b32.xlu0 %v2640, 27
  %v2678 = vpop.permute.xlu0 %2677
  %2679 = vrot.lane.b32.xlu0 %v2641, 27
  %v2680 = vpop.permute.xlu0 %2679
  %2681 = vrot.lane.b32.xlu0 %v2642, 27
  %v2682 = vpop.permute.xlu0 %2681
  %2683 = vrot.lane.b32.xlu0 %v2643, 27
  %v2684 = vpop.permute.xlu0 %2683
  %2685 = vrot.lane.b32.xlu0 %v2644, 27
  %v2686 = vpop.permute.xlu0 %2685
  %2687 = vrot.lane.b32.xlu0 %v2645, 27
  %v2688 = vpop.permute.xlu0 %2687
  %2689 = vrot.lane.b32.xlu0 %v2646, 27
  %v2690 = vpop.permute.xlu0 %2689
  %2691 = vrot.lane.b32.xlu0 %v2647, 27
  %v2692 = vpop.permute.xlu0 %2691
  %2693 = vrot.lane.b32.xlu0 %v2648, 27
  %v2694 = vpop.permute.xlu0 %2693
  %2695 = vrot.lane.b32.xlu0 %v2649, 27
  %v2696 = vpop.permute.xlu0 %2695
  %2697 = vrot.lane.b32.xlu0 %v2650, 27
  %v2698 = vpop.permute.xlu0 %2697
  %2699 = vrot.lane.b32.xlu0 %v2651, 27
  %v2700 = vpop.permute.xlu0 %2699
  %2701 = vrot.lane.b32.xlu0 %v2652, 27
  %v2702 = vpop.permute.xlu0 %2701
  %2703 = vrot.lane.b32.xlu0 %v2653, 27
  %v2704 = vpop.permute.xlu0 %2703
  %vm2705 = vcmask 220160
  %v2706 = vsel %vm2705, %v2672, %v2674
  %v2707 = vsel %vm2705, %v2674, %v2676
  %v2708 = vsel %vm2705, %v2676, %v2678
  %v2709 = vsel %vm2705, %v2678, %v2680
  %v2710 = vsel %vm2705, %v2680, %v2682
  %v2711 = vsel %vm2705, %v2682, %v2684
  %v2712 = vsel %vm2705, %v2684, %v2686
  %v2713 = vsel %vm2705, %v2686, %v2688
  %v2714 = vsel %vm2705, %v2688, %v2690
  %v2715 = vsel %vm2705, %v2690, %v2692
  %v2716 = vsel %vm2705, %v2692, %v2694
  %v2717 = vsel %vm2705, %v2694, %v2696
  %v2718 = vsel %vm2705, %v2696, %v2698
  %v2719 = vsel %vm2705, %v2698, %v2700
  %v2720 = vsel %vm2705, %v2700, %v2702
  %v2721 = vsel %vm2705, %v2702, %v2704
  %2738 = vst [vmem:[#allocation2 + $0xb80] sm:$0xff] %v2706
  %2739 = vst [vmem:[#allocation2 + $0xb88] sm:$0xff] %v2707
  %2740 = vst [vmem:[#allocation2 + $0xb90] sm:$0xff] %v2708
  %2741 = vst [vmem:[#allocation2 + $0xb98] sm:$0xff] %v2709
  %2742 = vst [vmem:[#allocation2 + $0xba0] sm:$0xff] %v2710
  %2743 = vst [vmem:[#allocation2 + $0xba8] sm:$0xff] %v2711
  %2744 = vst [vmem:[#allocation2 + $0xbb0] sm:$0xff] %v2712
  %2745 = vst [vmem:[#allocation2 + $0xbb8] sm:$0xff] %v2713
  %2746 = vst [vmem:[#allocation2 + $0xbc0] sm:$0xff] %v2714
  %2747 = vst [vmem:[#allocation2 + $0xbc8] sm:$0xff] %v2715
  %2748 = vst [vmem:[#allocation2 + $0xbd0] sm:$0xff] %v2716
  %2749 = vst [vmem:[#allocation2 + $0xbd8] sm:$0xff] %v2717
  %2750 = vst [vmem:[#allocation2 + $0xbe0] sm:$0xff] %v2718
  %2751 = vst [vmem:[#allocation2 + $0xbe8] sm:$0xff] %v2719
  %2752 = vst [vmem:[#allocation2 + $0xbf0] sm:$0xff] %v2720
  %2753 = vst [vmem:[#allocation2 + $0xbf8] sm:$0xff] %v2721
  %v2754 = vld [vmem:[%s0 + $0x8] sm:$0xff]
  %v2755 = vld [vmem:[%s0 + $0x10] sm:$0xff]
  %v2756 = vld [vmem:[%s0 + $0x18] sm:$0xff]
  %v2757 = vld [vmem:[%s0 + $0x20] sm:$0xff]
  %v2758 = vld [vmem:[%s0 + $0x28] sm:$0xff]
  %v2759 = vld [vmem:[%s0 + $0x30] sm:$0xff]
  %v2760 = vld [vmem:[%s0 + $0x38] sm:$0xff]
  %v2761 = vld [vmem:[%s0 + $0x40] sm:$0xff]
  %v2762 = vld [vmem:[%s0 + $0x48] sm:$0xff]
  %v2763 = vld [vmem:[%s0 + $0x50] sm:$0xff]
  %v2764 = vld [vmem:[%s0 + $0x58] sm:$0xff]
  %v2765 = vld [vmem:[%s0 + $0x60] sm:$0xff]
  %v2766 = vld [vmem:[%s0 + $0x68] sm:$0xff]
  %v2767 = vld [vmem:[%s0 + $0x70] sm:$0xff]
  %v2768 = vld [vmem:[%s0 + $0x78] sm:$0xff]
  %v2769 = vld [vmem:[%s0 + $0x80] sm:$0xff]
  %v2770 = vld [vmem:[%s0 + $0x88] sm:$0xff]
  %2788 = vrot.lane.b32.xlu0 %v2754, 19
  %v2789 = vpop.permute.xlu0 %2788
  %2790 = vrot.lane.b32.xlu0 %v2755, 19
  %v2791 = vpop.permute.xlu0 %2790
  %2792 = vrot.lane.b32.xlu0 %v2756, 19
  %v2793 = vpop.permute.xlu0 %2792
  %2794 = vrot.lane.b32.xlu0 %v2757, 19
  %v2795 = vpop.permute.xlu0 %2794
  %2796 = vrot.lane.b32.xlu0 %v2758, 19
  %v2797 = vpop.permute.xlu0 %2796
  %2798 = vrot.lane.b32.xlu0 %v2759, 19
  %v2799 = vpop.permute.xlu0 %2798
  %2800 = vrot.lane.b32.xlu0 %v2760, 19
  %v2801 = vpop.permute.xlu0 %2800
  %2802 = vrot.lane.b32.xlu0 %v2761, 19
  %v2803 = vpop.permute.xlu0 %2802
  %2804 = vrot.lane.b32.xlu0 %v2762, 19
  %v2805 = vpop.permute.xlu0 %2804
  %2806 = vrot.lane.b32.xlu0 %v2763, 19
  %v2807 = vpop.permute.xlu0 %2806
  %2808 = vrot.lane.b32.xlu0 %v2764, 19
  %v2809 = vpop.permute.xlu0 %2808
  %2810 = vrot.lane.b32.xlu0 %v2765, 19
  %v2811 = vpop.permute.xlu0 %2810
  %2812 = vrot.lane.b32.xlu0 %v2766, 19
  %v2813 = vpop.permute.xlu0 %2812
  %2814 = vrot.lane.b32.xlu0 %v2767, 19
  %v2815 = vpop.permute.xlu0 %2814
  %2816 = vrot.lane.b32.xlu0 %v2768, 19
  %v2817 = vpop.permute.xlu0 %2816
  %2818 = vrot.lane.b32.xlu0 %v2769, 19
  %v2819 = vpop.permute.xlu0 %2818
  %2820 = vrot.lane.b32.xlu0 %v2770, 19
  %v2821 = vpop.permute.xlu0 %2820
  %vm2822 = vcmask 154624
  %v2823 = vsel %vm2822, %v2789, %v2791
  %v2824 = vsel %vm2822, %v2791, %v2793
  %v2825 = vsel %vm2822, %v2793, %v2795
  %v2826 = vsel %vm2822, %v2795, %v2797
  %v2827 = vsel %vm2822, %v2797, %v2799
  %v2828 = vsel %vm2822, %v2799, %v2801
  %v2829 = vsel %vm2822, %v2801, %v2803
  %v2830 = vsel %vm2822, %v2803, %v2805
  %v2831 = vsel %vm2822, %v2805, %v2807
  %v2832 = vsel %vm2822, %v2807, %v2809
  %v2833 = vsel %vm2822, %v2809, %v2811
  %v2834 = vsel %vm2822, %v2811, %v2813
  %v2835 = vsel %vm2822, %v2813, %v2815
  %v2836 = vsel %vm2822, %v2815, %v2817
  %v2837 = vsel %vm2822, %v2817, %v2819
  %v2838 = vsel %vm2822, %v2819, %v2821
  %2855 = vst [vmem:[#allocation2 + $0xc00] sm:$0xff] %v2823
  %2856 = vst [vmem:[#allocation2 + $0xc08] sm:$0xff] %v2824
  %2857 = vst [vmem:[#allocation2 + $0xc10] sm:$0xff] %v2825
  %2858 = vst [vmem:[#allocation2 + $0xc18] sm:$0xff] %v2826
  %2859 = vst [vmem:[#allocation2 + $0xc20] sm:$0xff] %v2827
  %2860 = vst [vmem:[#allocation2 + $0xc28] sm:$0xff] %v2828
  %2861 = vst [vmem:[#allocation2 + $0xc30] sm:$0xff] %v2829
  %2862 = vst [vmem:[#allocation2 + $0xc38] sm:$0xff] %v2830
  %2863 = vst [vmem:[#allocation2 + $0xc40] sm:$0xff] %v2831
  %2864 = vst [vmem:[#allocation2 + $0xc48] sm:$0xff] %v2832
  %2865 = vst [vmem:[#allocation2 + $0xc50] sm:$0xff] %v2833
  %2866 = vst [vmem:[#allocation2 + $0xc58] sm:$0xff] %v2834
  %2867 = vst [vmem:[#allocation2 + $0xc60] sm:$0xff] %v2835
  %2868 = vst [vmem:[#allocation2 + $0xc68] sm:$0xff] %v2836
  %2869 = vst [vmem:[#allocation2 + $0xc70] sm:$0xff] %v2837
  %2870 = vst [vmem:[#allocation2 + $0xc78] sm:$0xff] %v2838
  %v2871 = vld [vmem:[%s0 + $0x8] sm:$0xff]
  %v2872 = vld [vmem:[%s0 + $0x10] sm:$0xff]
  %v2873 = vld [vmem:[%s0 + $0x18] sm:$0xff]
  %v2874 = vld [vmem:[%s0 + $0x20] sm:$0xff]
  %v2875 = vld [vmem:[%s0 + $0x28] sm:$0xff]
  %v2876 = vld [vmem:[%s0 + $0x30] sm:$0xff]
  %v2877 = vld [vmem:[%s0 + $0x38] sm:$0xff]
  %v2878 = vld [vmem:[%s0 + $0x40] sm:$0xff]
  %v2879 = vld [vmem:[%s0 + $0x48] sm:$0xff]
  %v2880 = vld [vmem:[%s0 + $0x50] sm:$0xff]
  %v2881 = vld [vmem:[%s0 + $0x58] sm:$0xff]
  %v2882 = vld [vmem:[%s0 + $0x60] sm:$0xff]
  %v2883 = vld [vmem:[%s0 + $0x68] sm:$0xff]
  %v2884 = vld [vmem:[%s0 + $0x70] sm:$0xff]
  %v2885 = vld [vmem:[%s0 + $0x78] sm:$0xff]
  %v2886 = vld [vmem:[%s0 + $0x80] sm:$0xff]
  %v2887 = vld [vmem:[%s0 + $0x88] sm:$0xff]
  %2905 = vrot.lane.b32.xlu0 %v2871, 18
  %v2906 = vpop.permute.xlu0 %2905
  %2907 = vrot.lane.b32.xlu0 %v2872, 18
  %v2908 = vpop.permute.xlu0 %2907
  %2909 = vrot.lane.b32.xlu0 %v2873, 18
  %v2910 = vpop.permute.xlu0 %2909
  %2911 = vrot.lane.b32.xlu0 %v2874, 18
  %v2912 = vpop.permute.xlu0 %2911
  %2913 = vrot.lane.b32.xlu0 %v2875, 18
  %v2914 = vpop.permute.xlu0 %2913
  %2915 = vrot.lane.b32.xlu0 %v2876, 18
  %v2916 = vpop.permute.xlu0 %2915
  %2917 = vrot.lane.b32.xlu0 %v2877, 18
  %v2918 = vpop.permute.xlu0 %2917
  %2919 = vrot.lane.b32.xlu0 %v2878, 18
  %v2920 = vpop.permute.xlu0 %2919
  %2921 = vrot.lane.b32.xlu0 %v2879, 18
  %v2922 = vpop.permute.xlu0 %2921
  %2923 = vrot.lane.b32.xlu0 %v2880, 18
  %v2924 = vpop.permute.xlu0 %2923
  %2925 = vrot.lane.b32.xlu0 %v2881, 18
  %v2926 = vpop.permute.xlu0 %2925
  %2927 = vrot.lane.b32.xlu0 %v2882, 18
  %v2928 = vpop.permute.xlu0 %2927
  %2929 = vrot.lane.b32.xlu0 %v2883, 18
  %v2930 = vpop.permute.xlu0 %2929
  %2931 = vrot.lane.b32.xlu0 %v2884, 18
  %v2932 = vpop.permute.xlu0 %2931
  %2933 = vrot.lane.b32.xlu0 %v2885, 18
  %v2934 = vpop.permute.xlu0 %2933
  %2935 = vrot.lane.b32.xlu0 %v2886, 18
  %v2936 = vpop.permute.xlu0 %2935
  %2937 = vrot.lane.b32.xlu0 %v2887, 18
  %v2938 = vpop.permute.xlu0 %2937
  %vm2939 = vcmask 146432
  %v2940 = vsel %vm2939, %v2906, %v2908
  %v2941 = vsel %vm2939, %v2908, %v2910
  %v2942 = vsel %vm2939, %v2910, %v2912
  %v2943 = vsel %vm2939, %v2912, %v2914
  %v2944 = vsel %vm2939, %v2914, %v2916
  %v2945 = vsel %vm2939, %v2916, %v2918
  %v2946 = vsel %vm2939, %v2918, %v2920
  %v2947 = vsel %vm2939, %v2920, %v2922
  %v2948 = vsel %vm2939, %v2922, %v2924
  %v2949 = vsel %vm2939, %v2924, %v2926
  %v2950 = vsel %vm2939, %v2926, %v2928
  %v2951 = vsel %vm2939, %v2928, %v2930
  %v2952 = vsel %vm2939, %v2930, %v2932
  %v2953 = vsel %vm2939, %v2932, %v2934
  %v2954 = vsel %vm2939, %v2934, %v2936
  %v2955 = vsel %vm2939, %v2936, %v2938
  %2972 = vst [vmem:[#allocation2 + $0xc80] sm:$0xff] %v2940
  %2973 = vst [vmem:[#allocation2 + $0xc88] sm:$0xff] %v2941
  %2974 = vst [vmem:[#allocation2 + $0xc90] sm:$0xff] %v2942
  %2975 = vst [vmem:[#allocation2 + $0xc98] sm:$0xff] %v2943
  %2976 = vst [vmem:[#allocation2 + $0xca0] sm:$0xff] %v2944
  %2977 = vst [vmem:[#allocation2 + $0xca8] sm:$0xff] %v2945
  %2978 = vst [vmem:[#allocation2 + $0xcb0] sm:$0xff] %v2946
  %2979 = vst [vmem:[#allocation2 + $0xcb8] sm:$0xff] %v2947
  %2980 = vst [vmem:[#allocation2 + $0xcc0] sm:$0xff] %v2948
  %2981 = vst [vmem:[#allocation2 + $0xcc8] sm:$0xff] %v2949
  %2982 = vst [vmem:[#allocation2 + $0xcd0] sm:$0xff] %v2950
  %2983 = vst [vmem:[#allocation2 + $0xcd8] sm:$0xff] %v2951
  %2984 = vst [vmem:[#allocation2 + $0xce0] sm:$0xff] %v2952
  %2985 = vst [vmem:[#allocation2 + $0xce8] sm:$0xff] %v2953
  %2986 = vst [vmem:[#allocation2 + $0xcf0] sm:$0xff] %v2954
  %2987 = vst [vmem:[#allocation2 + $0xcf8] sm:$0xff] %v2955
  %v2988 = vld [vmem:[%s0 + $0x8] sm:$0xff]
  %v2989 = vld [vmem:[%s0 + $0x10] sm:$0xff]
  %v2990 = vld [vmem:[%s0 + $0x18] sm:$0xff]
  %v2991 = vld [vmem:[%s0 + $0x20] sm:$0xff]
  %v2992 = vld [vmem:[%s0 + $0x28] sm:$0xff]
  %v2993 = vld [vmem:[%s0 + $0x30] sm:$0xff]
  %v2994 = vld [vmem:[%s0 + $0x38] sm:$0xff]
  %v2995 = vld [vmem:[%s0 + $0x40] sm:$0xff]
  %v2996 = vld [vmem:[%s0 + $0x48] sm:$0xff]
  %v2997 = vld [vmem:[%s0 + $0x50] sm:$0xff]
  %v2998 = vld [vmem:[%s0 + $0x58] sm:$0xff]
  %v2999 = vld [vmem:[%s0 + $0x60] sm:$0xff]
  %v3000 = vld [vmem:[%s0 + $0x68] sm:$0xff]
  %v3001 = vld [vmem:[%s0 + $0x70] sm:$0xff]
  %v3002 = vld [vmem:[%s0 + $0x78] sm:$0xff]
  %v3003 = vld [vmem:[%s0 + $0x80] sm:$0xff]
  %v3004 = vld [vmem:[%s0 + $0x88] sm:$0xff]
  %3022 = vrot.lane.b32.xlu0 %v2988, 17
  %v3023 = vpop.permute.xlu0 %3022
  %3024 = vrot.lane.b32.xlu0 %v2989, 17
  %v3025 = vpop.permute.xlu0 %3024
  %3026 = vrot.lane.b32.xlu0 %v2990, 17
  %v3027 = vpop.permute.xlu0 %3026
  %3028 = vrot.lane.b32.xlu0 %v2991, 17
  %v3029 = vpop.permute.xlu0 %3028
  %3030 = vrot.lane.b32.xlu0 %v2992, 17
  %v3031 = vpop.permute.xlu0 %3030
  %3032 = vrot.lane.b32.xlu0 %v2993, 17
  %v3033 = vpop.permute.xlu0 %3032
  %3034 = vrot.lane.b32.xlu0 %v2994, 17
  %v3035 = vpop.permute.xlu0 %3034
  %3036 = vrot.lane.b32.xlu0 %v2995, 17
  %v3037 = vpop.permute.xlu0 %3036
  %3038 = vrot.lane.b32.xlu0 %v2996, 17
  %v3039 = vpop.permute.xlu0 %3038
  %3040 = vrot.lane.b32.xlu0 %v2997, 17
  %v3041 = vpop.permute.xlu0 %3040
  %3042 = vrot.lane.b32.xlu0 %v2998, 17
  %v3043 = vpop.permute.xlu0 %3042
  %3044 = vrot.lane.b32.xlu0 %v2999, 17
  %v3045 = vpop.permute.xlu0 %3044
  %3046 = vrot.lane.b32.xlu0 %v3000, 17
  %v3047 = vpop.permute.xlu0 %3046
  %3048 = vrot.lane.b32.xlu0 %v3001, 17
  %v3049 = vpop.permute.xlu0 %3048
  %3050 = vrot.lane.b32.xlu0 %v3002, 17
  %v3051 = vpop.permute.xlu0 %3050
  %3052 = vrot.lane.b32.xlu0 %v3003, 17
  %v3053 = vpop.permute.xlu0 %3052
  %3054 = vrot.lane.b32.xlu0 %v3004, 17
  %v3055 = vpop.permute.xlu0 %3054
  %vm3056 = vcmask 138240
  %v3057 = vsel %vm3056, %v3023, %v3025
  %v3058 = vsel %vm3056, %v3025, %v3027
  %v3059 = vsel %vm3056, %v3027, %v3029
  %v3060 = vsel %vm3056, %v3029, %v3031
  %v3061 = vsel %vm3056, %v3031, %v3033
  %v3062 = vsel %vm3056, %v3033, %v3035
  %v3063 = vsel %vm3056, %v3035, %v3037
  %v3064 = vsel %vm3056, %v3037, %v3039
  %v3065 = vsel %vm3056, %v3039, %v3041
  %v3066 = vsel %vm3056, %v3041, %v3043
  %v3067 = vsel %vm3056, %v3043, %v3045
  %v3068 = vsel %vm3056, %v3045, %v3047
  %v3069 = vsel %vm3056, %v3047, %v3049
  %v3070 = vsel %vm3056, %v3049, %v3051
  %v3071 = vsel %vm3056, %v3051, %v3053
  %v3072 = vsel %vm3056, %v3053, %v3055
  %3089 = vst [vmem:[#allocation2 + $0xd00] sm:$0xff] %v3057
  %3090 = vst [vmem:[#allocation2 + $0xd08] sm:$0xff] %v3058
  %3091 = vst [vmem:[#allocation2 + $0xd10] sm:$0xff] %v3059
  %3092 = vst [vmem:[#allocation2 + $0xd18] sm:$0xff] %v3060
  %3093 = vst [vmem:[#allocation2 + $0xd20] sm:$0xff] %v3061
  %3094 = vst [vmem:[#allocation2 + $0xd28] sm:$0xff] %v3062
  %3095 = vst [vmem:[#allocation2 + $0xd30] sm:$0xff] %v3063
  %3096 = vst [vmem:[#allocation2 + $0xd38] sm:$0xff] %v3064
  %3097 = vst [vmem:[#allocation2 + $0xd40] sm:$0xff] %v3065
  %3098 = vst [vmem:[#allocation2 + $0xd48] sm:$0xff] %v3066
  %3099 = vst [vmem:[#allocation2 + $0xd50] sm:$0xff] %v3067
  %3100 = vst [vmem:[#allocation2 + $0xd58] sm:$0xff] %v3068
  %3101 = vst [vmem:[#allocation2 + $0xd60] sm:$0xff] %v3069
  %3102 = vst [vmem:[#allocation2 + $0xd68] sm:$0xff] %v3070
  %3103 = vst [vmem:[#allocation2 + $0xd70] sm:$0xff] %v3071
  %3104 = vst [vmem:[#allocation2 + $0xd78] sm:$0xff] %v3072
  %v3105 = vld [vmem:[%s1] sm:$0xff]
  %v3106 = vld [vmem:[#allocation2] sm:$0xff]
  %v3107 = vld [vmem:[#allocation2 + $0x8] sm:$0xff]
  %v3108 = vld [vmem:[#allocation2 + $0x10] sm:$0xff]
  %v3109 = vld [vmem:[#allocation2 + $0x18] sm:$0xff]
  %v3110 = vld [vmem:[#allocation2 + $0x20] sm:$0xff]
  %v3111 = vld [vmem:[#allocation2 + $0x28] sm:$0xff]
  %v3112 = vld [vmem:[#allocation2 + $0x30] sm:$0xff]
  %v3113 = vld [vmem:[#allocation2 + $0x38] sm:$0xff]
  %v3114 = vld [vmem:[#allocation2 + $0x40] sm:$0xff]
  %v3115 = vld [vmem:[#allocation2 + $0x48] sm:$0xff]
  %v3116 = vld [vmem:[#allocation2 + $0x50] sm:$0xff]
  %v3117 = vld [vmem:[#allocation2 + $0x58] sm:$0xff]
  %v3118 = vld [vmem:[#allocation2 + $0x60] sm:$0xff]
  %v3119 = vld [vmem:[#allocation2 + $0x68] sm:$0xff]
  %v3120 = vld [vmem:[#allocation2 + $0x70] sm:$0xff]
  %v3121 = vld [vmem:[#allocation2 + $0x78] sm:$0xff]
  %v3122 = vld [vmem:[#allocation2 + $0x80] sm:$0xff]
  %v3123 = vld [vmem:[#allocation2 + $0x88] sm:$0xff]
  %v3124 = vld [vmem:[#allocation2 + $0x90] sm:$0xff]
  %v3125 = vld [vmem:[#allocation2 + $0x98] sm:$0xff]
  %v3126 = vld [vmem:[#allocation2 + $0xa0] sm:$0xff]
  %v3127 = vld [vmem:[#allocation2 + $0xa8] sm:$0xff]
  %v3128 = vld [vmem:[#allocation2 + $0xb0] sm:$0xff]
  %v3129 = vld [vmem:[#allocation2 + $0xb8] sm:$0xff]
  %v3130 = vld [vmem:[#allocation2 + $0xc0] sm:$0xff]
  %v3131 = vld [vmem:[#allocation2 + $0xc8] sm:$0xff]
  %v3132 = vld [vmem:[#allocation2 + $0xd0] sm:$0xff]
  %v3133 = vld [vmem:[#allocation2 + $0xd8] sm:$0xff]
  %v3134 = vld [vmem:[#allocation2 + $0xe0] sm:$0xff]
  %v3135 = vld [vmem:[#allocation2 + $0xe8] sm:$0xff]
  %v3136 = vld [vmem:[#allocation2 + $0xf0] sm:$0xff]
  %v3137 = vld [vmem:[#allocation2 + $0xf8] sm:$0xff]
  %v3138 = vld [vmem:[#allocation2 + $0x100] sm:$0xff]
  %v3139 = vld [vmem:[#allocation2 + $0x108] sm:$0xff]
  %v3140 = vld [vmem:[#allocation2 + $0x110] sm:$0xff]
  %v3141 = vld [vmem:[#allocation2 + $0x118] sm:$0xff]
  %v3142 = vld [vmem:[#allocation2 + $0x120] sm:$0xff]
  %v3143 = vld [vmem:[#allocation2 + $0x128] sm:$0xff]
  %v3144 = vld [vmem:[#allocation2 + $0x130] sm:$0xff]
  %v3145 = vld [vmem:[#allocation2 + $0x138] sm:$0xff]
  %v3146 = vld [vmem:[#allocation2 + $0x140] sm:$0xff]
  %v3147 = vld [vmem:[#allocation2 + $0x148] sm:$0xff]
  %v3148 = vld [vmem:[#allocation2 + $0x150] sm:$0xff]
  %v3149 = vld [vmem:[#allocation2 + $0x158] sm:$0xff]
  %v3150 = vld [vmem:[#allocation2 + $0x160] sm:$0xff]
  %v3151 = vld [vmem:[#allocation2 + $0x168] sm:$0xff]
  %v3152 = vld [vmem:[#allocation2 + $0x170] sm:$0xff]
  %v3153 = vld [vmem:[#allocation2 + $0x178] sm:$0xff]
  %v3154 = vld [vmem:[#allocation2 + $0x180] sm:$0xff]
  %v3155 = vld [vmem:[#allocation2 + $0x188] sm:$0xff]
  %v3156 = vld [vmem:[#allocation2 + $0x190] sm:$0xff]
  %v3157 = vld [vmem:[#allocation2 + $0x198] sm:$0xff]
  %v3158 = vld [vmem:[#allocation2 + $0x1a0] sm:$0xff]
  %v3159 = vld [vmem:[#allocation2 + $0x1a8] sm:$0xff]
  %v3160 = vld [vmem:[#allocation2 + $0x1b0] sm:$0xff]
  %v3161 = vld [vmem:[#allocation2 + $0x1b8] sm:$0xff]
  %v3162 = vld [vmem:[#allocation2 + $0x1c0] sm:$0xff]
  %v3163 = vld [vmem:[#allocation2 + $0x1c8] sm:$0xff]
  %v3164 = vld [vmem:[#allocation2 + $0x1d0] sm:$0xff]
  %v3165 = vld [vmem:[#allocation2 + $0x1d8] sm:$0xff]
  %v3166 = vld [vmem:[#allocation2 + $0x1e0] sm:$0xff]
  %v3167 = vld [vmem:[#allocation2 + $0x1e8] sm:$0xff]
  %v3168 = vld [vmem:[#allocation2 + $0x1f0] sm:$0xff]
  %v3169 = vld [vmem:[#allocation2 + $0x1f8] sm:$0xff]
  %v3170 = vld [vmem:[#allocation2 + $0x200] sm:$0xff]
  %v3171 = vld [vmem:[#allocation2 + $0x208] sm:$0xff]
  %v3172 = vld [vmem:[#allocation2 + $0x210] sm:$0xff]
  %v3173 = vld [vmem:[#allocation2 + $0x218] sm:$0xff]
  %v3174 = vld [vmem:[#allocation2 + $0x220] sm:$0xff]
  %v3175 = vld [vmem:[#allocation2 + $0x228] sm:$0xff]
  %v3176 = vld [vmem:[#allocation2 + $0x230] sm:$0xff]
  %v3177 = vld [vmem:[#allocation2 + $0x238] sm:$0xff]
  %v3178 = vld [vmem:[#allocation2 + $0x240] sm:$0xff]
  %v3179 = vld [vmem:[#allocation2 + $0x248] sm:$0xff]
  %v3180 = vld [vmem:[#allocation2 + $0x250] sm:$0xff]
  %v3181 = vld [vmem:[#allocation2 + $0x258] sm:$0xff]
  %v3182 = vld [vmem:[#allocation2 + $0x260] sm:$0xff]
  %v3183 = vld [vmem:[#allocation2 + $0x268] sm:$0xff]
  %v3184 = vld [vmem:[#allocation2 + $0x270] sm:$0xff]
  %v3185 = vld [vmem:[#allocation2 + $0x278] sm:$0xff]
  %v3186 = vld [vmem:[#allocation2 + $0x280] sm:$0xff]
  %v3187 = vld [vmem:[#allocation2 + $0x288] sm:$0xff]
  %v3188 = vld [vmem:[#allocation2 + $0x290] sm:$0xff]
  %v3189 = vld [vmem:[#allocation2 + $0x298] sm:$0xff]
  %v3190 = vld [vmem:[#allocation2 + $0x2a0] sm:$0xff]
  %v3191 = vld [vmem:[#allocation2 + $0x2a8] sm:$0xff]
  %v3192 = vld [vmem:[#allocation2 + $0x2b0] sm:$0xff]
  %v3193 = vld [vmem:[#allocation2 + $0x2b8] sm:$0xff]
  %v3194 = vld [vmem:[#allocation2 + $0x2c0] sm:$0xff]
  %v3195 = vld [vmem:[#allocation2 + $0x2c8] sm:$0xff]
  %v3196 = vld [vmem:[#allocation2 + $0x2d0] sm:$0xff]
  %v3197 = vld [vmem:[#allocation2 + $0x2d8] sm:$0xff]
  %v3198 = vld [vmem:[#allocation2 + $0x2e0] sm:$0xff]
  %v3199 = vld [vmem:[#allocation2 + $0x2e8] sm:$0xff]
  %v3200 = vld [vmem:[#allocation2 + $0x2f0] sm:$0xff]
  %v3201 = vld [vmem:[#allocation2 + $0x2f8] sm:$0xff]
  %v3202 = vld [vmem:[#allocation2 + $0x300] sm:$0xff]
  %v3203 = vld [vmem:[#allocation2 + $0x308] sm:$0xff]
  %v3204 = vld [vmem:[#allocation2 + $0x310] sm:$0xff]
  %v3205 = vld [vmem:[#allocation2 + $0x318] sm:$0xff]
  %v3206 = vld [vmem:[#allocation2 + $0x320] sm:$0xff]
  %v3207 = vld [vmem:[#allocation2 + $0x328] sm:$0xff]
  %v3208 = vld [vmem:[#allocation2 + $0x330] sm:$0xff]
  %v3209 = vld [vmem:[#allocation2 + $0x338] sm:$0xff]
  %v3210 = vld [vmem:[#allocation2 + $0x340] sm:$0xff]
  %v3211 = vld [vmem:[#allocation2 + $0x348] sm:$0xff]
  %v3212 = vld [vmem:[#allocation2 + $0x350] sm:$0xff]
  %v3213 = vld [vmem:[#allocation2 + $0x358] sm:$0xff]
  %v3214 = vld [vmem:[#allocation2 + $0x360] sm:$0xff]
  %v3215 = vld [vmem:[#allocation2 + $0x368] sm:$0xff]
  %v3216 = vld [vmem:[#allocation2 + $0x370] sm:$0xff]
  %v3217 = vld [vmem:[#allocation2 + $0x378] sm:$0xff]
  %v3218 = vld [vmem:[#allocation2 + $0x380] sm:$0xff]
  %v3219 = vld [vmem:[#allocation2 + $0x388] sm:$0xff]
  %v3220 = vld [vmem:[#allocation2 + $0x390] sm:$0xff]
  %v3221 = vld [vmem:[#allocation2 + $0x398] sm:$0xff]
  %v3222 = vld [vmem:[#allocation2 + $0x3a0] sm:$0xff]
  %v3223 = vld [vmem:[#allocation2 + $0x3a8] sm:$0xff]
  %v3224 = vld [vmem:[#allocation2 + $0x3b0] sm:$0xff]
  %v3225 = vld [vmem:[#allocation2 + $0x3b8] sm:$0xff]
  %v3226 = vld [vmem:[#allocation2 + $0x3c0] sm:$0xff]
  %v3227 = vld [vmem:[#allocation2 + $0x3c8] sm:$0xff]
  %v3228 = vld [vmem:[#allocation2 + $0x3d0] sm:$0xff]
  %v3229 = vld [vmem:[#allocation2 + $0x3d8] sm:$0xff]
  %v3230 = vld [vmem:[#allocation2 + $0x3e0] sm:$0xff]
  %v3231 = vld [vmem:[#allocation2 + $0x3e8] sm:$0xff]
  %v3232 = vld [vmem:[#allocation2 + $0x3f0] sm:$0xff]
  %v3233 = vld [vmem:[#allocation2 + $0x3f8] sm:$0xff]
  %v3234 = vld [vmem:[#allocation2 + $0x400] sm:$0xff]
  %v3235 = vld [vmem:[#allocation2 + $0x408] sm:$0xff]
  %v3236 = vld [vmem:[#allocation2 + $0x410] sm:$0xff]
  %v3237 = vld [vmem:[#allocation2 + $0x418] sm:$0xff]
  %v3238 = vld [vmem:[#allocation2 + $0x420] sm:$0xff]
  %v3239 = vld [vmem:[#allocation2 + $0x428] sm:$0xff]
  %v3240 = vld [vmem:[#allocation2 + $0x430] sm:$0xff]
  %v3241 = vld [vmem:[#allocation2 + $0x438] sm:$0xff]
  %v3242 = vld [vmem:[#allocation2 + $0x440] sm:$0xff]
  %v3243 = vld [vmem:[#allocation2 + $0x448] sm:$0xff]
  %v3244 = vld [vmem:[#allocation2 + $0x450] sm:$0xff]
  %v3245 = vld [vmem:[#allocation2 + $0x458] sm:$0xff]
  %v3246 = vld [vmem:[#allocation2 + $0x460] sm:$0xff]
  %v3247 = vld [vmem:[#allocation2 + $0x468] sm:$0xff]
  %v3248 = vld [vmem:[#allocation2 + $0x470] sm:$0xff]
  %v3249 = vld [vmem:[#allocation2 + $0x478] sm:$0xff]
  %v3250 = vld [vmem:[#allocation2 + $0x480] sm:$0xff]
  %v3251 = vld [vmem:[#allocation2 + $0x488] sm:$0xff]
  %v3252 = vld [vmem:[#allocation2 + $0x490] sm:$0xff]
  %v3253 = vld [vmem:[#allocation2 + $0x498] sm:$0xff]
  %v3254 = vld [vmem:[#allocation2 + $0x4a0] sm:$0xff]
  %v3255 = vld [vmem:[#allocation2 + $0x4a8] sm:$0xff]
  %v3256 = vld [vmem:[#allocation2 + $0x4b0] sm:$0xff]
  %v3257 = vld [vmem:[#allocation2 + $0x4b8] sm:$0xff]
  %v3258 = vld [vmem:[#allocation2 + $0x4c0] sm:$0xff]
  %v3259 = vld [vmem:[#allocation2 + $0x4c8] sm:$0xff]
  %v3260 = vld [vmem:[#allocation2 + $0x4d0] sm:$0xff]
  %v3261 = vld [vmem:[#allocation2 + $0x4d8] sm:$0xff]
  %v3262 = vld [vmem:[#allocation2 + $0x4e0] sm:$0xff]
  %v3263 = vld [vmem:[#allocation2 + $0x4e8] sm:$0xff]
  %v3264 = vld [vmem:[#allocation2 + $0x4f0] sm:$0xff]
  %v3265 = vld [vmem:[#allocation2 + $0x4f8] sm:$0xff]
  %v3266 = vld [vmem:[#allocation2 + $0x500] sm:$0xff]
  %v3267 = vld [vmem:[#allocation2 + $0x508] sm:$0xff]
  %v3268 = vld [vmem:[#allocation2 + $0x510] sm:$0xff]
  %v3269 = vld [vmem:[#allocation2 + $0x518] sm:$0xff]
  %v3270 = vld [vmem:[#allocation2 + $0x520] sm:$0xff]
  %v3271 = vld [vmem:[#allocation2 + $0x528] sm:$0xff]
  %v3272 = vld [vmem:[#allocation2 + $0x530] sm:$0xff]
  %v3273 = vld [vmem:[#allocation2 + $0x538] sm:$0xff]
  %v3274 = vld [vmem:[#allocation2 + $0x540] sm:$0xff]
  %v3275 = vld [vmem:[#allocation2 + $0x548] sm:$0xff]
  %v3276 = vld [vmem:[#allocation2 + $0x550] sm:$0xff]
  %v3277 = vld [vmem:[#allocation2 + $0x558] sm:$0xff]
  %v3278 = vld [vmem:[#allocation2 + $0x560] sm:$0xff]
  %v3279 = vld [vmem:[#allocation2 + $0x568] sm:$0xff]
  %v3280 = vld [vmem:[#allocation2 + $0x570] sm:$0xff]
  %v3281 = vld [vmem:[#allocation2 + $0x578] sm:$0xff]
  %v3282 = vld [vmem:[#allocation2 + $0x580] sm:$0xff]
  %v3283 = vld [vmem:[#allocation2 + $0x588] sm:$0xff]
  %v3284 = vld [vmem:[#allocation2 + $0x590] sm:$0xff]
  %v3285 = vld [vmem:[#allocation2 + $0x598] sm:$0xff]
  %v3286 = vld [vmem:[#allocation2 + $0x5a0] sm:$0xff]
  %v3287 = vld [vmem:[#allocation2 + $0x5a8] sm:$0xff]
  %v3288 = vld [vmem:[#allocation2 + $0x5b0] sm:$0xff]
  %v3289 = vld [vmem:[#allocation2 + $0x5b8] sm:$0xff]
  %v3290 = vld [vmem:[#allocation2 + $0x5c0] sm:$0xff]
  %v3291 = vld [vmem:[#allocation2 + $0x5c8] sm:$0xff]
  %v3292 = vld [vmem:[#allocation2 + $0x5d0] sm:$0xff]
  %v3293 = vld [vmem:[#allocation2 + $0x5d8] sm:$0xff]
  %v3294 = vld [vmem:[#allocation2 + $0x5e0] sm:$0xff]
  %v3295 = vld [vmem:[#allocation2 + $0x5e8] sm:$0xff]
  %v3296 = vld [vmem:[#allocation2 + $0x5f0] sm:$0xff]
  %v3297 = vld [vmem:[#allocation2 + $0x5f8] sm:$0xff]
  %v3298 = vld [vmem:[#allocation2 + $0x600] sm:$0xff]
  %v3299 = vld [vmem:[#allocation2 + $0x608] sm:$0xff]
  %v3300 = vld [vmem:[#allocation2 + $0x610] sm:$0xff]
  %v3301 = vld [vmem:[#allocation2 + $0x618] sm:$0xff]
  %v3302 = vld [vmem:[#allocation2 + $0x620] sm:$0xff]
  %v3303 = vld [vmem:[#allocation2 + $0x628] sm:$0xff]
  %v3304 = vld [vmem:[#allocation2 + $0x630] sm:$0xff]
  %v3305 = vld [vmem:[#allocation2 + $0x638] sm:$0xff]
  %v3306 = vld [vmem:[#allocation2 + $0x640] sm:$0xff]
  %v3307 = vld [vmem:[#allocation2 + $0x648] sm:$0xff]
  %v3308 = vld [vmem:[#allocation2 + $0x650] sm:$0xff]
  %v3309 = vld [vmem:[#allocation2 + $0x658] sm:$0xff]
  %v3310 = vld [vmem:[#allocation2 + $0x660] sm:$0xff]
  %v3311 = vld [vmem:[#allocation2 + $0x668] sm:$0xff]
  %v3312 = vld [vmem:[#allocation2 + $0x670] sm:$0xff]
  %v3313 = vld [vmem:[#allocation2 + $0x678] sm:$0xff]
  %v3314 = vld [vmem:[#allocation2 + $0x680] sm:$0xff]
  %v3315 = vld [vmem:[#allocation2 + $0x688] sm:$0xff]
  %v3316 = vld [vmem:[#allocation2 + $0x690] sm:$0xff]
  %v3317 = vld [vmem:[#allocation2 + $0x698] sm:$0xff]
  %v3318 = vld [vmem:[#allocation2 + $0x6a0] sm:$0xff]
  %v3319 = vld [vmem:[#allocation2 + $0x6a8] sm:$0xff]
  %v3320 = vld [vmem:[#allocation2 + $0x6b0] sm:$0xff]
  %v3321 = vld [vmem:[#allocation2 + $0x6b8] sm:$0xff]
  %v3322 = vld [vmem:[#allocation2 + $0x6c0] sm:$0xff]
  %v3323 = vld [vmem:[#allocation2 + $0x6c8] sm:$0xff]
  %v3324 = vld [vmem:[#allocation2 + $0x6d0] sm:$0xff]
  %v3325 = vld [vmem:[#allocation2 + $0x6d8] sm:$0xff]
  %v3326 = vld [vmem:[#allocation2 + $0x6e0] sm:$0xff]
  %v3327 = vld [vmem:[#allocation2 + $0x6e8] sm:$0xff]
  %v3328 = vld [vmem:[#allocation2 + $0x6f0] sm:$0xff]
  %v3329 = vld [vmem:[#allocation2 + $0x6f8] sm:$0xff]
  %v3330 = vld [vmem:[#allocation2 + $0x700] sm:$0xff]
  %v3331 = vld [vmem:[#allocation2 + $0x708] sm:$0xff]
  %v3332 = vld [vmem:[#allocation2 + $0x710] sm:$0xff]
  %v3333 = vld [vmem:[#allocation2 + $0x718] sm:$0xff]
  %v3334 = vld [vmem:[#allocation2 + $0x720] sm:$0xff]
  %v3335 = vld [vmem:[#allocation2 + $0x728] sm:$0xff]
  %v3336 = vld [vmem:[#allocation2 + $0x730] sm:$0xff]
  %v3337 = vld [vmem:[#allocation2 + $0x738] sm:$0xff]
  %v3338 = vld [vmem:[#allocation2 + $0x740] sm:$0xff]
  %v3339 = vld [vmem:[#allocation2 + $0x748] sm:$0xff]
  %v3340 = vld [vmem:[#allocation2 + $0x750] sm:$0xff]
  %v3341 = vld [vmem:[#allocation2 + $0x758] sm:$0xff]
  %v3342 = vld [vmem:[#allocation2 + $0x760] sm:$0xff]
  %v3343 = vld [vmem:[#allocation2 + $0x768] sm:$0xff]
  %v3344 = vld [vmem:[#allocation2 + $0x770] sm:$0xff]
  %v3345 = vld [vmem:[#allocation2 + $0x778] sm:$0xff]
  %v3346 = vld [vmem:[#allocation2 + $0x780] sm:$0xff]
  %v3347 = vld [vmem:[#allocation2 + $0x788] sm:$0xff]
  %v3348 = vld [vmem:[#allocation2 + $0x790] sm:$0xff]
  %v3349 = vld [vmem:[#allocation2 + $0x798] sm:$0xff]
  %v3350 = vld [vmem:[#allocation2 + $0x7a0] sm:$0xff]
  %v3351 = vld [vmem:[#allocation2 + $0x7a8] sm:$0xff]
  %v3352 = vld [vmem:[#allocation2 + $0x7b0] sm:$0xff]
  %v3353 = vld [vmem:[#allocation2 + $0x7b8] sm:$0xff]
  %v3354 = vld [vmem:[#allocation2 + $0x7c0] sm:$0xff]
  %v3355 = vld [vmem:[#allocation2 + $0x7c8] sm:$0xff]
  %v3356 = vld [vmem:[#allocation2 + $0x7d0] sm:$0xff]
  %v3357 = vld [vmem:[#allocation2 + $0x7d8] sm:$0xff]
  %v3358 = vld [vmem:[#allocation2 + $0x7e0] sm:$0xff]
  %v3359 = vld [vmem:[#allocation2 + $0x7e8] sm:$0xff]
  %v3360 = vld [vmem:[#allocation2 + $0x7f0] sm:$0xff]
  %v3361 = vld [vmem:[#allocation2 + $0x7f8] sm:$0xff]
  %v3362 = vld [vmem:[#allocation2 + $0x800] sm:$0xff]
  %v3363 = vld [vmem:[#allocation2 + $0x808] sm:$0xff]
  %v3364 = vld [vmem:[#allocation2 + $0x810] sm:$0xff]
  %v3365 = vld [vmem:[#allocation2 + $0x818] sm:$0xff]
  %v3366 = vld [vmem:[#allocation2 + $0x820] sm:$0xff]
  %v3367 = vld [vmem:[#allocation2 + $0x828] sm:$0xff]
  %v3368 = vld [vmem:[#allocation2 + $0x830] sm:$0xff]
  %v3369 = vld [vmem:[#allocation2 + $0x838] sm:$0xff]
  %v3370 = vld [vmem:[#allocation2 + $0x840] sm:$0xff]
  %v3371 = vld [vmem:[#allocation2 + $0x848] sm:$0xff]
  %v3372 = vld [vmem:[#allocation2 + $0x850] sm:$0xff]
  %v3373 = vld [vmem:[#allocation2 + $0x858] sm:$0xff]
  %v3374 = vld [vmem:[#allocation2 + $0x860] sm:$0xff]
  %v3375 = vld [vmem:[#allocation2 + $0x868] sm:$0xff]
  %v3376 = vld [vmem:[#allocation2 + $0x870] sm:$0xff]
  %v3377 = vld [vmem:[#allocation2 + $0x878] sm:$0xff]
  %v3378 = vld [vmem:[#allocation2 + $0x880] sm:$0xff]
  %v3379 = vld [vmem:[#allocation2 + $0x888] sm:$0xff]
  %v3380 = vld [vmem:[#allocation2 + $0x890] sm:$0xff]
  %v3381 = vld [vmem:[#allocation2 + $0x898] sm:$0xff]
  %v3382 = vld [vmem:[#allocation2 + $0x8a0] sm:$0xff]
  %v3383 = vld [vmem:[#allocation2 + $0x8a8] sm:$0xff]
  %v3384 = vld [vmem:[#allocation2 + $0x8b0] sm:$0xff]
  %v3385 = vld [vmem:[#allocation2 + $0x8b8] sm:$0xff]
  %v3386 = vld [vmem:[#allocation2 + $0x8c0] sm:$0xff]
  %v3387 = vld [vmem:[#allocation2 + $0x8c8] sm:$0xff]
  %v3388 = vld [vmem:[#allocation2 + $0x8d0] sm:$0xff]
  %v3389 = vld [vmem:[#allocation2 + $0x8d8] sm:$0xff]
  %v3390 = vld [vmem:[#allocation2 + $0x8e0] sm:$0xff]
  %v3391 = vld [vmem:[#allocation2 + $0x8e8] sm:$0xff]
  %v3392 = vld [vmem:[#allocation2 + $0x8f0] sm:$0xff]
  %v3393 = vld [vmem:[#allocation2 + $0x8f8] sm:$0xff]
  %v3394 = vld [vmem:[#allocation2 + $0x900] sm:$0xff]
  %v3395 = vld [vmem:[#allocation2 + $0x908] sm:$0xff]
  %v3396 = vld [vmem:[#allocation2 + $0x910] sm:$0xff]
  %v3397 = vld [vmem:[#allocation2 + $0x918] sm:$0xff]
  %v3398 = vld [vmem:[#allocation2 + $0x920] sm:$0xff]
  %v3399 = vld [vmem:[#allocation2 + $0x928] sm:$0xff]
  %v3400 = vld [vmem:[#allocation2 + $0x930] sm:$0xff]
  %v3401 = vld [vmem:[#allocation2 + $0x938] sm:$0xff]
  %v3402 = vld [vmem:[#allocation2 + $0x940] sm:$0xff]
  %v3403 = vld [vmem:[#allocation2 + $0x948] sm:$0xff]
  %v3404 = vld [vmem:[#allocation2 + $0x950] sm:$0xff]
  %v3405 = vld [vmem:[#allocation2 + $0x958] sm:$0xff]
  %v3406 = vld [vmem:[#allocation2 + $0x960] sm:$0xff]
  %v3407 = vld [vmem:[#allocation2 + $0x968] sm:$0xff]
  %v3408 = vld [vmem:[#allocation2 + $0x970] sm:$0xff]
  %v3409 = vld [vmem:[#allocation2 + $0x978] sm:$0xff]
  %v3410 = vld [vmem:[#allocation2 + $0x980] sm:$0xff]
  %v3411 = vld [vmem:[#allocation2 + $0x988] sm:$0xff]
  %v3412 = vld [vmem:[#allocation2 + $0x990] sm:$0xff]
  %v3413 = vld [vmem:[#allocation2 + $0x998] sm:$0xff]
  %v3414 = vld [vmem:[#allocation2 + $0x9a0] sm:$0xff]
  %v3415 = vld [vmem:[#allocation2 + $0x9a8] sm:$0xff]
  %v3416 = vld [vmem:[#allocation2 + $0x9b0] sm:$0xff]
  %v3417 = vld [vmem:[#allocation2 + $0x9b8] sm:$0xff]
  %v3418 = vld [vmem:[#allocation2 + $0x9c0] sm:$0xff]
  %v3419 = vld [vmem:[#allocation2 + $0x9c8] sm:$0xff]
  %v3420 = vld [vmem:[#allocation2 + $0x9d0] sm:$0xff]
  %v3421 = vld [vmem:[#allocation2 + $0x9d8] sm:$0xff]
  %v3422 = vld [vmem:[#allocation2 + $0x9e0] sm:$0xff]
  %v3423 = vld [vmem:[#allocation2 + $0x9e8] sm:$0xff]
  %v3424 = vld [vmem:[#allocation2 + $0x9f0] sm:$0xff]
  %v3425 = vld [vmem:[#allocation2 + $0x9f8] sm:$0xff]
  %v3426 = vld [vmem:[#allocation2 + $0xa00] sm:$0xff]
  %v3427 = vld [vmem:[#allocation2 + $0xa08] sm:$0xff]
  %v3428 = vld [vmem:[#allocation2 + $0xa10] sm:$0xff]
  %v3429 = vld [vmem:[#allocation2 + $0xa18] sm:$0xff]
  %v3430 = vld [vmem:[#allocation2 + $0xa20] sm:$0xff]
  %v3431 = vld [vmem:[#allocation2 + $0xa28] sm:$0xff]
  %v3432 = vld [vmem:[#allocation2 + $0xa30] sm:$0xff]
  %v3433 = vld [vmem:[#allocation2 + $0xa38] sm:$0xff]
  %v3434 = vld [vmem:[#allocation2 + $0xa40] sm:$0xff]
  %v3435 = vld [vmem:[#allocation2 + $0xa48] sm:$0xff]
  %v3436 = vld [vmem:[#allocation2 + $0xa50] sm:$0xff]
  %v3437 = vld [vmem:[#allocation2 + $0xa58] sm:$0xff]
  %v3438 = vld [vmem:[#allocation2 + $0xa60] sm:$0xff]
  %v3439 = vld [vmem:[#allocation2 + $0xa68] sm:$0xff]
  %v3440 = vld [vmem:[#allocation2 + $0xa70] sm:$0xff]
  %v3441 = vld [vmem:[#allocation2 + $0xa78] sm:$0xff]
  %v3442 = vld [vmem:[#allocation2 + $0xa80] sm:$0xff]
  %v3443 = vld [vmem:[#allocation2 + $0xa88] sm:$0xff]
  %v3444 = vld [vmem:[#allocation2 + $0xa90] sm:$0xff]
  %v3445 = vld [vmem:[#allocation2 + $0xa98] sm:$0xff]
  %v3446 = vld [vmem:[#allocation2 + $0xaa0] sm:$0xff]
  %v3447 = vld [vmem:[#allocation2 + $0xaa8] sm:$0xff]
  %v3448 = vld [vmem:[#allocation2 + $0xab0] sm:$0xff]
  %v3449 = vld [vmem:[#allocation2 + $0xab8] sm:$0xff]
  %v3450 = vld [vmem:[#allocation2 + $0xac0] sm:$0xff]
  %v3451 = vld [vmem:[#allocation2 + $0xac8] sm:$0xff]
  %v3452 = vld [vmem:[#allocation2 + $0xad0] sm:$0xff]
  %v3453 = vld [vmem:[#allocation2 + $0xad8] sm:$0xff]
  %v3454 = vld [vmem:[#allocation2 + $0xae0] sm:$0xff]
  %v3455 = vld [vmem:[#allocation2 + $0xae8] sm:$0xff]
  %v3456 = vld [vmem:[#allocation2 + $0xaf0] sm:$0xff]
  %v3457 = vld [vmem:[#allocation2 + $0xaf8] sm:$0xff]
  %v3458 = vld [vmem:[#allocation2 + $0xb00] sm:$0xff]
  %v3459 = vld [vmem:[#allocation2 + $0xb08] sm:$0xff]
  %v3460 = vld [vmem:[#allocation2 + $0xb10] sm:$0xff]
  %v3461 = vld [vmem:[#allocation2 + $0xb18] sm:$0xff]
  %v3462 = vld [vmem:[#allocation2 + $0xb20] sm:$0xff]
  %v3463 = vld [vmem:[#allocation2 + $0xb28] sm:$0xff]
  %v3464 = vld [vmem:[#allocation2 + $0xb30] sm:$0xff]
  %v3465 = vld [vmem:[#allocation2 + $0xb38] sm:$0xff]
  %v3466 = vld [vmem:[#allocation2 + $0xb40] sm:$0xff]
  %v3467 = vld [vmem:[#allocation2 + $0xb48] sm:$0xff]
  %v3468 = vld [vmem:[#allocation2 + $0xb50] sm:$0xff]
  %v3469 = vld [vmem:[#allocation2 + $0xb58] sm:$0xff]
  %v3470 = vld [vmem:[#allocation2 + $0xb60] sm:$0xff]
  %v3471 = vld [vmem:[#allocation2 + $0xb68] sm:$0xff]
  %v3472 = vld [vmem:[#allocation2 + $0xb70] sm:$0xff]
  %v3473 = vld [vmem:[#allocation2 + $0xb78] sm:$0xff]
  %v3474 = vld [vmem:[#allocation2 + $0xb80] sm:$0xff]
  %v3475 = vld [vmem:[#allocation2 + $0xb88] sm:$0xff]
  %v3476 = vld [vmem:[#allocation2 + $0xb90] sm:$0xff]
  %v3477 = vld [vmem:[#allocation2 + $0xb98] sm:$0xff]
  %v3478 = vld [vmem:[#allocation2 + $0xba0] sm:$0xff]
  %v3479 = vld [vmem:[#allocation2 + $0xba8] sm:$0xff]
  %v3480 = vld [vmem:[#allocation2 + $0xbb0] sm:$0xff]
  %v3481 = vld [vmem:[#allocation2 + $0xbb8] sm:$0xff]
  %v3482 = vld [vmem:[#allocation2 + $0xbc0] sm:$0xff]
  %v3483 = vld [vmem:[#allocation2 + $0xbc8] sm:$0xff]
  %v3484 = vld [vmem:[#allocation2 + $0xbd0] sm:$0xff]
  %v3485 = vld [vmem:[#allocation2 + $0xbd8] sm:$0xff]
  %v3486 = vld [vmem:[#allocation2 + $0xbe0] sm:$0xff]
  %v3487 = vld [vmem:[#allocation2 + $0xbe8] sm:$0xff]
  %v3488 = vld [vmem:[#allocation2 + $0xbf0] sm:$0xff]
  %v3489 = vld [vmem:[#allocation2 + $0xbf8] sm:$0xff]
  %v3490 = vld [vmem:[#allocation2 + $0xc00] sm:$0xff]
  %v3491 = vld [vmem:[#allocation2 + $0xc08] sm:$0xff]
  %v3492 = vld [vmem:[#allocation2 + $0xc10] sm:$0xff]
  %v3493 = vld [vmem:[#allocation2 + $0xc18] sm:$0xff]
  %v3494 = vld [vmem:[#allocation2 + $0xc20] sm:$0xff]
  %v3495 = vld [vmem:[#allocation2 + $0xc28] sm:$0xff]
  %v3496 = vld [vmem:[#allocation2 + $0xc30] sm:$0xff]
  %v3497 = vld [vmem:[#allocation2 + $0xc38] sm:$0xff]
  %v3498 = vld [vmem:[#allocation2 + $0xc40] sm:$0xff]
  %v3499 = vld [vmem:[#allocation2 + $0xc48] sm:$0xff]
  %v3500 = vld [vmem:[#allocation2 + $0xc50] sm:$0xff]
  %v3501 = vld [vmem:[#allocation2 + $0xc58] sm:$0xff]
  %v3502 = vld [vmem:[#allocation2 + $0xc60] sm:$0xff]
  %v3503 = vld [vmem:[#allocation2 + $0xc68] sm:$0xff]
  %v3504 = vld [vmem:[#allocation2 + $0xc70] sm:$0xff]
  %v3505 = vld [vmem:[#allocation2 + $0xc78] sm:$0xff]
  %v3506 = vld [vmem:[#allocation2 + $0xc80] sm:$0xff]
  %v3507 = vld [vmem:[#allocation2 + $0xc88] sm:$0xff]
  %v3508 = vld [vmem:[#allocation2 + $0xc90] sm:$0xff]
  %v3509 = vld [vmem:[#allocation2 + $0xc98] sm:$0xff]
  %v3510 = vld [vmem:[#allocation2 + $0xca0] sm:$0xff]
  %v3511 = vld [vmem:[#allocation2 + $0xca8] sm:$0xff]
  %v3512 = vld [vmem:[#allocation2 + $0xcb0] sm:$0xff]
  %v3513 = vld [vmem:[#allocation2 + $0xcb8] sm:$0xff]
  %v3514 = vld [vmem:[#allocation2 + $0xcc0] sm:$0xff]
  %v3515 = vld [vmem:[#allocation2 + $0xcc8] sm:$0xff]
  %v3516 = vld [vmem:[#allocation2 + $0xcd0] sm:$0xff]
  %v3517 = vld [vmem:[#allocation2 + $0xcd8] sm:$0xff]
  %v3518 = vld [vmem:[#allocation2 + $0xce0] sm:$0xff]
  %v3519 = vld [vmem:[#allocation2 + $0xce8] sm:$0xff]
  %v3520 = vld [vmem:[#allocation2 + $0xcf0] sm:$0xff]
  %v3521 = vld [vmem:[#allocation2 + $0xcf8] sm:$0xff]
  %v3522 = vld [vmem:[#allocation2 + $0xd00] sm:$0xff]
  %v3523 = vld [vmem:[#allocation2 + $0xd08] sm:$0xff]
  %v3524 = vld [vmem:[#allocation2 + $0xd10] sm:$0xff]
  %v3525 = vld [vmem:[#allocation2 + $0xd18] sm:$0xff]
  %v3526 = vld [vmem:[#allocation2 + $0xd20] sm:$0xff]
  %v3527 = vld [vmem:[#allocation2 + $0xd28] sm:$0xff]
  %v3528 = vld [vmem:[#allocation2 + $0xd30] sm:$0xff]
  %v3529 = vld [vmem:[#allocation2 + $0xd38] sm:$0xff]
  %v3530 = vld [vmem:[#allocation2 + $0xd40] sm:$0xff]
  %v3531 = vld [vmem:[#allocation2 + $0xd48] sm:$0xff]
  %v3532 = vld [vmem:[#allocation2 + $0xd50] sm:$0xff]
  %v3533 = vld [vmem:[#allocation2 + $0xd58] sm:$0xff]
  %v3534 = vld [vmem:[#allocation2 + $0xd60] sm:$0xff]
  %v3535 = vld [vmem:[#allocation2 + $0xd68] sm:$0xff]
  %v3536 = vld [vmem:[#allocation2 + $0xd70] sm:$0xff]
  %v3537 = vld [vmem:[#allocation2 + $0xd78] sm:$0xff]
  %3539 = vst [vmem:[#allocation1] ss:$2 sm:$0xff] %v3105
  %v3540 = vld.sshfl [vmem:[#allocation1] sm:$0xff pattern:$0x75316420]
  %v3541 = vld.sshfl [vmem:[#allocation1 + $0x8] sm:$0xff pattern:$0x75316420]
  %vm3543 = vcmask 719872
  %v3544 = vsel %vm3543, %v3541, 0
  %3546 = vmatpush.msra.mxu0 %v3346
  %3547 = vmatpush.msra.mxu0 %v3330
  %3548 = vmatpush.msra.mxu0 %v3314
  %3549 = vmatpush.msra.mxu0 %v3298
  %3550 = vmatpush.msra.mxu0 %v3282
  %3551 = vmatpush.msra.mxu0 %v3266
  %3552 = vmatpush.msra.mxu0 %v3250
  %3553 = vmatpush.msra.mxu0 %v3234
  %3554 = vmatpush.msra.mxu0 %v3218
  %3555 = vmatpush.msra.mxu0 %v3202
  %3556 = vmatpush.msra.mxu0 %v3186
  %3557 = vmatpush.msra.mxu0 %v3170
  %3558 = vmatpush.msra.mxu0 %v3154
  %3559 = vmatpush.msra.mxu0 %v3138
  %3560 = vmatpush.msra.mxu0 %v3122
  %3561 = vmatpush.msra.mxu0 %v3106
  %3562 = vmatmul.f32.gmra.mxu0 %v3540
  %v3563 = vpop.f32.mrf.mxu0
  %v3564 = vadd.f32 0.0, %v3563
  %3565 = vdwg.mxu0
  %3566 = vmatpush.msra.mxu0 0.0
  %3567 = vmatpush.msra.mxu0 0.0
  %3568 = vmatpush.msra.mxu0 0.0
  %3569 = vmatpush.msra.mxu0 0.0
  %3570 = vmatpush.msra.mxu0 0.0
  %3571 = vmatpush.msra.mxu0 %v3522
  %3572 = vmatpush.msra.mxu0 %v3506
  %3573 = vmatpush.msra.mxu0 %v3490
  %3574 = vmatpush.msra.mxu0 %v3474
  %3575 = vmatpush.msra.mxu0 %v3458
  %3576 = vmatpush.msra.mxu0 %v3442
  %3577 = vmatpush.msra.mxu0 %v3426
  %3578 = vmatpush.msra.mxu0 %v3410
  %3579 = vmatpush.msra.mxu0 %v3394
  %3580 = vmatpush.msra.mxu0 %v3378
  %3581 = vmatpush.msra.mxu0 %v3362
  %3582 = vmatmul.f32.gmra.mxu0 %v3544
  %v3583 = vpop.f32.mrf.mxu0
  %v3584 = vadd.f32 %v3564, %v3583
  %3585 = vdwg.mxu0
  %3586 = vmatpush.msra.mxu0 %v3347
  %3587 = vmatpush.msra.mxu0 %v3331
  %3588 = vmatpush.msra.mxu0 %v3315
  %3589 = vmatpush.msra.mxu0 %v3299
  %3590 = vmatpush.msra.mxu0 %v3283
  %3591 = vmatpush.msra.mxu0 %v3267
  %3592 = vmatpush.msra.mxu0 %v3251
  %3593 = vmatpush.msra.mxu0 %v3235
  %3594 = vmatpush.msra.mxu0 %v3219
  %3595 = vmatpush.msra.mxu0 %v3203
  %3596 = vmatpush.msra.mxu0 %v3187
  %3597 = vmatpush.msra.mxu0 %v3171
  %3598 = vmatpush.msra.mxu0 %v3155
  %3599 = vmatpush.msra.mxu0 %v3139
  %3600 = vmatpush.msra.mxu0 %v3123
  %3601 = vmatpush.msra.mxu0 %v3107
  %3602 = vmatmul.f32.gmra.mxu0 %v3540
  %v3603 = vpop.f32.mrf.mxu0
  %v3604 = vadd.f32 0.0, %v3603
  %3605 = vdwg.mxu0
  %3606 = vmatpush.msra.mxu0 0.0
  %3607 = vmatpush.msra.mxu0 0.0
  %3608 = vmatpush.msra.mxu0 0.0
  %3609 = vmatpush.msra.mxu0 0.0
  %3610 = vmatpush.msra.mxu0 0.0
  %3611 = vmatpush.msra.mxu0 %v3523
  %3612 = vmatpush.msra.mxu0 %v3507
  %3613 = vmatpush.msra.mxu0 %v3491
  %3614 = vmatpush.msra.mxu0 %v3475
  %3615 = vmatpush.msra.mxu0 %v3459
  %3616 = vmatpush.msra.mxu0 %v3443
  %3617 = vmatpush.msra.mxu0 %v3427
  %3618 = vmatpush.msra.mxu0 %v3411
  %3619 = vmatpush.msra.mxu0 %v3395
  %3620 = vmatpush.msra.mxu0 %v3379
  %3621 = vmatpush.msra.mxu0 %v3363
  %3622 = vmatmul.f32.gmra.mxu0 %v3544
  %v3623 = vpop.f32.mrf.mxu0
  %v3624 = vadd.f32 %v3604, %v3623
  %3625 = vdwg.mxu0
  %3626 = vmatpush.msra.mxu0 %v3348
  %3627 = vmatpush.msra.mxu0 %v3332
  %3628 = vmatpush.msra.mxu0 %v3316
  %3629 = vmatpush.msra.mxu0 %v3300
  %3630 = vmatpush.msra.mxu0 %v3284
  %3631 = vmatpush.msra.mxu0 %v3268
  %3632 = vmatpush.msra.mxu0 %v3252
  %3633 = vmatpush.msra.mxu0 %v3236
  %3634 = vmatpush.msra.mxu0 %v3220
  %3635 = vmatpush.msra.mxu0 %v3204
  %3636 = vmatpush.msra.mxu0 %v3188
  %3637 = vmatpush.msra.mxu0 %v3172
  %3638 = vmatpush.msra.mxu0 %v3156
  %3639 = vmatpush.msra.mxu0 %v3140
  %3640 = vmatpush.msra.mxu0 %v3124
  %3641 = vmatpush.msra.mxu0 %v3108
  %3642 = vmatmul.f32.gmra.mxu0 %v3540
  %v3643 = vpop.f32.mrf.mxu0
  %v3644 = vadd.f32 0.0, %v3643
  %3645 = vdwg.mxu0
  %3646 = vmatpush.msra.mxu0 0.0
  %3647 = vmatpush.msra.mxu0 0.0
  %3648 = vmatpush.msra.mxu0 0.0
  %3649 = vmatpush.msra.mxu0 0.0
  %3650 = vmatpush.msra.mxu0 0.0
  %3651 = vmatpush.msra.mxu0 %v3524
  %3652 = vmatpush.msra.mxu0 %v3508
  %3653 = vmatpush.msra.mxu0 %v3492
  %3654 = vmatpush.msra.mxu0 %v3476
  %3655 = vmatpush.msra.mxu0 %v3460
  %3656 = vmatpush.msra.mxu0 %v3444
  %3657 = vmatpush.msra.mxu0 %v3428
  %3658 = vmatpush.msra.mxu0 %v3412
  %3659 = vmatpush.msra.mxu0 %v3396
  %3660 = vmatpush.msra.mxu0 %v3380
  %3661 = vmatpush.msra.mxu0 %v3364
  %3662 = vmatmul.f32.gmra.mxu0 %v3544
  %v3663 = vpop.f32.mrf.mxu0
  %v3664 = vadd.f32 %v3644, %v3663
  %3665 = vdwg.mxu0
  %3666 = vmatpush.msra.mxu0 %v3349
  %3667 = vmatpush.msra.mxu0 %v3333
  %3668 = vmatpush.msra.mxu0 %v3317
  %3669 = vmatpush.msra.mxu0 %v3301
  %3670 = vmatpush.msra.mxu0 %v3285
  %3671 = vmatpush.msra.mxu0 %v3269
  %3672 = vmatpush.msra.mxu0 %v3253
  %3673 = vmatpush.msra.mxu0 %v3237
  %3674 = vmatpush.msra.mxu0 %v3221
  %3675 = vmatpush.msra.mxu0 %v3205
  %3676 = vmatpush.msra.mxu0 %v3189
  %3677 = vmatpush.msra.mxu0 %v3173
  %3678 = vmatpush.msra.mxu0 %v3157
  %3679 = vmatpush.msra.mxu0 %v3141
  %3680 = vmatpush.msra.mxu0 %v3125
  %3681 = vmatpush.msra.mxu0 %v3109
  %3682 = vmatmul.f32.gmra.mxu0 %v3540
  %v3683 = vpop.f32.mrf.mxu0
  %v3684 = vadd.f32 0.0, %v3683
  %3685 = vdwg.mxu0
  %3686 = vmatpush.msra.mxu0 0.0
  %3687 = vmatpush.msra.mxu0 0.0
  %3688 = vmatpush.msra.mxu0 0.0
  %3689 = vmatpush.msra.mxu0 0.0
  %3690 = vmatpush.msra.mxu0 0.0
  %3691 = vmatpush.msra.mxu0 %v3525
  %3692 = vmatpush.msra.mxu0 %v3509
  %3693 = vmatpush.msra.mxu0 %v3493
  %3694 = vmatpush.msra.mxu0 %v3477
  %3695 = vmatpush.msra.mxu0 %v3461
  %3696 = vmatpush.msra.mxu0 %v3445
  %3697 = vmatpush.msra.mxu0 %v3429
  %3698 = vmatpush.msra.mxu0 %v3413
  %3699 = vmatpush.msra.mxu0 %v3397
  %3700 = vmatpush.msra.mxu0 %v3381
  %3701 = vmatpush.msra.mxu0 %v3365
  %3702 = vmatmul.f32.gmra.mxu0 %v3544
  %v3703 = vpop.f32.mrf.mxu0
  %v3704 = vadd.f32 %v3684, %v3703
  %3705 = vdwg.mxu0
  %3706 = vmatpush.msra.mxu0 %v3350
  %3707 = vmatpush.msra.mxu0 %v3334
  %3708 = vmatpush.msra.mxu0 %v3318
  %3709 = vmatpush.msra.mxu0 %v3302
  %3710 = vmatpush.msra.mxu0 %v3286
  %3711 = vmatpush.msra.mxu0 %v3270
  %3712 = vmatpush.msra.mxu0 %v3254
  %3713 = vmatpush.msra.mxu0 %v3238
  %3714 = vmatpush.msra.mxu0 %v3222
  %3715 = vmatpush.msra.mxu0 %v3206
  %3716 = vmatpush.msra.mxu0 %v3190
  %3717 = vmatpush.msra.mxu0 %v3174
  %3718 = vmatpush.msra.mxu0 %v3158
  %3719 = vmatpush.msra.mxu0 %v3142
  %3720 = vmatpush.msra.mxu0 %v3126
  %3721 = vmatpush.msra.mxu0 %v3110
  %3722 = vmatmul.f32.gmra.mxu0 %v3540
  %v3723 = vpop.f32.mrf.mxu0
  %v3724 = vadd.f32 0.0, %v3723
  %3725 = vdwg.mxu0
  %3726 = vmatpush.msra.mxu0 0.0
  %3727 = vmatpush.msra.mxu0 0.0
  %3728 = vmatpush.msra.mxu0 0.0
  %3729 = vmatpush.msra.mxu0 0.0
  %3730 = vmatpush.msra.mxu0 0.0
  %3731 = vmatpush.msra.mxu0 %v3526
  %3732 = vmatpush.msra.mxu0 %v3510
  %3733 = vmatpush.msra.mxu0 %v3494
  %3734 = vmatpush.msra.mxu0 %v3478
  %3735 = vmatpush.msra.mxu0 %v3462
  %3736 = vmatpush.msra.mxu0 %v3446
  %3737 = vmatpush.msra.mxu0 %v3430
  %3738 = vmatpush.msra.mxu0 %v3414
  %3739 = vmatpush.msra.mxu0 %v3398
  %3740 = vmatpush.msra.mxu0 %v3382
  %3741 = vmatpush.msra.mxu0 %v3366
  %3742 = vmatmul.f32.gmra.mxu0 %v3544
  %v3743 = vpop.f32.mrf.mxu0
  %v3744 = vadd.f32 %v3724, %v3743
  %3745 = vdwg.mxu0
  %3746 = vmatpush.msra.mxu0 %v3351
  %3747 = vmatpush.msra.mxu0 %v3335
  %3748 = vmatpush.msra.mxu0 %v3319
  %3749 = vmatpush.msra.mxu0 %v3303
  %3750 = vmatpush.msra.mxu0 %v3287
  %3751 = vmatpush.msra.mxu0 %v3271
  %3752 = vmatpush.msra.mxu0 %v3255
  %3753 = vmatpush.msra.mxu0 %v3239
  %3754 = vmatpush.msra.mxu0 %v3223
  %3755 = vmatpush.msra.mxu0 %v3207
  %3756 = vmatpush.msra.mxu0 %v3191
  %3757 = vmatpush.msra.mxu0 %v3175
  %3758 = vmatpush.msra.mxu0 %v3159
  %3759 = vmatpush.msra.mxu0 %v3143
  %3760 = vmatpush.msra.mxu0 %v3127
  %3761 = vmatpush.msra.mxu0 %v3111
  %3762 = vmatmul.f32.gmra.mxu0 %v3540
  %v3763 = vpop.f32.mrf.mxu0
  %v3764 = vadd.f32 0.0, %v3763
  %3765 = vdwg.mxu0
  %3766 = vmatpush.msra.mxu0 0.0
  %3767 = vmatpush.msra.mxu0 0.0
  %3768 = vmatpush.msra.mxu0 0.0
  %3769 = vmatpush.msra.mxu0 0.0
  %3770 = vmatpush.msra.mxu0 0.0
  %3771 = vmatpush.msra.mxu0 %v3527
  %3772 = vmatpush.msra.mxu0 %v3511
  %3773 = vmatpush.msra.mxu0 %v3495
  %3774 = vmatpush.msra.mxu0 %v3479
  %3775 = vmatpush.msra.mxu0 %v3463
  %3776 = vmatpush.msra.mxu0 %v3447
  %3777 = vmatpush.msra.mxu0 %v3431
  %3778 = vmatpush.msra.mxu0 %v3415
  %3779 = vmatpush.msra.mxu0 %v3399
  %3780 = vmatpush.msra.mxu0 %v3383
  %3781 = vmatpush.msra.mxu0 %v3367
  %3782 = vmatmul.f32.gmra.mxu0 %v3544
  %v3783 = vpop.f32.mrf.mxu0
  %v3784 = vadd.f32 %v3764, %v3783
  %3785 = vdwg.mxu0
  %3786 = vmatpush.msra.mxu0 %v3352
  %3787 = vmatpush.msra.mxu0 %v3336
  %3788 = vmatpush.msra.mxu0 %v3320
  %3789 = vmatpush.msra.mxu0 %v3304
  %3790 = vmatpush.msra.mxu0 %v3288
  %3791 = vmatpush.msra.mxu0 %v3272
  %3792 = vmatpush.msra.mxu0 %v3256
  %3793 = vmatpush.msra.mxu0 %v3240
  %3794 = vmatpush.msra.mxu0 %v3224
  %3795 = vmatpush.msra.mxu0 %v3208
  %3796 = vmatpush.msra.mxu0 %v3192
  %3797 = vmatpush.msra.mxu0 %v3176
  %3798 = vmatpush.msra.mxu0 %v3160
  %3799 = vmatpush.msra.mxu0 %v3144
  %3800 = vmatpush.msra.mxu0 %v3128
  %3801 = vmatpush.msra.mxu0 %v3112
  %3802 = vmatmul.f32.gmra.mxu0 %v3540
  %v3803 = vpop.f32.mrf.mxu0
  %v3804 = vadd.f32 0.0, %v3803
  %3805 = vdwg.mxu0
  %3806 = vmatpush.msra.mxu0 0.0
  %3807 = vmatpush.msra.mxu0 0.0
  %3808 = vmatpush.msra.mxu0 0.0
  %3809 = vmatpush.msra.mxu0 0.0
  %3810 = vmatpush.msra.mxu0 0.0
  %3811 = vmatpush.msra.mxu0 %v3528
  %3812 = vmatpush.msra.mxu0 %v3512
  %3813 = vmatpush.msra.mxu0 %v3496
  %3814 = vmatpush.msra.mxu0 %v3480
  %3815 = vmatpush.msra.mxu0 %v3464
  %3816 = vmatpush.msra.mxu0 %v3448
  %3817 = vmatpush.msra.mxu0 %v3432
  %3818 = vmatpush.msra.mxu0 %v3416
  %3819 = vmatpush.msra.mxu0 %v3400
  %3820 = vmatpush.msra.mxu0 %v3384
  %3821 = vmatpush.msra.mxu0 %v3368
  %3822 = vmatmul.f32.gmra.mxu0 %v3544
  %v3823 = vpop.f32.mrf.mxu0
  %v3824 = vadd.f32 %v3804, %v3823
  %3825 = vdwg.mxu0
  %3826 = vmatpush.msra.mxu0 %v3353
  %3827 = vmatpush.msra.mxu0 %v3337
  %3828 = vmatpush.msra.mxu0 %v3321
  %3829 = vmatpush.msra.mxu0 %v3305
  %3830 = vmatpush.msra.mxu0 %v3289
  %3831 = vmatpush.msra.mxu0 %v3273
  %3832 = vmatpush.msra.mxu0 %v3257
  %3833 = vmatpush.msra.mxu0 %v3241
  %3834 = vmatpush.msra.mxu0 %v3225
  %3835 = vmatpush.msra.mxu0 %v3209
  %3836 = vmatpush.msra.mxu0 %v3193
  %3837 = vmatpush.msra.mxu0 %v3177
  %3838 = vmatpush.msra.mxu0 %v3161
  %3839 = vmatpush.msra.mxu0 %v3145
  %3840 = vmatpush.msra.mxu0 %v3129
  %3841 = vmatpush.msra.mxu0 %v3113
  %3842 = vmatmul.f32.gmra.mxu0 %v3540
  %v3843 = vpop.f32.mrf.mxu0
  %v3844 = vadd.f32 0.0, %v3843
  %3845 = vdwg.mxu0
  %3846 = vmatpush.msra.mxu0 0.0
  %3847 = vmatpush.msra.mxu0 0.0
  %3848 = vmatpush.msra.mxu0 0.0
  %3849 = vmatpush.msra.mxu0 0.0
  %3850 = vmatpush.msra.mxu0 0.0
  %3851 = vmatpush.msra.mxu0 %v3529
  %3852 = vmatpush.msra.mxu0 %v3513
  %3853 = vmatpush.msra.mxu0 %v3497
  %3854 = vmatpush.msra.mxu0 %v3481
  %3855 = vmatpush.msra.mxu0 %v3465
  %3856 = vmatpush.msra.mxu0 %v3449
  %3857 = vmatpush.msra.mxu0 %v3433
  %3858 = vmatpush.msra.mxu0 %v3417
  %3859 = vmatpush.msra.mxu0 %v3401
  %3860 = vmatpush.msra.mxu0 %v3385
  %3861 = vmatpush.msra.mxu0 %v3369
  %3862 = vmatmul.f32.gmra.mxu0 %v3544
  %v3863 = vpop.f32.mrf.mxu0
  %v3864 = vadd.f32 %v3844, %v3863
  %3865 = vdwg.mxu0
  %3866 = vmatpush.msra.mxu0 %v3354
  %3867 = vmatpush.msra.mxu0 %v3338
  %3868 = vmatpush.msra.mxu0 %v3322
  %3869 = vmatpush.msra.mxu0 %v3306
  %3870 = vmatpush.msra.mxu0 %v3290
  %3871 = vmatpush.msra.mxu0 %v3274
  %3872 = vmatpush.msra.mxu0 %v3258
  %3873 = vmatpush.msra.mxu0 %v3242
  %3874 = vmatpush.msra.mxu0 %v3226
  %3875 = vmatpush.msra.mxu0 %v3210
  %3876 = vmatpush.msra.mxu0 %v3194
  %3877 = vmatpush.msra.mxu0 %v3178
  %3878 = vmatpush.msra.mxu0 %v3162
  %3879 = vmatpush.msra.mxu0 %v3146
  %3880 = vmatpush.msra.mxu0 %v3130
  %3881 = vmatpush.msra.mxu0 %v3114
  %3882 = vmatmul.f32.gmra.mxu0 %v3540
  %v3883 = vpop.f32.mrf.mxu0
  %v3884 = vadd.f32 0.0, %v3883
  %3885 = vdwg.mxu0
  %3886 = vmatpush.msra.mxu0 0.0
  %3887 = vmatpush.msra.mxu0 0.0
  %3888 = vmatpush.msra.mxu0 0.0
  %3889 = vmatpush.msra.mxu0 0.0
  %3890 = vmatpush.msra.mxu0 0.0
  %3891 = vmatpush.msra.mxu0 %v3530
  %3892 = vmatpush.msra.mxu0 %v3514
  %3893 = vmatpush.msra.mxu0 %v3498
  %3894 = vmatpush.msra.mxu0 %v3482
  %3895 = vmatpush.msra.mxu0 %v3466
  %3896 = vmatpush.msra.mxu0 %v3450
  %3897 = vmatpush.msra.mxu0 %v3434
  %3898 = vmatpush.msra.mxu0 %v3418
  %3899 = vmatpush.msra.mxu0 %v3402
  %3900 = vmatpush.msra.mxu0 %v3386
  %3901 = vmatpush.msra.mxu0 %v3370
  %3902 = vmatmul.f32.gmra.mxu0 %v3544
  %v3903 = vpop.f32.mrf.mxu0
  %v3904 = vadd.f32 %v3884, %v3903
  %3905 = vdwg.mxu0
  %3906 = vmatpush.msra.mxu0 %v3355
  %3907 = vmatpush.msra.mxu0 %v3339
  %3908 = vmatpush.msra.mxu0 %v3323
  %3909 = vmatpush.msra.mxu0 %v3307
  %3910 = vmatpush.msra.mxu0 %v3291
  %3911 = vmatpush.msra.mxu0 %v3275
  %3912 = vmatpush.msra.mxu0 %v3259
  %3913 = vmatpush.msra.mxu0 %v3243
  %3914 = vmatpush.msra.mxu0 %v3227
  %3915 = vmatpush.msra.mxu0 %v3211
  %3916 = vmatpush.msra.mxu0 %v3195
  %3917 = vmatpush.msra.mxu0 %v3179
  %3918 = vmatpush.msra.mxu0 %v3163
  %3919 = vmatpush.msra.mxu0 %v3147
  %3920 = vmatpush.msra.mxu0 %v3131
  %3921 = vmatpush.msra.mxu0 %v3115
  %3922 = vmatmul.f32.gmra.mxu0 %v3540
  %v3923 = vpop.f32.mrf.mxu0
  %v3924 = vadd.f32 0.0, %v3923
  %3925 = vdwg.mxu0
  %3926 = vmatpush.msra.mxu0 0.0
  %3927 = vmatpush.msra.mxu0 0.0
  %3928 = vmatpush.msra.mxu0 0.0
  %3929 = vmatpush.msra.mxu0 0.0
  %3930 = vmatpush.msra.mxu0 0.0
  %3931 = vmatpush.msra.mxu0 %v3531
  %3932 = vmatpush.msra.mxu0 %v3515
  %3933 = vmatpush.msra.mxu0 %v3499
  %3934 = vmatpush.msra.mxu0 %v3483
  %3935 = vmatpush.msra.mxu0 %v3467
  %3936 = vmatpush.msra.mxu0 %v3451
  %3937 = vmatpush.msra.mxu0 %v3435
  %3938 = vmatpush.msra.mxu0 %v3419
  %3939 = vmatpush.msra.mxu0 %v3403
  %3940 = vmatpush.msra.mxu0 %v3387
  %3941 = vmatpush.msra.mxu0 %v3371
  %3942 = vmatmul.f32.gmra.mxu0 %v3544
  %v3943 = vpop.f32.mrf.mxu0
  %v3944 = vadd.f32 %v3924, %v3943
  %3945 = vdwg.mxu0
  %3946 = vmatpush.msra.mxu0 %v3356
  %3947 = vmatpush.msra.mxu0 %v3340
  %3948 = vmatpush.msra.mxu0 %v3324
  %3949 = vmatpush.msra.mxu0 %v3308
  %3950 = vmatpush.msra.mxu0 %v3292
  %3951 = vmatpush.msra.mxu0 %v3276
  %3952 = vmatpush.msra.mxu0 %v3260
  %3953 = vmatpush.msra.mxu0 %v3244
  %3954 = vmatpush.msra.mxu0 %v3228
  %3955 = vmatpush.msra.mxu0 %v3212
  %3956 = vmatpush.msra.mxu0 %v3196
  %3957 = vmatpush.msra.mxu0 %v3180
  %3958 = vmatpush.msra.mxu0 %v3164
  %3959 = vmatpush.msra.mxu0 %v3148
  %3960 = vmatpush.msra.mxu0 %v3132
  %3961 = vmatpush.msra.mxu0 %v3116
  %3962 = vmatmul.f32.gmra.mxu0 %v3540
  %v3963 = vpop.f32.mrf.mxu0
  %v3964 = vadd.f32 0.0, %v3963
  %3965 = vdwg.mxu0
  %3966 = vmatpush.msra.mxu0 0.0
  %3967 = vmatpush.msra.mxu0 0.0
  %3968 = vmatpush.msra.mxu0 0.0
  %3969 = vmatpush.msra.mxu0 0.0
  %3970 = vmatpush.msra.mxu0 0.0
  %3971 = vmatpush.msra.mxu0 %v3532
  %3972 = vmatpush.msra.mxu0 %v3516
  %3973 = vmatpush.msra.mxu0 %v3500
  %3974 = vmatpush.msra.mxu0 %v3484
  %3975 = vmatpush.msra.mxu0 %v3468
  %3976 = vmatpush.msra.mxu0 %v3452
  %3977 = vmatpush.msra.mxu0 %v3436
  %3978 = vmatpush.msra.mxu0 %v3420
  %3979 = vmatpush.msra.mxu0 %v3404
  %3980 = vmatpush.msra.mxu0 %v3388
  %3981 = vmatpush.msra.mxu0 %v3372
  %3982 = vmatmul.f32.gmra.mxu0 %v3544
  %v3983 = vpop.f32.mrf.mxu0
  %v3984 = vadd.f32 %v3964, %v3983
  %3985 = vdwg.mxu0
  %3986 = vmatpush.msra.mxu0 %v3357
  %3987 = vmatpush.msra.mxu0 %v3341
  %3988 = vmatpush.msra.mxu0 %v3325
  %3989 = vmatpush.msra.mxu0 %v3309
  %3990 = vmatpush.msra.mxu0 %v3293
  %3991 = vmatpush.msra.mxu0 %v3277
  %3992 = vmatpush.msra.mxu0 %v3261
  %3993 = vmatpush.msra.mxu0 %v3245
  %3994 = vmatpush.msra.mxu0 %v3229
  %3995 = vmatpush.msra.mxu0 %v3213
  %3996 = vmatpush.msra.mxu0 %v3197
  %3997 = vmatpush.msra.mxu0 %v3181
  %3998 = vmatpush.msra.mxu0 %v3165
  %3999 = vmatpush.msra.mxu0 %v3149
  %4000 = vmatpush.msra.mxu0 %v3133
  %4001 = vmatpush.msra.mxu0 %v3117
  %4002 = vmatmul.f32.gmra.mxu0 %v3540
  %v4003 = vpop.f32.mrf.mxu0
  %v4004 = vadd.f32 0.0, %v4003
  %4005 = vdwg.mxu0
  %4006 = vmatpush.msra.mxu0 0.0
  %4007 = vmatpush.msra.mxu0 0.0
  %4008 = vmatpush.msra.mxu0 0.0
  %4009 = vmatpush.msra.mxu0 0.0
  %4010 = vmatpush.msra.mxu0 0.0
  %4011 = vmatpush.msra.mxu0 %v3533
  %4012 = vmatpush.msra.mxu0 %v3517
  %4013 = vmatpush.msra.mxu0 %v3501
  %4014 = vmatpush.msra.mxu0 %v3485
  %4015 = vmatpush.msra.mxu0 %v3469
  %4016 = vmatpush.msra.mxu0 %v3453
  %4017 = vmatpush.msra.mxu0 %v3437
  %4018 = vmatpush.msra.mxu0 %v3421
  %4019 = vmatpush.msra.mxu0 %v3405
  %4020 = vmatpush.msra.mxu0 %v3389
  %4021 = vmatpush.msra.mxu0 %v3373
  %4022 = vmatmul.f32.gmra.mxu0 %v3544
  %v4023 = vpop.f32.mrf.mxu0
  %v4024 = vadd.f32 %v4004, %v4023
  %4025 = vdwg.mxu0
  %4026 = vmatpush.msra.mxu0 %v3358
  %4027 = vmatpush.msra.mxu0 %v3342
  %4028 = vmatpush.msra.mxu0 %v3326
  %4029 = vmatpush.msra.mxu0 %v3310
  %4030 = vmatpush.msra.mxu0 %v3294
  %4031 = vmatpush.msra.mxu0 %v3278
  %4032 = vmatpush.msra.mxu0 %v3262
  %4033 = vmatpush.msra.mxu0 %v3246
  %4034 = vmatpush.msra.mxu0 %v3230
  %4035 = vmatpush.msra.mxu0 %v3214
  %4036 = vmatpush.msra.mxu0 %v3198
  %4037 = vmatpush.msra.mxu0 %v3182
  %4038 = vmatpush.msra.mxu0 %v3166
  %4039 = vmatpush.msra.mxu0 %v3150
  %4040 = vmatpush.msra.mxu0 %v3134
  %4041 = vmatpush.msra.mxu0 %v3118
  %4042 = vmatmul.f32.gmra.mxu0 %v3540
  %v4043 = vpop.f32.mrf.mxu0
  %v4044 = vadd.f32 0.0, %v4043
  %4045 = vdwg.mxu0
  %4046 = vmatpush.msra.mxu0 0.0
  %4047 = vmatpush.msra.mxu0 0.0
  %4048 = vmatpush.msra.mxu0 0.0
  %4049 = vmatpush.msra.mxu0 0.0
  %4050 = vmatpush.msra.mxu0 0.0
  %4051 = vmatpush.msra.mxu0 %v3534
  %4052 = vmatpush.msra.mxu0 %v3518
  %4053 = vmatpush.msra.mxu0 %v3502
  %4054 = vmatpush.msra.mxu0 %v3486
  %4055 = vmatpush.msra.mxu0 %v3470
  %4056 = vmatpush.msra.mxu0 %v3454
  %4057 = vmatpush.msra.mxu0 %v3438
  %4058 = vmatpush.msra.mxu0 %v3422
  %4059 = vmatpush.msra.mxu0 %v3406
  %4060 = vmatpush.msra.mxu0 %v3390
  %4061 = vmatpush.msra.mxu0 %v3374
  %4062 = vmatmul.f32.gmra.mxu0 %v3544
  %v4063 = vpop.f32.mrf.mxu0
  %v4064 = vadd.f32 %v4044, %v4063
  %4065 = vdwg.mxu0
  %4066 = vmatpush.msra.mxu0 %v3359
  %4067 = vmatpush.msra.mxu0 %v3343
  %4068 = vmatpush.msra.mxu0 %v3327
  %4069 = vmatpush.msra.mxu0 %v3311
  %4070 = vmatpush.msra.mxu0 %v3295
  %4071 = vmatpush.msra.mxu0 %v3279
  %4072 = vmatpush.msra.mxu0 %v3263
  %4073 = vmatpush.msra.mxu0 %v3247
  %4074 = vmatpush.msra.mxu0 %v3231
  %4075 = vmatpush.msra.mxu0 %v3215
  %4076 = vmatpush.msra.mxu0 %v3199
  %4077 = vmatpush.msra.mxu0 %v3183
  %4078 = vmatpush.msra.mxu0 %v3167
  %4079 = vmatpush.msra.mxu0 %v3151
  %4080 = vmatpush.msra.mxu0 %v3135
  %4081 = vmatpush.msra.mxu0 %v3119
  %4082 = vmatmul.f32.gmra.mxu0 %v3540
  %v4083 = vpop.f32.mrf.mxu0
  %v4084 = vadd.f32 0.0, %v4083
  %4085 = vdwg.mxu0
  %4086 = vmatpush.msra.mxu0 0.0
  %4087 = vmatpush.msra.mxu0 0.0
  %4088 = vmatpush.msra.mxu0 0.0
  %4089 = vmatpush.msra.mxu0 0.0
  %4090 = vmatpush.msra.mxu0 0.0
  %4091 = vmatpush.msra.mxu0 %v3535
  %4092 = vmatpush.msra.mxu0 %v3519
  %4093 = vmatpush.msra.mxu0 %v3503
  %4094 = vmatpush.msra.mxu0 %v3487
  %4095 = vmatpush.msra.mxu0 %v3471
  %4096 = vmatpush.msra.mxu0 %v3455
  %4097 = vmatpush.msra.mxu0 %v3439
  %4098 = vmatpush.msra.mxu0 %v3423
  %4099 = vmatpush.msra.mxu0 %v3407
  %4100 = vmatpush.msra.mxu0 %v3391
  %4101 = vmatpush.msra.mxu0 %v3375
  %4102 = vmatmul.f32.gmra.mxu0 %v3544
  %v4103 = vpop.f32.mrf.mxu0
  %v4104 = vadd.f32 %v4084, %v4103
  %4105 = vdwg.mxu0
  %4106 = vmatpush.msra.mxu0 %v3360
  %4107 = vmatpush.msra.mxu0 %v3344
  %4108 = vmatpush.msra.mxu0 %v3328
  %4109 = vmatpush.msra.mxu0 %v3312
  %4110 = vmatpush.msra.mxu0 %v3296
  %4111 = vmatpush.msra.mxu0 %v3280
  %4112 = vmatpush.msra.mxu0 %v3264
  %4113 = vmatpush.msra.mxu0 %v3248
  %4114 = vmatpush.msra.mxu0 %v3232
  %4115 = vmatpush.msra.mxu0 %v3216
  %4116 = vmatpush.msra.mxu0 %v3200
  %4117 = vmatpush.msra.mxu0 %v3184
  %4118 = vmatpush.msra.mxu0 %v3168
  %4119 = vmatpush.msra.mxu0 %v3152
  %4120 = vmatpush.msra.mxu0 %v3136
  %4121 = vmatpush.msra.mxu0 %v3120
  %4122 = vmatmul.f32.gmra.mxu0 %v3540
  %v4123 = vpop.f32.mrf.mxu0
  %v4124 = vadd.f32 0.0, %v4123
  %4125 = vdwg.mxu0
  %4126 = vmatpush.msra.mxu0 0.0
  %4127 = vmatpush.msra.mxu0 0.0
  %4128 = vmatpush.msra.mxu0 0.0
  %4129 = vmatpush.msra.mxu0 0.0
  %4130 = vmatpush.msra.mxu0 0.0
  %4131 = vmatpush.msra.mxu0 %v3536
  %4132 = vmatpush.msra.mxu0 %v3520
  %4133 = vmatpush.msra.mxu0 %v3504
  %4134 = vmatpush.msra.mxu0 %v3488
  %4135 = vmatpush.msra.mxu0 %v3472
  %4136 = vmatpush.msra.mxu0 %v3456
  %4137 = vmatpush.msra.mxu0 %v3440
  %4138 = vmatpush.msra.mxu0 %v3424
  %4139 = vmatpush.msra.mxu0 %v3408
  %4140 = vmatpush.msra.mxu0 %v3392
  %4141 = vmatpush.msra.mxu0 %v3376
  %4142 = vmatmul.f32.gmra.mxu0 %v3544
  %v4143 = vpop.f32.mrf.mxu0
  %v4144 = vadd.f32 %v4124, %v4143
  %4145 = vdwg.mxu0
  %4146 = vmatpush.msra.mxu0 %v3361
  %4147 = vmatpush.msra.mxu0 %v3345
  %4148 = vmatpush.msra.mxu0 %v3329
  %4149 = vmatpush.msra.mxu0 %v3313
  %4150 = vmatpush.msra.mxu0 %v3297
  %4151 = vmatpush.msra.mxu0 %v3281
  %4152 = vmatpush.msra.mxu0 %v3265
  %4153 = vmatpush.msra.mxu0 %v3249
  %4154 = vmatpush.msra.mxu0 %v3233
  %4155 = vmatpush.msra.mxu0 %v3217
  %4156 = vmatpush.msra.mxu0 %v3201
  %4157 = vmatpush.msra.mxu0 %v3185
  %4158 = vmatpush.msra.mxu0 %v3169
  %4159 = vmatpush.msra.mxu0 %v3153
  %4160 = vmatpush.msra.mxu0 %v3137
  %4161 = vmatpush.msra.mxu0 %v3121
  %4162 = vmatmul.f32.gmra.mxu0 %v3540
  %v4163 = vpop.f32.mrf.mxu0
  %v4164 = vadd.f32 0.0, %v4163
  %4165 = vdwg.mxu0
  %4166 = vmatpush.msra.mxu0 0.0
  %4167 = vmatpush.msra.mxu0 0.0
  %4168 = vmatpush.msra.mxu0 0.0
  %4169 = vmatpush.msra.mxu0 0.0
  %4170 = vmatpush.msra.mxu0 0.0
  %4171 = vmatpush.msra.mxu0 %v3537
  %4172 = vmatpush.msra.mxu0 %v3521
  %4173 = vmatpush.msra.mxu0 %v3505
  %4174 = vmatpush.msra.mxu0 %v3489
  %4175 = vmatpush.msra.mxu0 %v3473
  %4176 = vmatpush.msra.mxu0 %v3457
  %4177 = vmatpush.msra.mxu0 %v3441
  %4178 = vmatpush.msra.mxu0 %v3425
  %4179 = vmatpush.msra.mxu0 %v3409
  %4180 = vmatpush.msra.mxu0 %v3393
  %4181 = vmatpush.msra.mxu0 %v3377
  %4182 = vmatmul.f32.gmra.mxu0 %v3544
  %v4183 = vpop.f32.mrf.mxu0
  %v4184 = vadd.f32 %v4164, %v4183
  %4185 = vdwg.mxu0
  %v4188 = vperm.slane %v29, 0
  %v4189 = vperm.slane %v29, 1
  %v4190 = vperm.slane %v29, 2
  %v4191 = vperm.slane %v29, 3
  %v4192 = vperm.slane %v29, 4
  %v4193 = vperm.slane %v29, 5
  %v4194 = vperm.slane %v29, 6
  %v4195 = vperm.slane %v29, 7
  %v4196 = vperm.slane %v30, 0
  %v4197 = vperm.slane %v30, 1
  %v4198 = vperm.slane %v30, 2
  %v4199 = vperm.slane %v30, 3
  %v4200 = vperm.slane %v30, 4
  %v4201 = vperm.slane %v30, 5
  %v4202 = vperm.slane %v30, 6
  %v4203 = vperm.slane %v30, 7
  %v4220 = vmul.f32 %v3584, %v4188
  %v4221 = vmul.f32 %v3624, %v4189
  %v4222 = vmul.f32 %v3664, %v4190
  %v4223 = vmul.f32 %v3704, %v4191
  %v4224 = vmul.f32 %v3744, %v4192
  %v4225 = vmul.f32 %v3784, %v4193
  %v4226 = vmul.f32 %v3824, %v4194
  %v4227 = vmul.f32 %v3864, %v4195
  %v4228 = vmul.f32 %v3904, %v4196
  %v4229 = vmul.f32 %v3944, %v4197
  %v4230 = vmul.f32 %v3984, %v4198
  %v4231 = vmul.f32 %v4024, %v4199
  %v4232 = vmul.f32 %v4064, %v4200
  %v4233 = vmul.f32 %v4104, %v4201
  %v4234 = vmul.f32 %v4144, %v4202
  %v4235 = vmul.f32 %v4184, %v4203
  %vm4236 = vcmask 1043456
  %v4237 = vsel %vm4236, %v4220, 0.0
  %v4238 = vsel %vm4236, %v4221, 0.0
  %v4239 = vadd.f32 %v4237, %v4238
  %v4240 = vsel %vm4236, %v4222, 0.0
  %v4241 = vadd.f32 %v4239, %v4240
  %v4242 = vsel %vm4236, %v4223, 0.0
  %v4243 = vadd.f32 %v4241, %v4242
  %v4244 = vsel %vm4236, %v4224, 0.0
  %v4245 = vadd.f32 %v4243, %v4244
  %v4246 = vsel %vm4236, %v4225, 0.0
  %v4247 = vadd.f32 %v4245, %v4246
  %v4248 = vsel %vm4236, %v4226, 0.0
  %v4249 = vadd.f32 %v4247, %v4248
  %v4250 = vsel %vm4236, %v4227, 0.0
  %v4251 = vadd.f32 %v4249, %v4250
  %v4252 = vsel %vm4236, %v4228, 0.0
  %v4253 = vadd.f32 %v4251, %v4252
  %v4254 = vsel %vm4236, %v4229, 0.0
  %v4255 = vadd.f32 %v4253, %v4254
  %v4256 = vsel %vm4236, %v4230, 0.0
  %v4257 = vadd.f32 %v4255, %v4256
  %v4258 = vsel %vm4236, %v4231, 0.0
  %v4259 = vadd.f32 %v4257, %v4258
  %v4260 = vsel %vm4236, %v4232, 0.0
  %v4261 = vadd.f32 %v4259, %v4260
  %v4262 = vsel %vm4236, %v4233, 0.0
  %v4263 = vadd.f32 %v4261, %v4262
  %v4264 = vsel %vm4236, %v4234, 0.0
  %v4265 = vadd.f32 %v4263, %v4264
  %v4266 = vsel %vm4236, %v4235, 0.0
  %v4267 = vadd.f32 %v4265, %v4266
  %4268 = vadd.xlane.f32.xlu0 %v4267
  %v4269 = vpop.xlane.xlu0 %4268
  %v4270 = vmul.f32 %v4269, 0.0009765625
  %v4271 = vsub.f32 %v3584, %v4270
  %v4272 = vsub.f32 %v3624, %v4270
  %v4273 = vsub.f32 %v3664, %v4270
  %v4274 = vsub.f32 %v3704, %v4270
  %v4275 = vsub.f32 %v3744, %v4270
  %v4276 = vsub.f32 %v3784, %v4270
  %v4277 = vsub.f32 %v3824, %v4270
  %v4278 = vsub.f32 %v3864, %v4270
  %v4279 = vsub.f32 %v3904, %v4270
  %v4280 = vsub.f32 %v3944, %v4270
  %v4281 = vsub.f32 %v3984, %v4270
  %v4282 = vsub.f32 %v4024, %v4270
  %v4283 = vsub.f32 %v4064, %v4270
  %v4284 = vsub.f32 %v4104, %v4270
  %v4285 = vsub.f32 %v4144, %v4270
  %v4286 = vsub.f32 %v4184, %v4270
  %v4287 = vmul.f32 %v4271, %v4188
  %v4288 = vmul.f32 %v4272, %v4189
  %v4289 = vmul.f32 %v4273, %v4190
  %v4290 = vmul.f32 %v4274, %v4191
  %v4291 = vmul.f32 %v4275, %v4192
  %v4292 = vmul.f32 %v4276, %v4193
  %v4293 = vmul.f32 %v4277, %v4194
  %v4294 = vmul.f32 %v4278, %v4195
  %v4295 = vmul.f32 %v4279, %v4196
  %v4296 = vmul.f32 %v4280, %v4197
  %v4297 = vmul.f32 %v4281, %v4198
  %v4298 = vmul.f32 %v4282, %v4199
  %v4299 = vmul.f32 %v4283, %v4200
  %v4300 = vmul.f32 %v4284, %v4201
  %v4301 = vmul.f32 %v4285, %v4202
  %v4302 = vmul.f32 %v4286, %v4203
  %v4303 = vmul.f32 %v4287, %v4287
  %v4304 = vmul.f32 %v4288, %v4288
  %v4305 = vmul.f32 %v4289, %v4289
  %v4306 = vmul.f32 %v4290, %v4290
  %v4307 = vmul.f32 %v4291, %v4291
  %v4308 = vmul.f32 %v4292, %v4292
  %v4309 = vmul.f32 %v4293, %v4293
  %v4310 = vmul.f32 %v4294, %v4294
  %v4311 = vmul.f32 %v4295, %v4295
  %v4312 = vmul.f32 %v4296, %v4296
  %v4313 = vmul.f32 %v4297, %v4297
  %v4314 = vmul.f32 %v4298, %v4298
  %v4315 = vmul.f32 %v4299, %v4299
  %v4316 = vmul.f32 %v4300, %v4300
  %v4317 = vmul.f32 %v4301, %v4301
  %v4318 = vmul.f32 %v4302, %v4302
  %v4319 = vsel %vm4236, %v4303, 0.0
  %v4320 = vsel %vm4236, %v4304, 0.0
  %v4321 = vadd.f32 %v4319, %v4320
  %v4322 = vsel %vm4236, %v4305, 0.0
  %v4323 = vadd.f32 %v4321, %v4322
  %v4324 = vsel %vm4236, %v4306, 0.0
  %v4325 = vadd.f32 %v4323, %v4324
  %v4326 = vsel %vm4236, %v4307, 0.0
  %v4327 = vadd.f32 %v4325, %v4326
  %v4328 = vsel %vm4236, %v4308, 0.0
  %v4329 = vadd.f32 %v4327, %v4328
  %v4330 = vsel %vm4236, %v4309, 0.0
  %v4331 = vadd.f32 %v4329, %v4330
  %v4332 = vsel %vm4236, %v4310, 0.0
  %v4333 = vadd.f32 %v4331, %v4332
  %v4334 = vsel %vm4236, %v4311, 0.0
  %v4335 = vadd.f32 %v4333, %v4334
  %v4336 = vsel %vm4236, %v4312, 0.0
  %v4337 = vadd.f32 %v4335, %v4336
  %v4338 = vsel %vm4236, %v4313, 0.0
  %v4339 = vadd.f32 %v4337, %v4338
  %v4340 = vsel %vm4236, %v4314, 0.0
  %v4341 = vadd.f32 %v4339, %v4340
  %v4342 = vsel %vm4236, %v4315, 0.0
  %v4343 = vadd.f32 %v4341, %v4342
  %v4344 = vsel %vm4236, %v4316, 0.0
  %v4345 = vadd.f32 %v4343, %v4344
  %v4346 = vsel %vm4236, %v4317, 0.0
  %v4347 = vadd.f32 %v4345, %v4346
  %v4348 = vsel %vm4236, %v4318, 0.0
  %v4349 = vadd.f32 %v4347, %v4348
  %4350 = vadd.xlane.f32.xlu0 %v4349
  %v4351 = vpop.xlane.xlu0 %4350
  %v4352 = vmul.f32 %v4351, 0.0009765625
  %v4353 = vadd.f32 %v4352, 1e-05
  %v4354 = vrsqrt.pop %v4353
  %v4355 = vmul.f32 %v4354, %v4353
  %v4356 = vmul.f32 %v4355, %v4354
  %v4357 = vmul.f32 0.5, %v4356
  %v4358 = vsub.f32 1.5, %v4357
  %v4359 = vmul.f32 %v4354, %v4358
  %vm4360 = vweird.f32 %v4353
  %vm4361 = vweird.f32 %v4354
  %vm4362 = vmor %vm4360, %vm4361
  %v4363 = vsel %vm4362, %v4354, %v4359
  %v4364 = vld [vmem:[%s2] sm:$0xf]
  %v4365 = vmul.f32 %v4363, %v4364
  %4367 = vset.pattern.permute.xlu0 0
  %4368 = vperm.xlu0 %4367, %v4365
  %v4369 = vpop.permute.xlu0 %4368
  %v4371 = vmul.f32 %v4287, %v4369
  %v4372 = vmul.f32 %v4288, %v4369
  %v4373 = vmul.f32 %v4289, %v4369
  %v4374 = vmul.f32 %v4290, %v4369
  %v4375 = vmul.f32 %v4291, %v4369
  %v4376 = vmul.f32 %v4292, %v4369
  %v4377 = vmul.f32 %v4293, %v4369
  %v4378 = vmul.f32 %v4294, %v4369
  %v4379 = vmul.f32 %v4295, %v4369
  %v4380 = vmul.f32 %v4296, %v4369
  %v4381 = vmul.f32 %v4297, %v4369
  %v4382 = vmul.f32 %v4298, %v4369
  %v4383 = vmul.f32 %v4299, %v4369
  %v4384 = vmul.f32 %v4300, %v4369
  %v4385 = vmul.f32 %v4301, %v4369
  %v4386 = vmul.f32 %v4302, %v4369
  %v4387 = vld [vmem:[%s3] sm:$0xf]
  %4389 = vset.pattern.permute.xlu0 0
  %4390 = vperm.xlu0 %4389, %v4387
  %v4391 = vpop.permute.xlu0 %4390
  %v4393 = vadd.f32 %v4371, %v4391
  %v4394 = vadd.f32 %v4372, %v4391
  %v4395 = vadd.f32 %v4373, %v4391
  %v4396 = vadd.f32 %v4374, %v4391
  %v4397 = vadd.f32 %v4375, %v4391
  %v4398 = vadd.f32 %v4376, %v4391
  %v4399 = vadd.f32 %v4377, %v4391
  %v4400 = vadd.f32 %v4378, %v4391
  %v4401 = vadd.f32 %v4379, %v4391
  %v4402 = vadd.f32 %v4380, %v4391
  %v4403 = vadd.f32 %v4381, %v4391
  %v4404 = vadd.f32 %v4382, %v4391
  %v4405 = vadd.f32 %v4383, %v4391
  %v4406 = vadd.f32 %v4384, %v4391
  %v4407 = vadd.f32 %v4385, %v4391
  %v4408 = vadd.f32 %v4386, %v4391
  %v4409 = vmax.f32 %v4393, 0.0
  %v4410 = vmax.f32 %v4394, 0.0
  %v4411 = vmax.f32 %v4395, 0.0
  %v4412 = vmax.f32 %v4396, 0.0
  %v4413 = vmax.f32 %v4397, 0.0
  %v4414 = vmax.f32 %v4398, 0.0
  %v4415 = vmax.f32 %v4399, 0.0
  %v4416 = vmax.f32 %v4400, 0.0
  %v4417 = vmax.f32 %v4401, 0.0
  %v4418 = vmax.f32 %v4402, 0.0
  %v4419 = vmax.f32 %v4403, 0.0
  %v4420 = vmax.f32 %v4404, 0.0
  %v4421 = vmax.f32 %v4405, 0.0
  %v4422 = vmax.f32 %v4406, 0.0
  %v4423 = vmax.f32 %v4407, 0.0
  %v4424 = vmax.f32 %v4408, 0.0
  %v4425 = vmul.f32 %v4409, %v4188
  %v4426 = vmul.f32 %v4410, %v4189
  %v4427 = vmul.f32 %v4411, %v4190
  %v4428 = vmul.f32 %v4412, %v4191
  %v4429 = vmul.f32 %v4413, %v4192
  %v4430 = vmul.f32 %v4414, %v4193
  %v4431 = vmul.f32 %v4415, %v4194
  %v4432 = vmul.f32 %v4416, %v4195
  %v4433 = vmul.f32 %v4417, %v4196
  %v4434 = vmul.f32 %v4418, %v4197
  %v4435 = vmul.f32 %v4419, %v4198
  %v4436 = vmul.f32 %v4420, %v4199
  %v4437 = vmul.f32 %v4421, %v4200
  %v4438 = vmul.f32 %v4422, %v4201
  %v4439 = vmul.f32 %v4423, %v4202
  %v4440 = vmul.f32 %v4424, %v4203
  %v4441 = vsel %vm4236, %v4425, 0.0
  %v4442 = vsel %vm4236, %v4426, 0.0
  %v4443 = vsel %vm4236, %v4427, 0.0
  %v4444 = vsel %vm4236, %v4428, 0.0
  %v4445 = vsel %vm4236, %v4429, 0.0
  %v4446 = vsel %vm4236, %v4430, 0.0
  %v4447 = vsel %vm4236, %v4431, 0.0
  %v4448 = vsel %vm4236, %v4432, 0.0
  %v4449 = vsel %vm4236, %v4433, 0.0
  %v4450 = vsel %vm4236, %v4434, 0.0
  %v4451 = vsel %vm4236, %v4435, 0.0
  %v4452 = vsel %vm4236, %v4436, 0.0
  %v4453 = vsel %vm4236, %v4437, 0.0
  %v4454 = vsel %vm4236, %v4438, 0.0
  %v4455 = vsel %vm4236, %v4439, 0.0
  %v4456 = vsel %vm4236, %v4440, 0.0
  %4457 = vst [vmem:[#allocation4] sm:$0xff] 0.0
  %4458 = vst [vmem:[#allocation4 + $0x8] sm:$0xff] %v4441
  %4459 = vst [vmem:[#allocation4 + $0x10] sm:$0xff] %v4442
  %4460 = vst [vmem:[#allocation4 + $0x18] sm:$0xff] %v4443
  %4461 = vst [vmem:[#allocation4 + $0x20] sm:$0xff] %v4444
  %4462 = vst [vmem:[#allocation4 + $0x28] sm:$0xff] %v4445
  %4463 = vst [vmem:[#allocation4 + $0x30] sm:$0xff] %v4446
  %4464 = vst [vmem:[#allocation4 + $0x38] sm:$0xff] %v4447
  %4465 = vst [vmem:[#allocation4 + $0x40] sm:$0xff] %v4448
  %4466 = vst [vmem:[#allocation4 + $0x48] sm:$0xff] %v4449
  %4467 = vst [vmem:[#allocation4 + $0x50] sm:$0xff] %v4450
  %4468 = vst [vmem:[#allocation4 + $0x58] sm:$0xff] %v4451
  %4469 = vst [vmem:[#allocation4 + $0x60] sm:$0xff] %v4452
  %4470 = vst [vmem:[#allocation4 + $0x68] sm:$0xff] %v4453
  %4471 = vst [vmem:[#allocation4 + $0x70] sm:$0xff] %v4454
  %4472 = vst [vmem:[#allocation4 + $0x78] sm:$0xff] %v4455
  %4473 = vst [vmem:[#allocation4 + $0x80] sm:$0xff] %v4456
  %4474 = vst [vmem:[#allocation4 + $0x88] sm:$0xff] 0.0
  %v4475 = vld [vmem:[#allocation4] sm:$0xff]
  %v4476 = vld [vmem:[#allocation4 + $0x8] sm:$0xff]
  %v4477 = vld [vmem:[#allocation4 + $0x10] sm:$0xff]
  %v4478 = vld [vmem:[#allocation4 + $0x18] sm:$0xff]
  %v4479 = vld [vmem:[#allocation4 + $0x20] sm:$0xff]
  %v4480 = vld [vmem:[#allocation4 + $0x28] sm:$0xff]
  %v4481 = vld [vmem:[#allocation4 + $0x30] sm:$0xff]
  %v4482 = vld [vmem:[#allocation4 + $0x38] sm:$0xff]
  %v4483 = vld [vmem:[#allocation4 + $0x40] sm:$0xff]
  %v4484 = vld [vmem:[#allocation4 + $0x48] sm:$0xff]
  %v4485 = vld [vmem:[#allocation4 + $0x50] sm:$0xff]
  %v4486 = vld [vmem:[#allocation4 + $0x58] sm:$0xff]
  %v4487 = vld [vmem:[#allocation4 + $0x60] sm:$0xff]
  %v4488 = vld [vmem:[#allocation4 + $0x68] sm:$0xff]
  %v4489 = vld [vmem:[#allocation4 + $0x70] sm:$0xff]
  %v4490 = vld [vmem:[#allocation4 + $0x78] sm:$0xff]
  %v4491 = vld [vmem:[#allocation4 + $0x80] sm:$0xff]
  %4509 = vrot.lane.b32.xlu0 %v4475, 111
  %v4510 = vpop.permute.xlu0 %4509
  %4511 = vrot.lane.b32.xlu0 %v4476, 111
  %v4512 = vpop.permute.xlu0 %4511
  %4513 = vrot.lane.b32.xlu0 %v4477, 111
  %v4514 = vpop.permute.xlu0 %4513
  %4515 = vrot.lane.b32.xlu0 %v4478, 111
  %v4516 = vpop.permute.xlu0 %4515
  %4517 = vrot.lane.b32.xlu0 %v4479, 111
  %v4518 = vpop.permute.xlu0 %4517
  %4519 = vrot.lane.b32.xlu0 %v4480, 111
  %v4520 = vpop.permute.xlu0 %4519
  %4521 = vrot.lane.b32.xlu0 %v4481, 111
  %v4522 = vpop.permute.xlu0 %4521
  %4523 = vrot.lane.b32.xlu0 %v4482, 111
  %v4524 = vpop.permute.xlu0 %4523
  %4525 = vrot.lane.b32.xlu0 %v4483, 111
  %v4526 = vpop.permute.xlu0 %4525
  %4527 = vrot.lane.b32.xlu0 %v4484, 111
  %v4528 = vpop.permute.xlu0 %4527
  %4529 = vrot.lane.b32.xlu0 %v4485, 111
  %v4530 = vpop.permute.xlu0 %4529
  %4531 = vrot.lane.b32.xlu0 %v4486, 111
  %v4532 = vpop.permute.xlu0 %4531
  %4533 = vrot.lane.b32.xlu0 %v4487, 111
  %v4534 = vpop.permute.xlu0 %4533
  %4535 = vrot.lane.b32.xlu0 %v4488, 111
  %v4536 = vpop.permute.xlu0 %4535
  %4537 = vrot.lane.b32.xlu0 %v4489, 111
  %v4538 = vpop.permute.xlu0 %4537
  %4539 = vrot.lane.b32.xlu0 %v4490, 111
  %v4540 = vpop.permute.xlu0 %4539
  %4541 = vrot.lane.b32.xlu0 %v4491, 111
  %v4542 = vpop.permute.xlu0 %4541
  %v4543 = vsel %vm99, %v4510, %v4512
  %v4544 = vsel %vm99, %v4512, %v4514
  %v4545 = vsel %vm99, %v4514, %v4516
  %v4546 = vsel %vm99, %v4516, %v4518
  %v4547 = vsel %vm99, %v4518, %v4520
  %v4548 = vsel %vm99, %v4520, %v4522
  %v4549 = vsel %vm99, %v4522, %v4524
  %v4550 = vsel %vm99, %v4524, %v4526
  %v4551 = vsel %vm99, %v4526, %v4528
  %v4552 = vsel %vm99, %v4528, %v4530
  %v4553 = vsel %vm99, %v4530, %v4532
  %v4554 = vsel %vm99, %v4532, %v4534
  %v4555 = vsel %vm99, %v4534, %v4536
  %v4556 = vsel %vm99, %v4536, %v4538
  %v4557 = vsel %vm99, %v4538, %v4540
  %v4558 = vsel %vm99, %v4540, %v4542
  %4575 = vst [vmem:[#allocation3] sm:$0xff] %v4543
  %4576 = vst [vmem:[#allocation3 + $0x8] sm:$0xff] %v4544
  %4577 = vst [vmem:[#allocation3 + $0x10] sm:$0xff] %v4545
  %4578 = vst [vmem:[#allocation3 + $0x18] sm:$0xff] %v4546
  %4579 = vst [vmem:[#allocation3 + $0x20] sm:$0xff] %v4547
  %4580 = vst [vmem:[#allocation3 + $0x28] sm:$0xff] %v4548
  %4581 = vst [vmem:[#allocation3 + $0x30] sm:$0xff] %v4549
  %4582 = vst [vmem:[#allocation3 + $0x38] sm:$0xff] %v4550
  %4583 = vst [vmem:[#allocation3 + $0x40] sm:$0xff] %v4551
  %4584 = vst [vmem:[#allocation3 + $0x48] sm:$0xff] %v4552
  %4585 = vst [vmem:[#allocation3 + $0x50] sm:$0xff] %v4553
  %4586 = vst [vmem:[#allocation3 + $0x58] sm:$0xff] %v4554
  %4587 = vst [vmem:[#allocation3 + $0x60] sm:$0xff] %v4555
  %4588 = vst [vmem:[#allocation3 + $0x68] sm:$0xff] %v4556
  %4589 = vst [vmem:[#allocation3 + $0x70] sm:$0xff] %v4557
  %4590 = vst [vmem:[#allocation3 + $0x78] sm:$0xff] %v4558
  %v4591 = vld [vmem:[#allocation4] sm:$0xff]
  %v4592 = vld [vmem:[#allocation4 + $0x8] sm:$0xff]
  %v4593 = vld [vmem:[#allocation4 + $0x10] sm:$0xff]
  %v4594 = vld [vmem:[#allocation4 + $0x18] sm:$0xff]
  %v4595 = vld [vmem:[#allocation4 + $0x20] sm:$0xff]
  %v4596 = vld [vmem:[#allocation4 + $0x28] sm:$0xff]
  %v4597 = vld [vmem:[#allocation4 + $0x30] sm:$0xff]
  %v4598 = vld [vmem:[#allocation4 + $0x38] sm:$0xff]
  %v4599 = vld [vmem:[#allocation4 + $0x40] sm:$0xff]
  %v4600 = vld [vmem:[#allocation4 + $0x48] sm:$0xff]
  %v4601 = vld [vmem:[#allocation4 + $0x50] sm:$0xff]
  %v4602 = vld [vmem:[#allocation4 + $0x58] sm:$0xff]
  %v4603 = vld [vmem:[#allocation4 + $0x60] sm:$0xff]
  %v4604 = vld [vmem:[#allocation4 + $0x68] sm:$0xff]
  %v4605 = vld [vmem:[#allocation4 + $0x70] sm:$0xff]
  %v4606 = vld [vmem:[#allocation4 + $0x78] sm:$0xff]
  %v4607 = vld [vmem:[#allocation4 + $0x80] sm:$0xff]
  %4625 = vrot.lane.b32.xlu0 %v4591, 110
  %v4626 = vpop.permute.xlu0 %4625
  %4627 = vrot.lane.b32.xlu0 %v4592, 110
  %v4628 = vpop.permute.xlu0 %4627
  %4629 = vrot.lane.b32.xlu0 %v4593, 110
  %v4630 = vpop.permute.xlu0 %4629
  %4631 = vrot.lane.b32.xlu0 %v4594, 110
  %v4632 = vpop.permute.xlu0 %4631
  %4633 = vrot.lane.b32.xlu0 %v4595, 110
  %v4634 = vpop.permute.xlu0 %4633
  %4635 = vrot.lane.b32.xlu0 %v4596, 110
  %v4636 = vpop.permute.xlu0 %4635
  %4637 = vrot.lane.b32.xlu0 %v4597, 110
  %v4638 = vpop.permute.xlu0 %4637
  %4639 = vrot.lane.b32.xlu0 %v4598, 110
  %v4640 = vpop.permute.xlu0 %4639
  %4641 = vrot.lane.b32.xlu0 %v4599, 110
  %v4642 = vpop.permute.xlu0 %4641
  %4643 = vrot.lane.b32.xlu0 %v4600, 110
  %v4644 = vpop.permute.xlu0 %4643
  %4645 = vrot.lane.b32.xlu0 %v4601, 110
  %v4646 = vpop.permute.xlu0 %4645
  %4647 = vrot.lane.b32.xlu0 %v4602, 110
  %v4648 = vpop.permute.xlu0 %4647
  %4649 = vrot.lane.b32.xlu0 %v4603, 110
  %v4650 = vpop.permute.xlu0 %4649
  %4651 = vrot.lane.b32.xlu0 %v4604, 110
  %v4652 = vpop.permute.xlu0 %4651
  %4653 = vrot.lane.b32.xlu0 %v4605, 110
  %v4654 = vpop.permute.xlu0 %4653
  %4655 = vrot.lane.b32.xlu0 %v4606, 110
  %v4656 = vpop.permute.xlu0 %4655
  %4657 = vrot.lane.b32.xlu0 %v4607, 110
  %v4658 = vpop.permute.xlu0 %4657
  %v4659 = vsel %vm216, %v4626, %v4628
  %v4660 = vsel %vm216, %v4628, %v4630
  %v4661 = vsel %vm216, %v4630, %v4632
  %v4662 = vsel %vm216, %v4632, %v4634
  %v4663 = vsel %vm216, %v4634, %v4636
  %v4664 = vsel %vm216, %v4636, %v4638
  %v4665 = vsel %vm216, %v4638, %v4640
  %v4666 = vsel %vm216, %v4640, %v4642
  %v4667 = vsel %vm216, %v4642, %v4644
  %v4668 = vsel %vm216, %v4644, %v4646
  %v4669 = vsel %vm216, %v4646, %v4648
  %v4670 = vsel %vm216, %v4648, %v4650
  %v4671 = vsel %vm216, %v4650, %v4652
  %v4672 = vsel %vm216, %v4652, %v4654
  %v4673 = vsel %vm216, %v4654, %v4656
  %v4674 = vsel %vm216, %v4656, %v4658
  %4691 = vst [vmem:[#allocation3 + $0x80] sm:$0xff] %v4659
  %4692 = vst [vmem:[#allocation3 + $0x88] sm:$0xff] %v4660
  %4693 = vst [vmem:[#allocation3 + $0x90] sm:$0xff] %v4661
  %4694 = vst [vmem:[#allocation3 + $0x98] sm:$0xff] %v4662
  %4695 = vst [vmem:[#allocation3 + $0xa0] sm:$0xff] %v4663
  %4696 = vst [vmem:[#allocation3 + $0xa8] sm:$0xff] %v4664
  %4697 = vst [vmem:[#allocation3 + $0xb0] sm:$0xff] %v4665
  %4698 = vst [vmem:[#allocation3 + $0xb8] sm:$0xff] %v4666
  %4699 = vst [vmem:[#allocation3 + $0xc0] sm:$0xff] %v4667
  %4700 = vst [vmem:[#allocation3 + $0xc8] sm:$0xff] %v4668
  %4701 = vst [vmem:[#allocation3 + $0xd0] sm:$0xff] %v4669
  %4702 = vst [vmem:[#allocation3 + $0xd8] sm:$0xff] %v4670
  %4703 = vst [vmem:[#allocation3 + $0xe0] sm:$0xff] %v4671
  %4704 = vst [vmem:[#allocation3 + $0xe8] sm:$0xff] %v4672
  %4705 = vst [vmem:[#allocation3 + $0xf0] sm:$0xff] %v4673
  %4706 = vst [vmem:[#allocation3 + $0xf8] sm:$0xff] %v4674
  %v4707 = vld [vmem:[#allocation4] sm:$0xff]
  %v4708 = vld [vmem:[#allocation4 + $0x8] sm:$0xff]
  %v4709 = vld [vmem:[#allocation4 + $0x10] sm:$0xff]
  %v4710 = vld [vmem:[#allocation4 + $0x18] sm:$0xff]
  %v4711 = vld [vmem:[#allocation4 + $0x20] sm:$0xff]
  %v4712 = vld [vmem:[#allocation4 + $0x28] sm:$0xff]
  %v4713 = vld [vmem:[#allocation4 + $0x30] sm:$0xff]
  %v4714 = vld [vmem:[#allocation4 + $0x38] sm:$0xff]
  %v4715 = vld [vmem:[#allocation4 + $0x40] sm:$0xff]
  %v4716 = vld [vmem:[#allocation4 + $0x48] sm:$0xff]
  %v4717 = vld [vmem:[#allocation4 + $0x50] sm:$0xff]
  %v4718 = vld [vmem:[#allocation4 + $0x58] sm:$0xff]
  %v4719 = vld [vmem:[#allocation4 + $0x60] sm:$0xff]
  %v4720 = vld [vmem:[#allocation4 + $0x68] sm:$0xff]
  %v4721 = vld [vmem:[#allocation4 + $0x70] sm:$0xff]
  %v4722 = vld [vmem:[#allocation4 + $0x78] sm:$0xff]
  %v4723 = vld [vmem:[#allocation4 + $0x80] sm:$0xff]
  %4741 = vrot.lane.b32.xlu0 %v4707, 109
  %v4742 = vpop.permute.xlu0 %4741
  %4743 = vrot.lane.b32.xlu0 %v4708, 109
  %v4744 = vpop.permute.xlu0 %4743
  %4745 = vrot.lane.b32.xlu0 %v4709, 109
  %v4746 = vpop.permute.xlu0 %4745
  %4747 = vrot.lane.b32.xlu0 %v4710, 109
  %v4748 = vpop.permute.xlu0 %4747
  %4749 = vrot.lane.b32.xlu0 %v4711, 109
  %v4750 = vpop.permute.xlu0 %4749
  %4751 = vrot.lane.b32.xlu0 %v4712, 109
  %v4752 = vpop.permute.xlu0 %4751
  %4753 = vrot.lane.b32.xlu0 %v4713, 109
  %v4754 = vpop.permute.xlu0 %4753
  %4755 = vrot.lane.b32.xlu0 %v4714, 109
  %v4756 = vpop.permute.xlu0 %4755
  %4757 = vrot.lane.b32.xlu0 %v4715, 109
  %v4758 = vpop.permute.xlu0 %4757
  %4759 = vrot.lane.b32.xlu0 %v4716, 109
  %v4760 = vpop.permute.xlu0 %4759
  %4761 = vrot.lane.b32.xlu0 %v4717, 109
  %v4762 = vpop.permute.xlu0 %4761
  %4763 = vrot.lane.b32.xlu0 %v4718, 109
  %v4764 = vpop.permute.xlu0 %4763
  %4765 = vrot.lane.b32.xlu0 %v4719, 109
  %v4766 = vpop.permute.xlu0 %4765
  %4767 = vrot.lane.b32.xlu0 %v4720, 109
  %v4768 = vpop.permute.xlu0 %4767
  %4769 = vrot.lane.b32.xlu0 %v4721, 109
  %v4770 = vpop.permute.xlu0 %4769
  %4771 = vrot.lane.b32.xlu0 %v4722, 109
  %v4772 = vpop.permute.xlu0 %4771
  %4773 = vrot.lane.b32.xlu0 %v4723, 109
  %v4774 = vpop.permute.xlu0 %4773
  %v4775 = vsel %vm333, %v4742, %v4744
  %v4776 = vsel %vm333, %v4744, %v4746
  %v4777 = vsel %vm333, %v4746, %v4748
  %v4778 = vsel %vm333, %v4748, %v4750
  %v4779 = vsel %vm333, %v4750, %v4752
  %v4780 = vsel %vm333, %v4752, %v4754
  %v4781 = vsel %vm333, %v4754, %v4756
  %v4782 = vsel %vm333, %v4756, %v4758
  %v4783 = vsel %vm333, %v4758, %v4760
  %v4784 = vsel %vm333, %v4760, %v4762
  %v4785 = vsel %vm333, %v4762, %v4764
  %v4786 = vsel %vm333, %v4764, %v4766
  %v4787 = vsel %vm333, %v4766, %v4768
  %v4788 = vsel %vm333, %v4768, %v4770
  %v4789 = vsel %vm333, %v4770, %v4772
  %v4790 = vsel %vm333, %v4772, %v4774
  %4807 = vst [vmem:[#allocation3 + $0x100] sm:$0xff] %v4775
  %4808 = vst [vmem:[#allocation3 + $0x108] sm:$0xff] %v4776
  %4809 = vst [vmem:[#allocation3 + $0x110] sm:$0xff] %v4777
  %4810 = vst [vmem:[#allocation3 + $0x118] sm:$0xff] %v4778
  %4811 = vst [vmem:[#allocation3 + $0x120] sm:$0xff] %v4779
  %4812 = vst [vmem:[#allocation3 + $0x128] sm:$0xff] %v4780
  %4813 = vst [vmem:[#allocation3 + $0x130] sm:$0xff] %v4781
  %4814 = vst [vmem:[#allocation3 + $0x138] sm:$0xff] %v4782
  %4815 = vst [vmem:[#allocation3 + $0x140] sm:$0xff] %v4783
  %4816 = vst [vmem:[#allocation3 + $0x148] sm:$0xff] %v4784
  %4817 = vst [vmem:[#allocation3 + $0x150] sm:$0xff] %v4785
  %4818 = vst [vmem:[#allocation3 + $0x158] sm:$0xff] %v4786
  %4819 = vst [vmem:[#allocation3 + $0x160] sm:$0xff] %v4787
  %4820 = vst [vmem:[#allocation3 + $0x168] sm:$0xff] %v4788
  %4821 = vst [vmem:[#allocation3 + $0x170] sm:$0xff] %v4789
  %4822 = vst [vmem:[#allocation3 + $0x178] sm:$0xff] %v4790
  %v4823 = vld [vmem:[#allocation4] sm:$0xff]
  %v4824 = vld [vmem:[#allocation4 + $0x8] sm:$0xff]
  %v4825 = vld [vmem:[#allocation4 + $0x10] sm:$0xff]
  %v4826 = vld [vmem:[#allocation4 + $0x18] sm:$0xff]
  %v4827 = vld [vmem:[#allocation4 + $0x20] sm:$0xff]
  %v4828 = vld [vmem:[#allocation4 + $0x28] sm:$0xff]
  %v4829 = vld [vmem:[#allocation4 + $0x30] sm:$0xff]
  %v4830 = vld [vmem:[#allocation4 + $0x38] sm:$0xff]
  %v4831 = vld [vmem:[#allocation4 + $0x40] sm:$0xff]
  %v4832 = vld [vmem:[#allocation4 + $0x48] sm:$0xff]
  %v4833 = vld [vmem:[#allocation4 + $0x50] sm:$0xff]
  %v4834 = vld [vmem:[#allocation4 + $0x58] sm:$0xff]
  %v4835 = vld [vmem:[#allocation4 + $0x60] sm:$0xff]
  %v4836 = vld [vmem:[#allocation4 + $0x68] sm:$0xff]
  %v4837 = vld [vmem:[#allocation4 + $0x70] sm:$0xff]
  %v4838 = vld [vmem:[#allocation4 + $0x78] sm:$0xff]
  %v4839 = vld [vmem:[#allocation4 + $0x80] sm:$0xff]
  %4857 = vrot.lane.b32.xlu0 %v4823, 101
  %v4858 = vpop.permute.xlu0 %4857
  %4859 = vrot.lane.b32.xlu0 %v4824, 101
  %v4860 = vpop.permute.xlu0 %4859
  %4861 = vrot.lane.b32.xlu0 %v4825, 101
  %v4862 = vpop.permute.xlu0 %4861
  %4863 = vrot.lane.b32.xlu0 %v4826, 101
  %v4864 = vpop.permute.xlu0 %4863
  %4865 = vrot.lane.b32.xlu0 %v4827, 101
  %v4866 = vpop.permute.xlu0 %4865
  %4867 = vrot.lane.b32.xlu0 %v4828, 101
  %v4868 = vpop.permute.xlu0 %4867
  %4869 = vrot.lane.b32.xlu0 %v4829, 101
  %v4870 = vpop.permute.xlu0 %4869
  %4871 = vrot.lane.b32.xlu0 %v4830, 101
  %v4872 = vpop.permute.xlu0 %4871
  %4873 = vrot.lane.b32.xlu0 %v4831, 101
  %v4874 = vpop.permute.xlu0 %4873
  %4875 = vrot.lane.b32.xlu0 %v4832, 101
  %v4876 = vpop.permute.xlu0 %4875
  %4877 = vrot.lane.b32.xlu0 %v4833, 101
  %v4878 = vpop.permute.xlu0 %4877
  %4879 = vrot.lane.b32.xlu0 %v4834, 101
  %v4880 = vpop.permute.xlu0 %4879
  %4881 = vrot.lane.b32.xlu0 %v4835, 101
  %v4882 = vpop.permute.xlu0 %4881
  %4883 = vrot.lane.b32.xlu0 %v4836, 101
  %v4884 = vpop.permute.xlu0 %4883
  %4885 = vrot.lane.b32.xlu0 %v4837, 101
  %v4886 = vpop.permute.xlu0 %4885
  %4887 = vrot.lane.b32.xlu0 %v4838, 101
  %v4888 = vpop.permute.xlu0 %4887
  %4889 = vrot.lane.b32.xlu0 %v4839, 101
  %v4890 = vpop.permute.xlu0 %4889
  %v4891 = vsel %vm450, %v4858, %v4860
  %v4892 = vsel %vm450, %v4860, %v4862
  %v4893 = vsel %vm450, %v4862, %v4864
  %v4894 = vsel %vm450, %v4864, %v4866
  %v4895 = vsel %vm450, %v4866, %v4868
  %v4896 = vsel %vm450, %v4868, %v4870
  %v4897 = vsel %vm450, %v4870, %v4872
  %v4898 = vsel %vm450, %v4872, %v4874
  %v4899 = vsel %vm450, %v4874, %v4876
  %v4900 = vsel %vm450, %v4876, %v4878
  %v4901 = vsel %vm450, %v4878, %v4880
  %v4902 = vsel %vm450, %v4880, %v4882
  %v4903 = vsel %vm450, %v4882, %v4884
  %v4904 = vsel %vm450, %v4884, %v4886
  %v4905 = vsel %vm450, %v4886, %v4888
  %v4906 = vsel %vm450, %v4888, %v4890
  %4923 = vst [vmem:[#allocation3 + $0x180] sm:$0xff] %v4891
  %4924 = vst [vmem:[#allocation3 + $0x188] sm:$0xff] %v4892
  %4925 = vst [vmem:[#allocation3 + $0x190] sm:$0xff] %v4893
  %4926 = vst [vmem:[#allocation3 + $0x198] sm:$0xff] %v4894
  %4927 = vst [vmem:[#allocation3 + $0x1a0] sm:$0xff] %v4895
  %4928 = vst [vmem:[#allocation3 + $0x1a8] sm:$0xff] %v4896
  %4929 = vst [vmem:[#allocation3 + $0x1b0] sm:$0xff] %v4897
  %4930 = vst [vmem:[#allocation3 + $0x1b8] sm:$0xff] %v4898
  %4931 = vst [vmem:[#allocation3 + $0x1c0] sm:$0xff] %v4899
  %4932 = vst [vmem:[#allocation3 + $0x1c8] sm:$0xff] %v4900
  %4933 = vst [vmem:[#allocation3 + $0x1d0] sm:$0xff] %v4901
  %4934 = vst [vmem:[#allocation3 + $0x1d8] sm:$0xff] %v4902
  %4935 = vst [vmem:[#allocation3 + $0x1e0] sm:$0xff] %v4903
  %4936 = vst [vmem:[#allocation3 + $0x1e8] sm:$0xff] %v4904
  %4937 = vst [vmem:[#allocation3 + $0x1f0] sm:$0xff] %v4905
  %4938 = vst [vmem:[#allocation3 + $0x1f8] sm:$0xff] %v4906
  %v4939 = vld [vmem:[#allocation4] sm:$0xff]
  %v4940 = vld [vmem:[#allocation4 + $0x8] sm:$0xff]
  %v4941 = vld [vmem:[#allocation4 + $0x10] sm:$0xff]
  %v4942 = vld [vmem:[#allocation4 + $0x18] sm:$0xff]
  %v4943 = vld [vmem:[#allocation4 + $0x20] sm:$0xff]
  %v4944 = vld [vmem:[#allocation4 + $0x28] sm:$0xff]
  %v4945 = vld [vmem:[#allocation4 + $0x30] sm:$0xff]
  %v4946 = vld [vmem:[#allocation4 + $0x38] sm:$0xff]
  %v4947 = vld [vmem:[#allocation4 + $0x40] sm:$0xff]
  %v4948 = vld [vmem:[#allocation4 + $0x48] sm:$0xff]
  %v4949 = vld [vmem:[#allocation4 + $0x50] sm:$0xff]
  %v4950 = vld [vmem:[#allocation4 + $0x58] sm:$0xff]
  %v4951 = vld [vmem:[#allocation4 + $0x60] sm:$0xff]
  %v4952 = vld [vmem:[#allocation4 + $0x68] sm:$0xff]
  %v4953 = vld [vmem:[#allocation4 + $0x70] sm:$0xff]
  %v4954 = vld [vmem:[#allocation4 + $0x78] sm:$0xff]
  %v4955 = vld [vmem:[#allocation4 + $0x80] sm:$0xff]
  %4973 = vrot.lane.b32.xlu0 %v4939, 100
  %v4974 = vpop.permute.xlu0 %4973
  %4975 = vrot.lane.b32.xlu0 %v4940, 100
  %v4976 = vpop.permute.xlu0 %4975
  %4977 = vrot.lane.b32.xlu0 %v4941, 100
  %v4978 = vpop.permute.xlu0 %4977
  %4979 = vrot.lane.b32.xlu0 %v4942, 100
  %v4980 = vpop.permute.xlu0 %4979
  %4981 = vrot.lane.b32.xlu0 %v4943, 100
  %v4982 = vpop.permute.xlu0 %4981
  %4983 = vrot.lane.b32.xlu0 %v4944, 100
  %v4984 = vpop.permute.xlu0 %4983
  %4985 = vrot.lane.b32.xlu0 %v4945, 100
  %v4986 = vpop.permute.xlu0 %4985
  %4987 = vrot.lane.b32.xlu0 %v4946, 100
  %v4988 = vpop.permute.xlu0 %4987
  %4989 = vrot.lane.b32.xlu0 %v4947, 100
  %v4990 = vpop.permute.xlu0 %4989
  %4991 = vrot.lane.b32.xlu0 %v4948, 100
  %v4992 = vpop.permute.xlu0 %4991
  %4993 = vrot.lane.b32.xlu0 %v4949, 100
  %v4994 = vpop.permute.xlu0 %4993
  %4995 = vrot.lane.b32.xlu0 %v4950, 100
  %v4996 = vpop.permute.xlu0 %4995
  %4997 = vrot.lane.b32.xlu0 %v4951, 100
  %v4998 = vpop.permute.xlu0 %4997
  %4999 = vrot.lane.b32.xlu0 %v4952, 100
  %v5000 = vpop.permute.xlu0 %4999
  %5001 = vrot.lane.b32.xlu0 %v4953, 100
  %v5002 = vpop.permute.xlu0 %5001
  %5003 = vrot.lane.b32.xlu0 %v4954, 100
  %v5004 = vpop.permute.xlu0 %5003
  %5005 = vrot.lane.b32.xlu0 %v4955, 100
  %v5006 = vpop.permute.xlu0 %5005
  %v5007 = vsel %vm567, %v4974, %v4976
  %v5008 = vsel %vm567, %v4976, %v4978
  %v5009 = vsel %vm567, %v4978, %v4980
  %v5010 = vsel %vm567, %v4980, %v4982
  %v5011 = vsel %vm567, %v4982, %v4984
  %v5012 = vsel %vm567, %v4984, %v4986
  %v5013 = vsel %vm567, %v4986, %v4988
  %v5014 = vsel %vm567, %v4988, %v4990
  %v5015 = vsel %vm567, %v4990, %v4992
  %v5016 = vsel %vm567, %v4992, %v4994
  %v5017 = vsel %vm567, %v4994, %v4996
  %v5018 = vsel %vm567, %v4996, %v4998
  %v5019 = vsel %vm567, %v4998, %v5000
  %v5020 = vsel %vm567, %v5000, %v5002
  %v5021 = vsel %vm567, %v5002, %v5004
  %v5022 = vsel %vm567, %v5004, %v5006
  %5039 = vst [vmem:[#allocation3 + $0x200] sm:$0xff] %v5007
  %5040 = vst [vmem:[#allocation3 + $0x208] sm:$0xff] %v5008
  %5041 = vst [vmem:[#allocation3 + $0x210] sm:$0xff] %v5009
  %5042 = vst [vmem:[#allocation3 + $0x218] sm:$0xff] %v5010
  %5043 = vst [vmem:[#allocation3 + $0x220] sm:$0xff] %v5011
  %5044 = vst [vmem:[#allocation3 + $0x228] sm:$0xff] %v5012
  %5045 = vst [vmem:[#allocation3 + $0x230] sm:$0xff] %v5013
  %5046 = vst [vmem:[#allocation3 + $0x238] sm:$0xff] %v5014
  %5047 = vst [vmem:[#allocation3 + $0x240] sm:$0xff] %v5015
  %5048 = vst [vmem:[#allocation3 + $0x248] sm:$0xff] %v5016
  %5049 = vst [vmem:[#allocation3 + $0x250] sm:$0xff] %v5017
  %5050 = vst [vmem:[#allocation3 + $0x258] sm:$0xff] %v5018
  %5051 = vst [vmem:[#allocation3 + $0x260] sm:$0xff] %v5019
  %5052 = vst [vmem:[#allocation3 + $0x268] sm:$0xff] %v5020
  %5053 = vst [vmem:[#allocation3 + $0x270] sm:$0xff] %v5021
  %5054 = vst [vmem:[#allocation3 + $0x278] sm:$0xff] %v5022
  %v5055 = vld [vmem:[#allocation4] sm:$0xff]
  %v5056 = vld [vmem:[#allocation4 + $0x8] sm:$0xff]
  %v5057 = vld [vmem:[#allocation4 + $0x10] sm:$0xff]
  %v5058 = vld [vmem:[#allocation4 + $0x18] sm:$0xff]
  %v5059 = vld [vmem:[#allocation4 + $0x20] sm:$0xff]
  %v5060 = vld [vmem:[#allocation4 + $0x28] sm:$0xff]
  %v5061 = vld [vmem:[#allocation4 + $0x30] sm:$0xff]
  %v5062 = vld [vmem:[#allocation4 + $0x38] sm:$0xff]
  %v5063 = vld [vmem:[#allocation4 + $0x40] sm:$0xff]
  %v5064 = vld [vmem:[#allocation4 + $0x48] sm:$0xff]
  %v5065 = vld [vmem:[#allocation4 + $0x50] sm:$0xff]
  %v5066 = vld [vmem:[#allocation4 + $0x58] sm:$0xff]
  %v5067 = vld [vmem:[#allocation4 + $0x60] sm:$0xff]
  %v5068 = vld [vmem:[#allocation4 + $0x68] sm:$0xff]
  %v5069 = vld [vmem:[#allocation4 + $0x70] sm:$0xff]
  %v5070 = vld [vmem:[#allocation4 + $0x78] sm:$0xff]
  %v5071 = vld [vmem:[#allocation4 + $0x80] sm:$0xff]
  %5089 = vrot.lane.b32.xlu0 %v5055, 99
  %v5090 = vpop.permute.xlu0 %5089
  %5091 = vrot.lane.b32.xlu0 %v5056, 99
  %v5092 = vpop.permute.xlu0 %5091
  %5093 = vrot.lane.b32.xlu0 %v5057, 99
  %v5094 = vpop.permute.xlu0 %5093
  %5095 = vrot.lane.b32.xlu0 %v5058, 99
  %v5096 = vpop.permute.xlu0 %5095
  %5097 = vrot.lane.b32.xlu0 %v5059, 99
  %v5098 = vpop.permute.xlu0 %5097
  %5099 = vrot.lane.b32.xlu0 %v5060, 99
  %v5100 = vpop.permute.xlu0 %5099
  %5101 = vrot.lane.b32.xlu0 %v5061, 99
  %v5102 = vpop.permute.xlu0 %5101
  %5103 = vrot.lane.b32.xlu0 %v5062, 99
  %v5104 = vpop.permute.xlu0 %5103
  %5105 = vrot.lane.b32.xlu0 %v5063, 99
  %v5106 = vpop.permute.xlu0 %5105
  %5107 = vrot.lane.b32.xlu0 %v5064, 99
  %v5108 = vpop.permute.xlu0 %5107
  %5109 = vrot.lane.b32.xlu0 %v5065, 99
  %v5110 = vpop.permute.xlu0 %5109
  %5111 = vrot.lane.b32.xlu0 %v5066, 99
  %v5112 = vpop.permute.xlu0 %5111
  %5113 = vrot.lane.b32.xlu0 %v5067, 99
  %v5114 = vpop.permute.xlu0 %5113
  %5115 = vrot.lane.b32.xlu0 %v5068, 99
  %v5116 = vpop.permute.xlu0 %5115
  %5117 = vrot.lane.b32.xlu0 %v5069, 99
  %v5118 = vpop.permute.xlu0 %5117
  %5119 = vrot.lane.b32.xlu0 %v5070, 99
  %v5120 = vpop.permute.xlu0 %5119
  %5121 = vrot.lane.b32.xlu0 %v5071, 99
  %v5122 = vpop.permute.xlu0 %5121
  %v5123 = vsel %vm684, %v5090, %v5092
  %v5124 = vsel %vm684, %v5092, %v5094
  %v5125 = vsel %vm684, %v5094, %v5096
  %v5126 = vsel %vm684, %v5096, %v5098
  %v5127 = vsel %vm684, %v5098, %v5100
  %v5128 = vsel %vm684, %v5100, %v5102
  %v5129 = vsel %vm684, %v5102, %v5104
  %v5130 = vsel %vm684, %v5104, %v5106
  %v5131 = vsel %vm684, %v5106, %v5108
  %v5132 = vsel %vm684, %v5108, %v5110
  %v5133 = vsel %vm684, %v5110, %v5112
  %v5134 = vsel %vm684, %v5112, %v5114
  %v5135 = vsel %vm684, %v5114, %v5116
  %v5136 = vsel %vm684, %v5116, %v5118
  %v5137 = vsel %vm684, %v5118, %v5120
  %v5138 = vsel %vm684, %v5120, %v5122
  %5155 = vst [vmem:[#allocation3 + $0x280] sm:$0xff] %v5123
  %5156 = vst [vmem:[#allocation3 + $0x288] sm:$0xff] %v5124
  %5157 = vst [vmem:[#allocation3 + $0x290] sm:$0xff] %v5125
  %5158 = vst [vmem:[#allocation3 + $0x298] sm:$0xff] %v5126
  %5159 = vst [vmem:[#allocation3 + $0x2a0] sm:$0xff] %v5127
  %5160 = vst [vmem:[#allocation3 + $0x2a8] sm:$0xff] %v5128
  %5161 = vst [vmem:[#allocation3 + $0x2b0] sm:$0xff] %v5129
  %5162 = vst [vmem:[#allocation3 + $0x2b8] sm:$0xff] %v5130
  %5163 = vst [vmem:[#allocation3 + $0x2c0] sm:$0xff] %v5131
  %5164 = vst [vmem:[#allocation3 + $0x2c8] sm:$0xff] %v5132
  %5165 = vst [vmem:[#allocation3 + $0x2d0] sm:$0xff] %v5133
  %5166 = vst [vmem:[#allocation3 + $0x2d8] sm:$0xff] %v5134
  %5167 = vst [vmem:[#allocation3 + $0x2e0] sm:$0xff] %v5135
  %5168 = vst [vmem:[#allocation3 + $0x2e8] sm:$0xff] %v5136
  %5169 = vst [vmem:[#allocation3 + $0x2f0] sm:$0xff] %v5137
  %5170 = vst [vmem:[#allocation3 + $0x2f8] sm:$0xff] %v5138
  %v5171 = vld [vmem:[#allocation4] sm:$0xff]
  %v5172 = vld [vmem:[#allocation4 + $0x8] sm:$0xff]
  %v5173 = vld [vmem:[#allocation4 + $0x10] sm:$0xff]
  %v5174 = vld [vmem:[#allocation4 + $0x18] sm:$0xff]
  %v5175 = vld [vmem:[#allocation4 + $0x20] sm:$0xff]
  %v5176 = vld [vmem:[#allocation4 + $0x28] sm:$0xff]
  %v5177 = vld [vmem:[#allocation4 + $0x30] sm:$0xff]
  %v5178 = vld [vmem:[#allocation4 + $0x38] sm:$0xff]
  %v5179 = vld [vmem:[#allocation4 + $0x40] sm:$0xff]
  %v5180 = vld [vmem:[#allocation4 + $0x48] sm:$0xff]
  %v5181 = vld [vmem:[#allocation4 + $0x50] sm:$0xff]
  %v5182 = vld [vmem:[#allocation4 + $0x58] sm:$0xff]
  %v5183 = vld [vmem:[#allocation4 + $0x60] sm:$0xff]
  %v5184 = vld [vmem:[#allocation4 + $0x68] sm:$0xff]
  %v5185 = vld [vmem:[#allocation4 + $0x70] sm:$0xff]
  %v5186 = vld [vmem:[#allocation4 + $0x78] sm:$0xff]
  %v5187 = vld [vmem:[#allocation4 + $0x80] sm:$0xff]
  %5205 = vrot.lane.b32.xlu0 %v5171, 91
  %v5206 = vpop.permute.xlu0 %5205
  %5207 = vrot.lane.b32.xlu0 %v5172, 91
  %v5208 = vpop.permute.xlu0 %5207
  %5209 = vrot.lane.b32.xlu0 %v5173, 91
  %v5210 = vpop.permute.xlu0 %5209
  %5211 = vrot.lane.b32.xlu0 %v5174, 91
  %v5212 = vpop.permute.xlu0 %5211
  %5213 = vrot.lane.b32.xlu0 %v5175, 91
  %v5214 = vpop.permute.xlu0 %5213
  %5215 = vrot.lane.b32.xlu0 %v5176, 91
  %v5216 = vpop.permute.xlu0 %5215
  %5217 = vrot.lane.b32.xlu0 %v5177, 91
  %v5218 = vpop.permute.xlu0 %5217
  %5219 = vrot.lane.b32.xlu0 %v5178, 91
  %v5220 = vpop.permute.xlu0 %5219
  %5221 = vrot.lane.b32.xlu0 %v5179, 91
  %v5222 = vpop.permute.xlu0 %5221
  %5223 = vrot.lane.b32.xlu0 %v5180, 91
  %v5224 = vpop.permute.xlu0 %5223
  %5225 = vrot.lane.b32.xlu0 %v5181, 91
  %v5226 = vpop.permute.xlu0 %5225
  %5227 = vrot.lane.b32.xlu0 %v5182, 91
  %v5228 = vpop.permute.xlu0 %5227
  %5229 = vrot.lane.b32.xlu0 %v5183, 91
  %v5230 = vpop.permute.xlu0 %5229
  %5231 = vrot.lane.b32.xlu0 %v5184, 91
  %v5232 = vpop.permute.xlu0 %5231
  %5233 = vrot.lane.b32.xlu0 %v5185, 91
  %v5234 = vpop.permute.xlu0 %5233
  %5235 = vrot.lane.b32.xlu0 %v5186, 91
  %v5236 = vpop.permute.xlu0 %5235
  %5237 = vrot.lane.b32.xlu0 %v5187, 91
  %v5238 = vpop.permute.xlu0 %5237
  %v5239 = vsel %vm801, %v5206, %v5208
  %v5240 = vsel %vm801, %v5208, %v5210
  %v5241 = vsel %vm801, %v5210, %v5212
  %v5242 = vsel %vm801, %v5212, %v5214
  %v5243 = vsel %vm801, %v5214, %v5216
  %v5244 = vsel %vm801, %v5216, %v5218
  %v5245 = vsel %vm801, %v5218, %v5220
  %v5246 = vsel %vm801, %v5220, %v5222
  %v5247 = vsel %vm801, %v5222, %v5224
  %v5248 = vsel %vm801, %v5224, %v5226
  %v5249 = vsel %vm801, %v5226, %v5228
  %v5250 = vsel %vm801, %v5228, %v5230
  %v5251 = vsel %vm801, %v5230, %v5232
  %v5252 = vsel %vm801, %v5232, %v5234
  %v5253 = vsel %vm801, %v5234, %v5236
  %v5254 = vsel %vm801, %v5236, %v5238
  %5271 = vst [vmem:[#allocation3 + $0x300] sm:$0xff] %v5239
  %5272 = vst [vmem:[#allocation3 + $0x308] sm:$0xff] %v5240
  %5273 = vst [vmem:[#allocation3 + $0x310] sm:$0xff] %v5241
  %5274 = vst [vmem:[#allocation3 + $0x318] sm:$0xff] %v5242
  %5275 = vst [vmem:[#allocation3 + $0x320] sm:$0xff] %v5243
  %5276 = vst [vmem:[#allocation3 + $0x328] sm:$0xff] %v5244
  %5277 = vst [vmem:[#allocation3 + $0x330] sm:$0xff] %v5245
  %5278 = vst [vmem:[#allocation3 + $0x338] sm:$0xff] %v5246
  %5279 = vst [vmem:[#allocation3 + $0x340] sm:$0xff] %v5247
  %5280 = vst [vmem:[#allocation3 + $0x348] sm:$0xff] %v5248
  %5281 = vst [vmem:[#allocation3 + $0x350] sm:$0xff] %v5249
  %5282 = vst [vmem:[#allocation3 + $0x358] sm:$0xff] %v5250
  %5283 = vst [vmem:[#allocation3 + $0x360] sm:$0xff] %v5251
  %5284 = vst [vmem:[#allocation3 + $0x368] sm:$0xff] %v5252
  %5285 = vst [vmem:[#allocation3 + $0x370] sm:$0xff] %v5253
  %5286 = vst [vmem:[#allocation3 + $0x378] sm:$0xff] %v5254
  %v5287 = vld [vmem:[#allocation4] sm:$0xff]
  %v5288 = vld [vmem:[#allocation4 + $0x8] sm:$0xff]
  %v5289 = vld [vmem:[#allocation4 + $0x10] sm:$0xff]
  %v5290 = vld [vmem:[#allocation4 + $0x18] sm:$0xff]
  %v5291 = vld [vmem:[#allocation4 + $0x20] sm:$0xff]
  %v5292 = vld [vmem:[#allocation4 + $0x28] sm:$0xff]
  %v5293 = vld [vmem:[#allocation4 + $0x30] sm:$0xff]
  %v5294 = vld [vmem:[#allocation4 + $0x38] sm:$0xff]
  %v5295 = vld [vmem:[#allocation4 + $0x40] sm:$0xff]
  %v5296 = vld [vmem:[#allocation4 + $0x48] sm:$0xff]
  %v5297 = vld [vmem:[#allocation4 + $0x50] sm:$0xff]
  %v5298 = vld [vmem:[#allocation4 + $0x58] sm:$0xff]
  %v5299 = vld [vmem:[#allocation4 + $0x60] sm:$0xff]
  %v5300 = vld [vmem:[#allocation4 + $0x68] sm:$0xff]
  %v5301 = vld [vmem:[#allocation4 + $0x70] sm:$0xff]
  %v5302 = vld [vmem:[#allocation4 + $0x78] sm:$0xff]
  %v5303 = vld [vmem:[#allocation4 + $0x80] sm:$0xff]
  %5321 = vrot.lane.b32.xlu0 %v5287, 90
  %v5322 = vpop.permute.xlu0 %5321
  %5323 = vrot.lane.b32.xlu0 %v5288, 90
  %v5324 = vpop.permute.xlu0 %5323
  %5325 = vrot.lane.b32.xlu0 %v5289, 90
  %v5326 = vpop.permute.xlu0 %5325
  %5327 = vrot.lane.b32.xlu0 %v5290, 90
  %v5328 = vpop.permute.xlu0 %5327
  %5329 = vrot.lane.b32.xlu0 %v5291, 90
  %v5330 = vpop.permute.xlu0 %5329
  %5331 = vrot.lane.b32.xlu0 %v5292, 90
  %v5332 = vpop.permute.xlu0 %5331
  %5333 = vrot.lane.b32.xlu0 %v5293, 90
  %v5334 = vpop.permute.xlu0 %5333
  %5335 = vrot.lane.b32.xlu0 %v5294, 90
  %v5336 = vpop.permute.xlu0 %5335
  %5337 = vrot.lane.b32.xlu0 %v5295, 90
  %v5338 = vpop.permute.xlu0 %5337
  %5339 = vrot.lane.b32.xlu0 %v5296, 90
  %v5340 = vpop.permute.xlu0 %5339
  %5341 = vrot.lane.b32.xlu0 %v5297, 90
  %v5342 = vpop.permute.xlu0 %5341
  %5343 = vrot.lane.b32.xlu0 %v5298, 90
  %v5344 = vpop.permute.xlu0 %5343
  %5345 = vrot.lane.b32.xlu0 %v5299, 90
  %v5346 = vpop.permute.xlu0 %5345
  %5347 = vrot.lane.b32.xlu0 %v5300, 90
  %v5348 = vpop.permute.xlu0 %5347
  %5349 = vrot.lane.b32.xlu0 %v5301, 90
  %v5350 = vpop.permute.xlu0 %5349
  %5351 = vrot.lane.b32.xlu0 %v5302, 90
  %v5352 = vpop.permute.xlu0 %5351
  %5353 = vrot.lane.b32.xlu0 %v5303, 90
  %v5354 = vpop.permute.xlu0 %5353
  %v5355 = vsel %vm918, %v5322, %v5324
  %v5356 = vsel %vm918, %v5324, %v5326
  %v5357 = vsel %vm918, %v5326, %v5328
  %v5358 = vsel %vm918, %v5328, %v5330
  %v5359 = vsel %vm918, %v5330, %v5332
  %v5360 = vsel %vm918, %v5332, %v5334
  %v5361 = vsel %vm918, %v5334, %v5336
  %v5362 = vsel %vm918, %v5336, %v5338
  %v5363 = vsel %vm918, %v5338, %v5340
  %v5364 = vsel %vm918, %v5340, %v5342
  %v5365 = vsel %vm918, %v5342, %v5344
  %v5366 = vsel %vm918, %v5344, %v5346
  %v5367 = vsel %vm918, %v5346, %v5348
  %v5368 = vsel %vm918, %v5348, %v5350
  %v5369 = vsel %vm918, %v5350, %v5352
  %v5370 = vsel %vm918, %v5352, %v5354
  %5387 = vst [vmem:[#allocation3 + $0x380] sm:$0xff] %v5355
  %5388 = vst [vmem:[#allocation3 + $0x388] sm:$0xff] %v5356
  %5389 = vst [vmem:[#allocation3 + $0x390] sm:$0xff] %v5357
  %5390 = vst [vmem:[#allocation3 + $0x398] sm:$0xff] %v5358
  %5391 = vst [vmem:[#allocation3 + $0x3a0] sm:$0xff] %v5359
  %5392 = vst [vmem:[#allocation3 + $0x3a8] sm:$0xff] %v5360
  %5393 = vst [vmem:[#allocation3 + $0x3b0] sm:$0xff] %v5361
  %5394 = vst [vmem:[#allocation3 + $0x3b8] sm:$0xff] %v5362
  %5395 = vst [vmem:[#allocation3 + $0x3c0] sm:$0xff] %v5363
  %5396 = vst [vmem:[#allocation3 + $0x3c8] sm:$0xff] %v5364
  %5397 = vst [vmem:[#allocation3 + $0x3d0] sm:$0xff] %v5365
  %5398 = vst [vmem:[#allocation3 + $0x3d8] sm:$0xff] %v5366
  %5399 = vst [vmem:[#allocation3 + $0x3e0] sm:$0xff] %v5367
  %5400 = vst [vmem:[#allocation3 + $0x3e8] sm:$0xff] %v5368
  %5401 = vst [vmem:[#allocation3 + $0x3f0] sm:$0xff] %v5369
  %5402 = vst [vmem:[#allocation3 + $0x3f8] sm:$0xff] %v5370
  %v5403 = vld [vmem:[#allocation4] sm:$0xff]
  %v5404 = vld [vmem:[#allocation4 + $0x8] sm:$0xff]
  %v5405 = vld [vmem:[#allocation4 + $0x10] sm:$0xff]
  %v5406 = vld [vmem:[#allocation4 + $0x18] sm:$0xff]
  %v5407 = vld [vmem:[#allocation4 + $0x20] sm:$0xff]
  %v5408 = vld [vmem:[#allocation4 + $0x28] sm:$0xff]
  %v5409 = vld [vmem:[#allocation4 + $0x30] sm:$0xff]
  %v5410 = vld [vmem:[#allocation4 + $0x38] sm:$0xff]
  %v5411 = vld [vmem:[#allocation4 + $0x40] sm:$0xff]
  %v5412 = vld [vmem:[#allocation4 + $0x48] sm:$0xff]
  %v5413 = vld [vmem:[#allocation4 + $0x50] sm:$0xff]
  %v5414 = vld [vmem:[#allocation4 + $0x58] sm:$0xff]
  %v5415 = vld [vmem:[#allocation4 + $0x60] sm:$0xff]
  %v5416 = vld [vmem:[#allocation4 + $0x68] sm:$0xff]
  %v5417 = vld [vmem:[#allocation4 + $0x70] sm:$0xff]
  %v5418 = vld [vmem:[#allocation4 + $0x78] sm:$0xff]
  %v5419 = vld [vmem:[#allocation4 + $0x80] sm:$0xff]
  %5437 = vrot.lane.b32.xlu0 %v5403, 89
  %v5438 = vpop.permute.xlu0 %5437
  %5439 = vrot.lane.b32.xlu0 %v5404, 89
  %v5440 = vpop.permute.xlu0 %5439
  %5441 = vrot.lane.b32.xlu0 %v5405, 89
  %v5442 = vpop.permute.xlu0 %5441
  %5443 = vrot.lane.b32.xlu0 %v5406, 89
  %v5444 = vpop.permute.xlu0 %5443
  %5445 = vrot.lane.b32.xlu0 %v5407, 89
  %v5446 = vpop.permute.xlu0 %5445
  %5447 = vrot.lane.b32.xlu0 %v5408, 89
  %v5448 = vpop.permute.xlu0 %5447
  %5449 = vrot.lane.b32.xlu0 %v5409, 89
  %v5450 = vpop.permute.xlu0 %5449
  %5451 = vrot.lane.b32.xlu0 %v5410, 89
  %v5452 = vpop.permute.xlu0 %5451
  %5453 = vrot.lane.b32.xlu0 %v5411, 89
  %v5454 = vpop.permute.xlu0 %5453
  %5455 = vrot.lane.b32.xlu0 %v5412, 89
  %v5456 = vpop.permute.xlu0 %5455
  %5457 = vrot.lane.b32.xlu0 %v5413, 89
  %v5458 = vpop.permute.xlu0 %5457
  %5459 = vrot.lane.b32.xlu0 %v5414, 89
  %v5460 = vpop.permute.xlu0 %5459
  %5461 = vrot.lane.b32.xlu0 %v5415, 89
  %v5462 = vpop.permute.xlu0 %5461
  %5463 = vrot.lane.b32.xlu0 %v5416, 89
  %v5464 = vpop.permute.xlu0 %5463
  %5465 = vrot.lane.b32.xlu0 %v5417, 89
  %v5466 = vpop.permute.xlu0 %5465
  %5467 = vrot.lane.b32.xlu0 %v5418, 89
  %v5468 = vpop.permute.xlu0 %5467
  %5469 = vrot.lane.b32.xlu0 %v5419, 89
  %v5470 = vpop.permute.xlu0 %5469
  %v5471 = vsel %vm1035, %v5438, %v5440
  %v5472 = vsel %vm1035, %v5440, %v5442
  %v5473 = vsel %vm1035, %v5442, %v5444
  %v5474 = vsel %vm1035, %v5444, %v5446
  %v5475 = vsel %vm1035, %v5446, %v5448
  %v5476 = vsel %vm1035, %v5448, %v5450
  %v5477 = vsel %vm1035, %v5450, %v5452
  %v5478 = vsel %vm1035, %v5452, %v5454
  %v5479 = vsel %vm1035, %v5454, %v5456
  %v5480 = vsel %vm1035, %v5456, %v5458
  %v5481 = vsel %vm1035, %v5458, %v5460
  %v5482 = vsel %vm1035, %v5460, %v5462
  %v5483 = vsel %vm1035, %v5462, %v5464
  %v5484 = vsel %vm1035, %v5464, %v5466
  %v5485 = vsel %vm1035, %v5466, %v5468
  %v5486 = vsel %vm1035, %v5468, %v5470
  %5503 = vst [vmem:[#allocation3 + $0x400] sm:$0xff] %v5471
  %5504 = vst [vmem:[#allocation3 + $0x408] sm:$0xff] %v5472
  %5505 = vst [vmem:[#allocation3 + $0x410] sm:$0xff] %v5473
  %5506 = vst [vmem:[#allocation3 + $0x418] sm:$0xff] %v5474
  %5507 = vst [vmem:[#allocation3 + $0x420] sm:$0xff] %v5475
  %5508 = vst [vmem:[#allocation3 + $0x428] sm:$0xff] %v5476
  %5509 = vst [vmem:[#allocation3 + $0x430] sm:$0xff] %v5477
  %5510 = vst [vmem:[#allocation3 + $0x438] sm:$0xff] %v5478
  %5511 = vst [vmem:[#allocation3 + $0x440] sm:$0xff] %v5479
  %5512 = vst [vmem:[#allocation3 + $0x448] sm:$0xff] %v5480
  %5513 = vst [vmem:[#allocation3 + $0x450] sm:$0xff] %v5481
  %5514 = vst [vmem:[#allocation3 + $0x458] sm:$0xff] %v5482
  %5515 = vst [vmem:[#allocation3 + $0x460] sm:$0xff] %v5483
  %5516 = vst [vmem:[#allocation3 + $0x468] sm:$0xff] %v5484
  %5517 = vst [vmem:[#allocation3 + $0x470] sm:$0xff] %v5485
  %5518 = vst [vmem:[#allocation3 + $0x478] sm:$0xff] %v5486
  %v5519 = vld [vmem:[#allocation4] sm:$0xff]
  %v5520 = vld [vmem:[#allocation4 + $0x8] sm:$0xff]
  %v5521 = vld [vmem:[#allocation4 + $0x10] sm:$0xff]
  %v5522 = vld [vmem:[#allocation4 + $0x18] sm:$0xff]
  %v5523 = vld [vmem:[#allocation4 + $0x20] sm:$0xff]
  %v5524 = vld [vmem:[#allocation4 + $0x28] sm:$0xff]
  %v5525 = vld [vmem:[#allocation4 + $0x30] sm:$0xff]
  %v5526 = vld [vmem:[#allocation4 + $0x38] sm:$0xff]
  %v5527 = vld [vmem:[#allocation4 + $0x40] sm:$0xff]
  %v5528 = vld [vmem:[#allocation4 + $0x48] sm:$0xff]
  %v5529 = vld [vmem:[#allocation4 + $0x50] sm:$0xff]
  %v5530 = vld [vmem:[#allocation4 + $0x58] sm:$0xff]
  %v5531 = vld [vmem:[#allocation4 + $0x60] sm:$0xff]
  %v5532 = vld [vmem:[#allocation4 + $0x68] sm:$0xff]
  %v5533 = vld [vmem:[#allocation4 + $0x70] sm:$0xff]
  %v5534 = vld [vmem:[#allocation4 + $0x78] sm:$0xff]
  %v5535 = vld [vmem:[#allocation4 + $0x80] sm:$0xff]
  %5553 = vrot.lane.b32.xlu0 %v5519, 11
  %v5554 = vpop.permute.xlu0 %5553
  %5555 = vrot.lane.b32.xlu0 %v5520, 11
  %v5556 = vpop.permute.xlu0 %5555
  %5557 = vrot.lane.b32.xlu0 %v5521, 11
  %v5558 = vpop.permute.xlu0 %5557
  %5559 = vrot.lane.b32.xlu0 %v5522, 11
  %v5560 = vpop.permute.xlu0 %5559
  %5561 = vrot.lane.b32.xlu0 %v5523, 11
  %v5562 = vpop.permute.xlu0 %5561
  %5563 = vrot.lane.b32.xlu0 %v5524, 11
  %v5564 = vpop.permute.xlu0 %5563
  %5565 = vrot.lane.b32.xlu0 %v5525, 11
  %v5566 = vpop.permute.xlu0 %5565
  %5567 = vrot.lane.b32.xlu0 %v5526, 11
  %v5568 = vpop.permute.xlu0 %5567
  %5569 = vrot.lane.b32.xlu0 %v5527, 11
  %v5570 = vpop.permute.xlu0 %5569
  %5571 = vrot.lane.b32.xlu0 %v5528, 11
  %v5572 = vpop.permute.xlu0 %5571
  %5573 = vrot.lane.b32.xlu0 %v5529, 11
  %v5574 = vpop.permute.xlu0 %5573
  %5575 = vrot.lane.b32.xlu0 %v5530, 11
  %v5576 = vpop.permute.xlu0 %5575
  %5577 = vrot.lane.b32.xlu0 %v5531, 11
  %v5578 = vpop.permute.xlu0 %5577
  %5579 = vrot.lane.b32.xlu0 %v5532, 11
  %v5580 = vpop.permute.xlu0 %5579
  %5581 = vrot.lane.b32.xlu0 %v5533, 11
  %v5582 = vpop.permute.xlu0 %5581
  %5583 = vrot.lane.b32.xlu0 %v5534, 11
  %v5584 = vpop.permute.xlu0 %5583
  %5585 = vrot.lane.b32.xlu0 %v5535, 11
  %v5586 = vpop.permute.xlu0 %5585
  %v5587 = vsel %vm1152, %v5554, %v5556
  %v5588 = vsel %vm1152, %v5556, %v5558
  %v5589 = vsel %vm1152, %v5558, %v5560
  %v5590 = vsel %vm1152, %v5560, %v5562
  %v5591 = vsel %vm1152, %v5562, %v5564
  %v5592 = vsel %vm1152, %v5564, %v5566
  %v5593 = vsel %vm1152, %v5566, %v5568
  %v5594 = vsel %vm1152, %v5568, %v5570
  %v5595 = vsel %vm1152, %v5570, %v5572
  %v5596 = vsel %vm1152, %v5572, %v5574
  %v5597 = vsel %vm1152, %v5574, %v5576
  %v5598 = vsel %vm1152, %v5576, %v5578
  %v5599 = vsel %vm1152, %v5578, %v5580
  %v5600 = vsel %vm1152, %v5580, %v5582
  %v5601 = vsel %vm1152, %v5582, %v5584
  %v5602 = vsel %vm1152, %v5584, %v5586
  %5619 = vst [vmem:[#allocation3 + $0x480] sm:$0xff] %v5587
  %5620 = vst [vmem:[#allocation3 + $0x488] sm:$0xff] %v5588
  %5621 = vst [vmem:[#allocation3 + $0x490] sm:$0xff] %v5589
  %5622 = vst [vmem:[#allocation3 + $0x498] sm:$0xff] %v5590
  %5623 = vst [vmem:[#allocation3 + $0x4a0] sm:$0xff] %v5591
  %5624 = vst [vmem:[#allocation3 + $0x4a8] sm:$0xff] %v5592
  %5625 = vst [vmem:[#allocation3 + $0x4b0] sm:$0xff] %v5593
  %5626 = vst [vmem:[#allocation3 + $0x4b8] sm:$0xff] %v5594
  %5627 = vst [vmem:[#allocation3 + $0x4c0] sm:$0xff] %v5595
  %5628 = vst [vmem:[#allocation3 + $0x4c8] sm:$0xff] %v5596
  %5629 = vst [vmem:[#allocation3 + $0x4d0] sm:$0xff] %v5597
  %5630 = vst [vmem:[#allocation3 + $0x4d8] sm:$0xff] %v5598
  %5631 = vst [vmem:[#allocation3 + $0x4e0] sm:$0xff] %v5599
  %5632 = vst [vmem:[#allocation3 + $0x4e8] sm:$0xff] %v5600
  %5633 = vst [vmem:[#allocation3 + $0x4f0] sm:$0xff] %v5601
  %5634 = vst [vmem:[#allocation3 + $0x4f8] sm:$0xff] %v5602
  %v5635 = vld [vmem:[#allocation4] sm:$0xff]
  %v5636 = vld [vmem:[#allocation4 + $0x8] sm:$0xff]
  %v5637 = vld [vmem:[#allocation4 + $0x10] sm:$0xff]
  %v5638 = vld [vmem:[#allocation4 + $0x18] sm:$0xff]
  %v5639 = vld [vmem:[#allocation4 + $0x20] sm:$0xff]
  %v5640 = vld [vmem:[#allocation4 + $0x28] sm:$0xff]
  %v5641 = vld [vmem:[#allocation4 + $0x30] sm:$0xff]
  %v5642 = vld [vmem:[#allocation4 + $0x38] sm:$0xff]
  %v5643 = vld [vmem:[#allocation4 + $0x40] sm:$0xff]
  %v5644 = vld [vmem:[#allocation4 + $0x48] sm:$0xff]
  %v5645 = vld [vmem:[#allocation4 + $0x50] sm:$0xff]
  %v5646 = vld [vmem:[#allocation4 + $0x58] sm:$0xff]
  %v5647 = vld [vmem:[#allocation4 + $0x60] sm:$0xff]
  %v5648 = vld [vmem:[#allocation4 + $0x68] sm:$0xff]
  %v5649 = vld [vmem:[#allocation4 + $0x70] sm:$0xff]
  %v5650 = vld [vmem:[#allocation4 + $0x78] sm:$0xff]
  %v5651 = vld [vmem:[#allocation4 + $0x80] sm:$0xff]
  %5669 = vrot.lane.b32.xlu0 %v5635, 10
  %v5670 = vpop.permute.xlu0 %5669
  %5671 = vrot.lane.b32.xlu0 %v5636, 10
  %v5672 = vpop.permute.xlu0 %5671
  %5673 = vrot.lane.b32.xlu0 %v5637, 10
  %v5674 = vpop.permute.xlu0 %5673
  %5675 = vrot.lane.b32.xlu0 %v5638, 10
  %v5676 = vpop.permute.xlu0 %5675
  %5677 = vrot.lane.b32.xlu0 %v5639, 10
  %v5678 = vpop.permute.xlu0 %5677
  %5679 = vrot.lane.b32.xlu0 %v5640, 10
  %v5680 = vpop.permute.xlu0 %5679
  %5681 = vrot.lane.b32.xlu0 %v5641, 10
  %v5682 = vpop.permute.xlu0 %5681
  %5683 = vrot.lane.b32.xlu0 %v5642, 10
  %v5684 = vpop.permute.xlu0 %5683
  %5685 = vrot.lane.b32.xlu0 %v5643, 10
  %v5686 = vpop.permute.xlu0 %5685
  %5687 = vrot.lane.b32.xlu0 %v5644, 10
  %v5688 = vpop.permute.xlu0 %5687
  %5689 = vrot.lane.b32.xlu0 %v5645, 10
  %v5690 = vpop.permute.xlu0 %5689
  %5691 = vrot.lane.b32.xlu0 %v5646, 10
  %v5692 = vpop.permute.xlu0 %5691
  %5693 = vrot.lane.b32.xlu0 %v5647, 10
  %v5694 = vpop.permute.xlu0 %5693
  %5695 = vrot.lane.b32.xlu0 %v5648, 10
  %v5696 = vpop.permute.xlu0 %5695
  %5697 = vrot.lane.b32.xlu0 %v5649, 10
  %v5698 = vpop.permute.xlu0 %5697
  %5699 = vrot.lane.b32.xlu0 %v5650, 10
  %v5700 = vpop.permute.xlu0 %5699
  %5701 = vrot.lane.b32.xlu0 %v5651, 10
  %v5702 = vpop.permute.xlu0 %5701
  %v5703 = vsel %vm1269, %v5670, %v5672
  %v5704 = vsel %vm1269, %v5672, %v5674
  %v5705 = vsel %vm1269, %v5674, %v5676
  %v5706 = vsel %vm1269, %v5676, %v5678
  %v5707 = vsel %vm1269, %v5678, %v5680
  %v5708 = vsel %vm1269, %v5680, %v5682
  %v5709 = vsel %vm1269, %v5682, %v5684
  %v5710 = vsel %vm1269, %v5684, %v5686
  %v5711 = vsel %vm1269, %v5686, %v5688
  %v5712 = vsel %vm1269, %v5688, %v5690
  %v5713 = vsel %vm1269, %v5690, %v5692
  %v5714 = vsel %vm1269, %v5692, %v5694
  %v5715 = vsel %vm1269, %v5694, %v5696
  %v5716 = vsel %vm1269, %v5696, %v5698
  %v5717 = vsel %vm1269, %v5698, %v5700
  %v5718 = vsel %vm1269, %v5700, %v5702
  %5735 = vst [vmem:[#allocation3 + $0x500] sm:$0xff] %v5703
  %5736 = vst [vmem:[#allocation3 + $0x508] sm:$0xff] %v5704
  %5737 = vst [vmem:[#allocation3 + $0x510] sm:$0xff] %v5705
  %5738 = vst [vmem:[#allocation3 + $0x518] sm:$0xff] %v5706
  %5739 = vst [vmem:[#allocation3 + $0x520] sm:$0xff] %v5707
  %5740 = vst [vmem:[#allocation3 + $0x528] sm:$0xff] %v5708
  %5741 = vst [vmem:[#allocation3 + $0x530] sm:$0xff] %v5709
  %5742 = vst [vmem:[#allocation3 + $0x538] sm:$0xff] %v5710
  %5743 = vst [vmem:[#allocation3 + $0x540] sm:$0xff] %v5711
  %5744 = vst [vmem:[#allocation3 + $0x548] sm:$0xff] %v5712
  %5745 = vst [vmem:[#allocation3 + $0x550] sm:$0xff] %v5713
  %5746 = vst [vmem:[#allocation3 + $0x558] sm:$0xff] %v5714
  %5747 = vst [vmem:[#allocation3 + $0x560] sm:$0xff] %v5715
  %5748 = vst [vmem:[#allocation3 + $0x568] sm:$0xff] %v5716
  %5749 = vst [vmem:[#allocation3 + $0x570] sm:$0xff] %v5717
  %5750 = vst [vmem:[#allocation3 + $0x578] sm:$0xff] %v5718
  %v5751 = vld [vmem:[#allocation4] sm:$0xff]
  %v5752 = vld [vmem:[#allocation4 + $0x8] sm:$0xff]
  %v5753 = vld [vmem:[#allocation4 + $0x10] sm:$0xff]
  %v5754 = vld [vmem:[#allocation4 + $0x18] sm:$0xff]
  %v5755 = vld [vmem:[#allocation4 + $0x20] sm:$0xff]
  %v5756 = vld [vmem:[#allocation4 + $0x28] sm:$0xff]
  %v5757 = vld [vmem:[#allocation4 + $0x30] sm:$0xff]
  %v5758 = vld [vmem:[#allocation4 + $0x38] sm:$0xff]
  %v5759 = vld [vmem:[#allocation4 + $0x40] sm:$0xff]
  %v5760 = vld [vmem:[#allocation4 + $0x48] sm:$0xff]
  %v5761 = vld [vmem:[#allocation4 + $0x50] sm:$0xff]
  %v5762 = vld [vmem:[#allocation4 + $0x58] sm:$0xff]
  %v5763 = vld [vmem:[#allocation4 + $0x60] sm:$0xff]
  %v5764 = vld [vmem:[#allocation4 + $0x68] sm:$0xff]
  %v5765 = vld [vmem:[#allocation4 + $0x70] sm:$0xff]
  %v5766 = vld [vmem:[#allocation4 + $0x78] sm:$0xff]
  %v5767 = vld [vmem:[#allocation4 + $0x80] sm:$0xff]
  %5785 = vrot.lane.b32.xlu0 %v5751, 9
  %v5786 = vpop.permute.xlu0 %5785
  %5787 = vrot.lane.b32.xlu0 %v5752, 9
  %v5788 = vpop.permute.xlu0 %5787
  %5789 = vrot.lane.b32.xlu0 %v5753, 9
  %v5790 = vpop.permute.xlu0 %5789
  %5791 = vrot.lane.b32.xlu0 %v5754, 9
  %v5792 = vpop.permute.xlu0 %5791
  %5793 = vrot.lane.b32.xlu0 %v5755, 9
  %v5794 = vpop.permute.xlu0 %5793
  %5795 = vrot.lane.b32.xlu0 %v5756, 9
  %v5796 = vpop.permute.xlu0 %5795
  %5797 = vrot.lane.b32.xlu0 %v5757, 9
  %v5798 = vpop.permute.xlu0 %5797
  %5799 = vrot.lane.b32.xlu0 %v5758, 9
  %v5800 = vpop.permute.xlu0 %5799
  %5801 = vrot.lane.b32.xlu0 %v5759, 9
  %v5802 = vpop.permute.xlu0 %5801
  %5803 = vrot.lane.b32.xlu0 %v5760, 9
  %v5804 = vpop.permute.xlu0 %5803
  %5805 = vrot.lane.b32.xlu0 %v5761, 9
  %v5806 = vpop.permute.xlu0 %5805
  %5807 = vrot.lane.b32.xlu0 %v5762, 9
  %v5808 = vpop.permute.xlu0 %5807
  %5809 = vrot.lane.b32.xlu0 %v5763, 9
  %v5810 = vpop.permute.xlu0 %5809
  %5811 = vrot.lane.b32.xlu0 %v5764, 9
  %v5812 = vpop.permute.xlu0 %5811
  %5813 = vrot.lane.b32.xlu0 %v5765, 9
  %v5814 = vpop.permute.xlu0 %5813
  %5815 = vrot.lane.b32.xlu0 %v5766, 9
  %v5816 = vpop.permute.xlu0 %5815
  %5817 = vrot.lane.b32.xlu0 %v5767, 9
  %v5818 = vpop.permute.xlu0 %5817
  %v5819 = vsel %vm1386, %v5786, %v5788
  %v5820 = vsel %vm1386, %v5788, %v5790
  %v5821 = vsel %vm1386, %v5790, %v5792
  %v5822 = vsel %vm1386, %v5792, %v5794
  %v5823 = vsel %vm1386, %v5794, %v5796
  %v5824 = vsel %vm1386, %v5796, %v5798
  %v5825 = vsel %vm1386, %v5798, %v5800
  %v5826 = vsel %vm1386, %v5800, %v5802
  %v5827 = vsel %vm1386, %v5802, %v5804
  %v5828 = vsel %vm1386, %v5804, %v5806
  %v5829 = vsel %vm1386, %v5806, %v5808
  %v5830 = vsel %vm1386, %v5808, %v5810
  %v5831 = vsel %vm1386, %v5810, %v5812
  %v5832 = vsel %vm1386, %v5812, %v5814
  %v5833 = vsel %vm1386, %v5814, %v5816
  %v5834 = vsel %vm1386, %v5816, %v5818
  %5851 = vst [vmem:[#allocation3 + $0x580] sm:$0xff] %v5819
  %5852 = vst [vmem:[#allocation3 + $0x588] sm:$0xff] %v5820
  %5853 = vst [vmem:[#allocation3 + $0x590] sm:$0xff] %v5821
  %5854 = vst [vmem:[#allocation3 + $0x598] sm:$0xff] %v5822
  %5855 = vst [vmem:[#allocation3 + $0x5a0] sm:$0xff] %v5823
  %5856 = vst [vmem:[#allocation3 + $0x5a8] sm:$0xff] %v5824
  %5857 = vst [vmem:[#allocation3 + $0x5b0] sm:$0xff] %v5825
  %5858 = vst [vmem:[#allocation3 + $0x5b8] sm:$0xff] %v5826
  %5859 = vst [vmem:[#allocation3 + $0x5c0] sm:$0xff] %v5827
  %5860 = vst [vmem:[#allocation3 + $0x5c8] sm:$0xff] %v5828
  %5861 = vst [vmem:[#allocation3 + $0x5d0] sm:$0xff] %v5829
  %5862 = vst [vmem:[#allocation3 + $0x5d8] sm:$0xff] %v5830
  %5863 = vst [vmem:[#allocation3 + $0x5e0] sm:$0xff] %v5831
  %5864 = vst [vmem:[#allocation3 + $0x5e8] sm:$0xff] %v5832
  %5865 = vst [vmem:[#allocation3 + $0x5f0] sm:$0xff] %v5833
  %5866 = vst [vmem:[#allocation3 + $0x5f8] sm:$0xff] %v5834
  %v5867 = vld [vmem:[#allocation4] sm:$0xff]
  %v5868 = vld [vmem:[#allocation4 + $0x8] sm:$0xff]
  %v5869 = vld [vmem:[#allocation4 + $0x10] sm:$0xff]
  %v5870 = vld [vmem:[#allocation4 + $0x18] sm:$0xff]
  %v5871 = vld [vmem:[#allocation4 + $0x20] sm:$0xff]
  %v5872 = vld [vmem:[#allocation4 + $0x28] sm:$0xff]
  %v5873 = vld [vmem:[#allocation4 + $0x30] sm:$0xff]
  %v5874 = vld [vmem:[#allocation4 + $0x38] sm:$0xff]
  %v5875 = vld [vmem:[#allocation4 + $0x40] sm:$0xff]
  %v5876 = vld [vmem:[#allocation4 + $0x48] sm:$0xff]
  %v5877 = vld [vmem:[#allocation4 + $0x50] sm:$0xff]
  %v5878 = vld [vmem:[#allocation4 + $0x58] sm:$0xff]
  %v5879 = vld [vmem:[#allocation4 + $0x60] sm:$0xff]
  %v5880 = vld [vmem:[#allocation4 + $0x68] sm:$0xff]
  %v5881 = vld [vmem:[#allocation4 + $0x70] sm:$0xff]
  %v5882 = vld [vmem:[#allocation4 + $0x78] sm:$0xff]
  %v5883 = vld [vmem:[#allocation4 + $0x80] sm:$0xff]
  %5901 = vrot.lane.b32.xlu0 %v5867, 1
  %v5902 = vpop.permute.xlu0 %5901
  %5903 = vrot.lane.b32.xlu0 %v5868, 1
  %v5904 = vpop.permute.xlu0 %5903
  %5905 = vrot.lane.b32.xlu0 %v5869, 1
  %v5906 = vpop.permute.xlu0 %5905
  %5907 = vrot.lane.b32.xlu0 %v5870, 1
  %v5908 = vpop.permute.xlu0 %5907
  %5909 = vrot.lane.b32.xlu0 %v5871, 1
  %v5910 = vpop.permute.xlu0 %5909
  %5911 = vrot.lane.b32.xlu0 %v5872, 1
  %v5912 = vpop.permute.xlu0 %5911
  %5913 = vrot.lane.b32.xlu0 %v5873, 1
  %v5914 = vpop.permute.xlu0 %5913
  %5915 = vrot.lane.b32.xlu0 %v5874, 1
  %v5916 = vpop.permute.xlu0 %5915
  %5917 = vrot.lane.b32.xlu0 %v5875, 1
  %v5918 = vpop.permute.xlu0 %5917
  %5919 = vrot.lane.b32.xlu0 %v5876, 1
  %v5920 = vpop.permute.xlu0 %5919
  %5921 = vrot.lane.b32.xlu0 %v5877, 1
  %v5922 = vpop.permute.xlu0 %5921
  %5923 = vrot.lane.b32.xlu0 %v5878, 1
  %v5924 = vpop.permute.xlu0 %5923
  %5925 = vrot.lane.b32.xlu0 %v5879, 1
  %v5926 = vpop.permute.xlu0 %5925
  %5927 = vrot.lane.b32.xlu0 %v5880, 1
  %v5928 = vpop.permute.xlu0 %5927
  %5929 = vrot.lane.b32.xlu0 %v5881, 1
  %v5930 = vpop.permute.xlu0 %5929
  %5931 = vrot.lane.b32.xlu0 %v5882, 1
  %v5932 = vpop.permute.xlu0 %5931
  %5933 = vrot.lane.b32.xlu0 %v5883, 1
  %v5934 = vpop.permute.xlu0 %5933
  %v5935 = vsel %vm1503, %v5902, %v5904
  %v5936 = vsel %vm1503, %v5904, %v5906
  %v5937 = vsel %vm1503, %v5906, %v5908
  %v5938 = vsel %vm1503, %v5908, %v5910
  %v5939 = vsel %vm1503, %v5910, %v5912
  %v5940 = vsel %vm1503, %v5912, %v5914
  %v5941 = vsel %vm1503, %v5914, %v5916
  %v5942 = vsel %vm1503, %v5916, %v5918
  %v5943 = vsel %vm1503, %v5918, %v5920
  %v5944 = vsel %vm1503, %v5920, %v5922
  %v5945 = vsel %vm1503, %v5922, %v5924
  %v5946 = vsel %vm1503, %v5924, %v5926
  %v5947 = vsel %vm1503, %v5926, %v5928
  %v5948 = vsel %vm1503, %v5928, %v5930
  %v5949 = vsel %vm1503, %v5930, %v5932
  %v5950 = vsel %vm1503, %v5932, %v5934
  %5967 = vst [vmem:[#allocation3 + $0x600] sm:$0xff] %v5935
  %5968 = vst [vmem:[#allocation3 + $0x608] sm:$0xff] %v5936
  %5969 = vst [vmem:[#allocation3 + $0x610] sm:$0xff] %v5937
  %5970 = vst [vmem:[#allocation3 + $0x618] sm:$0xff] %v5938
  %5971 = vst [vmem:[#allocation3 + $0x620] sm:$0xff] %v5939
  %5972 = vst [vmem:[#allocation3 + $0x628] sm:$0xff] %v5940
  %5973 = vst [vmem:[#allocation3 + $0x630] sm:$0xff] %v5941
  %5974 = vst [vmem:[#allocation3 + $0x638] sm:$0xff] %v5942
  %5975 = vst [vmem:[#allocation3 + $0x640] sm:$0xff] %v5943
  %5976 = vst [vmem:[#allocation3 + $0x648] sm:$0xff] %v5944
  %5977 = vst [vmem:[#allocation3 + $0x650] sm:$0xff] %v5945
  %5978 = vst [vmem:[#allocation3 + $0x658] sm:$0xff] %v5946
  %5979 = vst [vmem:[#allocation3 + $0x660] sm:$0xff] %v5947
  %5980 = vst [vmem:[#allocation3 + $0x668] sm:$0xff] %v5948
  %5981 = vst [vmem:[#allocation3 + $0x670] sm:$0xff] %v5949
  %5982 = vst [vmem:[#allocation3 + $0x678] sm:$0xff] %v5950
  %v5983 = vld [vmem:[#allocation4 + $0x8] sm:$0xff]
  %v5984 = vld [vmem:[#allocation4 + $0x10] sm:$0xff]
  %v5985 = vld [vmem:[#allocation4 + $0x18] sm:$0xff]
  %v5986 = vld [vmem:[#allocation4 + $0x20] sm:$0xff]
  %v5987 = vld [vmem:[#allocation4 + $0x28] sm:$0xff]
  %v5988 = vld [vmem:[#allocation4 + $0x30] sm:$0xff]
  %v5989 = vld [vmem:[#allocation4 + $0x38] sm:$0xff]
  %v5990 = vld [vmem:[#allocation4 + $0x40] sm:$0xff]
  %v5991 = vld [vmem:[#allocation4 + $0x48] sm:$0xff]
  %v5992 = vld [vmem:[#allocation4 + $0x50] sm:$0xff]
  %v5993 = vld [vmem:[#allocation4 + $0x58] sm:$0xff]
  %v5994 = vld [vmem:[#allocation4 + $0x60] sm:$0xff]
  %v5995 = vld [vmem:[#allocation4 + $0x68] sm:$0xff]
  %v5996 = vld [vmem:[#allocation4 + $0x70] sm:$0xff]
  %v5997 = vld [vmem:[#allocation4 + $0x78] sm:$0xff]
  %v5998 = vld [vmem:[#allocation4 + $0x80] sm:$0xff]
  %5999 = vst [vmem:[#allocation3 + $0x680] sm:$0xff] %v5983
  %6000 = vst [vmem:[#allocation3 + $0x688] sm:$0xff] %v5984
  %6001 = vst [vmem:[#allocation3 + $0x690] sm:$0xff] %v5985
  %6002 = vst [vmem:[#allocation3 + $0x698] sm:$0xff] %v5986
  %6003 = vst [vmem:[#allocation3 + $0x6a0] sm:$0xff] %v5987
  %6004 = vst [vmem:[#allocation3 + $0x6a8] sm:$0xff] %v5988
  %6005 = vst [vmem:[#allocation3 + $0x6b0] sm:$0xff] %v5989
  %6006 = vst [vmem:[#allocation3 + $0x6b8] sm:$0xff] %v5990
  %6007 = vst [vmem:[#allocation3 + $0x6c0] sm:$0xff] %v5991
  %6008 = vst [vmem:[#allocation3 + $0x6c8] sm:$0xff] %v5992
  %6009 = vst [vmem:[#allocation3 + $0x6d0] sm:$0xff] %v5993
  %6010 = vst [vmem:[#allocation3 + $0x6d8] sm:$0xff] %v5994
  %6011 = vst [vmem:[#allocation3 + $0x6e0] sm:$0xff] %v5995
  %6012 = vst [vmem:[#allocation3 + $0x6e8] sm:$0xff] %v5996
  %6013 = vst [vmem:[#allocation3 + $0x6f0] sm:$0xff] %v5997
  %6014 = vst [vmem:[#allocation3 + $0x6f8] sm:$0xff] %v5998
  %v6015 = vld [vmem:[#allocation4 + $0x8] sm:$0xff]
  %v6016 = vld [vmem:[#allocation4 + $0x10] sm:$0xff]
  %v6017 = vld [vmem:[#allocation4 + $0x18] sm:$0xff]
  %v6018 = vld [vmem:[#allocation4 + $0x20] sm:$0xff]
  %v6019 = vld [vmem:[#allocation4 + $0x28] sm:$0xff]
  %v6020 = vld [vmem:[#allocation4 + $0x30] sm:$0xff]
  %v6021 = vld [vmem:[#allocation4 + $0x38] sm:$0xff]
  %v6022 = vld [vmem:[#allocation4 + $0x40] sm:$0xff]
  %v6023 = vld [vmem:[#allocation4 + $0x48] sm:$0xff]
  %v6024 = vld [vmem:[#allocation4 + $0x50] sm:$0xff]
  %v6025 = vld [vmem:[#allocation4 + $0x58] sm:$0xff]
  %v6026 = vld [vmem:[#allocation4 + $0x60] sm:$0xff]
  %v6027 = vld [vmem:[#allocation4 + $0x68] sm:$0xff]
  %v6028 = vld [vmem:[#allocation4 + $0x70] sm:$0xff]
  %v6029 = vld [vmem:[#allocation4 + $0x78] sm:$0xff]
  %v6030 = vld [vmem:[#allocation4 + $0x80] sm:$0xff]
  %v6031 = vld [vmem:[#allocation4 + $0x88] sm:$0xff]
  %6049 = vrot.lane.b32.xlu0 %v6015, 127
  %v6050 = vpop.permute.xlu0 %6049
  %6051 = vrot.lane.b32.xlu0 %v6016, 127
  %v6052 = vpop.permute.xlu0 %6051
  %6053 = vrot.lane.b32.xlu0 %v6017, 127
  %v6054 = vpop.permute.xlu0 %6053
  %6055 = vrot.lane.b32.xlu0 %v6018, 127
  %v6056 = vpop.permute.xlu0 %6055
  %6057 = vrot.lane.b32.xlu0 %v6019, 127
  %v6058 = vpop.permute.xlu0 %6057
  %6059 = vrot.lane.b32.xlu0 %v6020, 127
  %v6060 = vpop.permute.xlu0 %6059
  %6061 = vrot.lane.b32.xlu0 %v6021, 127
  %v6062 = vpop.permute.xlu0 %6061
  %6063 = vrot.lane.b32.xlu0 %v6022, 127
  %v6064 = vpop.permute.xlu0 %6063
  %6065 = vrot.lane.b32.xlu0 %v6023, 127
  %v6066 = vpop.permute.xlu0 %6065
  %6067 = vrot.lane.b32.xlu0 %v6024, 127
  %v6068 = vpop.permute.xlu0 %6067
  %6069 = vrot.lane.b32.xlu0 %v6025, 127
  %v6070 = vpop.permute.xlu0 %6069
  %6071 = vrot.lane.b32.xlu0 %v6026, 127
  %v6072 = vpop.permute.xlu0 %6071
  %6073 = vrot.lane.b32.xlu0 %v6027, 127
  %v6074 = vpop.permute.xlu0 %6073
  %6075 = vrot.lane.b32.xlu0 %v6028, 127
  %v6076 = vpop.permute.xlu0 %6075
  %6077 = vrot.lane.b32.xlu0 %v6029, 127
  %v6078 = vpop.permute.xlu0 %6077
  %6079 = vrot.lane.b32.xlu0 %v6030, 127
  %v6080 = vpop.permute.xlu0 %6079
  %6081 = vrot.lane.b32.xlu0 %v6031, 127
  %v6082 = vpop.permute.xlu0 %6081
  %v6083 = vsel %vm1652, %v6050, %v6052
  %v6084 = vsel %vm1652, %v6052, %v6054
  %v6085 = vsel %vm1652, %v6054, %v6056
  %v6086 = vsel %vm1652, %v6056, %v6058
  %v6087 = vsel %vm1652, %v6058, %v6060
  %v6088 = vsel %vm1652, %v6060, %v6062
  %v6089 = vsel %vm1652, %v6062, %v6064
  %v6090 = vsel %vm1652, %v6064, %v6066
  %v6091 = vsel %vm1652, %v6066, %v6068
  %v6092 = vsel %vm1652, %v6068, %v6070
  %v6093 = vsel %vm1652, %v6070, %v6072
  %v6094 = vsel %vm1652, %v6072, %v6074
  %v6095 = vsel %vm1652, %v6074, %v6076
  %v6096 = vsel %vm1652, %v6076, %v6078
  %v6097 = vsel %vm1652, %v6078, %v6080
  %v6098 = vsel %vm1652, %v6080, %v6082
  %6115 = vst [vmem:[#allocation3 + $0x700] sm:$0xff] %v6083
  %6116 = vst [vmem:[#allocation3 + $0x708] sm:$0xff] %v6084
  %6117 = vst [vmem:[#allocation3 + $0x710] sm:$0xff] %v6085
  %6118 = vst [vmem:[#allocation3 + $0x718] sm:$0xff] %v6086
  %6119 = vst [vmem:[#allocation3 + $0x720] sm:$0xff] %v6087
  %6120 = vst [vmem:[#allocation3 + $0x728] sm:$0xff] %v6088
  %6121 = vst [vmem:[#allocation3 + $0x730] sm:$0xff] %v6089
  %6122 = vst [vmem:[#allocation3 + $0x738] sm:$0xff] %v6090
  %6123 = vst [vmem:[#allocation3 + $0x740] sm:$0xff] %v6091
  %6124 = vst [vmem:[#allocation3 + $0x748] sm:$0xff] %v6092
  %6125 = vst [vmem:[#allocation3 + $0x750] sm:$0xff] %v6093
  %6126 = vst [vmem:[#allocation3 + $0x758] sm:$0xff] %v6094
  %6127 = vst [vmem:[#allocation3 + $0x760] sm:$0xff] %v6095
  %6128 = vst [vmem:[#allocation3 + $0x768] sm:$0xff] %v6096
  %6129 = vst [vmem:[#allocation3 + $0x770] sm:$0xff] %v6097
  %6130 = vst [vmem:[#allocation3 + $0x778] sm:$0xff] %v6098
  %v6131 = vld [vmem:[#allocation4 + $0x8] sm:$0xff]
  %v6132 = vld [vmem:[#allocation4 + $0x10] sm:$0xff]
  %v6133 = vld [vmem:[#allocation4 + $0x18] sm:$0xff]
  %v6134 = vld [vmem:[#allocation4 + $0x20] sm:$0xff]
  %v6135 = vld [vmem:[#allocation4 + $0x28] sm:$0xff]
  %v6136 = vld [vmem:[#allocation4 + $0x30] sm:$0xff]
  %v6137 = vld [vmem:[#allocation4 + $0x38] sm:$0xff]
  %v6138 = vld [vmem:[#allocation4 + $0x40] sm:$0xff]
  %v6139 = vld [vmem:[#allocation4 + $0x48] sm:$0xff]
  %v6140 = vld [vmem:[#allocation4 + $0x50] sm:$0xff]
  %v6141 = vld [vmem:[#allocation4 + $0x58] sm:$0xff]
  %v6142 = vld [vmem:[#allocation4 + $0x60] sm:$0xff]
  %v6143 = vld [vmem:[#allocation4 + $0x68] sm:$0xff]
  %v6144 = vld [vmem:[#allocation4 + $0x70] sm:$0xff]
  %v6145 = vld [vmem:[#allocation4 + $0x78] sm:$0xff]
  %v6146 = vld [vmem:[#allocation4 + $0x80] sm:$0xff]
  %v6147 = vld [vmem:[#allocation4 + $0x88] sm:$0xff]
  %6165 = vrot.lane.b32.xlu0 %v6131, 119
  %v6166 = vpop.permute.xlu0 %6165
  %6167 = vrot.lane.b32.xlu0 %v6132, 119
  %v6168 = vpop.permute.xlu0 %6167
  %6169 = vrot.lane.b32.xlu0 %v6133, 119
  %v6170 = vpop.permute.xlu0 %6169
  %6171 = vrot.lane.b32.xlu0 %v6134, 119
  %v6172 = vpop.permute.xlu0 %6171
  %6173 = vrot.lane.b32.xlu0 %v6135, 119
  %v6174 = vpop.permute.xlu0 %6173
  %6175 = vrot.lane.b32.xlu0 %v6136, 119
  %v6176 = vpop.permute.xlu0 %6175
  %6177 = vrot.lane.b32.xlu0 %v6137, 119
  %v6178 = vpop.permute.xlu0 %6177
  %6179 = vrot.lane.b32.xlu0 %v6138, 119
  %v6180 = vpop.permute.xlu0 %6179
  %6181 = vrot.lane.b32.xlu0 %v6139, 119
  %v6182 = vpop.permute.xlu0 %6181
  %6183 = vrot.lane.b32.xlu0 %v6140, 119
  %v6184 = vpop.permute.xlu0 %6183
  %6185 = vrot.lane.b32.xlu0 %v6141, 119
  %v6186 = vpop.permute.xlu0 %6185
  %6187 = vrot.lane.b32.xlu0 %v6142, 119
  %v6188 = vpop.permute.xlu0 %6187
  %6189 = vrot.lane.b32.xlu0 %v6143, 119
  %v6190 = vpop.permute.xlu0 %6189
  %6191 = vrot.lane.b32.xlu0 %v6144, 119
  %v6192 = vpop.permute.xlu0 %6191
  %6193 = vrot.lane.b32.xlu0 %v6145, 119
  %v6194 = vpop.permute.xlu0 %6193
  %6195 = vrot.lane.b32.xlu0 %v6146, 119
  %v6196 = vpop.permute.xlu0 %6195
  %6197 = vrot.lane.b32.xlu0 %v6147, 119
  %v6198 = vpop.permute.xlu0 %6197
  %v6199 = vsel %vm1769, %v6166, %v6168
  %v6200 = vsel %vm1769, %v6168, %v6170
  %v6201 = vsel %vm1769, %v6170, %v6172
  %v6202 = vsel %vm1769, %v6172, %v6174
  %v6203 = vsel %vm1769, %v6174, %v6176
  %v6204 = vsel %vm1769, %v6176, %v6178
  %v6205 = vsel %vm1769, %v6178, %v6180
  %v6206 = vsel %vm1769, %v6180, %v6182
  %v6207 = vsel %vm1769, %v6182, %v6184
  %v6208 = vsel %vm1769, %v6184, %v6186
  %v6209 = vsel %vm1769, %v6186, %v6188
  %v6210 = vsel %vm1769, %v6188, %v6190
  %v6211 = vsel %vm1769, %v6190, %v6192
  %v6212 = vsel %vm1769, %v6192, %v6194
  %v6213 = vsel %vm1769, %v6194, %v6196
  %v6214 = vsel %vm1769, %v6196, %v6198
  %6231 = vst [vmem:[#allocation3 + $0x780] sm:$0xff] %v6199
  %6232 = vst [vmem:[#allocation3 + $0x788] sm:$0xff] %v6200
  %6233 = vst [vmem:[#allocation3 + $0x790] sm:$0xff] %v6201
  %6234 = vst [vmem:[#allocation3 + $0x798] sm:$0xff] %v6202
  %6235 = vst [vmem:[#allocation3 + $0x7a0] sm:$0xff] %v6203
  %6236 = vst [vmem:[#allocation3 + $0x7a8] sm:$0xff] %v6204
  %6237 = vst [vmem:[#allocation3 + $0x7b0] sm:$0xff] %v6205
  %6238 = vst [vmem:[#allocation3 + $0x7b8] sm:$0xff] %v6206
  %6239 = vst [vmem:[#allocation3 + $0x7c0] sm:$0xff] %v6207
  %6240 = vst [vmem:[#allocation3 + $0x7c8] sm:$0xff] %v6208
  %6241 = vst [vmem:[#allocation3 + $0x7d0] sm:$0xff] %v6209
  %6242 = vst [vmem:[#allocation3 + $0x7d8] sm:$0xff] %v6210
  %6243 = vst [vmem:[#allocation3 + $0x7e0] sm:$0xff] %v6211
  %6244 = vst [vmem:[#allocation3 + $0x7e8] sm:$0xff] %v6212
  %6245 = vst [vmem:[#allocation3 + $0x7f0] sm:$0xff] %v6213
  %6246 = vst [vmem:[#allocation3 + $0x7f8] sm:$0xff] %v6214
  %v6247 = vld [vmem:[#allocation4 + $0x8] sm:$0xff]
  %v6248 = vld [vmem:[#allocation4 + $0x10] sm:$0xff]
  %v6249 = vld [vmem:[#allocation4 + $0x18] sm:$0xff]
  %v6250 = vld [vmem:[#allocation4 + $0x20] sm:$0xff]
  %v6251 = vld [vmem:[#allocation4 + $0x28] sm:$0xff]
  %v6252 = vld [vmem:[#allocation4 + $0x30] sm:$0xff]
  %v6253 = vld [vmem:[#allocation4 + $0x38] sm:$0xff]
  %v6254 = vld [vmem:[#allocation4 + $0x40] sm:$0xff]
  %v6255 = vld [vmem:[#allocation4 + $0x48] sm:$0xff]
  %v6256 = vld [vmem:[#allocation4 + $0x50] sm:$0xff]
  %v6257 = vld [vmem:[#allocation4 + $0x58] sm:$0xff]
  %v6258 = vld [vmem:[#allocation4 + $0x60] sm:$0xff]
  %v6259 = vld [vmem:[#allocation4 + $0x68] sm:$0xff]
  %v6260 = vld [vmem:[#allocation4 + $0x70] sm:$0xff]
  %v6261 = vld [vmem:[#allocation4 + $0x78] sm:$0xff]
  %v6262 = vld [vmem:[#allocation4 + $0x80] sm:$0xff]
  %v6263 = vld [vmem:[#allocation4 + $0x88] sm:$0xff]
  %6281 = vrot.lane.b32.xlu0 %v6247, 118
  %v6282 = vpop.permute.xlu0 %6281
  %6283 = vrot.lane.b32.xlu0 %v6248, 118
  %v6284 = vpop.permute.xlu0 %6283
  %6285 = vrot.lane.b32.xlu0 %v6249, 118
  %v6286 = vpop.permute.xlu0 %6285
  %6287 = vrot.lane.b32.xlu0 %v6250, 118
  %v6288 = vpop.permute.xlu0 %6287
  %6289 = vrot.lane.b32.xlu0 %v6251, 118
  %v6290 = vpop.permute.xlu0 %6289
  %6291 = vrot.lane.b32.xlu0 %v6252, 118
  %v6292 = vpop.permute.xlu0 %6291
  %6293 = vrot.lane.b32.xlu0 %v6253, 118
  %v6294 = vpop.permute.xlu0 %6293
  %6295 = vrot.lane.b32.xlu0 %v6254, 118
  %v6296 = vpop.permute.xlu0 %6295
  %6297 = vrot.lane.b32.xlu0 %v6255, 118
  %v6298 = vpop.permute.xlu0 %6297
  %6299 = vrot.lane.b32.xlu0 %v6256, 118
  %v6300 = vpop.permute.xlu0 %6299
  %6301 = vrot.lane.b32.xlu0 %v6257, 118
  %v6302 = vpop.permute.xlu0 %6301
  %6303 = vrot.lane.b32.xlu0 %v6258, 118
  %v6304 = vpop.permute.xlu0 %6303
  %6305 = vrot.lane.b32.xlu0 %v6259, 118
  %v6306 = vpop.permute.xlu0 %6305
  %6307 = vrot.lane.b32.xlu0 %v6260, 118
  %v6308 = vpop.permute.xlu0 %6307
  %6309 = vrot.lane.b32.xlu0 %v6261, 118
  %v6310 = vpop.permute.xlu0 %6309
  %6311 = vrot.lane.b32.xlu0 %v6262, 118
  %v6312 = vpop.permute.xlu0 %6311
  %6313 = vrot.lane.b32.xlu0 %v6263, 118
  %v6314 = vpop.permute.xlu0 %6313
  %v6315 = vsel %vm1886, %v6282, %v6284
  %v6316 = vsel %vm1886, %v6284, %v6286
  %v6317 = vsel %vm1886, %v6286, %v6288
  %v6318 = vsel %vm1886, %v6288, %v6290
  %v6319 = vsel %vm1886, %v6290, %v6292
  %v6320 = vsel %vm1886, %v6292, %v6294
  %v6321 = vsel %vm1886, %v6294, %v6296
  %v6322 = vsel %vm1886, %v6296, %v6298
  %v6323 = vsel %vm1886, %v6298, %v6300
  %v6324 = vsel %vm1886, %v6300, %v6302
  %v6325 = vsel %vm1886, %v6302, %v6304
  %v6326 = vsel %vm1886, %v6304, %v6306
  %v6327 = vsel %vm1886, %v6306, %v6308
  %v6328 = vsel %vm1886, %v6308, %v6310
  %v6329 = vsel %vm1886, %v6310, %v6312
  %v6330 = vsel %vm1886, %v6312, %v6314
  %6347 = vst [vmem:[#allocation3 + $0x800] sm:$0xff] %v6315
  %6348 = vst [vmem:[#allocation3 + $0x808] sm:$0xff] %v6316
  %6349 = vst [vmem:[#allocation3 + $0x810] sm:$0xff] %v6317
  %6350 = vst [vmem:[#allocation3 + $0x818] sm:$0xff] %v6318
  %6351 = vst [vmem:[#allocation3 + $0x820] sm:$0xff] %v6319
  %6352 = vst [vmem:[#allocation3 + $0x828] sm:$0xff] %v6320
  %6353 = vst [vmem:[#allocation3 + $0x830] sm:$0xff] %v6321
  %6354 = vst [vmem:[#allocation3 + $0x838] sm:$0xff] %v6322
  %6355 = vst [vmem:[#allocation3 + $0x840] sm:$0xff] %v6323
  %6356 = vst [vmem:[#allocation3 + $0x848] sm:$0xff] %v6324
  %6357 = vst [vmem:[#allocation3 + $0x850] sm:$0xff] %v6325
  %6358 = vst [vmem:[#allocation3 + $0x858] sm:$0xff] %v6326
  %6359 = vst [vmem:[#allocation3 + $0x860] sm:$0xff] %v6327
  %6360 = vst [vmem:[#allocation3 + $0x868] sm:$0xff] %v6328
  %6361 = vst [vmem:[#allocation3 + $0x870] sm:$0xff] %v6329
  %6362 = vst [vmem:[#allocation3 + $0x878] sm:$0xff] %v6330
  %v6363 = vld [vmem:[#allocation4 + $0x8] sm:$0xff]
  %v6364 = vld [vmem:[#allocation4 + $0x10] sm:$0xff]
  %v6365 = vld [vmem:[#allocation4 + $0x18] sm:$0xff]
  %v6366 = vld [vmem:[#allocation4 + $0x20] sm:$0xff]
  %v6367 = vld [vmem:[#allocation4 + $0x28] sm:$0xff]
  %v6368 = vld [vmem:[#allocation4 + $0x30] sm:$0xff]
  %v6369 = vld [vmem:[#allocation4 + $0x38] sm:$0xff]
  %v6370 = vld [vmem:[#allocation4 + $0x40] sm:$0xff]
  %v6371 = vld [vmem:[#allocation4 + $0x48] sm:$0xff]
  %v6372 = vld [vmem:[#allocation4 + $0x50] sm:$0xff]
  %v6373 = vld [vmem:[#allocation4 + $0x58] sm:$0xff]
  %v6374 = vld [vmem:[#allocation4 + $0x60] sm:$0xff]
  %v6375 = vld [vmem:[#allocation4 + $0x68] sm:$0xff]
  %v6376 = vld [vmem:[#allocation4 + $0x70] sm:$0xff]
  %v6377 = vld [vmem:[#allocation4 + $0x78] sm:$0xff]
  %v6378 = vld [vmem:[#allocation4 + $0x80] sm:$0xff]
  %v6379 = vld [vmem:[#allocation4 + $0x88] sm:$0xff]
  %6397 = vrot.lane.b32.xlu0 %v6363, 117
  %v6398 = vpop.permute.xlu0 %6397
  %6399 = vrot.lane.b32.xlu0 %v6364, 117
  %v6400 = vpop.permute.xlu0 %6399
  %6401 = vrot.lane.b32.xlu0 %v6365, 117
  %v6402 = vpop.permute.xlu0 %6401
  %6403 = vrot.lane.b32.xlu0 %v6366, 117
  %v6404 = vpop.permute.xlu0 %6403
  %6405 = vrot.lane.b32.xlu0 %v6367, 117
  %v6406 = vpop.permute.xlu0 %6405
  %6407 = vrot.lane.b32.xlu0 %v6368, 117
  %v6408 = vpop.permute.xlu0 %6407
  %6409 = vrot.lane.b32.xlu0 %v6369, 117
  %v6410 = vpop.permute.xlu0 %6409
  %6411 = vrot.lane.b32.xlu0 %v6370, 117
  %v6412 = vpop.permute.xlu0 %6411
  %6413 = vrot.lane.b32.xlu0 %v6371, 117
  %v6414 = vpop.permute.xlu0 %6413
  %6415 = vrot.lane.b32.xlu0 %v6372, 117
  %v6416 = vpop.permute.xlu0 %6415
  %6417 = vrot.lane.b32.xlu0 %v6373, 117
  %v6418 = vpop.permute.xlu0 %6417
  %6419 = vrot.lane.b32.xlu0 %v6374, 117
  %v6420 = vpop.permute.xlu0 %6419
  %6421 = vrot.lane.b32.xlu0 %v6375, 117
  %v6422 = vpop.permute.xlu0 %6421
  %6423 = vrot.lane.b32.xlu0 %v6376, 117
  %v6424 = vpop.permute.xlu0 %6423
  %6425 = vrot.lane.b32.xlu0 %v6377, 117
  %v6426 = vpop.permute.xlu0 %6425
  %6427 = vrot.lane.b32.xlu0 %v6378, 117
  %v6428 = vpop.permute.xlu0 %6427
  %6429 = vrot.lane.b32.xlu0 %v6379, 117
  %v6430 = vpop.permute.xlu0 %6429
  %v6431 = vsel %vm2003, %v6398, %v6400
  %v6432 = vsel %vm2003, %v6400, %v6402
  %v6433 = vsel %vm2003, %v6402, %v6404
  %v6434 = vsel %vm2003, %v6404, %v6406
  %v6435 = vsel %vm2003, %v6406, %v6408
  %v6436 = vsel %vm2003, %v6408, %v6410
  %v6437 = vsel %vm2003, %v6410, %v6412
  %v6438 = vsel %vm2003, %v6412, %v6414
  %v6439 = vsel %vm2003, %v6414, %v6416
  %v6440 = vsel %vm2003, %v6416, %v6418
  %v6441 = vsel %vm2003, %v6418, %v6420
  %v6442 = vsel %vm2003, %v6420, %v6422
  %v6443 = vsel %vm2003, %v6422, %v6424
  %v6444 = vsel %vm2003, %v6424, %v6426
  %v6445 = vsel %vm2003, %v6426, %v6428
  %v6446 = vsel %vm2003, %v6428, %v6430
  %6463 = vst [vmem:[#allocation3 + $0x880] sm:$0xff] %v6431
  %6464 = vst [vmem:[#allocation3 + $0x888] sm:$0xff] %v6432
  %6465 = vst [vmem:[#allocation3 + $0x890] sm:$0xff] %v6433
  %6466 = vst [vmem:[#allocation3 + $0x898] sm:$0xff] %v6434
  %6467 = vst [vmem:[#allocation3 + $0x8a0] sm:$0xff] %v6435
  %6468 = vst [vmem:[#allocation3 + $0x8a8] sm:$0xff] %v6436
  %6469 = vst [vmem:[#allocation3 + $0x8b0] sm:$0xff] %v6437
  %6470 = vst [vmem:[#allocation3 + $0x8b8] sm:$0xff] %v6438
  %6471 = vst [vmem:[#allocation3 + $0x8c0] sm:$0xff] %v6439
  %6472 = vst [vmem:[#allocation3 + $0x8c8] sm:$0xff] %v6440
  %6473 = vst [vmem:[#allocation3 + $0x8d0] sm:$0xff] %v6441
  %6474 = vst [vmem:[#allocation3 + $0x8d8] sm:$0xff] %v6442
  %6475 = vst [vmem:[#allocation3 + $0x8e0] sm:$0xff] %v6443
  %6476 = vst [vmem:[#allocation3 + $0x8e8] sm:$0xff] %v6444
  %6477 = vst [vmem:[#allocation3 + $0x8f0] sm:$0xff] %v6445
  %6478 = vst [vmem:[#allocation3 + $0x8f8] sm:$0xff] %v6446
  %v6479 = vld [vmem:[#allocation4 + $0x8] sm:$0xff]
  %v6480 = vld [vmem:[#allocation4 + $0x10] sm:$0xff]
  %v6481 = vld [vmem:[#allocation4 + $0x18] sm:$0xff]
  %v6482 = vld [vmem:[#allocation4 + $0x20] sm:$0xff]
  %v6483 = vld [vmem:[#allocation4 + $0x28] sm:$0xff]
  %v6484 = vld [vmem:[#allocation4 + $0x30] sm:$0xff]
  %v6485 = vld [vmem:[#allocation4 + $0x38] sm:$0xff]
  %v6486 = vld [vmem:[#allocation4 + $0x40] sm:$0xff]
  %v6487 = vld [vmem:[#allocation4 + $0x48] sm:$0xff]
  %v6488 = vld [vmem:[#allocation4 + $0x50] sm:$0xff]
  %v6489 = vld [vmem:[#allocation4 + $0x58] sm:$0xff]
  %v6490 = vld [vmem:[#allocation4 + $0x60] sm:$0xff]
  %v6491 = vld [vmem:[#allocation4 + $0x68] sm:$0xff]
  %v6492 = vld [vmem:[#allocation4 + $0x70] sm:$0xff]
  %v6493 = vld [vmem:[#allocation4 + $0x78] sm:$0xff]
  %v6494 = vld [vmem:[#allocation4 + $0x80] sm:$0xff]
  %v6495 = vld [vmem:[#allocation4 + $0x88] sm:$0xff]
  %6513 = vrot.lane.b32.xlu0 %v6479, 39
  %v6514 = vpop.permute.xlu0 %6513
  %6515 = vrot.lane.b32.xlu0 %v6480, 39
  %v6516 = vpop.permute.xlu0 %6515
  %6517 = vrot.lane.b32.xlu0 %v6481, 39
  %v6518 = vpop.permute.xlu0 %6517
  %6519 = vrot.lane.b32.xlu0 %v6482, 39
  %v6520 = vpop.permute.xlu0 %6519
  %6521 = vrot.lane.b32.xlu0 %v6483, 39
  %v6522 = vpop.permute.xlu0 %6521
  %6523 = vrot.lane.b32.xlu0 %v6484, 39
  %v6524 = vpop.permute.xlu0 %6523
  %6525 = vrot.lane.b32.xlu0 %v6485, 39
  %v6526 = vpop.permute.xlu0 %6525
  %6527 = vrot.lane.b32.xlu0 %v6486, 39
  %v6528 = vpop.permute.xlu0 %6527
  %6529 = vrot.lane.b32.xlu0 %v6487, 39
  %v6530 = vpop.permute.xlu0 %6529
  %6531 = vrot.lane.b32.xlu0 %v6488, 39
  %v6532 = vpop.permute.xlu0 %6531
  %6533 = vrot.lane.b32.xlu0 %v6489, 39
  %v6534 = vpop.permute.xlu0 %6533
  %6535 = vrot.lane.b32.xlu0 %v6490, 39
  %v6536 = vpop.permute.xlu0 %6535
  %6537 = vrot.lane.b32.xlu0 %v6491, 39
  %v6538 = vpop.permute.xlu0 %6537
  %6539 = vrot.lane.b32.xlu0 %v6492, 39
  %v6540 = vpop.permute.xlu0 %6539
  %6541 = vrot.lane.b32.xlu0 %v6493, 39
  %v6542 = vpop.permute.xlu0 %6541
  %6543 = vrot.lane.b32.xlu0 %v6494, 39
  %v6544 = vpop.permute.xlu0 %6543
  %6545 = vrot.lane.b32.xlu0 %v6495, 39
  %v6546 = vpop.permute.xlu0 %6545
  %v6547 = vsel %vm2120, %v6514, %v6516
  %v6548 = vsel %vm2120, %v6516, %v6518
  %v6549 = vsel %vm2120, %v6518, %v6520
  %v6550 = vsel %vm2120, %v6520, %v6522
  %v6551 = vsel %vm2120, %v6522, %v6524
  %v6552 = vsel %vm2120, %v6524, %v6526
  %v6553 = vsel %vm2120, %v6526, %v6528
  %v6554 = vsel %vm2120, %v6528, %v6530
  %v6555 = vsel %vm2120, %v6530, %v6532
  %v6556 = vsel %vm2120, %v6532, %v6534
  %v6557 = vsel %vm2120, %v6534, %v6536
  %v6558 = vsel %vm2120, %v6536, %v6538
  %v6559 = vsel %vm2120, %v6538, %v6540
  %v6560 = vsel %vm2120, %v6540, %v6542
  %v6561 = vsel %vm2120, %v6542, %v6544
  %v6562 = vsel %vm2120, %v6544, %v6546
  %6579 = vst [vmem:[#allocation3 + $0x900] sm:$0xff] %v6547
  %6580 = vst [vmem:[#allocation3 + $0x908] sm:$0xff] %v6548
  %6581 = vst [vmem:[#allocation3 + $0x910] sm:$0xff] %v6549
  %6582 = vst [vmem:[#allocation3 + $0x918] sm:$0xff] %v6550
  %6583 = vst [vmem:[#allocation3 + $0x920] sm:$0xff] %v6551
  %6584 = vst [vmem:[#allocation3 + $0x928] sm:$0xff] %v6552
  %6585 = vst [vmem:[#allocation3 + $0x930] sm:$0xff] %v6553
  %6586 = vst [vmem:[#allocation3 + $0x938] sm:$0xff] %v6554
  %6587 = vst [vmem:[#allocation3 + $0x940] sm:$0xff] %v6555
  %6588 = vst [vmem:[#allocation3 + $0x948] sm:$0xff] %v6556
  %6589 = vst [vmem:[#allocation3 + $0x950] sm:$0xff] %v6557
  %6590 = vst [vmem:[#allocation3 + $0x958] sm:$0xff] %v6558
  %6591 = vst [vmem:[#allocation3 + $0x960] sm:$0xff] %v6559
  %6592 = vst [vmem:[#allocation3 + $0x968] sm:$0xff] %v6560
  %6593 = vst [vmem:[#allocation3 + $0x970] sm:$0xff] %v6561
  %6594 = vst [vmem:[#allocation3 + $0x978] sm:$0xff] %v6562
  %v6595 = vld [vmem:[#allocation4 + $0x8] sm:$0xff]
  %v6596 = vld [vmem:[#allocation4 + $0x10] sm:$0xff]
  %v6597 = vld [vmem:[#allocation4 + $0x18] sm:$0xff]
  %v6598 = vld [vmem:[#allocation4 + $0x20] sm:$0xff]
  %v6599 = vld [vmem:[#allocation4 + $0x28] sm:$0xff]
  %v6600 = vld [vmem:[#allocation4 + $0x30] sm:$0xff]
  %v6601 = vld [vmem:[#allocation4 + $0x38] sm:$0xff]
  %v6602 = vld [vmem:[#allocation4 + $0x40] sm:$0xff]
  %v6603 = vld [vmem:[#allocation4 + $0x48] sm:$0xff]
  %v6604 = vld [vmem:[#allocation4 + $0x50] sm:$0xff]
  %v6605 = vld [vmem:[#allocation4 + $0x58] sm:$0xff]
  %v6606 = vld [vmem:[#allocation4 + $0x60] sm:$0xff]
  %v6607 = vld [vmem:[#allocation4 + $0x68] sm:$0xff]
  %v6608 = vld [vmem:[#allocation4 + $0x70] sm:$0xff]
  %v6609 = vld [vmem:[#allocation4 + $0x78] sm:$0xff]
  %v6610 = vld [vmem:[#allocation4 + $0x80] sm:$0xff]
  %v6611 = vld [vmem:[#allocation4 + $0x88] sm:$0xff]
  %6629 = vrot.lane.b32.xlu0 %v6595, 38
  %v6630 = vpop.permute.xlu0 %6629
  %6631 = vrot.lane.b32.xlu0 %v6596, 38
  %v6632 = vpop.permute.xlu0 %6631
  %6633 = vrot.lane.b32.xlu0 %v6597, 38
  %v6634 = vpop.permute.xlu0 %6633
  %6635 = vrot.lane.b32.xlu0 %v6598, 38
  %v6636 = vpop.permute.xlu0 %6635
  %6637 = vrot.lane.b32.xlu0 %v6599, 38
  %v6638 = vpop.permute.xlu0 %6637
  %6639 = vrot.lane.b32.xlu0 %v6600, 38
  %v6640 = vpop.permute.xlu0 %6639
  %6641 = vrot.lane.b32.xlu0 %v6601, 38
  %v6642 = vpop.permute.xlu0 %6641
  %6643 = vrot.lane.b32.xlu0 %v6602, 38
  %v6644 = vpop.permute.xlu0 %6643
  %6645 = vrot.lane.b32.xlu0 %v6603, 38
  %v6646 = vpop.permute.xlu0 %6645
  %6647 = vrot.lane.b32.xlu0 %v6604, 38
  %v6648 = vpop.permute.xlu0 %6647
  %6649 = vrot.lane.b32.xlu0 %v6605, 38
  %v6650 = vpop.permute.xlu0 %6649
  %6651 = vrot.lane.b32.xlu0 %v6606, 38
  %v6652 = vpop.permute.xlu0 %6651
  %6653 = vrot.lane.b32.xlu0 %v6607, 38
  %v6654 = vpop.permute.xlu0 %6653
  %6655 = vrot.lane.b32.xlu0 %v6608, 38
  %v6656 = vpop.permute.xlu0 %6655
  %6657 = vrot.lane.b32.xlu0 %v6609, 38
  %v6658 = vpop.permute.xlu0 %6657
  %6659 = vrot.lane.b32.xlu0 %v6610, 38
  %v6660 = vpop.permute.xlu0 %6659
  %6661 = vrot.lane.b32.xlu0 %v6611, 38
  %v6662 = vpop.permute.xlu0 %6661
  %v6663 = vsel %vm2237, %v6630, %v6632
  %v6664 = vsel %vm2237, %v6632, %v6634
  %v6665 = vsel %vm2237, %v6634, %v6636
  %v6666 = vsel %vm2237, %v6636, %v6638
  %v6667 = vsel %vm2237, %v6638, %v6640
  %v6668 = vsel %vm2237, %v6640, %v6642
  %v6669 = vsel %vm2237, %v6642, %v6644
  %v6670 = vsel %vm2237, %v6644, %v6646
  %v6671 = vsel %vm2237, %v6646, %v6648
  %v6672 = vsel %vm2237, %v6648, %v6650
  %v6673 = vsel %vm2237, %v6650, %v6652
  %v6674 = vsel %vm2237, %v6652, %v6654
  %v6675 = vsel %vm2237, %v6654, %v6656
  %v6676 = vsel %vm2237, %v6656, %v6658
  %v6677 = vsel %vm2237, %v6658, %v6660
  %v6678 = vsel %vm2237, %v6660, %v6662
  %6695 = vst [vmem:[#allocation3 + $0x980] sm:$0xff] %v6663
  %6696 = vst [vmem:[#allocation3 + $0x988] sm:$0xff] %v6664
  %6697 = vst [vmem:[#allocation3 + $0x990] sm:$0xff] %v6665
  %6698 = vst [vmem:[#allocation3 + $0x998] sm:$0xff] %v6666
  %6699 = vst [vmem:[#allocation3 + $0x9a0] sm:$0xff] %v6667
  %6700 = vst [vmem:[#allocation3 + $0x9a8] sm:$0xff] %v6668
  %6701 = vst [vmem:[#allocation3 + $0x9b0] sm:$0xff] %v6669
  %6702 = vst [vmem:[#allocation3 + $0x9b8] sm:$0xff] %v6670
  %6703 = vst [vmem:[#allocation3 + $0x9c0] sm:$0xff] %v6671
  %6704 = vst [vmem:[#allocation3 + $0x9c8] sm:$0xff] %v6672
  %6705 = vst [vmem:[#allocation3 + $0x9d0] sm:$0xff] %v6673
  %6706 = vst [vmem:[#allocation3 + $0x9d8] sm:$0xff] %v6674
  %6707 = vst [vmem:[#allocation3 + $0x9e0] sm:$0xff] %v6675
  %6708 = vst [vmem:[#allocation3 + $0x9e8] sm:$0xff] %v6676
  %6709 = vst [vmem:[#allocation3 + $0x9f0] sm:$0xff] %v6677
  %6710 = vst [vmem:[#allocation3 + $0x9f8] sm:$0xff] %v6678
  %v6711 = vld [vmem:[#allocation4 + $0x8] sm:$0xff]
  %v6712 = vld [vmem:[#allocation4 + $0x10] sm:$0xff]
  %v6713 = vld [vmem:[#allocation4 + $0x18] sm:$0xff]
  %v6714 = vld [vmem:[#allocation4 + $0x20] sm:$0xff]
  %v6715 = vld [vmem:[#allocation4 + $0x28] sm:$0xff]
  %v6716 = vld [vmem:[#allocation4 + $0x30] sm:$0xff]
  %v6717 = vld [vmem:[#allocation4 + $0x38] sm:$0xff]
  %v6718 = vld [vmem:[#allocation4 + $0x40] sm:$0xff]
  %v6719 = vld [vmem:[#allocation4 + $0x48] sm:$0xff]
  %v6720 = vld [vmem:[#allocation4 + $0x50] sm:$0xff]
  %v6721 = vld [vmem:[#allocation4 + $0x58] sm:$0xff]
  %v6722 = vld [vmem:[#allocation4 + $0x60] sm:$0xff]
  %v6723 = vld [vmem:[#allocation4 + $0x68] sm:$0xff]
  %v6724 = vld [vmem:[#allocation4 + $0x70] sm:$0xff]
  %v6725 = vld [vmem:[#allocation4 + $0x78] sm:$0xff]
  %v6726 = vld [vmem:[#allocation4 + $0x80] sm:$0xff]
  %v6727 = vld [vmem:[#allocation4 + $0x88] sm:$0xff]
  %6745 = vrot.lane.b32.xlu0 %v6711, 37
  %v6746 = vpop.permute.xlu0 %6745
  %6747 = vrot.lane.b32.xlu0 %v6712, 37
  %v6748 = vpop.permute.xlu0 %6747
  %6749 = vrot.lane.b32.xlu0 %v6713, 37
  %v6750 = vpop.permute.xlu0 %6749
  %6751 = vrot.lane.b32.xlu0 %v6714, 37
  %v6752 = vpop.permute.xlu0 %6751
  %6753 = vrot.lane.b32.xlu0 %v6715, 37
  %v6754 = vpop.permute.xlu0 %6753
  %6755 = vrot.lane.b32.xlu0 %v6716, 37
  %v6756 = vpop.permute.xlu0 %6755
  %6757 = vrot.lane.b32.xlu0 %v6717, 37
  %v6758 = vpop.permute.xlu0 %6757
  %6759 = vrot.lane.b32.xlu0 %v6718, 37
  %v6760 = vpop.permute.xlu0 %6759
  %6761 = vrot.lane.b32.xlu0 %v6719, 37
  %v6762 = vpop.permute.xlu0 %6761
  %6763 = vrot.lane.b32.xlu0 %v6720, 37
  %v6764 = vpop.permute.xlu0 %6763
  %6765 = vrot.lane.b32.xlu0 %v6721, 37
  %v6766 = vpop.permute.xlu0 %6765
  %6767 = vrot.lane.b32.xlu0 %v6722, 37
  %v6768 = vpop.permute.xlu0 %6767
  %6769 = vrot.lane.b32.xlu0 %v6723, 37
  %v6770 = vpop.permute.xlu0 %6769
  %6771 = vrot.lane.b32.xlu0 %v6724, 37
  %v6772 = vpop.permute.xlu0 %6771
  %6773 = vrot.lane.b32.xlu0 %v6725, 37
  %v6774 = vpop.permute.xlu0 %6773
  %6775 = vrot.lane.b32.xlu0 %v6726, 37
  %v6776 = vpop.permute.xlu0 %6775
  %6777 = vrot.lane.b32.xlu0 %v6727, 37
  %v6778 = vpop.permute.xlu0 %6777
  %v6779 = vsel %vm2354, %v6746, %v6748
  %v6780 = vsel %vm2354, %v6748, %v6750
  %v6781 = vsel %vm2354, %v6750, %v6752
  %v6782 = vsel %vm2354, %v6752, %v6754
  %v6783 = vsel %vm2354, %v6754, %v6756
  %v6784 = vsel %vm2354, %v6756, %v6758
  %v6785 = vsel %vm2354, %v6758, %v6760
  %v6786 = vsel %vm2354, %v6760, %v6762
  %v6787 = vsel %vm2354, %v6762, %v6764
  %v6788 = vsel %vm2354, %v6764, %v6766
  %v6789 = vsel %vm2354, %v6766, %v6768
  %v6790 = vsel %vm2354, %v6768, %v6770
  %v6791 = vsel %vm2354, %v6770, %v6772
  %v6792 = vsel %vm2354, %v6772, %v6774
  %v6793 = vsel %vm2354, %v6774, %v6776
  %v6794 = vsel %vm2354, %v6776, %v6778
  %6811 = vst [vmem:[#allocation3 + $0xa00] sm:$0xff] %v6779
  %6812 = vst [vmem:[#allocation3 + $0xa08] sm:$0xff] %v6780
  %6813 = vst [vmem:[#allocation3 + $0xa10] sm:$0xff] %v6781
  %6814 = vst [vmem:[#allocation3 + $0xa18] sm:$0xff] %v6782
  %6815 = vst [vmem:[#allocation3 + $0xa20] sm:$0xff] %v6783
  %6816 = vst [vmem:[#allocation3 + $0xa28] sm:$0xff] %v6784
  %6817 = vst [vmem:[#allocation3 + $0xa30] sm:$0xff] %v6785
  %6818 = vst [vmem:[#allocation3 + $0xa38] sm:$0xff] %v6786
  %6819 = vst [vmem:[#allocation3 + $0xa40] sm:$0xff] %v6787
  %6820 = vst [vmem:[#allocation3 + $0xa48] sm:$0xff] %v6788
  %6821 = vst [vmem:[#allocation3 + $0xa50] sm:$0xff] %v6789
  %6822 = vst [vmem:[#allocation3 + $0xa58] sm:$0xff] %v6790
  %6823 = vst [vmem:[#allocation3 + $0xa60] sm:$0xff] %v6791
  %6824 = vst [vmem:[#allocation3 + $0xa68] sm:$0xff] %v6792
  %6825 = vst [vmem:[#allocation3 + $0xa70] sm:$0xff] %v6793
  %6826 = vst [vmem:[#allocation3 + $0xa78] sm:$0xff] %v6794
  %v6827 = vld [vmem:[#allocation4 + $0x8] sm:$0xff]
  %v6828 = vld [vmem:[#allocation4 + $0x10] sm:$0xff]
  %v6829 = vld [vmem:[#allocation4 + $0x18] sm:$0xff]
  %v6830 = vld [vmem:[#allocation4 + $0x20] sm:$0xff]
  %v6831 = vld [vmem:[#allocation4 + $0x28] sm:$0xff]
  %v6832 = vld [vmem:[#allocation4 + $0x30] sm:$0xff]
  %v6833 = vld [vmem:[#allocation4 + $0x38] sm:$0xff]
  %v6834 = vld [vmem:[#allocation4 + $0x40] sm:$0xff]
  %v6835 = vld [vmem:[#allocation4 + $0x48] sm:$0xff]
  %v6836 = vld [vmem:[#allocation4 + $0x50] sm:$0xff]
  %v6837 = vld [vmem:[#allocation4 + $0x58] sm:$0xff]
  %v6838 = vld [vmem:[#allocation4 + $0x60] sm:$0xff]
  %v6839 = vld [vmem:[#allocation4 + $0x68] sm:$0xff]
  %v6840 = vld [vmem:[#allocation4 + $0x70] sm:$0xff]
  %v6841 = vld [vmem:[#allocation4 + $0x78] sm:$0xff]
  %v6842 = vld [vmem:[#allocation4 + $0x80] sm:$0xff]
  %v6843 = vld [vmem:[#allocation4 + $0x88] sm:$0xff]
  %6861 = vrot.lane.b32.xlu0 %v6827, 29
  %v6862 = vpop.permute.xlu0 %6861
  %6863 = vrot.lane.b32.xlu0 %v6828, 29
  %v6864 = vpop.permute.xlu0 %6863
  %6865 = vrot.lane.b32.xlu0 %v6829, 29
  %v6866 = vpop.permute.xlu0 %6865
  %6867 = vrot.lane.b32.xlu0 %v6830, 29
  %v6868 = vpop.permute.xlu0 %6867
  %6869 = vrot.lane.b32.xlu0 %v6831, 29
  %v6870 = vpop.permute.xlu0 %6869
  %6871 = vrot.lane.b32.xlu0 %v6832, 29
  %v6872 = vpop.permute.xlu0 %6871
  %6873 = vrot.lane.b32.xlu0 %v6833, 29
  %v6874 = vpop.permute.xlu0 %6873
  %6875 = vrot.lane.b32.xlu0 %v6834, 29
  %v6876 = vpop.permute.xlu0 %6875
  %6877 = vrot.lane.b32.xlu0 %v6835, 29
  %v6878 = vpop.permute.xlu0 %6877
  %6879 = vrot.lane.b32.xlu0 %v6836, 29
  %v6880 = vpop.permute.xlu0 %6879
  %6881 = vrot.lane.b32.xlu0 %v6837, 29
  %v6882 = vpop.permute.xlu0 %6881
  %6883 = vrot.lane.b32.xlu0 %v6838, 29
  %v6884 = vpop.permute.xlu0 %6883
  %6885 = vrot.lane.b32.xlu0 %v6839, 29
  %v6886 = vpop.permute.xlu0 %6885
  %6887 = vrot.lane.b32.xlu0 %v6840, 29
  %v6888 = vpop.permute.xlu0 %6887
  %6889 = vrot.lane.b32.xlu0 %v6841, 29
  %v6890 = vpop.permute.xlu0 %6889
  %6891 = vrot.lane.b32.xlu0 %v6842, 29
  %v6892 = vpop.permute.xlu0 %6891
  %6893 = vrot.lane.b32.xlu0 %v6843, 29
  %v6894 = vpop.permute.xlu0 %6893
  %v6895 = vsel %vm2471, %v6862, %v6864
  %v6896 = vsel %vm2471, %v6864, %v6866
  %v6897 = vsel %vm2471, %v6866, %v6868
  %v6898 = vsel %vm2471, %v6868, %v6870
  %v6899 = vsel %vm2471, %v6870, %v6872
  %v6900 = vsel %vm2471, %v6872, %v6874
  %v6901 = vsel %vm2471, %v6874, %v6876
  %v6902 = vsel %vm2471, %v6876, %v6878
  %v6903 = vsel %vm2471, %v6878, %v6880
  %v6904 = vsel %vm2471, %v6880, %v6882
  %v6905 = vsel %vm2471, %v6882, %v6884
  %v6906 = vsel %vm2471, %v6884, %v6886
  %v6907 = vsel %vm2471, %v6886, %v6888
  %v6908 = vsel %vm2471, %v6888, %v6890
  %v6909 = vsel %vm2471, %v6890, %v6892
  %v6910 = vsel %vm2471, %v6892, %v6894
  %6927 = vst [vmem:[#allocation3 + $0xa80] sm:$0xff] %v6895
  %6928 = vst [vmem:[#allocation3 + $0xa88] sm:$0xff] %v6896
  %6929 = vst [vmem:[#allocation3 + $0xa90] sm:$0xff] %v6897
  %6930 = vst [vmem:[#allocation3 + $0xa98] sm:$0xff] %v6898
  %6931 = vst [vmem:[#allocation3 + $0xaa0] sm:$0xff] %v6899
  %6932 = vst [vmem:[#allocation3 + $0xaa8] sm:$0xff] %v6900
  %6933 = vst [vmem:[#allocation3 + $0xab0] sm:$0xff] %v6901
  %6934 = vst [vmem:[#allocation3 + $0xab8] sm:$0xff] %v6902
  %6935 = vst [vmem:[#allocation3 + $0xac0] sm:$0xff] %v6903
  %6936 = vst [vmem:[#allocation3 + $0xac8] sm:$0xff] %v6904
  %6937 = vst [vmem:[#allocation3 + $0xad0] sm:$0xff] %v6905
  %6938 = vst [vmem:[#allocation3 + $0xad8] sm:$0xff] %v6906
  %6939 = vst [vmem:[#allocation3 + $0xae0] sm:$0xff] %v6907
  %6940 = vst [vmem:[#allocation3 + $0xae8] sm:$0xff] %v6908
  %6941 = vst [vmem:[#allocation3 + $0xaf0] sm:$0xff] %v6909
  %6942 = vst [vmem:[#allocation3 + $0xaf8] sm:$0xff] %v6910
  %v6943 = vld [vmem:[#allocation4 + $0x8] sm:$0xff]
  %v6944 = vld [vmem:[#allocation4 + $0x10] sm:$0xff]
  %v6945 = vld [vmem:[#allocation4 + $0x18] sm:$0xff]
  %v6946 = vld [vmem:[#allocation4 + $0x20] sm:$0xff]
  %v6947 = vld [vmem:[#allocation4 + $0x28] sm:$0xff]
  %v6948 = vld [vmem:[#allocation4 + $0x30] sm:$0xff]
  %v6949 = vld [vmem:[#allocation4 + $0x38] sm:$0xff]
  %v6950 = vld [vmem:[#allocation4 + $0x40] sm:$0xff]
  %v6951 = vld [vmem:[#allocation4 + $0x48] sm:$0xff]
  %v6952 = vld [vmem:[#allocation4 + $0x50] sm:$0xff]
  %v6953 = vld [vmem:[#allocation4 + $0x58] sm:$0xff]
  %v6954 = vld [vmem:[#allocation4 + $0x60] sm:$0xff]
  %v6955 = vld [vmem:[#allocation4 + $0x68] sm:$0xff]
  %v6956 = vld [vmem:[#allocation4 + $0x70] sm:$0xff]
  %v6957 = vld [vmem:[#allocation4 + $0x78] sm:$0xff]
  %v6958 = vld [vmem:[#allocation4 + $0x80] sm:$0xff]
  %v6959 = vld [vmem:[#allocation4 + $0x88] sm:$0xff]
  %6977 = vrot.lane.b32.xlu0 %v6943, 28
  %v6978 = vpop.permute.xlu0 %6977
  %6979 = vrot.lane.b32.xlu0 %v6944, 28
  %v6980 = vpop.permute.xlu0 %6979
  %6981 = vrot.lane.b32.xlu0 %v6945, 28
  %v6982 = vpop.permute.xlu0 %6981
  %6983 = vrot.lane.b32.xlu0 %v6946, 28
  %v6984 = vpop.permute.xlu0 %6983
  %6985 = vrot.lane.b32.xlu0 %v6947, 28
  %v6986 = vpop.permute.xlu0 %6985
  %6987 = vrot.lane.b32.xlu0 %v6948, 28
  %v6988 = vpop.permute.xlu0 %6987
  %6989 = vrot.lane.b32.xlu0 %v6949, 28
  %v6990 = vpop.permute.xlu0 %6989
  %6991 = vrot.lane.b32.xlu0 %v6950, 28
  %v6992 = vpop.permute.xlu0 %6991
  %6993 = vrot.lane.b32.xlu0 %v6951, 28
  %v6994 = vpop.permute.xlu0 %6993
  %6995 = vrot.lane.b32.xlu0 %v6952, 28
  %v6996 = vpop.permute.xlu0 %6995
  %6997 = vrot.lane.b32.xlu0 %v6953, 28
  %v6998 = vpop.permute.xlu0 %6997
  %6999 = vrot.lane.b32.xlu0 %v6954, 28
  %v7000 = vpop.permute.xlu0 %6999
  %7001 = vrot.lane.b32.xlu0 %v6955, 28
  %v7002 = vpop.permute.xlu0 %7001
  %7003 = vrot.lane.b32.xlu0 %v6956, 28
  %v7004 = vpop.permute.xlu0 %7003
  %7005 = vrot.lane.b32.xlu0 %v6957, 28
  %v7006 = vpop.permute.xlu0 %7005
  %7007 = vrot.lane.b32.xlu0 %v6958, 28
  %v7008 = vpop.permute.xlu0 %7007
  %7009 = vrot.lane.b32.xlu0 %v6959, 28
  %v7010 = vpop.permute.xlu0 %7009
  %v7011 = vsel %vm2588, %v6978, %v6980
  %v7012 = vsel %vm2588, %v6980, %v6982
  %v7013 = vsel %vm2588, %v6982, %v6984
  %v7014 = vsel %vm2588, %v6984, %v6986
  %v7015 = vsel %vm2588, %v6986, %v6988
  %v7016 = vsel %vm2588, %v6988, %v6990
  %v7017 = vsel %vm2588, %v6990, %v6992
  %v7018 = vsel %vm2588, %v6992, %v6994
  %v7019 = vsel %vm2588, %v6994, %v6996
  %v7020 = vsel %vm2588, %v6996, %v6998
  %v7021 = vsel %vm2588, %v6998, %v7000
  %v7022 = vsel %vm2588, %v7000, %v7002
  %v7023 = vsel %vm2588, %v7002, %v7004
  %v7024 = vsel %vm2588, %v7004, %v7006
  %v7025 = vsel %vm2588, %v7006, %v7008
  %v7026 = vsel %vm2588, %v7008, %v7010
  %7043 = vst [vmem:[#allocation3 + $0xb00] sm:$0xff] %v7011
  %7044 = vst [vmem:[#allocation3 + $0xb08] sm:$0xff] %v7012
  %7045 = vst [vmem:[#allocation3 + $0xb10] sm:$0xff] %v7013
  %7046 = vst [vmem:[#allocation3 + $0xb18] sm:$0xff] %v7014
  %7047 = vst [vmem:[#allocation3 + $0xb20] sm:$0xff] %v7015
  %7048 = vst [vmem:[#allocation3 + $0xb28] sm:$0xff] %v7016
  %7049 = vst [vmem:[#allocation3 + $0xb30] sm:$0xff] %v7017
  %7050 = vst [vmem:[#allocation3 + $0xb38] sm:$0xff] %v7018
  %7051 = vst [vmem:[#allocation3 + $0xb40] sm:$0xff] %v7019
  %7052 = vst [vmem:[#allocation3 + $0xb48] sm:$0xff] %v7020
  %7053 = vst [vmem:[#allocation3 + $0xb50] sm:$0xff] %v7021
  %7054 = vst [vmem:[#allocation3 + $0xb58] sm:$0xff] %v7022
  %7055 = vst [vmem:[#allocation3 + $0xb60] sm:$0xff] %v7023
  %7056 = vst [vmem:[#allocation3 + $0xb68] sm:$0xff] %v7024
  %7057 = vst [vmem:[#allocation3 + $0xb70] sm:$0xff] %v7025
  %7058 = vst [vmem:[#allocation3 + $0xb78] sm:$0xff] %v7026
  %v7059 = vld [vmem:[#allocation4 + $0x8] sm:$0xff]
  %v7060 = vld [vmem:[#allocation4 + $0x10] sm:$0xff]
  %v7061 = vld [vmem:[#allocation4 + $0x18] sm:$0xff]
  %v7062 = vld [vmem:[#allocation4 + $0x20] sm:$0xff]
  %v7063 = vld [vmem:[#allocation4 + $0x28] sm:$0xff]
  %v7064 = vld [vmem:[#allocation4 + $0x30] sm:$0xff]
  %v7065 = vld [vmem:[#allocation4 + $0x38] sm:$0xff]
  %v7066 = vld [vmem:[#allocation4 + $0x40] sm:$0xff]
  %v7067 = vld [vmem:[#allocation4 + $0x48] sm:$0xff]
  %v7068 = vld [vmem:[#allocation4 + $0x50] sm:$0xff]
  %v7069 = vld [vmem:[#allocation4 + $0x58] sm:$0xff]
  %v7070 = vld [vmem:[#allocation4 + $0x60] sm:$0xff]
  %v7071 = vld [vmem:[#allocation4 + $0x68] sm:$0xff]
  %v7072 = vld [vmem:[#allocation4 + $0x70] sm:$0xff]
  %v7073 = vld [vmem:[#allocation4 + $0x78] sm:$0xff]
  %v7074 = vld [vmem:[#allocation4 + $0x80] sm:$0xff]
  %v7075 = vld [vmem:[#allocation4 + $0x88] sm:$0xff]
  %7093 = vrot.lane.b32.xlu0 %v7059, 27
  %v7094 = vpop.permute.xlu0 %7093
  %7095 = vrot.lane.b32.xlu0 %v7060, 27
  %v7096 = vpop.permute.xlu0 %7095
  %7097 = vrot.lane.b32.xlu0 %v7061, 27
  %v7098 = vpop.permute.xlu0 %7097
  %7099 = vrot.lane.b32.xlu0 %v7062, 27
  %v7100 = vpop.permute.xlu0 %7099
  %7101 = vrot.lane.b32.xlu0 %v7063, 27
  %v7102 = vpop.permute.xlu0 %7101
  %7103 = vrot.lane.b32.xlu0 %v7064, 27
  %v7104 = vpop.permute.xlu0 %7103
  %7105 = vrot.lane.b32.xlu0 %v7065, 27
  %v7106 = vpop.permute.xlu0 %7105
  %7107 = vrot.lane.b32.xlu0 %v7066, 27
  %v7108 = vpop.permute.xlu0 %7107
  %7109 = vrot.lane.b32.xlu0 %v7067, 27
  %v7110 = vpop.permute.xlu0 %7109
  %7111 = vrot.lane.b32.xlu0 %v7068, 27
  %v7112 = vpop.permute.xlu0 %7111
  %7113 = vrot.lane.b32.xlu0 %v7069, 27
  %v7114 = vpop.permute.xlu0 %7113
  %7115 = vrot.lane.b32.xlu0 %v7070, 27
  %v7116 = vpop.permute.xlu0 %7115
  %7117 = vrot.lane.b32.xlu0 %v7071, 27
  %v7118 = vpop.permute.xlu0 %7117
  %7119 = vrot.lane.b32.xlu0 %v7072, 27
  %v7120 = vpop.permute.xlu0 %7119
  %7121 = vrot.lane.b32.xlu0 %v7073, 27
  %v7122 = vpop.permute.xlu0 %7121
  %7123 = vrot.lane.b32.xlu0 %v7074, 27
  %v7124 = vpop.permute.xlu0 %7123
  %7125 = vrot.lane.b32.xlu0 %v7075, 27
  %v7126 = vpop.permute.xlu0 %7125
  %v7127 = vsel %vm2705, %v7094, %v7096
  %v7128 = vsel %vm2705, %v7096, %v7098
  %v7129 = vsel %vm2705, %v7098, %v7100
  %v7130 = vsel %vm2705, %v7100, %v7102
  %v7131 = vsel %vm2705, %v7102, %v7104
  %v7132 = vsel %vm2705, %v7104, %v7106
  %v7133 = vsel %vm2705, %v7106, %v7108
  %v7134 = vsel %vm2705, %v7108, %v7110
  %v7135 = vsel %vm2705, %v7110, %v7112
  %v7136 = vsel %vm2705, %v7112, %v7114
  %v7137 = vsel %vm2705, %v7114, %v7116
  %v7138 = vsel %vm2705, %v7116, %v7118
  %v7139 = vsel %vm2705, %v7118, %v7120
  %v7140 = vsel %vm2705, %v7120, %v7122
  %v7141 = vsel %vm2705, %v7122, %v7124
  %v7142 = vsel %vm2705, %v7124, %v7126
  %7159 = vst [vmem:[#allocation3 + $0xb80] sm:$0xff] %v7127
  %7160 = vst [vmem:[#allocation3 + $0xb88] sm:$0xff] %v7128
  %7161 = vst [vmem:[#allocation3 + $0xb90] sm:$0xff] %v7129
  %7162 = vst [vmem:[#allocation3 + $0xb98] sm:$0xff] %v7130
  %7163 = vst [vmem:[#allocation3 + $0xba0] sm:$0xff] %v7131
  %7164 = vst [vmem:[#allocation3 + $0xba8] sm:$0xff] %v7132
  %7165 = vst [vmem:[#allocation3 + $0xbb0] sm:$0xff] %v7133
  %7166 = vst [vmem:[#allocation3 + $0xbb8] sm:$0xff] %v7134
  %7167 = vst [vmem:[#allocation3 + $0xbc0] sm:$0xff] %v7135
  %7168 = vst [vmem:[#allocation3 + $0xbc8] sm:$0xff] %v7136
  %7169 = vst [vmem:[#allocation3 + $0xbd0] sm:$0xff] %v7137
  %7170 = vst [vmem:[#allocation3 + $0xbd8] sm:$0xff] %v7138
  %7171 = vst [vmem:[#allocation3 + $0xbe0] sm:$0xff] %v7139
  %7172 = vst [vmem:[#allocation3 + $0xbe8] sm:$0xff] %v7140
  %7173 = vst [vmem:[#allocation3 + $0xbf0] sm:$0xff] %v7141
  %7174 = vst [vmem:[#allocation3 + $0xbf8] sm:$0xff] %v7142
  %v7175 = vld [vmem:[#allocation4 + $0x8] sm:$0xff]
  %v7176 = vld [vmem:[#allocation4 + $0x10] sm:$0xff]
  %v7177 = vld [vmem:[#allocation4 + $0x18] sm:$0xff]
  %v7178 = vld [vmem:[#allocation4 + $0x20] sm:$0xff]
  %v7179 = vld [vmem:[#allocation4 + $0x28] sm:$0xff]
  %v7180 = vld [vmem:[#allocation4 + $0x30] sm:$0xff]
  %v7181 = vld [vmem:[#allocation4 + $0x38] sm:$0xff]
  %v7182 = vld [vmem:[#allocation4 + $0x40] sm:$0xff]
  %v7183 = vld [vmem:[#allocation4 + $0x48] sm:$0xff]
  %v7184 = vld [vmem:[#allocation4 + $0x50] sm:$0xff]
  %v7185 = vld [vmem:[#allocation4 + $0x58] sm:$0xff]
  %v7186 = vld [vmem:[#allocation4 + $0x60] sm:$0xff]
  %v7187 = vld [vmem:[#allocation4 + $0x68] sm:$0xff]
  %v7188 = vld [vmem:[#allocation4 + $0x70] sm:$0xff]
  %v7189 = vld [vmem:[#allocation4 + $0x78] sm:$0xff]
  %v7190 = vld [vmem:[#allocation4 + $0x80] sm:$0xff]
  %v7191 = vld [vmem:[#allocation4 + $0x88] sm:$0xff]
  %7209 = vrot.lane.b32.xlu0 %v7175, 19
  %v7210 = vpop.permute.xlu0 %7209
  %7211 = vrot.lane.b32.xlu0 %v7176, 19
  %v7212 = vpop.permute.xlu0 %7211
  %7213 = vrot.lane.b32.xlu0 %v7177, 19
  %v7214 = vpop.permute.xlu0 %7213
  %7215 = vrot.lane.b32.xlu0 %v7178, 19
  %v7216 = vpop.permute.xlu0 %7215
  %7217 = vrot.lane.b32.xlu0 %v7179, 19
  %v7218 = vpop.permute.xlu0 %7217
  %7219 = vrot.lane.b32.xlu0 %v7180, 19
  %v7220 = vpop.permute.xlu0 %7219
  %7221 = vrot.lane.b32.xlu0 %v7181, 19
  %v7222 = vpop.permute.xlu0 %7221
  %7223 = vrot.lane.b32.xlu0 %v7182, 19
  %v7224 = vpop.permute.xlu0 %7223
  %7225 = vrot.lane.b32.xlu0 %v7183, 19
  %v7226 = vpop.permute.xlu0 %7225
  %7227 = vrot.lane.b32.xlu0 %v7184, 19
  %v7228 = vpop.permute.xlu0 %7227
  %7229 = vrot.lane.b32.xlu0 %v7185, 19
  %v7230 = vpop.permute.xlu0 %7229
  %7231 = vrot.lane.b32.xlu0 %v7186, 19
  %v7232 = vpop.permute.xlu0 %7231
  %7233 = vrot.lane.b32.xlu0 %v7187, 19
  %v7234 = vpop.permute.xlu0 %7233
  %7235 = vrot.lane.b32.xlu0 %v7188, 19
  %v7236 = vpop.permute.xlu0 %7235
  %7237 = vrot.lane.b32.xlu0 %v7189, 19
  %v7238 = vpop.permute.xlu0 %7237
  %7239 = vrot.lane.b32.xlu0 %v7190, 19
  %v7240 = vpop.permute.xlu0 %7239
  %7241 = vrot.lane.b32.xlu0 %v7191, 19
  %v7242 = vpop.permute.xlu0 %7241
  %v7243 = vsel %vm2822, %v7210, %v7212
  %v7244 = vsel %vm2822, %v7212, %v7214
  %v7245 = vsel %vm2822, %v7214, %v7216
  %v7246 = vsel %vm2822, %v7216, %v7218
  %v7247 = vsel %vm2822, %v7218, %v7220
  %v7248 = vsel %vm2822, %v7220, %v7222
  %v7249 = vsel %vm2822, %v7222, %v7224
  %v7250 = vsel %vm2822, %v7224, %v7226
  %v7251 = vsel %vm2822, %v7226, %v7228
  %v7252 = vsel %vm2822, %v7228, %v7230
  %v7253 = vsel %vm2822, %v7230, %v7232
  %v7254 = vsel %vm2822, %v7232, %v7234
  %v7255 = vsel %vm2822, %v7234, %v7236
  %v7256 = vsel %vm2822, %v7236, %v7238
  %v7257 = vsel %vm2822, %v7238, %v7240
  %v7258 = vsel %vm2822, %v7240, %v7242
  %7275 = vst [vmem:[#allocation3 + $0xc00] sm:$0xff] %v7243
  %7276 = vst [vmem:[#allocation3 + $0xc08] sm:$0xff] %v7244
  %7277 = vst [vmem:[#allocation3 + $0xc10] sm:$0xff] %v7245
  %7278 = vst [vmem:[#allocation3 + $0xc18] sm:$0xff] %v7246
  %7279 = vst [vmem:[#allocation3 + $0xc20] sm:$0xff] %v7247
  %7280 = vst [vmem:[#allocation3 + $0xc28] sm:$0xff] %v7248
  %7281 = vst [vmem:[#allocation3 + $0xc30] sm:$0xff] %v7249
  %7282 = vst [vmem:[#allocation3 + $0xc38] sm:$0xff] %v7250
  %7283 = vst [vmem:[#allocation3 + $0xc40] sm:$0xff] %v7251
  %7284 = vst [vmem:[#allocation3 + $0xc48] sm:$0xff] %v7252
  %7285 = vst [vmem:[#allocation3 + $0xc50] sm:$0xff] %v7253
  %7286 = vst [vmem:[#allocation3 + $0xc58] sm:$0xff] %v7254
  %7287 = vst [vmem:[#allocation3 + $0xc60] sm:$0xff] %v7255
  %7288 = vst [vmem:[#allocation3 + $0xc68] sm:$0xff] %v7256
  %7289 = vst [vmem:[#allocation3 + $0xc70] sm:$0xff] %v7257
  %7290 = vst [vmem:[#allocation3 + $0xc78] sm:$0xff] %v7258
  %v7291 = vld [vmem:[#allocation4 + $0x8] sm:$0xff]
  %v7292 = vld [vmem:[#allocation4 + $0x10] sm:$0xff]
  %v7293 = vld [vmem:[#allocation4 + $0x18] sm:$0xff]
  %v7294 = vld [vmem:[#allocation4 + $0x20] sm:$0xff]
  %v7295 = vld [vmem:[#allocation4 + $0x28] sm:$0xff]
  %v7296 = vld [vmem:[#allocation4 + $0x30] sm:$0xff]
  %v7297 = vld [vmem:[#allocation4 + $0x38] sm:$0xff]
  %v7298 = vld [vmem:[#allocation4 + $0x40] sm:$0xff]
  %v7299 = vld [vmem:[#allocation4 + $0x48] sm:$0xff]
  %v7300 = vld [vmem:[#allocation4 + $0x50] sm:$0xff]
  %v7301 = vld [vmem:[#allocation4 + $0x58] sm:$0xff]
  %v7302 = vld [vmem:[#allocation4 + $0x60] sm:$0xff]
  %v7303 = vld [vmem:[#allocation4 + $0x68] sm:$0xff]
  %v7304 = vld [vmem:[#allocation4 + $0x70] sm:$0xff]
  %v7305 = vld [vmem:[#allocation4 + $0x78] sm:$0xff]
  %v7306 = vld [vmem:[#allocation4 + $0x80] sm:$0xff]
  %v7307 = vld [vmem:[#allocation4 + $0x88] sm:$0xff]
  %7325 = vrot.lane.b32.xlu0 %v7291, 18
  %v7326 = vpop.permute.xlu0 %7325
  %7327 = vrot.lane.b32.xlu0 %v7292, 18
  %v7328 = vpop.permute.xlu0 %7327
  %7329 = vrot.lane.b32.xlu0 %v7293, 18
  %v7330 = vpop.permute.xlu0 %7329
  %7331 = vrot.lane.b32.xlu0 %v7294, 18
  %v7332 = vpop.permute.xlu0 %7331
  %7333 = vrot.lane.b32.xlu0 %v7295, 18
  %v7334 = vpop.permute.xlu0 %7333
  %7335 = vrot.lane.b32.xlu0 %v7296, 18
  %v7336 = vpop.permute.xlu0 %7335
  %7337 = vrot.lane.b32.xlu0 %v7297, 18
  %v7338 = vpop.permute.xlu0 %7337
  %7339 = vrot.lane.b32.xlu0 %v7298, 18
  %v7340 = vpop.permute.xlu0 %7339
  %7341 = vrot.lane.b32.xlu0 %v7299, 18
  %v7342 = vpop.permute.xlu0 %7341
  %7343 = vrot.lane.b32.xlu0 %v7300, 18
  %v7344 = vpop.permute.xlu0 %7343
  %7345 = vrot.lane.b32.xlu0 %v7301, 18
  %v7346 = vpop.permute.xlu0 %7345
  %7347 = vrot.lane.b32.xlu0 %v7302, 18
  %v7348 = vpop.permute.xlu0 %7347
  %7349 = vrot.lane.b32.xlu0 %v7303, 18
  %v7350 = vpop.permute.xlu0 %7349
  %7351 = vrot.lane.b32.xlu0 %v7304, 18
  %v7352 = vpop.permute.xlu0 %7351
  %7353 = vrot.lane.b32.xlu0 %v7305, 18
  %v7354 = vpop.permute.xlu0 %7353
  %7355 = vrot.lane.b32.xlu0 %v7306, 18
  %v7356 = vpop.permute.xlu0 %7355
  %7357 = vrot.lane.b32.xlu0 %v7307, 18
  %v7358 = vpop.permute.xlu0 %7357
  %v7359 = vsel %vm2939, %v7326, %v7328
  %v7360 = vsel %vm2939, %v7328, %v7330
  %v7361 = vsel %vm2939, %v7330, %v7332
  %v7362 = vsel %vm2939, %v7332, %v7334
  %v7363 = vsel %vm2939, %v7334, %v7336
  %v7364 = vsel %vm2939, %v7336, %v7338
  %v7365 = vsel %vm2939, %v7338, %v7340
  %v7366 = vsel %vm2939, %v7340, %v7342
  %v7367 = vsel %vm2939, %v7342, %v7344
  %v7368 = vsel %vm2939, %v7344, %v7346
  %v7369 = vsel %vm2939, %v7346, %v7348
  %v7370 = vsel %vm2939, %v7348, %v7350
  %v7371 = vsel %vm2939, %v7350, %v7352
  %v7372 = vsel %vm2939, %v7352, %v7354
  %v7373 = vsel %vm2939, %v7354, %v7356
  %v7374 = vsel %vm2939, %v7356, %v7358
  %7391 = vst [vmem:[#allocation3 + $0xc80] sm:$0xff] %v7359
  %7392 = vst [vmem:[#allocation3 + $0xc88] sm:$0xff] %v7360
  %7393 = vst [vmem:[#allocation3 + $0xc90] sm:$0xff] %v7361
  %7394 = vst [vmem:[#allocation3 + $0xc98] sm:$0xff] %v7362
  %7395 = vst [vmem:[#allocation3 + $0xca0] sm:$0xff] %v7363
  %7396 = vst [vmem:[#allocation3 + $0xca8] sm:$0xff] %v7364
  %7397 = vst [vmem:[#allocation3 + $0xcb0] sm:$0xff] %v7365
  %7398 = vst [vmem:[#allocation3 + $0xcb8] sm:$0xff] %v7366
  %7399 = vst [vmem:[#allocation3 + $0xcc0] sm:$0xff] %v7367
  %7400 = vst [vmem:[#allocation3 + $0xcc8] sm:$0xff] %v7368
  %7401 = vst [vmem:[#allocation3 + $0xcd0] sm:$0xff] %v7369
  %7402 = vst [vmem:[#allocation3 + $0xcd8] sm:$0xff] %v7370
  %7403 = vst [vmem:[#allocation3 + $0xce0] sm:$0xff] %v7371
  %7404 = vst [vmem:[#allocation3 + $0xce8] sm:$0xff] %v7372
  %7405 = vst [vmem:[#allocation3 + $0xcf0] sm:$0xff] %v7373
  %7406 = vst [vmem:[#allocation3 + $0xcf8] sm:$0xff] %v7374
  %v7407 = vld [vmem:[#allocation4 + $0x8] sm:$0xff]
  %v7408 = vld [vmem:[#allocation4 + $0x10] sm:$0xff]
  %v7409 = vld [vmem:[#allocation4 + $0x18] sm:$0xff]
  %v7410 = vld [vmem:[#allocation4 + $0x20] sm:$0xff]
  %v7411 = vld [vmem:[#allocation4 + $0x28] sm:$0xff]
  %v7412 = vld [vmem:[#allocation4 + $0x30] sm:$0xff]
  %v7413 = vld [vmem:[#allocation4 + $0x38] sm:$0xff]
  %v7414 = vld [vmem:[#allocation4 + $0x40] sm:$0xff]
  %v7415 = vld [vmem:[#allocation4 + $0x48] sm:$0xff]
  %v7416 = vld [vmem:[#allocation4 + $0x50] sm:$0xff]
  %v7417 = vld [vmem:[#allocation4 + $0x58] sm:$0xff]
  %v7418 = vld [vmem:[#allocation4 + $0x60] sm:$0xff]
  %v7419 = vld [vmem:[#allocation4 + $0x68] sm:$0xff]
  %v7420 = vld [vmem:[#allocation4 + $0x70] sm:$0xff]
  %v7421 = vld [vmem:[#allocation4 + $0x78] sm:$0xff]
  %v7422 = vld [vmem:[#allocation4 + $0x80] sm:$0xff]
  %v7423 = vld [vmem:[#allocation4 + $0x88] sm:$0xff]
  %7441 = vrot.lane.b32.xlu0 %v7407, 17
  %v7442 = vpop.permute.xlu0 %7441
  %7443 = vrot.lane.b32.xlu0 %v7408, 17
  %v7444 = vpop.permute.xlu0 %7443
  %7445 = vrot.lane.b32.xlu0 %v7409, 17
  %v7446 = vpop.permute.xlu0 %7445
  %7447 = vrot.lane.b32.xlu0 %v7410, 17
  %v7448 = vpop.permute.xlu0 %7447
  %7449 = vrot.lane.b32.xlu0 %v7411, 17
  %v7450 = vpop.permute.xlu0 %7449
  %7451 = vrot.lane.b32.xlu0 %v7412, 17
  %v7452 = vpop.permute.xlu0 %7451
  %7453 = vrot.lane.b32.xlu0 %v7413, 17
  %v7454 = vpop.permute.xlu0 %7453
  %7455 = vrot.lane.b32.xlu0 %v7414, 17
  %v7456 = vpop.permute.xlu0 %7455
  %7457 = vrot.lane.b32.xlu0 %v7415, 17
  %v7458 = vpop.permute.xlu0 %7457
  %7459 = vrot.lane.b32.xlu0 %v7416, 17
  %v7460 = vpop.permute.xlu0 %7459
  %7461 = vrot.lane.b32.xlu0 %v7417, 17
  %v7462 = vpop.permute.xlu0 %7461
  %7463 = vrot.lane.b32.xlu0 %v7418, 17
  %v7464 = vpop.permute.xlu0 %7463
  %7465 = vrot.lane.b32.xlu0 %v7419, 17
  %v7466 = vpop.permute.xlu0 %7465
  %7467 = vrot.lane.b32.xlu0 %v7420, 17
  %v7468 = vpop.permute.xlu0 %7467
  %7469 = vrot.lane.b32.xlu0 %v7421, 17
  %v7470 = vpop.permute.xlu0 %7469
  %7471 = vrot.lane.b32.xlu0 %v7422, 17
  %v7472 = vpop.permute.xlu0 %7471
  %7473 = vrot.lane.b32.xlu0 %v7423, 17
  %v7474 = vpop.permute.xlu0 %7473
  %v7475 = vsel %vm3056, %v7442, %v7444
  %v7476 = vsel %vm3056, %v7444, %v7446
  %v7477 = vsel %vm3056, %v7446, %v7448
  %v7478 = vsel %vm3056, %v7448, %v7450
  %v7479 = vsel %vm3056, %v7450, %v7452
  %v7480 = vsel %vm3056, %v7452, %v7454
  %v7481 = vsel %vm3056, %v7454, %v7456
  %v7482 = vsel %vm3056, %v7456, %v7458
  %v7483 = vsel %vm3056, %v7458, %v7460
  %v7484 = vsel %vm3056, %v7460, %v7462
  %v7485 = vsel %vm3056, %v7462, %v7464
  %v7486 = vsel %vm3056, %v7464, %v7466
  %v7487 = vsel %vm3056, %v7466, %v7468
  %v7488 = vsel %vm3056, %v7468, %v7470
  %v7489 = vsel %vm3056, %v7470, %v7472
  %v7490 = vsel %vm3056, %v7472, %v7474
  %7507 = vst [vmem:[#allocation3 + $0xd00] sm:$0xff] %v7475
  %7508 = vst [vmem:[#allocation3 + $0xd08] sm:$0xff] %v7476
  %7509 = vst [vmem:[#allocation3 + $0xd10] sm:$0xff] %v7477
  %7510 = vst [vmem:[#allocation3 + $0xd18] sm:$0xff] %v7478
  %7511 = vst [vmem:[#allocation3 + $0xd20] sm:$0xff] %v7479
  %7512 = vst [vmem:[#allocation3 + $0xd28] sm:$0xff] %v7480
  %7513 = vst [vmem:[#allocation3 + $0xd30] sm:$0xff] %v7481
  %7514 = vst [vmem:[#allocation3 + $0xd38] sm:$0xff] %v7482
  %7515 = vst [vmem:[#allocation3 + $0xd40] sm:$0xff] %v7483
  %7516 = vst [vmem:[#allocation3 + $0xd48] sm:$0xff] %v7484
  %7517 = vst [vmem:[#allocation3 + $0xd50] sm:$0xff] %v7485
  %7518 = vst [vmem:[#allocation3 + $0xd58] sm:$0xff] %v7486
  %7519 = vst [vmem:[#allocation3 + $0xd60] sm:$0xff] %v7487
  %7520 = vst [vmem:[#allocation3 + $0xd68] sm:$0xff] %v7488
  %7521 = vst [vmem:[#allocation3 + $0xd70] sm:$0xff] %v7489
  %7522 = vst [vmem:[#allocation3 + $0xd78] sm:$0xff] %v7490
  %v7523 = vld [vmem:[%s4] sm:$0xff]
  %v7524 = vld [vmem:[#allocation3] sm:$0xff]
  %v7525 = vld [vmem:[#allocation3 + $0x8] sm:$0xff]
  %v7526 = vld [vmem:[#allocation3 + $0x10] sm:$0xff]
  %v7527 = vld [vmem:[#allocation3 + $0x18] sm:$0xff]
  %v7528 = vld [vmem:[#allocation3 + $0x20] sm:$0xff]
  %v7529 = vld [vmem:[#allocation3 + $0x28] sm:$0xff]
  %v7530 = vld [vmem:[#allocation3 + $0x30] sm:$0xff]
  %v7531 = vld [vmem:[#allocation3 + $0x38] sm:$0xff]
  %v7532 = vld [vmem:[#allocation3 + $0x40] sm:$0xff]
  %v7533 = vld [vmem:[#allocation3 + $0x48] sm:$0xff]
  %v7534 = vld [vmem:[#allocation3 + $0x50] sm:$0xff]
  %v7535 = vld [vmem:[#allocation3 + $0x58] sm:$0xff]
  %v7536 = vld [vmem:[#allocation3 + $0x60] sm:$0xff]
  %v7537 = vld [vmem:[#allocation3 + $0x68] sm:$0xff]
  %v7538 = vld [vmem:[#allocation3 + $0x70] sm:$0xff]
  %v7539 = vld [vmem:[#allocation3 + $0x78] sm:$0xff]
  %v7540 = vld [vmem:[#allocation3 + $0x80] sm:$0xff]
  %v7541 = vld [vmem:[#allocation3 + $0x88] sm:$0xff]
  %v7542 = vld [vmem:[#allocation3 + $0x90] sm:$0xff]
  %v7543 = vld [vmem:[#allocation3 + $0x98] sm:$0xff]
  %v7544 = vld [vmem:[#allocation3 + $0xa0] sm:$0xff]
  %v7545 = vld [vmem:[#allocation3 + $0xa8] sm:$0xff]
  %v7546 = vld [vmem:[#allocation3 + $0xb0] sm:$0xff]
  %v7547 = vld [vmem:[#allocation3 + $0xb8] sm:$0xff]
  %v7548 = vld [vmem:[#allocation3 + $0xc0] sm:$0xff]
  %v7549 = vld [vmem:[#allocation3 + $0xc8] sm:$0xff]
  %v7550 = vld [vmem:[#allocation3 + $0xd0] sm:$0xff]
  %v7551 = vld [vmem:[#allocation3 + $0xd8] sm:$0xff]
  %v7552 = vld [vmem:[#allocation3 + $0xe0] sm:$0xff]
  %v7553 = vld [vmem:[#allocation3 + $0xe8] sm:$0xff]
  %v7554 = vld [vmem:[#allocation3 + $0xf0] sm:$0xff]
  %v7555 = vld [vmem:[#allocation3 + $0xf8] sm:$0xff]
  %v7556 = vld [vmem:[#allocation3 + $0x100] sm:$0xff]
  %v7557 = vld [vmem:[#allocation3 + $0x108] sm:$0xff]
  %v7558 = vld [vmem:[#allocation3 + $0x110] sm:$0xff]
  %v7559 = vld [vmem:[#allocation3 + $0x118] sm:$0xff]
  %v7560 = vld [vmem:[#allocation3 + $0x120] sm:$0xff]
  %v7561 = vld [vmem:[#allocation3 + $0x128] sm:$0xff]
  %v7562 = vld [vmem:[#allocation3 + $0x130] sm:$0xff]
  %v7563 = vld [vmem:[#allocation3 + $0x138] sm:$0xff]
  %v7564 = vld [vmem:[#allocation3 + $0x140] sm:$0xff]
  %v7565 = vld [vmem:[#allocation3 + $0x148] sm:$0xff]
  %v7566 = vld [vmem:[#allocation3 + $0x150] sm:$0xff]
  %v7567 = vld [vmem:[#allocation3 + $0x158] sm:$0xff]
  %v7568 = vld [vmem:[#allocation3 + $0x160] sm:$0xff]
  %v7569 = vld [vmem:[#allocation3 + $0x168] sm:$0xff]
  %v7570 = vld [vmem:[#allocation3 + $0x170] sm:$0xff]
  %v7571 = vld [vmem:[#allocation3 + $0x178] sm:$0xff]
  %v7572 = vld [vmem:[#allocation3 + $0x180] sm:$0xff]
  %v7573 = vld [vmem:[#allocation3 + $0x188] sm:$0xff]
  %v7574 = vld [vmem:[#allocation3 + $0x190] sm:$0xff]
  %v7575 = vld [vmem:[#allocation3 + $0x198] sm:$0xff]
  %v7576 = vld [vmem:[#allocation3 + $0x1a0] sm:$0xff]
  %v7577 = vld [vmem:[#allocation3 + $0x1a8] sm:$0xff]
  %v7578 = vld [vmem:[#allocation3 + $0x1b0] sm:$0xff]
  %v7579 = vld [vmem:[#allocation3 + $0x1b8] sm:$0xff]
  %v7580 = vld [vmem:[#allocation3 + $0x1c0] sm:$0xff]
  %v7581 = vld [vmem:[#allocation3 + $0x1c8] sm:$0xff]
  %v7582 = vld [vmem:[#allocation3 + $0x1d0] sm:$0xff]
  %v7583 = vld [vmem:[#allocation3 + $0x1d8] sm:$0xff]
  %v7584 = vld [vmem:[#allocation3 + $0x1e0] sm:$0xff]
  %v7585 = vld [vmem:[#allocation3 + $0x1e8] sm:$0xff]
  %v7586 = vld [vmem:[#allocation3 + $0x1f0] sm:$0xff]
  %v7587 = vld [vmem:[#allocation3 + $0x1f8] sm:$0xff]
  %v7588 = vld [vmem:[#allocation3 + $0x200] sm:$0xff]
  %v7589 = vld [vmem:[#allocation3 + $0x208] sm:$0xff]
  %v7590 = vld [vmem:[#allocation3 + $0x210] sm:$0xff]
  %v7591 = vld [vmem:[#allocation3 + $0x218] sm:$0xff]
  %v7592 = vld [vmem:[#allocation3 + $0x220] sm:$0xff]
  %v7593 = vld [vmem:[#allocation3 + $0x228] sm:$0xff]
  %v7594 = vld [vmem:[#allocation3 + $0x230] sm:$0xff]
  %v7595 = vld [vmem:[#allocation3 + $0x238] sm:$0xff]
  %v7596 = vld [vmem:[#allocation3 + $0x240] sm:$0xff]
  %v7597 = vld [vmem:[#allocation3 + $0x248] sm:$0xff]
  %v7598 = vld [vmem:[#allocation3 + $0x250] sm:$0xff]
  %v7599 = vld [vmem:[#allocation3 + $0x258] sm:$0xff]
  %v7600 = vld [vmem:[#allocation3 + $0x260] sm:$0xff]
  %v7601 = vld [vmem:[#allocation3 + $0x268] sm:$0xff]
  %v7602 = vld [vmem:[#allocation3 + $0x270] sm:$0xff]
  %v7603 = vld [vmem:[#allocation3 + $0x278] sm:$0xff]
  %v7604 = vld [vmem:[#allocation3 + $0x280] sm:$0xff]
  %v7605 = vld [vmem:[#allocation3 + $0x288] sm:$0xff]
  %v7606 = vld [vmem:[#allocation3 + $0x290] sm:$0xff]
  %v7607 = vld [vmem:[#allocation3 + $0x298] sm:$0xff]
  %v7608 = vld [vmem:[#allocation3 + $0x2a0] sm:$0xff]
  %v7609 = vld [vmem:[#allocation3 + $0x2a8] sm:$0xff]
  %v7610 = vld [vmem:[#allocation3 + $0x2b0] sm:$0xff]
  %v7611 = vld [vmem:[#allocation3 + $0x2b8] sm:$0xff]
  %v7612 = vld [vmem:[#allocation3 + $0x2c0] sm:$0xff]
  %v7613 = vld [vmem:[#allocation3 + $0x2c8] sm:$0xff]
  %v7614 = vld [vmem:[#allocation3 + $0x2d0] sm:$0xff]
  %v7615 = vld [vmem:[#allocation3 + $0x2d8] sm:$0xff]
  %v7616 = vld [vmem:[#allocation3 + $0x2e0] sm:$0xff]
  %v7617 = vld [vmem:[#allocation3 + $0x2e8] sm:$0xff]
  %v7618 = vld [vmem:[#allocation3 + $0x2f0] sm:$0xff]
  %v7619 = vld [vmem:[#allocation3 + $0x2f8] sm:$0xff]
  %v7620 = vld [vmem:[#allocation3 + $0x300] sm:$0xff]
  %v7621 = vld [vmem:[#allocation3 + $0x308] sm:$0xff]
  %v7622 = vld [vmem:[#allocation3 + $0x310] sm:$0xff]
  %v7623 = vld [vmem:[#allocation3 + $0x318] sm:$0xff]
  %v7624 = vld [vmem:[#allocation3 + $0x320] sm:$0xff]
  %v7625 = vld [vmem:[#allocation3 + $0x328] sm:$0xff]
  %v7626 = vld [vmem:[#allocation3 + $0x330] sm:$0xff]
  %v7627 = vld [vmem:[#allocation3 + $0x338] sm:$0xff]
  %v7628 = vld [vmem:[#allocation3 + $0x340] sm:$0xff]
  %v7629 = vld [vmem:[#allocation3 + $0x348] sm:$0xff]
  %v7630 = vld [vmem:[#allocation3 + $0x350] sm:$0xff]
  %v7631 = vld [vmem:[#allocation3 + $0x358] sm:$0xff]
  %v7632 = vld [vmem:[#allocation3 + $0x360] sm:$0xff]
  %v7633 = vld [vmem:[#allocation3 + $0x368] sm:$0xff]
  %v7634 = vld [vmem:[#allocation3 + $0x370] sm:$0xff]
  %v7635 = vld [vmem:[#allocation3 + $0x378] sm:$0xff]
  %v7636 = vld [vmem:[#allocation3 + $0x380] sm:$0xff]
  %v7637 = vld [vmem:[#allocation3 + $0x388] sm:$0xff]
  %v7638 = vld [vmem:[#allocation3 + $0x390] sm:$0xff]
  %v7639 = vld [vmem:[#allocation3 + $0x398] sm:$0xff]
  %v7640 = vld [vmem:[#allocation3 + $0x3a0] sm:$0xff]
  %v7641 = vld [vmem:[#allocation3 + $0x3a8] sm:$0xff]
  %v7642 = vld [vmem:[#allocation3 + $0x3b0] sm:$0xff]
  %v7643 = vld [vmem:[#allocation3 + $0x3b8] sm:$0xff]
  %v7644 = vld [vmem:[#allocation3 + $0x3c0] sm:$0xff]
  %v7645 = vld [vmem:[#allocation3 + $0x3c8] sm:$0xff]
  %v7646 = vld [vmem:[#allocation3 + $0x3d0] sm:$0xff]
  %v7647 = vld [vmem:[#allocation3 + $0x3d8] sm:$0xff]
  %v7648 = vld [vmem:[#allocation3 + $0x3e0] sm:$0xff]
  %v7649 = vld [vmem:[#allocation3 + $0x3e8] sm:$0xff]
  %v7650 = vld [vmem:[#allocation3 + $0x3f0] sm:$0xff]
  %v7651 = vld [vmem:[#allocation3 + $0x3f8] sm:$0xff]
  %v7652 = vld [vmem:[#allocation3 + $0x400] sm:$0xff]
  %v7653 = vld [vmem:[#allocation3 + $0x408] sm:$0xff]
  %v7654 = vld [vmem:[#allocation3 + $0x410] sm:$0xff]
  %v7655 = vld [vmem:[#allocation3 + $0x418] sm:$0xff]
  %v7656 = vld [vmem:[#allocation3 + $0x420] sm:$0xff]
  %v7657 = vld [vmem:[#allocation3 + $0x428] sm:$0xff]
  %v7658 = vld [vmem:[#allocation3 + $0x430] sm:$0xff]
  %v7659 = vld [vmem:[#allocation3 + $0x438] sm:$0xff]
  %v7660 = vld [vmem:[#allocation3 + $0x440] sm:$0xff]
  %v7661 = vld [vmem:[#allocation3 + $0x448] sm:$0xff]
  %v7662 = vld [vmem:[#allocation3 + $0x450] sm:$0xff]
  %v7663 = vld [vmem:[#allocation3 + $0x458] sm:$0xff]
  %v7664 = vld [vmem:[#allocation3 + $0x460] sm:$0xff]
  %v7665 = vld [vmem:[#allocation3 + $0x468] sm:$0xff]
  %v7666 = vld [vmem:[#allocation3 + $0x470] sm:$0xff]
  %v7667 = vld [vmem:[#allocation3 + $0x478] sm:$0xff]
  %v7668 = vld [vmem:[#allocation3 + $0x480] sm:$0xff]
  %v7669 = vld [vmem:[#allocation3 + $0x488] sm:$0xff]
  %v7670 = vld [vmem:[#allocation3 + $0x490] sm:$0xff]
  %v7671 = vld [vmem:[#allocation3 + $0x498] sm:$0xff]
  %v7672 = vld [vmem:[#allocation3 + $0x4a0] sm:$0xff]
  %v7673 = vld [vmem:[#allocation3 + $0x4a8] sm:$0xff]
  %v7674 = vld [vmem:[#allocation3 + $0x4b0] sm:$0xff]
  %v7675 = vld [vmem:[#allocation3 + $0x4b8] sm:$0xff]
  %v7676 = vld [vmem:[#allocation3 + $0x4c0] sm:$0xff]
  %v7677 = vld [vmem:[#allocation3 + $0x4c8] sm:$0xff]
  %v7678 = vld [vmem:[#allocation3 + $0x4d0] sm:$0xff]
  %v7679 = vld [vmem:[#allocation3 + $0x4d8] sm:$0xff]
  %v7680 = vld [vmem:[#allocation3 + $0x4e0] sm:$0xff]
  %v7681 = vld [vmem:[#allocation3 + $0x4e8] sm:$0xff]
  %v7682 = vld [vmem:[#allocation3 + $0x4f0] sm:$0xff]
  %v7683 = vld [vmem:[#allocation3 + $0x4f8] sm:$0xff]
  %v7684 = vld [vmem:[#allocation3 + $0x500] sm:$0xff]
  %v7685 = vld [vmem:[#allocation3 + $0x508] sm:$0xff]
  %v7686 = vld [vmem:[#allocation3 + $0x510] sm:$0xff]
  %v7687 = vld [vmem:[#allocation3 + $0x518] sm:$0xff]
  %v7688 = vld [vmem:[#allocation3 + $0x520] sm:$0xff]
  %v7689 = vld [vmem:[#allocation3 + $0x528] sm:$0xff]
  %v7690 = vld [vmem:[#allocation3 + $0x530] sm:$0xff]
  %v7691 = vld [vmem:[#allocation3 + $0x538] sm:$0xff]
  %v7692 = vld [vmem:[#allocation3 + $0x540] sm:$0xff]
  %v7693 = vld [vmem:[#allocation3 + $0x548] sm:$0xff]
  %v7694 = vld [vmem:[#allocation3 + $0x550] sm:$0xff]
  %v7695 = vld [vmem:[#allocation3 + $0x558] sm:$0xff]
  %v7696 = vld [vmem:[#allocation3 + $0x560] sm:$0xff]
  %v7697 = vld [vmem:[#allocation3 + $0x568] sm:$0xff]
  %v7698 = vld [vmem:[#allocation3 + $0x570] sm:$0xff]
  %v7699 = vld [vmem:[#allocation3 + $0x578] sm:$0xff]
  %v7700 = vld [vmem:[#allocation3 + $0x580] sm:$0xff]
  %v7701 = vld [vmem:[#allocation3 + $0x588] sm:$0xff]
  %v7702 = vld [vmem:[#allocation3 + $0x590] sm:$0xff]
  %v7703 = vld [vmem:[#allocation3 + $0x598] sm:$0xff]
  %v7704 = vld [vmem:[#allocation3 + $0x5a0] sm:$0xff]
  %v7705 = vld [vmem:[#allocation3 + $0x5a8] sm:$0xff]
  %v7706 = vld [vmem:[#allocation3 + $0x5b0] sm:$0xff]
  %v7707 = vld [vmem:[#allocation3 + $0x5b8] sm:$0xff]
  %v7708 = vld [vmem:[#allocation3 + $0x5c0] sm:$0xff]
  %v7709 = vld [vmem:[#allocation3 + $0x5c8] sm:$0xff]
  %v7710 = vld [vmem:[#allocation3 + $0x5d0] sm:$0xff]
  %v7711 = vld [vmem:[#allocation3 + $0x5d8] sm:$0xff]
  %v7712 = vld [vmem:[#allocation3 + $0x5e0] sm:$0xff]
  %v7713 = vld [vmem:[#allocation3 + $0x5e8] sm:$0xff]
  %v7714 = vld [vmem:[#allocation3 + $0x5f0] sm:$0xff]
  %v7715 = vld [vmem:[#allocation3 + $0x5f8] sm:$0xff]
  %v7716 = vld [vmem:[#allocation3 + $0x600] sm:$0xff]
  %v7717 = vld [vmem:[#allocation3 + $0x608] sm:$0xff]
  %v7718 = vld [vmem:[#allocation3 + $0x610] sm:$0xff]
  %v7719 = vld [vmem:[#allocation3 + $0x618] sm:$0xff]
  %v7720 = vld [vmem:[#allocation3 + $0x620] sm:$0xff]
  %v7721 = vld [vmem:[#allocation3 + $0x628] sm:$0xff]
  %v7722 = vld [vmem:[#allocation3 + $0x630] sm:$0xff]
  %v7723 = vld [vmem:[#allocation3 + $0x638] sm:$0xff]
  %v7724 = vld [vmem:[#allocation3 + $0x640] sm:$0xff]
  %v7725 = vld [vmem:[#allocation3 + $0x648] sm:$0xff]
  %v7726 = vld [vmem:[#allocation3 + $0x650] sm:$0xff]
  %v7727 = vld [vmem:[#allocation3 + $0x658] sm:$0xff]
  %v7728 = vld [vmem:[#allocation3 + $0x660] sm:$0xff]
  %v7729 = vld [vmem:[#allocation3 + $0x668] sm:$0xff]
  %v7730 = vld [vmem:[#allocation3 + $0x670] sm:$0xff]
  %v7731 = vld [vmem:[#allocation3 + $0x678] sm:$0xff]
  %v7732 = vld [vmem:[#allocation3 + $0x680] sm:$0xff]
  %v7733 = vld [vmem:[#allocation3 + $0x688] sm:$0xff]
  %v7734 = vld [vmem:[#allocation3 + $0x690] sm:$0xff]
  %v7735 = vld [vmem:[#allocation3 + $0x698] sm:$0xff]
  %v7736 = vld [vmem:[#allocation3 + $0x6a0] sm:$0xff]
  %v7737 = vld [vmem:[#allocation3 + $0x6a8] sm:$0xff]
  %v7738 = vld [vmem:[#allocation3 + $0x6b0] sm:$0xff]
  %v7739 = vld [vmem:[#allocation3 + $0x6b8] sm:$0xff]
  %v7740 = vld [vmem:[#allocation3 + $0x6c0] sm:$0xff]
  %v7741 = vld [vmem:[#allocation3 + $0x6c8] sm:$0xff]
  %v7742 = vld [vmem:[#allocation3 + $0x6d0] sm:$0xff]
  %v7743 = vld [vmem:[#allocation3 + $0x6d8] sm:$0xff]
  %v7744 = vld [vmem:[#allocation3 + $0x6e0] sm:$0xff]
  %v7745 = vld [vmem:[#allocation3 + $0x6e8] sm:$0xff]
  %v7746 = vld [vmem:[#allocation3 + $0x6f0] sm:$0xff]
  %v7747 = vld [vmem:[#allocation3 + $0x6f8] sm:$0xff]
  %v7748 = vld [vmem:[#allocation3 + $0x700] sm:$0xff]
  %v7749 = vld [vmem:[#allocation3 + $0x708] sm:$0xff]
  %v7750 = vld [vmem:[#allocation3 + $0x710] sm:$0xff]
  %v7751 = vld [vmem:[#allocation3 + $0x718] sm:$0xff]
  %v7752 = vld [vmem:[#allocation3 + $0x720] sm:$0xff]
  %v7753 = vld [vmem:[#allocation3 + $0x728] sm:$0xff]
  %v7754 = vld [vmem:[#allocation3 + $0x730] sm:$0xff]
  %v7755 = vld [vmem:[#allocation3 + $0x738] sm:$0xff]
  %v7756 = vld [vmem:[#allocation3 + $0x740] sm:$0xff]
  %v7757 = vld [vmem:[#allocation3 + $0x748] sm:$0xff]
  %v7758 = vld [vmem:[#allocation3 + $0x750] sm:$0xff]
  %v7759 = vld [vmem:[#allocation3 + $0x758] sm:$0xff]
  %v7760 = vld [vmem:[#allocation3 + $0x760] sm:$0xff]
  %v7761 = vld [vmem:[#allocation3 + $0x768] sm:$0xff]
  %v7762 = vld [vmem:[#allocation3 + $0x770] sm:$0xff]
  %v7763 = vld [vmem:[#allocation3 + $0x778] sm:$0xff]
  %v7764 = vld [vmem:[#allocation3 + $0x780] sm:$0xff]
  %v7765 = vld [vmem:[#allocation3 + $0x788] sm:$0xff]
  %v7766 = vld [vmem:[#allocation3 + $0x790] sm:$0xff]
  %v7767 = vld [vmem:[#allocation3 + $0x798] sm:$0xff]
  %v7768 = vld [vmem:[#allocation3 + $0x7a0] sm:$0xff]
  %v7769 = vld [vmem:[#allocation3 + $0x7a8] sm:$0xff]
  %v7770 = vld [vmem:[#allocation3 + $0x7b0] sm:$0xff]
  %v7771 = vld [vmem:[#allocation3 + $0x7b8] sm:$0xff]
  %v7772 = vld [vmem:[#allocation3 + $0x7c0] sm:$0xff]
  %v7773 = vld [vmem:[#allocation3 + $0x7c8] sm:$0xff]
  %v7774 = vld [vmem:[#allocation3 + $0x7d0] sm:$0xff]
  %v7775 = vld [vmem:[#allocation3 + $0x7d8] sm:$0xff]
  %v7776 = vld [vmem:[#allocation3 + $0x7e0] sm:$0xff]
  %v7777 = vld [vmem:[#allocation3 + $0x7e8] sm:$0xff]
  %v7778 = vld [vmem:[#allocation3 + $0x7f0] sm:$0xff]
  %v7779 = vld [vmem:[#allocation3 + $0x7f8] sm:$0xff]
  %v7780 = vld [vmem:[#allocation3 + $0x800] sm:$0xff]
  %v7781 = vld [vmem:[#allocation3 + $0x808] sm:$0xff]
  %v7782 = vld [vmem:[#allocation3 + $0x810] sm:$0xff]
  %v7783 = vld [vmem:[#allocation3 + $0x818] sm:$0xff]
  %v7784 = vld [vmem:[#allocation3 + $0x820] sm:$0xff]
  %v7785 = vld [vmem:[#allocation3 + $0x828] sm:$0xff]
  %v7786 = vld [vmem:[#allocation3 + $0x830] sm:$0xff]
  %v7787 = vld [vmem:[#allocation3 + $0x838] sm:$0xff]
  %v7788 = vld [vmem:[#allocation3 + $0x840] sm:$0xff]
  %v7789 = vld [vmem:[#allocation3 + $0x848] sm:$0xff]
  %v7790 = vld [vmem:[#allocation3 + $0x850] sm:$0xff]
  %v7791 = vld [vmem:[#allocation3 + $0x858] sm:$0xff]
  %v7792 = vld [vmem:[#allocation3 + $0x860] sm:$0xff]
  %v7793 = vld [vmem:[#allocation3 + $0x868] sm:$0xff]
  %v7794 = vld [vmem:[#allocation3 + $0x870] sm:$0xff]
  %v7795 = vld [vmem:[#allocation3 + $0x878] sm:$0xff]
  %v7796 = vld [vmem:[#allocation3 + $0x880] sm:$0xff]
  %v7797 = vld [vmem:[#allocation3 + $0x888] sm:$0xff]
  %v7798 = vld [vmem:[#allocation3 + $0x890] sm:$0xff]
  %v7799 = vld [vmem:[#allocation3 + $0x898] sm:$0xff]
  %v7800 = vld [vmem:[#allocation3 + $0x8a0] sm:$0xff]
  %v7801 = vld [vmem:[#allocation3 + $0x8a8] sm:$0xff]
  %v7802 = vld [vmem:[#allocation3 + $0x8b0] sm:$0xff]
  %v7803 = vld [vmem:[#allocation3 + $0x8b8] sm:$0xff]
  %v7804 = vld [vmem:[#allocation3 + $0x8c0] sm:$0xff]
  %v7805 = vld [vmem:[#allocation3 + $0x8c8] sm:$0xff]
  %v7806 = vld [vmem:[#allocation3 + $0x8d0] sm:$0xff]
  %v7807 = vld [vmem:[#allocation3 + $0x8d8] sm:$0xff]
  %v7808 = vld [vmem:[#allocation3 + $0x8e0] sm:$0xff]
  %v7809 = vld [vmem:[#allocation3 + $0x8e8] sm:$0xff]
  %v7810 = vld [vmem:[#allocation3 + $0x8f0] sm:$0xff]
  %v7811 = vld [vmem:[#allocation3 + $0x8f8] sm:$0xff]
  %v7812 = vld [vmem:[#allocation3 + $0x900] sm:$0xff]
  %v7813 = vld [vmem:[#allocation3 + $0x908] sm:$0xff]
  %v7814 = vld [vmem:[#allocation3 + $0x910] sm:$0xff]
  %v7815 = vld [vmem:[#allocation3 + $0x918] sm:$0xff]
  %v7816 = vld [vmem:[#allocation3 + $0x920] sm:$0xff]
  %v7817 = vld [vmem:[#allocation3 + $0x928] sm:$0xff]
  %v7818 = vld [vmem:[#allocation3 + $0x930] sm:$0xff]
  %v7819 = vld [vmem:[#allocation3 + $0x938] sm:$0xff]
  %v7820 = vld [vmem:[#allocation3 + $0x940] sm:$0xff]
  %v7821 = vld [vmem:[#allocation3 + $0x948] sm:$0xff]
  %v7822 = vld [vmem:[#allocation3 + $0x950] sm:$0xff]
  %v7823 = vld [vmem:[#allocation3 + $0x958] sm:$0xff]
  %v7824 = vld [vmem:[#allocation3 + $0x960] sm:$0xff]
  %v7825 = vld [vmem:[#allocation3 + $0x968] sm:$0xff]
  %v7826 = vld [vmem:[#allocation3 + $0x970] sm:$0xff]
  %v7827 = vld [vmem:[#allocation3 + $0x978] sm:$0xff]
  %v7828 = vld [vmem:[#allocation3 + $0x980] sm:$0xff]
  %v7829 = vld [vmem:[#allocation3 + $0x988] sm:$0xff]
  %v7830 = vld [vmem:[#allocation3 + $0x990] sm:$0xff]
  %v7831 = vld [vmem:[#allocation3 + $0x998] sm:$0xff]
  %v7832 = vld [vmem:[#allocation3 + $0x9a0] sm:$0xff]
  %v7833 = vld [vmem:[#allocation3 + $0x9a8] sm:$0xff]
  %v7834 = vld [vmem:[#allocation3 + $0x9b0] sm:$0xff]
  %v7835 = vld [vmem:[#allocation3 + $0x9b8] sm:$0xff]
  %v7836 = vld [vmem:[#allocation3 + $0x9c0] sm:$0xff]
  %v7837 = vld [vmem:[#allocation3 + $0x9c8] sm:$0xff]
  %v7838 = vld [vmem:[#allocation3 + $0x9d0] sm:$0xff]
  %v7839 = vld [vmem:[#allocation3 + $0x9d8] sm:$0xff]
  %v7840 = vld [vmem:[#allocation3 + $0x9e0] sm:$0xff]
  %v7841 = vld [vmem:[#allocation3 + $0x9e8] sm:$0xff]
  %v7842 = vld [vmem:[#allocation3 + $0x9f0] sm:$0xff]
  %v7843 = vld [vmem:[#allocation3 + $0x9f8] sm:$0xff]
  %v7844 = vld [vmem:[#allocation3 + $0xa00] sm:$0xff]
  %v7845 = vld [vmem:[#allocation3 + $0xa08] sm:$0xff]
  %v7846 = vld [vmem:[#allocation3 + $0xa10] sm:$0xff]
  %v7847 = vld [vmem:[#allocation3 + $0xa18] sm:$0xff]
  %v7848 = vld [vmem:[#allocation3 + $0xa20] sm:$0xff]
  %v7849 = vld [vmem:[#allocation3 + $0xa28] sm:$0xff]
  %v7850 = vld [vmem:[#allocation3 + $0xa30] sm:$0xff]
  %v7851 = vld [vmem:[#allocation3 + $0xa38] sm:$0xff]
  %v7852 = vld [vmem:[#allocation3 + $0xa40] sm:$0xff]
  %v7853 = vld [vmem:[#allocation3 + $0xa48] sm:$0xff]
  %v7854 = vld [vmem:[#allocation3 + $0xa50] sm:$0xff]
  %v7855 = vld [vmem:[#allocation3 + $0xa58] sm:$0xff]
  %v7856 = vld [vmem:[#allocation3 + $0xa60] sm:$0xff]
  %v7857 = vld [vmem:[#allocation3 + $0xa68] sm:$0xff]
  %v7858 = vld [vmem:[#allocation3 + $0xa70] sm:$0xff]
  %v7859 = vld [vmem:[#allocation3 + $0xa78] sm:$0xff]
  %v7860 = vld [vmem:[#allocation3 + $0xa80] sm:$0xff]
  %v7861 = vld [vmem:[#allocation3 + $0xa88] sm:$0xff]
  %v7862 = vld [vmem:[#allocation3 + $0xa90] sm:$0xff]
  %v7863 = vld [vmem:[#allocation3 + $0xa98] sm:$0xff]
  %v7864 = vld [vmem:[#allocation3 + $0xaa0] sm:$0xff]
  %v7865 = vld [vmem:[#allocation3 + $0xaa8] sm:$0xff]
  %v7866 = vld [vmem:[#allocation3 + $0xab0] sm:$0xff]
  %v7867 = vld [vmem:[#allocation3 + $0xab8] sm:$0xff]
  %v7868 = vld [vmem:[#allocation3 + $0xac0] sm:$0xff]
  %v7869 = vld [vmem:[#allocation3 + $0xac8] sm:$0xff]
  %v7870 = vld [vmem:[#allocation3 + $0xad0] sm:$0xff]
  %v7871 = vld [vmem:[#allocation3 + $0xad8] sm:$0xff]
  %v7872 = vld [vmem:[#allocation3 + $0xae0] sm:$0xff]
  %v7873 = vld [vmem:[#allocation3 + $0xae8] sm:$0xff]
  %v7874 = vld [vmem:[#allocation3 + $0xaf0] sm:$0xff]
  %v7875 = vld [vmem:[#allocation3 + $0xaf8] sm:$0xff]
  %v7876 = vld [vmem:[#allocation3 + $0xb00] sm:$0xff]
  %v7877 = vld [vmem:[#allocation3 + $0xb08] sm:$0xff]
  %v7878 = vld [vmem:[#allocation3 + $0xb10] sm:$0xff]
  %v7879 = vld [vmem:[#allocation3 + $0xb18] sm:$0xff]
  %v7880 = vld [vmem:[#allocation3 + $0xb20] sm:$0xff]
  %v7881 = vld [vmem:[#allocation3 + $0xb28] sm:$0xff]
  %v7882 = vld [vmem:[#allocation3 + $0xb30] sm:$0xff]
  %v7883 = vld [vmem:[#allocation3 + $0xb38] sm:$0xff]
  %v7884 = vld [vmem:[#allocation3 + $0xb40] sm:$0xff]
  %v7885 = vld [vmem:[#allocation3 + $0xb48] sm:$0xff]
  %v7886 = vld [vmem:[#allocation3 + $0xb50] sm:$0xff]
  %v7887 = vld [vmem:[#allocation3 + $0xb58] sm:$0xff]
  %v7888 = vld [vmem:[#allocation3 + $0xb60] sm:$0xff]
  %v7889 = vld [vmem:[#allocation3 + $0xb68] sm:$0xff]
  %v7890 = vld [vmem:[#allocation3 + $0xb70] sm:$0xff]
  %v7891 = vld [vmem:[#allocation3 + $0xb78] sm:$0xff]
  %v7892 = vld [vmem:[#allocation3 + $0xb80] sm:$0xff]
  %v7893 = vld [vmem:[#allocation3 + $0xb88] sm:$0xff]
  %v7894 = vld [vmem:[#allocation3 + $0xb90] sm:$0xff]
  %v7895 = vld [vmem:[#allocation3 + $0xb98] sm:$0xff]
  %v7896 = vld [vmem:[#allocation3 + $0xba0] sm:$0xff]
  %v7897 = vld [vmem:[#allocation3 + $0xba8] sm:$0xff]
  %v7898 = vld [vmem:[#allocation3 + $0xbb0] sm:$0xff]
  %v7899 = vld [vmem:[#allocation3 + $0xbb8] sm:$0xff]
  %v7900 = vld [vmem:[#allocation3 + $0xbc0] sm:$0xff]
  %v7901 = vld [vmem:[#allocation3 + $0xbc8] sm:$0xff]
  %v7902 = vld [vmem:[#allocation3 + $0xbd0] sm:$0xff]
  %v7903 = vld [vmem:[#allocation3 + $0xbd8] sm:$0xff]
  %v7904 = vld [vmem:[#allocation3 + $0xbe0] sm:$0xff]
  %v7905 = vld [vmem:[#allocation3 + $0xbe8] sm:$0xff]
  %v7906 = vld [vmem:[#allocation3 + $0xbf0] sm:$0xff]
  %v7907 = vld [vmem:[#allocation3 + $0xbf8] sm:$0xff]
  %v7908 = vld [vmem:[#allocation3 + $0xc00] sm:$0xff]
  %v7909 = vld [vmem:[#allocation3 + $0xc08] sm:$0xff]
  %v7910 = vld [vmem:[#allocation3 + $0xc10] sm:$0xff]
  %v7911 = vld [vmem:[#allocation3 + $0xc18] sm:$0xff]
  %v7912 = vld [vmem:[#allocation3 + $0xc20] sm:$0xff]
  %v7913 = vld [vmem:[#allocation3 + $0xc28] sm:$0xff]
  %v7914 = vld [vmem:[#allocation3 + $0xc30] sm:$0xff]
  %v7915 = vld [vmem:[#allocation3 + $0xc38] sm:$0xff]
  %v7916 = vld [vmem:[#allocation3 + $0xc40] sm:$0xff]
  %v7917 = vld [vmem:[#allocation3 + $0xc48] sm:$0xff]
  %v7918 = vld [vmem:[#allocation3 + $0xc50] sm:$0xff]
  %v7919 = vld [vmem:[#allocation3 + $0xc58] sm:$0xff]
  %v7920 = vld [vmem:[#allocation3 + $0xc60] sm:$0xff]
  %v7921 = vld [vmem:[#allocation3 + $0xc68] sm:$0xff]
  %v7922 = vld [vmem:[#allocation3 + $0xc70] sm:$0xff]
  %v7923 = vld [vmem:[#allocation3 + $0xc78] sm:$0xff]
  %v7924 = vld [vmem:[#allocation3 + $0xc80] sm:$0xff]
  %v7925 = vld [vmem:[#allocation3 + $0xc88] sm:$0xff]
  %v7926 = vld [vmem:[#allocation3 + $0xc90] sm:$0xff]
  %v7927 = vld [vmem:[#allocation3 + $0xc98] sm:$0xff]
  %v7928 = vld [vmem:[#allocation3 + $0xca0] sm:$0xff]
  %v7929 = vld [vmem:[#allocation3 + $0xca8] sm:$0xff]
  %v7930 = vld [vmem:[#allocation3 + $0xcb0] sm:$0xff]
  %v7931 = vld [vmem:[#allocation3 + $0xcb8] sm:$0xff]
  %v7932 = vld [vmem:[#allocation3 + $0xcc0] sm:$0xff]
  %v7933 = vld [vmem:[#allocation3 + $0xcc8] sm:$0xff]
  %v7934 = vld [vmem:[#allocation3 + $0xcd0] sm:$0xff]
  %v7935 = vld [vmem:[#allocation3 + $0xcd8] sm:$0xff]
  %v7936 = vld [vmem:[#allocation3 + $0xce0] sm:$0xff]
  %v7937 = vld [vmem:[#allocation3 + $0xce8] sm:$0xff]
  %v7938 = vld [vmem:[#allocation3 + $0xcf0] sm:$0xff]
  %v7939 = vld [vmem:[#allocation3 + $0xcf8] sm:$0xff]
  %v7940 = vld [vmem:[#allocation3 + $0xd00] sm:$0xff]
  %v7941 = vld [vmem:[#allocation3 + $0xd08] sm:$0xff]
  %v7942 = vld [vmem:[#allocation3 + $0xd10] sm:$0xff]
  %v7943 = vld [vmem:[#allocation3 + $0xd18] sm:$0xff]
  %v7944 = vld [vmem:[#allocation3 + $0xd20] sm:$0xff]
  %v7945 = vld [vmem:[#allocation3 + $0xd28] sm:$0xff]
  %v7946 = vld [vmem:[#allocation3 + $0xd30] sm:$0xff]
  %v7947 = vld [vmem:[#allocation3 + $0xd38] sm:$0xff]
  %v7948 = vld [vmem:[#allocation3 + $0xd40] sm:$0xff]
  %v7949 = vld [vmem:[#allocation3 + $0xd48] sm:$0xff]
  %v7950 = vld [vmem:[#allocation3 + $0xd50] sm:$0xff]
  %v7951 = vld [vmem:[#allocation3 + $0xd58] sm:$0xff]
  %v7952 = vld [vmem:[#allocation3 + $0xd60] sm:$0xff]
  %v7953 = vld [vmem:[#allocation3 + $0xd68] sm:$0xff]
  %v7954 = vld [vmem:[#allocation3 + $0xd70] sm:$0xff]
  %v7955 = vld [vmem:[#allocation3 + $0xd78] sm:$0xff]
  %7957 = vst [vmem:[#allocation1] ss:$2 sm:$0xff] %v7523
  %v7958 = vld.sshfl [vmem:[#allocation1] sm:$0xff pattern:$0x75316420]
  %v7959 = vld.sshfl [vmem:[#allocation1 + $0x8] sm:$0xff pattern:$0x75316420]
  %v7961 = vsel %vm3543, %v7959, 0
  %7963 = vmatpush.msra.mxu0 %v7764
  %7964 = vmatpush.msra.mxu0 %v7748
  %7965 = vmatpush.msra.mxu0 %v7732
  %7966 = vmatpush.msra.mxu0 %v7716
  %7967 = vmatpush.msra.mxu0 %v7700
  %7968 = vmatpush.msra.mxu0 %v7684
  %7969 = vmatpush.msra.mxu0 %v7668
  %7970 = vmatpush.msra.mxu0 %v7652
  %7971 = vmatpush.msra.mxu0 %v7636
  %7972 = vmatpush.msra.mxu0 %v7620
  %7973 = vmatpush.msra.mxu0 %v7604
  %7974 = vmatpush.msra.mxu0 %v7588
  %7975 = vmatpush.msra.mxu0 %v7572
  %7976 = vmatpush.msra.mxu0 %v7556
  %7977 = vmatpush.msra.mxu0 %v7540
  %7978 = vmatpush.msra.mxu0 %v7524
  %7979 = vmatmul.f32.gmra.mxu0 %v7958
  %v7980 = vpop.f32.mrf.mxu0
  %v7981 = vadd.f32 0.0, %v7980
  %7982 = vdwg.mxu0
  %7983 = vmatpush.msra.mxu0 0.0
  %7984 = vmatpush.msra.mxu0 0.0
  %7985 = vmatpush.msra.mxu0 0.0
  %7986 = vmatpush.msra.mxu0 0.0
  %7987 = vmatpush.msra.mxu0 0.0
  %7988 = vmatpush.msra.mxu0 %v7940
  %7989 = vmatpush.msra.mxu0 %v7924
  %7990 = vmatpush.msra.mxu0 %v7908
  %7991 = vmatpush.msra.mxu0 %v7892
  %7992 = vmatpush.msra.mxu0 %v7876
  %7993 = vmatpush.msra.mxu0 %v7860
  %7994 = vmatpush.msra.mxu0 %v7844
  %7995 = vmatpush.msra.mxu0 %v7828
  %7996 = vmatpush.msra.mxu0 %v7812
  %7997 = vmatpush.msra.mxu0 %v7796
  %7998 = vmatpush.msra.mxu0 %v7780
  %7999 = vmatmul.f32.gmra.mxu0 %v7961
  %v8000 = vpop.f32.mrf.mxu0
  %v8001 = vadd.f32 %v7981, %v8000
  %8002 = vdwg.mxu0
  %8003 = vmatpush.msra.mxu0 %v7765
  %8004 = vmatpush.msra.mxu0 %v7749
  %8005 = vmatpush.msra.mxu0 %v7733
  %8006 = vmatpush.msra.mxu0 %v7717
  %8007 = vmatpush.msra.mxu0 %v7701
  %8008 = vmatpush.msra.mxu0 %v7685
  %8009 = vmatpush.msra.mxu0 %v7669
  %8010 = vmatpush.msra.mxu0 %v7653
  %8011 = vmatpush.msra.mxu0 %v7637
  %8012 = vmatpush.msra.mxu0 %v7621
  %8013 = vmatpush.msra.mxu0 %v7605
  %8014 = vmatpush.msra.mxu0 %v7589
  %8015 = vmatpush.msra.mxu0 %v7573
  %8016 = vmatpush.msra.mxu0 %v7557
  %8017 = vmatpush.msra.mxu0 %v7541
  %8018 = vmatpush.msra.mxu0 %v7525
  %8019 = vmatmul.f32.gmra.mxu0 %v7958
  %v8020 = vpop.f32.mrf.mxu0
  %v8021 = vadd.f32 0.0, %v8020
  %8022 = vdwg.mxu0
  %8023 = vmatpush.msra.mxu0 0.0
  %8024 = vmatpush.msra.mxu0 0.0
  %8025 = vmatpush.msra.mxu0 0.0
  %8026 = vmatpush.msra.mxu0 0.0
  %8027 = vmatpush.msra.mxu0 0.0
  %8028 = vmatpush.msra.mxu0 %v7941
  %8029 = vmatpush.msra.mxu0 %v7925
  %8030 = vmatpush.msra.mxu0 %v7909
  %8031 = vmatpush.msra.mxu0 %v7893
  %8032 = vmatpush.msra.mxu0 %v7877
  %8033 = vmatpush.msra.mxu0 %v7861
  %8034 = vmatpush.msra.mxu0 %v7845
  %8035 = vmatpush.msra.mxu0 %v7829
  %8036 = vmatpush.msra.mxu0 %v7813
  %8037 = vmatpush.msra.mxu0 %v7797
  %8038 = vmatpush.msra.mxu0 %v7781
  %8039 = vmatmul.f32.gmra.mxu0 %v7961
  %v8040 = vpop.f32.mrf.mxu0
  %v8041 = vadd.f32 %v8021, %v8040
  %8042 = vdwg.mxu0
  %8043 = vmatpush.msra.mxu0 %v7766
  %8044 = vmatpush.msra.mxu0 %v7750
  %8045 = vmatpush.msra.mxu0 %v7734
  %8046 = vmatpush.msra.mxu0 %v7718
  %8047 = vmatpush.msra.mxu0 %v7702
  %8048 = vmatpush.msra.mxu0 %v7686
  %8049 = vmatpush.msra.mxu0 %v7670
  %8050 = vmatpush.msra.mxu0 %v7654
  %8051 = vmatpush.msra.mxu0 %v7638
  %8052 = vmatpush.msra.mxu0 %v7622
  %8053 = vmatpush.msra.mxu0 %v7606
  %8054 = vmatpush.msra.mxu0 %v7590
  %8055 = vmatpush.msra.mxu0 %v7574
  %8056 = vmatpush.msra.mxu0 %v7558
  %8057 = vmatpush.msra.mxu0 %v7542
  %8058 = vmatpush.msra.mxu0 %v7526
  %8059 = vmatmul.f32.gmra.mxu0 %v7958
  %v8060 = vpop.f32.mrf.mxu0
  %v8061 = vadd.f32 0.0, %v8060
  %8062 = vdwg.mxu0
  %8063 = vmatpush.msra.mxu0 0.0
  %8064 = vmatpush.msra.mxu0 0.0
  %8065 = vmatpush.msra.mxu0 0.0
  %8066 = vmatpush.msra.mxu0 0.0
  %8067 = vmatpush.msra.mxu0 0.0
  %8068 = vmatpush.msra.mxu0 %v7942
  %8069 = vmatpush.msra.mxu0 %v7926
  %8070 = vmatpush.msra.mxu0 %v7910
  %8071 = vmatpush.msra.mxu0 %v7894
  %8072 = vmatpush.msra.mxu0 %v7878
  %8073 = vmatpush.msra.mxu0 %v7862
  %8074 = vmatpush.msra.mxu0 %v7846
  %8075 = vmatpush.msra.mxu0 %v7830
  %8076 = vmatpush.msra.mxu0 %v7814
  %8077 = vmatpush.msra.mxu0 %v7798
  %8078 = vmatpush.msra.mxu0 %v7782
  %8079 = vmatmul.f32.gmra.mxu0 %v7961
  %v8080 = vpop.f32.mrf.mxu0
  %v8081 = vadd.f32 %v8061, %v8080
  %8082 = vdwg.mxu0
  %8083 = vmatpush.msra.mxu0 %v7767
  %8084 = vmatpush.msra.mxu0 %v7751
  %8085 = vmatpush.msra.mxu0 %v7735
  %8086 = vmatpush.msra.mxu0 %v7719
  %8087 = vmatpush.msra.mxu0 %v7703
  %8088 = vmatpush.msra.mxu0 %v7687
  %8089 = vmatpush.msra.mxu0 %v7671
  %8090 = vmatpush.msra.mxu0 %v7655
  %8091 = vmatpush.msra.mxu0 %v7639
  %8092 = vmatpush.msra.mxu0 %v7623
  %8093 = vmatpush.msra.mxu0 %v7607
  %8094 = vmatpush.msra.mxu0 %v7591
  %8095 = vmatpush.msra.mxu0 %v7575
  %8096 = vmatpush.msra.mxu0 %v7559
  %8097 = vmatpush.msra.mxu0 %v7543
  %8098 = vmatpush.msra.mxu0 %v7527
  %8099 = vmatmul.f32.gmra.mxu0 %v7958
  %v8100 = vpop.f32.mrf.mxu0
  %v8101 = vadd.f32 0.0, %v8100
  %8102 = vdwg.mxu0
  %8103 = vmatpush.msra.mxu0 0.0
  %8104 = vmatpush.msra.mxu0 0.0
  %8105 = vmatpush.msra.mxu0 0.0
  %8106 = vmatpush.msra.mxu0 0.0
  %8107 = vmatpush.msra.mxu0 0.0
  %8108 = vmatpush.msra.mxu0 %v7943
  %8109 = vmatpush.msra.mxu0 %v7927
  %8110 = vmatpush.msra.mxu0 %v7911
  %8111 = vmatpush.msra.mxu0 %v7895
  %8112 = vmatpush.msra.mxu0 %v7879
  %8113 = vmatpush.msra.mxu0 %v7863
  %8114 = vmatpush.msra.mxu0 %v7847
  %8115 = vmatpush.msra.mxu0 %v7831
  %8116 = vmatpush.msra.mxu0 %v7815
  %8117 = vmatpush.msra.mxu0 %v7799
  %8118 = vmatpush.msra.mxu0 %v7783
  %8119 = vmatmul.f32.gmra.mxu0 %v7961
  %v8120 = vpop.f32.mrf.mxu0
  %v8121 = vadd.f32 %v8101, %v8120
  %8122 = vdwg.mxu0
  %8123 = vmatpush.msra.mxu0 %v7768
  %8124 = vmatpush.msra.mxu0 %v7752
  %8125 = vmatpush.msra.mxu0 %v7736
  %8126 = vmatpush.msra.mxu0 %v7720
  %8127 = vmatpush.msra.mxu0 %v7704
  %8128 = vmatpush.msra.mxu0 %v7688
  %8129 = vmatpush.msra.mxu0 %v7672
  %8130 = vmatpush.msra.mxu0 %v7656
  %8131 = vmatpush.msra.mxu0 %v7640
  %8132 = vmatpush.msra.mxu0 %v7624
  %8133 = vmatpush.msra.mxu0 %v7608
  %8134 = vmatpush.msra.mxu0 %v7592
  %8135 = vmatpush.msra.mxu0 %v7576
  %8136 = vmatpush.msra.mxu0 %v7560
  %8137 = vmatpush.msra.mxu0 %v7544
  %8138 = vmatpush.msra.mxu0 %v7528
  %8139 = vmatmul.f32.gmra.mxu0 %v7958
  %v8140 = vpop.f32.mrf.mxu0
  %v8141 = vadd.f32 0.0, %v8140
  %8142 = vdwg.mxu0
  %8143 = vmatpush.msra.mxu0 0.0
  %8144 = vmatpush.msra.mxu0 0.0
  %8145 = vmatpush.msra.mxu0 0.0
  %8146 = vmatpush.msra.mxu0 0.0
  %8147 = vmatpush.msra.mxu0 0.0
  %8148 = vmatpush.msra.mxu0 %v7944
  %8149 = vmatpush.msra.mxu0 %v7928
  %8150 = vmatpush.msra.mxu0 %v7912
  %8151 = vmatpush.msra.mxu0 %v7896
  %8152 = vmatpush.msra.mxu0 %v7880
  %8153 = vmatpush.msra.mxu0 %v7864
  %8154 = vmatpush.msra.mxu0 %v7848
  %8155 = vmatpush.msra.mxu0 %v7832
  %8156 = vmatpush.msra.mxu0 %v7816
  %8157 = vmatpush.msra.mxu0 %v7800
  %8158 = vmatpush.msra.mxu0 %v7784
  %8159 = vmatmul.f32.gmra.mxu0 %v7961
  %v8160 = vpop.f32.mrf.mxu0
  %v8161 = vadd.f32 %v8141, %v8160
  %8162 = vdwg.mxu0
  %8163 = vmatpush.msra.mxu0 %v7769
  %8164 = vmatpush.msra.mxu0 %v7753
  %8165 = vmatpush.msra.mxu0 %v7737
  %8166 = vmatpush.msra.mxu0 %v7721
  %8167 = vmatpush.msra.mxu0 %v7705
  %8168 = vmatpush.msra.mxu0 %v7689
  %8169 = vmatpush.msra.mxu0 %v7673
  %8170 = vmatpush.msra.mxu0 %v7657
  %8171 = vmatpush.msra.mxu0 %v7641
  %8172 = vmatpush.msra.mxu0 %v7625
  %8173 = vmatpush.msra.mxu0 %v7609
  %8174 = vmatpush.msra.mxu0 %v7593
  %8175 = vmatpush.msra.mxu0 %v7577
  %8176 = vmatpush.msra.mxu0 %v7561
  %8177 = vmatpush.msra.mxu0 %v7545
  %8178 = vmatpush.msra.mxu0 %v7529
  %8179 = vmatmul.f32.gmra.mxu0 %v7958
  %v8180 = vpop.f32.mrf.mxu0
  %v8181 = vadd.f32 0.0, %v8180
  %8182 = vdwg.mxu0
  %8183 = vmatpush.msra.mxu0 0.0
  %8184 = vmatpush.msra.mxu0 0.0
  %8185 = vmatpush.msra.mxu0 0.0
  %8186 = vmatpush.msra.mxu0 0.0
  %8187 = vmatpush.msra.mxu0 0.0
  %8188 = vmatpush.msra.mxu0 %v7945
  %8189 = vmatpush.msra.mxu0 %v7929
  %8190 = vmatpush.msra.mxu0 %v7913
  %8191 = vmatpush.msra.mxu0 %v7897
  %8192 = vmatpush.msra.mxu0 %v7881
  %8193 = vmatpush.msra.mxu0 %v7865
  %8194 = vmatpush.msra.mxu0 %v7849
  %8195 = vmatpush.msra.mxu0 %v7833
  %8196 = vmatpush.msra.mxu0 %v7817
  %8197 = vmatpush.msra.mxu0 %v7801
  %8198 = vmatpush.msra.mxu0 %v7785
  %8199 = vmatmul.f32.gmra.mxu0 %v7961
  %v8200 = vpop.f32.mrf.mxu0
  %v8201 = vadd.f32 %v8181, %v8200
  %8202 = vdwg.mxu0
  %8203 = vmatpush.msra.mxu0 %v7770
  %8204 = vmatpush.msra.mxu0 %v7754
  %8205 = vmatpush.msra.mxu0 %v7738
  %8206 = vmatpush.msra.mxu0 %v7722
  %8207 = vmatpush.msra.mxu0 %v7706
  %8208 = vmatpush.msra.mxu0 %v7690
  %8209 = vmatpush.msra.mxu0 %v7674
  %8210 = vmatpush.msra.mxu0 %v7658
  %8211 = vmatpush.msra.mxu0 %v7642
  %8212 = vmatpush.msra.mxu0 %v7626
  %8213 = vmatpush.msra.mxu0 %v7610
  %8214 = vmatpush.msra.mxu0 %v7594
  %8215 = vmatpush.msra.mxu0 %v7578
  %8216 = vmatpush.msra.mxu0 %v7562
  %8217 = vmatpush.msra.mxu0 %v7546
  %8218 = vmatpush.msra.mxu0 %v7530
  %8219 = vmatmul.f32.gmra.mxu0 %v7958
  %v8220 = vpop.f32.mrf.mxu0
  %v8221 = vadd.f32 0.0, %v8220
  %8222 = vdwg.mxu0
  %8223 = vmatpush.msra.mxu0 0.0
  %8224 = vmatpush.msra.mxu0 0.0
  %8225 = vmatpush.msra.mxu0 0.0
  %8226 = vmatpush.msra.mxu0 0.0
  %8227 = vmatpush.msra.mxu0 0.0
  %8228 = vmatpush.msra.mxu0 %v7946
  %8229 = vmatpush.msra.mxu0 %v7930
  %8230 = vmatpush.msra.mxu0 %v7914
  %8231 = vmatpush.msra.mxu0 %v7898
  %8232 = vmatpush.msra.mxu0 %v7882
  %8233 = vmatpush.msra.mxu0 %v7866
  %8234 = vmatpush.msra.mxu0 %v7850
  %8235 = vmatpush.msra.mxu0 %v7834
  %8236 = vmatpush.msra.mxu0 %v7818
  %8237 = vmatpush.msra.mxu0 %v7802
  %8238 = vmatpush.msra.mxu0 %v7786
  %8239 = vmatmul.f32.gmra.mxu0 %v7961
  %v8240 = vpop.f32.mrf.mxu0
  %v8241 = vadd.f32 %v8221, %v8240
  %8242 = vdwg.mxu0
  %8243 = vmatpush.msra.mxu0 %v7771
  %8244 = vmatpush.msra.mxu0 %v7755
  %8245 = vmatpush.msra.mxu0 %v7739
  %8246 = vmatpush.msra.mxu0 %v7723
  %8247 = vmatpush.msra.mxu0 %v7707
  %8248 = vmatpush.msra.mxu0 %v7691
  %8249 = vmatpush.msra.mxu0 %v7675
  %8250 = vmatpush.msra.mxu0 %v7659
  %8251 = vmatpush.msra.mxu0 %v7643
  %8252 = vmatpush.msra.mxu0 %v7627
  %8253 = vmatpush.msra.mxu0 %v7611
  %8254 = vmatpush.msra.mxu0 %v7595
  %8255 = vmatpush.msra.mxu0 %v7579
  %8256 = vmatpush.msra.mxu0 %v7563
  %8257 = vmatpush.msra.mxu0 %v7547
  %8258 = vmatpush.msra.mxu0 %v7531
  %8259 = vmatmul.f32.gmra.mxu0 %v7958
  %v8260 = vpop.f32.mrf.mxu0
  %v8261 = vadd.f32 0.0, %v8260
  %8262 = vdwg.mxu0
  %8263 = vmatpush.msra.mxu0 0.0
  %8264 = vmatpush.msra.mxu0 0.0
  %8265 = vmatpush.msra.mxu0 0.0
  %8266 = vmatpush.msra.mxu0 0.0
  %8267 = vmatpush.msra.mxu0 0.0
  %8268 = vmatpush.msra.mxu0 %v7947
  %8269 = vmatpush.msra.mxu0 %v7931
  %8270 = vmatpush.msra.mxu0 %v7915
  %8271 = vmatpush.msra.mxu0 %v7899
  %8272 = vmatpush.msra.mxu0 %v7883
  %8273 = vmatpush.msra.mxu0 %v7867
  %8274 = vmatpush.msra.mxu0 %v7851
  %8275 = vmatpush.msra.mxu0 %v7835
  %8276 = vmatpush.msra.mxu0 %v7819
  %8277 = vmatpush.msra.mxu0 %v7803
  %8278 = vmatpush.msra.mxu0 %v7787
  %8279 = vmatmul.f32.gmra.mxu0 %v7961
  %v8280 = vpop.f32.mrf.mxu0
  %v8281 = vadd.f32 %v8261, %v8280
  %8282 = vdwg.mxu0
  %8283 = vmatpush.msra.mxu0 %v7772
  %8284 = vmatpush.msra.mxu0 %v7756
  %8285 = vmatpush.msra.mxu0 %v7740
  %8286 = vmatpush.msra.mxu0 %v7724
  %8287 = vmatpush.msra.mxu0 %v7708
  %8288 = vmatpush.msra.mxu0 %v7692
  %8289 = vmatpush.msra.mxu0 %v7676
  %8290 = vmatpush.msra.mxu0 %v7660
  %8291 = vmatpush.msra.mxu0 %v7644
  %8292 = vmatpush.msra.mxu0 %v7628
  %8293 = vmatpush.msra.mxu0 %v7612
  %8294 = vmatpush.msra.mxu0 %v7596
  %8295 = vmatpush.msra.mxu0 %v7580
  %8296 = vmatpush.msra.mxu0 %v7564
  %8297 = vmatpush.msra.mxu0 %v7548
  %8298 = vmatpush.msra.mxu0 %v7532
  %8299 = vmatmul.f32.gmra.mxu0 %v7958
  %v8300 = vpop.f32.mrf.mxu0
  %v8301 = vadd.f32 0.0, %v8300
  %8302 = vdwg.mxu0
  %8303 = vmatpush.msra.mxu0 0.0
  %8304 = vmatpush.msra.mxu0 0.0
  %8305 = vmatpush.msra.mxu0 0.0
  %8306 = vmatpush.msra.mxu0 0.0
  %8307 = vmatpush.msra.mxu0 0.0
  %8308 = vmatpush.msra.mxu0 %v7948
  %8309 = vmatpush.msra.mxu0 %v7932
  %8310 = vmatpush.msra.mxu0 %v7916
  %8311 = vmatpush.msra.mxu0 %v7900
  %8312 = vmatpush.msra.mxu0 %v7884
  %8313 = vmatpush.msra.mxu0 %v7868
  %8314 = vmatpush.msra.mxu0 %v7852
  %8315 = vmatpush.msra.mxu0 %v7836
  %8316 = vmatpush.msra.mxu0 %v7820
  %8317 = vmatpush.msra.mxu0 %v7804
  %8318 = vmatpush.msra.mxu0 %v7788
  %8319 = vmatmul.f32.gmra.mxu0 %v7961
  %v8320 = vpop.f32.mrf.mxu0
  %v8321 = vadd.f32 %v8301, %v8320
  %8322 = vdwg.mxu0
  %8323 = vmatpush.msra.mxu0 %v7773
  %8324 = vmatpush.msra.mxu0 %v7757
  %8325 = vmatpush.msra.mxu0 %v7741
  %8326 = vmatpush.msra.mxu0 %v7725
  %8327 = vmatpush.msra.mxu0 %v7709
  %8328 = vmatpush.msra.mxu0 %v7693
  %8329 = vmatpush.msra.mxu0 %v7677
  %8330 = vmatpush.msra.mxu0 %v7661
  %8331 = vmatpush.msra.mxu0 %v7645
  %8332 = vmatpush.msra.mxu0 %v7629
  %8333 = vmatpush.msra.mxu0 %v7613
  %8334 = vmatpush.msra.mxu0 %v7597
  %8335 = vmatpush.msra.mxu0 %v7581
  %8336 = vmatpush.msra.mxu0 %v7565
  %8337 = vmatpush.msra.mxu0 %v7549
  %8338 = vmatpush.msra.mxu0 %v7533
  %8339 = vmatmul.f32.gmra.mxu0 %v7958
  %v8340 = vpop.f32.mrf.mxu0
  %v8341 = vadd.f32 0.0, %v8340
  %8342 = vdwg.mxu0
  %8343 = vmatpush.msra.mxu0 0.0
  %8344 = vmatpush.msra.mxu0 0.0
  %8345 = vmatpush.msra.mxu0 0.0
  %8346 = vmatpush.msra.mxu0 0.0
  %8347 = vmatpush.msra.mxu0 0.0
  %8348 = vmatpush.msra.mxu0 %v7949
  %8349 = vmatpush.msra.mxu0 %v7933
  %8350 = vmatpush.msra.mxu0 %v7917
  %8351 = vmatpush.msra.mxu0 %v7901
  %8352 = vmatpush.msra.mxu0 %v7885
  %8353 = vmatpush.msra.mxu0 %v7869
  %8354 = vmatpush.msra.mxu0 %v7853
  %8355 = vmatpush.msra.mxu0 %v7837
  %8356 = vmatpush.msra.mxu0 %v7821
  %8357 = vmatpush.msra.mxu0 %v7805
  %8358 = vmatpush.msra.mxu0 %v7789
  %8359 = vmatmul.f32.gmra.mxu0 %v7961
  %v8360 = vpop.f32.mrf.mxu0
  %v8361 = vadd.f32 %v8341, %v8360
  %8362 = vdwg.mxu0
  %8363 = vmatpush.msra.mxu0 %v7774
  %8364 = vmatpush.msra.mxu0 %v7758
  %8365 = vmatpush.msra.mxu0 %v7742
  %8366 = vmatpush.msra.mxu0 %v7726
  %8367 = vmatpush.msra.mxu0 %v7710
  %8368 = vmatpush.msra.mxu0 %v7694
  %8369 = vmatpush.msra.mxu0 %v7678
  %8370 = vmatpush.msra.mxu0 %v7662
  %8371 = vmatpush.msra.mxu0 %v7646
  %8372 = vmatpush.msra.mxu0 %v7630
  %8373 = vmatpush.msra.mxu0 %v7614
  %8374 = vmatpush.msra.mxu0 %v7598
  %8375 = vmatpush.msra.mxu0 %v7582
  %8376 = vmatpush.msra.mxu0 %v7566
  %8377 = vmatpush.msra.mxu0 %v7550
  %8378 = vmatpush.msra.mxu0 %v7534
  %8379 = vmatmul.f32.gmra.mxu0 %v7958
  %v8380 = vpop.f32.mrf.mxu0
  %v8381 = vadd.f32 0.0, %v8380
  %8382 = vdwg.mxu0
  %8383 = vmatpush.msra.mxu0 0.0
  %8384 = vmatpush.msra.mxu0 0.0
  %8385 = vmatpush.msra.mxu0 0.0
  %8386 = vmatpush.msra.mxu0 0.0
  %8387 = vmatpush.msra.mxu0 0.0
  %8388 = vmatpush.msra.mxu0 %v7950
  %8389 = vmatpush.msra.mxu0 %v7934
  %8390 = vmatpush.msra.mxu0 %v7918
  %8391 = vmatpush.msra.mxu0 %v7902
  %8392 = vmatpush.msra.mxu0 %v7886
  %8393 = vmatpush.msra.mxu0 %v7870
  %8394 = vmatpush.msra.mxu0 %v7854
  %8395 = vmatpush.msra.mxu0 %v7838
  %8396 = vmatpush.msra.mxu0 %v7822
  %8397 = vmatpush.msra.mxu0 %v7806
  %8398 = vmatpush.msra.mxu0 %v7790
  %8399 = vmatmul.f32.gmra.mxu0 %v7961
  %v8400 = vpop.f32.mrf.mxu0
  %v8401 = vadd.f32 %v8381, %v8400
  %8402 = vdwg.mxu0
  %8403 = vmatpush.msra.mxu0 %v7775
  %8404 = vmatpush.msra.mxu0 %v7759
  %8405 = vmatpush.msra.mxu0 %v7743
  %8406 = vmatpush.msra.mxu0 %v7727
  %8407 = vmatpush.msra.mxu0 %v7711
  %8408 = vmatpush.msra.mxu0 %v7695
  %8409 = vmatpush.msra.mxu0 %v7679
  %8410 = vmatpush.msra.mxu0 %v7663
  %8411 = vmatpush.msra.mxu0 %v7647
  %8412 = vmatpush.msra.mxu0 %v7631
  %8413 = vmatpush.msra.mxu0 %v7615
  %8414 = vmatpush.msra.mxu0 %v7599
  %8415 = vmatpush.msra.mxu0 %v7583
  %8416 = vmatpush.msra.mxu0 %v7567
  %8417 = vmatpush.msra.mxu0 %v7551
  %8418 = vmatpush.msra.mxu0 %v7535
  %8419 = vmatmul.f32.gmra.mxu0 %v7958
  %v8420 = vpop.f32.mrf.mxu0
  %v8421 = vadd.f32 0.0, %v8420
  %8422 = vdwg.mxu0
  %8423 = vmatpush.msra.mxu0 0.0
  %8424 = vmatpush.msra.mxu0 0.0
  %8425 = vmatpush.msra.mxu0 0.0
  %8426 = vmatpush.msra.mxu0 0.0
  %8427 = vmatpush.msra.mxu0 0.0
  %8428 = vmatpush.msra.mxu0 %v7951
  %8429 = vmatpush.msra.mxu0 %v7935
  %8430 = vmatpush.msra.mxu0 %v7919
  %8431 = vmatpush.msra.mxu0 %v7903
  %8432 = vmatpush.msra.mxu0 %v7887
  %8433 = vmatpush.msra.mxu0 %v7871
  %8434 = vmatpush.msra.mxu0 %v7855
  %8435 = vmatpush.msra.mxu0 %v7839
  %8436 = vmatpush.msra.mxu0 %v7823
  %8437 = vmatpush.msra.mxu0 %v7807
  %8438 = vmatpush.msra.mxu0 %v7791
  %8439 = vmatmul.f32.gmra.mxu0 %v7961
  %v8440 = vpop.f32.mrf.mxu0
  %v8441 = vadd.f32 %v8421, %v8440
  %8442 = vdwg.mxu0
  %8443 = vmatpush.msra.mxu0 %v7776
  %8444 = vmatpush.msra.mxu0 %v7760
  %8445 = vmatpush.msra.mxu0 %v7744
  %8446 = vmatpush.msra.mxu0 %v7728
  %8447 = vmatpush.msra.mxu0 %v7712
  %8448 = vmatpush.msra.mxu0 %v7696
  %8449 = vmatpush.msra.mxu0 %v7680
  %8450 = vmatpush.msra.mxu0 %v7664
  %8451 = vmatpush.msra.mxu0 %v7648
  %8452 = vmatpush.msra.mxu0 %v7632
  %8453 = vmatpush.msra.mxu0 %v7616
  %8454 = vmatpush.msra.mxu0 %v7600
  %8455 = vmatpush.msra.mxu0 %v7584
  %8456 = vmatpush.msra.mxu0 %v7568
  %8457 = vmatpush.msra.mxu0 %v7552
  %8458 = vmatpush.msra.mxu0 %v7536
  %8459 = vmatmul.f32.gmra.mxu0 %v7958
  %v8460 = vpop.f32.mrf.mxu0
  %v8461 = vadd.f32 0.0, %v8460
  %8462 = vdwg.mxu0
  %8463 = vmatpush.msra.mxu0 0.0
  %8464 = vmatpush.msra.mxu0 0.0
  %8465 = vmatpush.msra.mxu0 0.0
  %8466 = vmatpush.msra.mxu0 0.0
  %8467 = vmatpush.msra.mxu0 0.0
  %8468 = vmatpush.msra.mxu0 %v7952
  %8469 = vmatpush.msra.mxu0 %v7936
  %8470 = vmatpush.msra.mxu0 %v7920
  %8471 = vmatpush.msra.mxu0 %v7904
  %8472 = vmatpush.msra.mxu0 %v7888
  %8473 = vmatpush.msra.mxu0 %v7872
  %8474 = vmatpush.msra.mxu0 %v7856
  %8475 = vmatpush.msra.mxu0 %v7840
  %8476 = vmatpush.msra.mxu0 %v7824
  %8477 = vmatpush.msra.mxu0 %v7808
  %8478 = vmatpush.msra.mxu0 %v7792
  %8479 = vmatmul.f32.gmra.mxu0 %v7961
  %v8480 = vpop.f32.mrf.mxu0
  %v8481 = vadd.f32 %v8461, %v8480
  %8482 = vdwg.mxu0
  %8483 = vmatpush.msra.mxu0 %v7777
  %8484 = vmatpush.msra.mxu0 %v7761
  %8485 = vmatpush.msra.mxu0 %v7745
  %8486 = vmatpush.msra.mxu0 %v7729
  %8487 = vmatpush.msra.mxu0 %v7713
  %8488 = vmatpush.msra.mxu0 %v7697
  %8489 = vmatpush.msra.mxu0 %v7681
  %8490 = vmatpush.msra.mxu0 %v7665
  %8491 = vmatpush.msra.mxu0 %v7649
  %8492 = vmatpush.msra.mxu0 %v7633
  %8493 = vmatpush.msra.mxu0 %v7617
  %8494 = vmatpush.msra.mxu0 %v7601
  %8495 = vmatpush.msra.mxu0 %v7585
  %8496 = vmatpush.msra.mxu0 %v7569
  %8497 = vmatpush.msra.mxu0 %v7553
  %8498 = vmatpush.msra.mxu0 %v7537
  %8499 = vmatmul.f32.gmra.mxu0 %v7958
  %v8500 = vpop.f32.mrf.mxu0
  %v8501 = vadd.f32 0.0, %v8500
  %8502 = vdwg.mxu0
  %8503 = vmatpush.msra.mxu0 0.0
  %8504 = vmatpush.msra.mxu0 0.0
  %8505 = vmatpush.msra.mxu0 0.0
  %8506 = vmatpush.msra.mxu0 0.0
  %8507 = vmatpush.msra.mxu0 0.0
  %8508 = vmatpush.msra.mxu0 %v7953
  %8509 = vmatpush.msra.mxu0 %v7937
  %8510 = vmatpush.msra.mxu0 %v7921
  %8511 = vmatpush.msra.mxu0 %v7905
  %8512 = vmatpush.msra.mxu0 %v7889
  %8513 = vmatpush.msra.mxu0 %v7873
  %8514 = vmatpush.msra.mxu0 %v7857
  %8515 = vmatpush.msra.mxu0 %v7841
  %8516 = vmatpush.msra.mxu0 %v7825
  %8517 = vmatpush.msra.mxu0 %v7809
  %8518 = vmatpush.msra.mxu0 %v7793
  %8519 = vmatmul.f32.gmra.mxu0 %v7961
  %v8520 = vpop.f32.mrf.mxu0
  %v8521 = vadd.f32 %v8501, %v8520
  %8522 = vdwg.mxu0
  %8523 = vmatpush.msra.mxu0 %v7778
  %8524 = vmatpush.msra.mxu0 %v7762
  %8525 = vmatpush.msra.mxu0 %v7746
  %8526 = vmatpush.msra.mxu0 %v7730
  %8527 = vmatpush.msra.mxu0 %v7714
  %8528 = vmatpush.msra.mxu0 %v7698
  %8529 = vmatpush.msra.mxu0 %v7682
  %8530 = vmatpush.msra.mxu0 %v7666
  %8531 = vmatpush.msra.mxu0 %v7650
  %8532 = vmatpush.msra.mxu0 %v7634
  %8533 = vmatpush.msra.mxu0 %v7618
  %8534 = vmatpush.msra.mxu0 %v7602
  %8535 = vmatpush.msra.mxu0 %v7586
  %8536 = vmatpush.msra.mxu0 %v7570
  %8537 = vmatpush.msra.mxu0 %v7554
  %8538 = vmatpush.msra.mxu0 %v7538
  %8539 = vmatmul.f32.gmra.mxu0 %v7958
  %v8540 = vpop.f32.mrf.mxu0
  %v8541 = vadd.f32 0.0, %v8540
  %8542 = vdwg.mxu0
  %8543 = vmatpush.msra.mxu0 0.0
  %8544 = vmatpush.msra.mxu0 0.0
  %8545 = vmatpush.msra.mxu0 0.0
  %8546 = vmatpush.msra.mxu0 0.0
  %8547 = vmatpush.msra.mxu0 0.0
  %8548 = vmatpush.msra.mxu0 %v7954
  %8549 = vmatpush.msra.mxu0 %v7938
  %8550 = vmatpush.msra.mxu0 %v7922
  %8551 = vmatpush.msra.mxu0 %v7906
  %8552 = vmatpush.msra.mxu0 %v7890
  %8553 = vmatpush.msra.mxu0 %v7874
  %8554 = vmatpush.msra.mxu0 %v7858
  %8555 = vmatpush.msra.mxu0 %v7842
  %8556 = vmatpush.msra.mxu0 %v7826
  %8557 = vmatpush.msra.mxu0 %v7810
  %8558 = vmatpush.msra.mxu0 %v7794
  %8559 = vmatmul.f32.gmra.mxu0 %v7961
  %v8560 = vpop.f32.mrf.mxu0
  %v8561 = vadd.f32 %v8541, %v8560
  %8562 = vdwg.mxu0
  %8563 = vmatpush.msra.mxu0 %v7779
  %8564 = vmatpush.msra.mxu0 %v7763
  %8565 = vmatpush.msra.mxu0 %v7747
  %8566 = vmatpush.msra.mxu0 %v7731
  %8567 = vmatpush.msra.mxu0 %v7715
  %8568 = vmatpush.msra.mxu0 %v7699
  %8569 = vmatpush.msra.mxu0 %v7683
  %8570 = vmatpush.msra.mxu0 %v7667
  %8571 = vmatpush.msra.mxu0 %v7651
  %8572 = vmatpush.msra.mxu0 %v7635
  %8573 = vmatpush.msra.mxu0 %v7619
  %8574 = vmatpush.msra.mxu0 %v7603
  %8575 = vmatpush.msra.mxu0 %v7587
  %8576 = vmatpush.msra.mxu0 %v7571
  %8577 = vmatpush.msra.mxu0 %v7555
  %8578 = vmatpush.msra.mxu0 %v7539
  %8579 = vmatmul.f32.gmra.mxu0 %v7958
  %v8580 = vpop.f32.mrf.mxu0
  %v8581 = vadd.f32 0.0, %v8580
  %8582 = vdwg.mxu0
  %8583 = vmatpush.msra.mxu0 0.0
  %8584 = vmatpush.msra.mxu0 0.0
  %8585 = vmatpush.msra.mxu0 0.0
  %8586 = vmatpush.msra.mxu0 0.0
  %8587 = vmatpush.msra.mxu0 0.0
  %8588 = vmatpush.msra.mxu0 %v7955
  %8589 = vmatpush.msra.mxu0 %v7939
  %8590 = vmatpush.msra.mxu0 %v7923
  %8591 = vmatpush.msra.mxu0 %v7907
  %8592 = vmatpush.msra.mxu0 %v7891
  %8593 = vmatpush.msra.mxu0 %v7875
  %8594 = vmatpush.msra.mxu0 %v7859
  %8595 = vmatpush.msra.mxu0 %v7843
  %8596 = vmatpush.msra.mxu0 %v7827
  %8597 = vmatpush.msra.mxu0 %v7811
  %8598 = vmatpush.msra.mxu0 %v7795
  %8599 = vmatmul.f32.gmra.mxu0 %v7961
  %v8600 = vpop.f32.mrf.mxu0
  %v8601 = vadd.f32 %v8581, %v8600
  %8602 = vdwg.mxu0
  %v8603 = vmul.f32 %v8001, %v4188
  %v8604 = vmul.f32 %v8041, %v4189
  %v8605 = vmul.f32 %v8081, %v4190
  %v8606 = vmul.f32 %v8121, %v4191
  %v8607 = vmul.f32 %v8161, %v4192
  %v8608 = vmul.f32 %v8201, %v4193
  %v8609 = vmul.f32 %v8241, %v4194
  %v8610 = vmul.f32 %v8281, %v4195
  %v8611 = vmul.f32 %v8321, %v4196
  %v8612 = vmul.f32 %v8361, %v4197
  %v8613 = vmul.f32 %v8401, %v4198
  %v8614 = vmul.f32 %v8441, %v4199
  %v8615 = vmul.f32 %v8481, %v4200
  %v8616 = vmul.f32 %v8521, %v4201
  %v8617 = vmul.f32 %v8561, %v4202
  %v8618 = vmul.f32 %v8601, %v4203
  %v8619 = vsel %vm4236, %v8603, 0.0
  %v8620 = vsel %vm4236, %v8604, 0.0
  %v8621 = vadd.f32 %v8619, %v8620
  %v8622 = vsel %vm4236, %v8605, 0.0
  %v8623 = vadd.f32 %v8621, %v8622
  %v8624 = vsel %vm4236, %v8606, 0.0
  %v8625 = vadd.f32 %v8623, %v8624
  %v8626 = vsel %vm4236, %v8607, 0.0
  %v8627 = vadd.f32 %v8625, %v8626
  %v8628 = vsel %vm4236, %v8608, 0.0
  %v8629 = vadd.f32 %v8627, %v8628
  %v8630 = vsel %vm4236, %v8609, 0.0
  %v8631 = vadd.f32 %v8629, %v8630
  %v8632 = vsel %vm4236, %v8610, 0.0
  %v8633 = vadd.f32 %v8631, %v8632
  %v8634 = vsel %vm4236, %v8611, 0.0
  %v8635 = vadd.f32 %v8633, %v8634
  %v8636 = vsel %vm4236, %v8612, 0.0
  %v8637 = vadd.f32 %v8635, %v8636
  %v8638 = vsel %vm4236, %v8613, 0.0
  %v8639 = vadd.f32 %v8637, %v8638
  %v8640 = vsel %vm4236, %v8614, 0.0
  %v8641 = vadd.f32 %v8639, %v8640
  %v8642 = vsel %vm4236, %v8615, 0.0
  %v8643 = vadd.f32 %v8641, %v8642
  %v8644 = vsel %vm4236, %v8616, 0.0
  %v8645 = vadd.f32 %v8643, %v8644
  %v8646 = vsel %vm4236, %v8617, 0.0
  %v8647 = vadd.f32 %v8645, %v8646
  %v8648 = vsel %vm4236, %v8618, 0.0
  %v8649 = vadd.f32 %v8647, %v8648
  %8650 = vadd.xlane.f32.xlu0 %v8649
  %v8651 = vpop.xlane.xlu0 %8650
  %v8652 = vmul.f32 %v8651, 0.0009765625
  %v8653 = vsub.f32 %v8001, %v8652
  %v8654 = vsub.f32 %v8041, %v8652
  %v8655 = vsub.f32 %v8081, %v8652
  %v8656 = vsub.f32 %v8121, %v8652
  %v8657 = vsub.f32 %v8161, %v8652
  %v8658 = vsub.f32 %v8201, %v8652
  %v8659 = vsub.f32 %v8241, %v8652
  %v8660 = vsub.f32 %v8281, %v8652
  %v8661 = vsub.f32 %v8321, %v8652
  %v8662 = vsub.f32 %v8361, %v8652
  %v8663 = vsub.f32 %v8401, %v8652
  %v8664 = vsub.f32 %v8441, %v8652
  %v8665 = vsub.f32 %v8481, %v8652
  %v8666 = vsub.f32 %v8521, %v8652
  %v8667 = vsub.f32 %v8561, %v8652
  %v8668 = vsub.f32 %v8601, %v8652
  %v8669 = vmul.f32 %v8653, %v4188
  %v8670 = vmul.f32 %v8654, %v4189
  %v8671 = vmul.f32 %v8655, %v4190
  %v8672 = vmul.f32 %v8656, %v4191
  %v8673 = vmul.f32 %v8657, %v4192
  %v8674 = vmul.f32 %v8658, %v4193
  %v8675 = vmul.f32 %v8659, %v4194
  %v8676 = vmul.f32 %v8660, %v4195
  %v8677 = vmul.f32 %v8661, %v4196
  %v8678 = vmul.f32 %v8662, %v4197
  %v8679 = vmul.f32 %v8663, %v4198
  %v8680 = vmul.f32 %v8664, %v4199
  %v8681 = vmul.f32 %v8665, %v4200
  %v8682 = vmul.f32 %v8666, %v4201
  %v8683 = vmul.f32 %v8667, %v4202
  %v8684 = vmul.f32 %v8668, %v4203
  %v8685 = vmul.f32 %v8669, %v8669
  %v8686 = vmul.f32 %v8670, %v8670
  %v8687 = vmul.f32 %v8671, %v8671
  %v8688 = vmul.f32 %v8672, %v8672
  %v8689 = vmul.f32 %v8673, %v8673
  %v8690 = vmul.f32 %v8674, %v8674
  %v8691 = vmul.f32 %v8675, %v8675
  %v8692 = vmul.f32 %v8676, %v8676
  %v8693 = vmul.f32 %v8677, %v8677
  %v8694 = vmul.f32 %v8678, %v8678
  %v8695 = vmul.f32 %v8679, %v8679
  %v8696 = vmul.f32 %v8680, %v8680
  %v8697 = vmul.f32 %v8681, %v8681
  %v8698 = vmul.f32 %v8682, %v8682
  %v8699 = vmul.f32 %v8683, %v8683
  %v8700 = vmul.f32 %v8684, %v8684
  %v8701 = vsel %vm4236, %v8685, 0.0
  %v8702 = vsel %vm4236, %v8686, 0.0
  %v8703 = vadd.f32 %v8701, %v8702
  %v8704 = vsel %vm4236, %v8687, 0.0
  %v8705 = vadd.f32 %v8703, %v8704
  %v8706 = vsel %vm4236, %v8688, 0.0
  %v8707 = vadd.f32 %v8705, %v8706
  %v8708 = vsel %vm4236, %v8689, 0.0
  %v8709 = vadd.f32 %v8707, %v8708
  %v8710 = vsel %vm4236, %v8690, 0.0
  %v8711 = vadd.f32 %v8709, %v8710
  %v8712 = vsel %vm4236, %v8691, 0.0
  %v8713 = vadd.f32 %v8711, %v8712
  %v8714 = vsel %vm4236, %v8692, 0.0
  %v8715 = vadd.f32 %v8713, %v8714
  %v8716 = vsel %vm4236, %v8693, 0.0
  %v8717 = vadd.f32 %v8715, %v8716
  %v8718 = vsel %vm4236, %v8694, 0.0
  %v8719 = vadd.f32 %v8717, %v8718
  %v8720 = vsel %vm4236, %v8695, 0.0
  %v8721 = vadd.f32 %v8719, %v8720
  %v8722 = vsel %vm4236, %v8696, 0.0
  %v8723 = vadd.f32 %v8721, %v8722
  %v8724 = vsel %vm4236, %v8697, 0.0
  %v8725 = vadd.f32 %v8723, %v8724
  %v8726 = vsel %vm4236, %v8698, 0.0
  %v8727 = vadd.f32 %v8725, %v8726
  %v8728 = vsel %vm4236, %v8699, 0.0
  %v8729 = vadd.f32 %v8727, %v8728
  %v8730 = vsel %vm4236, %v8700, 0.0
  %v8731 = vadd.f32 %v8729, %v8730
  %8732 = vadd.xlane.f32.xlu0 %v8731
  %v8733 = vpop.xlane.xlu0 %8732
  %v8734 = vmul.f32 %v8733, 0.0009765625
  %v8735 = vadd.f32 %v8734, 1e-05
  %v8736 = vrsqrt.pop %v8735
  %v8737 = vmul.f32 %v8736, %v8735
  %v8738 = vmul.f32 %v8737, %v8736
  %v8739 = vmul.f32 0.5, %v8738
  %v8740 = vsub.f32 1.5, %v8739
  %v8741 = vmul.f32 %v8736, %v8740
  %vm8742 = vweird.f32 %v8735
  %vm8743 = vweird.f32 %v8736
  %vm8744 = vmor %vm8742, %vm8743
  %v8745 = vsel %vm8744, %v8736, %v8741
  %v8746 = vld [vmem:[%s5] sm:$0xf]
  %v8747 = vmul.f32 %v8745, %v8746
  %8749 = vset.pattern.permute.xlu0 0
  %8750 = vperm.xlu0 %8749, %v8747
  %v8751 = vpop.permute.xlu0 %8750
  %v8753 = vmul.f32 %v8669, %v8751
  %v8754 = vmul.f32 %v8670, %v8751
  %v8755 = vmul.f32 %v8671, %v8751
  %v8756 = vmul.f32 %v8672, %v8751
  %v8757 = vmul.f32 %v8673, %v8751
  %v8758 = vmul.f32 %v8674, %v8751
  %v8759 = vmul.f32 %v8675, %v8751
  %v8760 = vmul.f32 %v8676, %v8751
  %v8761 = vmul.f32 %v8677, %v8751
  %v8762 = vmul.f32 %v8678, %v8751
  %v8763 = vmul.f32 %v8679, %v8751
  %v8764 = vmul.f32 %v8680, %v8751
  %v8765 = vmul.f32 %v8681, %v8751
  %v8766 = vmul.f32 %v8682, %v8751
  %v8767 = vmul.f32 %v8683, %v8751
  %v8768 = vmul.f32 %v8684, %v8751
  %v8769 = vld [vmem:[%s6] sm:$0xf]
  %8771 = vset.pattern.permute.xlu0 0
  %8772 = vperm.xlu0 %8771, %v8769
  %v8773 = vpop.permute.xlu0 %8772
  %v8775 = vadd.f32 %v8753, %v8773
  %v8776 = vadd.f32 %v8754, %v8773
  %v8777 = vadd.f32 %v8755, %v8773
  %v8778 = vadd.f32 %v8756, %v8773
  %v8779 = vadd.f32 %v8757, %v8773
  %v8780 = vadd.f32 %v8758, %v8773
  %v8781 = vadd.f32 %v8759, %v8773
  %v8782 = vadd.f32 %v8760, %v8773
  %v8783 = vadd.f32 %v8761, %v8773
  %v8784 = vadd.f32 %v8762, %v8773
  %v8785 = vadd.f32 %v8763, %v8773
  %v8786 = vadd.f32 %v8764, %v8773
  %v8787 = vadd.f32 %v8765, %v8773
  %v8788 = vadd.f32 %v8766, %v8773
  %v8789 = vadd.f32 %v8767, %v8773
  %v8790 = vadd.f32 %v8768, %v8773
  %v8791 = vmax.f32 %v8775, 0.0
  %v8792 = vmax.f32 %v8776, 0.0
  %v8793 = vmax.f32 %v8777, 0.0
  %v8794 = vmax.f32 %v8778, 0.0
  %v8795 = vmax.f32 %v8779, 0.0
  %v8796 = vmax.f32 %v8780, 0.0
  %v8797 = vmax.f32 %v8781, 0.0
  %v8798 = vmax.f32 %v8782, 0.0
  %v8799 = vmax.f32 %v8783, 0.0
  %v8800 = vmax.f32 %v8784, 0.0
  %v8801 = vmax.f32 %v8785, 0.0
  %v8802 = vmax.f32 %v8786, 0.0
  %v8803 = vmax.f32 %v8787, 0.0
  %v8804 = vmax.f32 %v8788, 0.0
  %v8805 = vmax.f32 %v8789, 0.0
  %v8806 = vmax.f32 %v8790, 0.0
  %v8823 = vrot.slane %v8792, 4
  %v8824 = vrot.slane %v8794, 4
  %v8825 = vrot.slane %v8796, 4
  %v8826 = vrot.slane %v8798, 4
  %v8827 = vrot.slane %v8800, 4
  %v8828 = vrot.slane %v8802, 4
  %v8829 = vrot.slane %v8804, 4
  %v8830 = vrot.slane %v8806, 4
  %v8831 = vsel %vm4236, %v8791, %v8823
  %v8832 = vsel %vm4236, %v8793, %v8824
  %v8833 = vsel %vm4236, %v8795, %v8825
  %v8834 = vsel %vm4236, %v8797, %v8826
  %v8835 = vsel %vm4236, %v8799, %v8827
  %v8836 = vsel %vm4236, %v8801, %v8828
  %v8837 = vsel %vm4236, %v8803, %v8829
  %v8838 = vsel %vm4236, %v8805, %v8830
  %8847 = vst [vmem:[%s8] sm:$0xff] %v8831
  %8848 = vst [vmem:[%s8 + $0x8] sm:$0xff] %v8832
  %8849 = vst [vmem:[%s8 + $0x10] sm:$0xff] %v8833
  %8850 = vst [vmem:[%s8 + $0x18] sm:$0xff] %v8834
  %8851 = vst [vmem:[%s8 + $0x20] sm:$0xff] %v8835
  %8852 = vst [vmem:[%s8 + $0x28] sm:$0xff] %v8836
  %8853 = vst [vmem:[%s8 + $0x30] sm:$0xff] %v8837
  %8854 = vst [vmem:[%s8 + $0x38] sm:$0xff] %v8838
  // Predicated region
  $region34: #{up_forward.1} parent=0 // pred_check
    _
  $region35: #{up_forward.1} parent=0 // pred_check_branch
    %8856 = sbr.rel (0) target = $region37
  $region36: #{up_forward.1} parent=0 // pred_region
    _
  $region37: #{up_forward.1} parent=0 // pred_fallthru
    _
  // Predicated region
  $region38: #{up_forward.1} parent=0 // pred_check
    _
  $region39: #{up_forward.1} parent=0 // pred_check_branch
    %8858 = sbr.rel (0) target = $region41
  $region40: #{up_forward.1} parent=0 // pred_region
    _
  $region41: #{up_forward.1} parent=0 // pred_fallthru
    _

</llo_original>
